<compile_context>
chip_gen: v7x
topology: tpu7x:2x2x1
jax: 0.10.0
libtpu: 0.0.40
codegen_flags: <defaults>
</compile_context>

<pallas_src>
import functools

import jax
import jax.numpy as jnp
from jax.experimental import pallas as pl
from jax.experimental.pallas import tpu as pltpu

EPS = 1e-5
# bf16 MXU inputs with f32 accumulation (standard TPU practice; large win on v5e
# where the f32 matmul path would otherwise dominate).
MATMUL_INPUT_DTYPE = jnp.bfloat16


def _fused_kernel(x_ref, g1b1_ref, w_ref, g2b2_ref, o_ref, *, eps, inv_p):
    # ---- BN1 (batch stats, biased var, two-pass) + ReLU -------------------------
    # Recomputed per grid step so every step is self-contained (enables "parallel"
    # grid semantics / v7x megacore).  x is the same block every step, so it is
    # DMA'd from HBM only once and stays resident in VMEM.
    x = x_ref[...]                                            # (Cin, P) f32
    m1 = jnp.sum(x, axis=-1, keepdims=True) * inv_p           # E[x]
    xc = x - m1
    var1 = jnp.sum(xc * xc, axis=-1, keepdims=True) * inv_p   # biased var, stable
    g1 = g1b1_ref[:, 0:1]
    b1 = g1b1_ref[:, 1:2]
    s1 = g1 * jax.lax.rsqrt(var1 + eps)
    h = jnp.maximum(xc * s1 + b1, 0.0)                        # BN1 + ReLU
    h_bf = h.astype(MATMUL_INPUT_DTYPE)

    # ---- Conv 1x1 as matmul on the MXU (bf16 in, f32 accumulation) --------------
    y = jnp.dot(w_ref[...], h_bf, preferred_element_type=jnp.float32)  # (Ct, P)

    # ---- BN2 (batch stats, biased var, two-pass) per output channel -------------
    m2 = jnp.sum(y, axis=-1, keepdims=True) * inv_p
    y_c = y - m2
    var2 = jnp.sum(y_c * y_c, axis=-1, keepdims=True) * inv_p
    g2 = g2b2_ref[:, 0:1]
    b2 = g2b2_ref[:, 1:2]
    s2 = g2 * jax.lax.rsqrt(var2 + eps)
    o_ref[...] = y_c * s2 + b2


def prepare_conv_weight(w_oihw):
    """Convert the 1x1 conv weight to a persistent bf16 (Cout, Cin) matrix.

    Do this ONCE at parameter-load time; casting per call would just move the
    same HBM bytes around (anti-pattern).
    """
    cout, cin = w_oihw.shape[0], w_oihw.shape[1]
    return jnp.asarray(w_oihw.reshape(cout, cin), dtype=MATMUL_INPUT_DTYPE)


def bn_relu_conv1x1_bn(x_nchw, gamma1, beta1, w2d_bf16, gamma2, beta2,
                       *, cout_tile=512):
    """x_nchw: (1, Cin, H, W) f32; w2d_bf16: (Cout, Cin) bf16 (see prepare_conv_weight)."""
    N, Cin, H, W = x_nchw.shape
    Cout, Cin_w = w2d_bf16.shape
    assert Cin_w == Cin
    # TODO(synk): the transpose-free (Cin, P) flattening relies on N == 1 (as in the
    # module's input x166); N > 1 would need a transpose or a batch grid axis.
    assert N == 1
    assert Cout % cout_tile == 0
    P = N * H * W

    x2d = x_nchw.reshape(Cin, P)                       # free reshape (N == 1)
    g1b1 = jnp.stack([gamma1, beta1], axis=-1)         # (Cin, 2)
    g2b2 = jnp.stack([gamma2, beta2], axis=-1)         # (Cout, 2)

    kernel = functools.partial(_fused_kernel, eps=EPS, inv_p=1.0 / P)
    grid = (Cout // cout_tile,)

    out2d = pl.pallas_call(
        kernel,
        out_shape=jax.ShapeDtypeStruct((Cout, P), jnp.float32),
        grid=grid,
        in_specs=[
            pl.BlockSpec((Cin, P), lambda j: (0, 0)),           # x (VMEM-resident)
            pl.BlockSpec((Cin, 2), lambda j: (0, 0)),           # gamma1 | beta1
            pl.BlockSpec((cout_tile, Cin), lambda j: (j, 0)),   # W tile (bf16)
            pl.BlockSpec((cout_tile, 2), lambda j: (j, 0)),     # gamma2 | beta2 tile
        ],
        out_specs=pl.BlockSpec((cout_tile, P), lambda j: (j, 0)),
        compiler_params=pltpu.CompilerParams(
            # Every grid step is independent -> shard Cout tiles across TCs on v7x.
            dimension_semantics=("parallel",),
            # ~10 MiB working set; 32 MiB gives headroom on v5e (16 MiB scoped
            # default) while staying under v7x's 64 MiB physical VMEM.
            vmem_limit_bytes=32 * 1024 * 1024,
        ),
    )(x2d, g1b1, w2d_bf16, g2b2)

    return out2d.reshape(N, Cout, H, W)


def _reference(x_nchw, gamma1, beta1, w_oihw, gamma2, beta2):
    N, Cin, H, W = x_nchw.shape
    Cout = w_oihw.shape[0]
    x2d = jnp.transpose(x_nchw, (0, 2, 3, 1)).reshape(-1, Cin)
    m1 = jnp.mean(x2d, axis=0)
    v1 = jnp.mean((x2d - m1) ** 2, axis=0)
    h = (x2d - m1) / jnp.sqrt(v1 + EPS) * gamma1 + beta1
    h = jnp.maximum(h, 0.0)
    y = h @ jnp.transpose(w_oihw.reshape(Cout, Cin), (1, 0))
    m2 = jnp.mean(y, axis=0)
    v2 = jnp.mean((y - m2) ** 2, axis=0)
    o = (y - m2) / jnp.sqrt(v2 + EPS) * gamma2 + beta2
    return jnp.transpose(o.reshape(N, H, W, Cout), (0, 3, 1, 2))


if __name__ == "__main__":
    key = jax.random.PRNGKey(0)
    k_x, k_w, k_g1, k_b1, k_g2, k_b2 = jax.random.split(key, 6)

    N, Cin, H, W = 1, 256, 28, 28   # matches the module's input x166
    Cout = 1024

    x = jax.random.normal(k_x, (N, Cin, H, W), dtype=jnp.float32)
    w = jax.random.normal(k_w, (Cout, Cin, 1, 1), dtype=jnp.float32) * 0.05
    gamma1 = 1.0 + 0.1 * jax.random.normal(k_g1, (Cin,), dtype=jnp.float32)
    beta1 = 0.1 * jax.random.normal(k_b1, (Cin,), dtype=jnp.float32)
    gamma2 = 1.0 + 0.1 * jax.random.normal(k_g2, (Cout,), dtype=jnp.float32)
    beta2 = 0.1 * jax.random.normal(k_b2, (Cout,), dtype=jnp.float32)

    # One-time weight preparation (persistent bf16 conv weight, outside the hot path).
    w2d_bf16 = jax.block_until_ready(prepare_conv_weight(w))

    fn = jax.jit(bn_relu_conv1x1_bn)
    out = jax.block_until_ready(fn(x, gamma1, beta1, w2d_bf16, gamma2, beta2))

    ref = _reference(x, gamma1, beta1, w, gamma2, beta2)
    assert out.shape == (N, Cout, H, W), out.shape
    # Tolerance reflects bf16 MXU inputs with f32 accumulation vs. a pure-f32
    # reference (expected max abs error ~1e-2 on the unit-scale BN2 output).
    assert jnp.allclose(out, ref, atol=3e-2, rtol=1e-2), "mismatch vs reference"

    print("KERNEL_OK")
</pallas_src>

<mosaic_0001>
module attributes {stable_mosaic.version = 11 : i64} {
  func.func @_fused_kernel(%arg0: i32, %arg1: memref<256x784xf32, #tpu.memory_space<vmem>>, %arg2: memref<256x2xf32, #tpu.memory_space<vmem>>, %arg3: memref<512x256xbf16, #tpu.memory_space<vmem>>, %arg4: memref<512x2xf32, #tpu.memory_space<vmem>>, %arg5: memref<512x784xf32, #tpu.memory_space<vmem>>) attributes {dimension_semantics = [#tpu.dimension_semantics<parallel>], iteration_bounds = array<i64: 2>, scalar_prefetch = 0 : i64, scratch_operands = 0 : i64, tpu.core_type = #tpu.core_type<tc>, window_params = [{pipeline_mode = #tpu.pipeline_mode<synchronous>, transform_indices = @transform_0, window_bounds = array<i64: 256, 784>}, {pipeline_mode = #tpu.pipeline_mode<synchronous>, transform_indices = @transform_1, window_bounds = array<i64: 256, 2>}, {transform_indices = @transform_2, window_bounds = array<i64: 512, 256>}, {transform_indices = @transform_3, window_bounds = array<i64: 512, 2>}, {transform_indices = @transform_4, window_bounds = array<i64: 512, 784>}]} {
    %c0 = arith.constant 0 : index
    %c0_0 = arith.constant 0 : index
    %0 = vector.load %arg1[%c0, %c0_0] : memref<256x784xf32, #tpu.memory_space<vmem>>, vector<256x784xf32>
    %cst = arith.constant dense<0.000000e+00> : vector<256xf32>
    %1 = vector.multi_reduction <add>, %0, %cst [1] : vector<256x784xf32> to vector<256xf32>
    %2 = vector.shape_cast %1 : vector<256xf32> to vector<256x1xf32>
    %cst_1 = arith.constant 0.00127551018 : f32
    %3 = vector.broadcast %cst_1 : f32 to vector<256x1xf32>
    %4 = arith.mulf %2, %3 : vector<256x1xf32>
    %5 = vector.broadcast %4 : vector<256x1xf32> to vector<256x784xf32>
    %6 = arith.subf %0, %5 : vector<256x784xf32>
    %7 = arith.mulf %6, %6 : vector<256x784xf32>
    %cst_2 = arith.constant dense<0.000000e+00> : vector<256xf32>
    %8 = vector.multi_reduction <add>, %7, %cst_2 [1] : vector<256x784xf32> to vector<256xf32>
    %9 = vector.shape_cast %8 : vector<256xf32> to vector<256x1xf32>
    %cst_3 = arith.constant 0.00127551018 : f32
    %10 = vector.broadcast %cst_3 : f32 to vector<256x1xf32>
    %11 = arith.mulf %9, %10 : vector<256x1xf32>
    %c0_4 = arith.constant 0 : index
    %c0_5 = arith.constant 0 : index
    %12 = vector.load %arg2[%c0_4, %c0_5] : memref<256x2xf32, #tpu.memory_space<vmem>>, vector<256x1xf32>
    %c0_6 = arith.constant 0 : index
    %c1 = arith.constant 1 : index
    %13 = vector.load %arg2[%c0_6, %c1] : memref<256x2xf32, #tpu.memory_space<vmem>>, vector<256x1xf32>
    %cst_7 = arith.constant 9.99999974E-6 : f32
    %14 = vector.broadcast %cst_7 : f32 to vector<256x1xf32>
    %15 = arith.addf %11, %14 : vector<256x1xf32>
    %16 = math.rsqrt %15 : vector<256x1xf32>
    %17 = arith.mulf %12, %16 : vector<256x1xf32>
    %18 = vector.broadcast %17 : vector<256x1xf32> to vector<256x784xf32>
    %19 = arith.mulf %6, %18 : vector<256x784xf32>
    %20 = vector.broadcast %13 : vector<256x1xf32> to vector<256x784xf32>
    %21 = arith.addf %19, %20 : vector<256x784xf32>
    %cst_8 = arith.constant 0.000000e+00 : f32
    %22 = vector.broadcast %cst_8 : f32 to vector<256x784xf32>
    %23 = arith.maximumf %21, %22 : vector<256x784xf32>
    %24 = arith.truncf %23 : vector<256x784xf32> to vector<256x784xbf16>
    %c0_9 = arith.constant 0 : index
    %c0_10 = arith.constant 0 : index
    %25 = vector.load %arg3[%c0_9, %c0_10] : memref<512x256xbf16, #tpu.memory_space<vmem>>, vector<512x256xbf16>
    %cst_11 = arith.constant dense<0.000000e+00> : vector<512x784xf32>
    %26 = tpu.matmul %25, %24, %cst_11 {dimension_numbers = #tpu.dot_dimension_numbers<[1], [0], [0], [1], [0, 0, 1, 1], [], []>} : vector<512x256xbf16>, vector<256x784xbf16>, vector<512x784xf32> -> vector<512x784xf32>
    %cst_12 = arith.constant dense<0.000000e+00> : vector<512xf32>
    %27 = vector.multi_reduction <add>, %26, %cst_12 [1] : vector<512x784xf32> to vector<512xf32>
    %28 = vector.shape_cast %27 : vector<512xf32> to vector<512x1xf32>
    %cst_13 = arith.constant 0.00127551018 : f32
    %29 = vector.broadcast %cst_13 : f32 to vector<512x1xf32>
    %30 = arith.mulf %28, %29 : vector<512x1xf32>
    %31 = vector.broadcast %30 : vector<512x1xf32> to vector<512x784xf32>
    %32 = arith.subf %26, %31 : vector<512x784xf32>
    %33 = arith.mulf %32, %32 : vector<512x784xf32>
    %cst_14 = arith.constant dense<0.000000e+00> : vector<512xf32>
    %34 = vector.multi_reduction <add>, %33, %cst_14 [1] : vector<512x784xf32> to vector<512xf32>
    %35 = vector.shape_cast %34 : vector<512xf32> to vector<512x1xf32>
    %cst_15 = arith.constant 0.00127551018 : f32
    %36 = vector.broadcast %cst_15 : f32 to vector<512x1xf32>
    %37 = arith.mulf %35, %36 : vector<512x1xf32>
    %c0_16 = arith.constant 0 : index
    %c0_17 = arith.constant 0 : index
    %38 = vector.load %arg4[%c0_16, %c0_17] : memref<512x2xf32, #tpu.memory_space<vmem>>, vector<512x1xf32>
    %c0_18 = arith.constant 0 : index
    %c1_19 = arith.constant 1 : index
    %39 = vector.load %arg4[%c0_18, %c1_19] : memref<512x2xf32, #tpu.memory_space<vmem>>, vector<512x1xf32>
    %cst_20 = arith.constant 9.99999974E-6 : f32
    %40 = vector.broadcast %cst_20 : f32 to vector<512x1xf32>
    %41 = arith.addf %37, %40 : vector<512x1xf32>
    %42 = math.rsqrt %41 : vector<512x1xf32>
    %43 = arith.mulf %38, %42 : vector<512x1xf32>
    %44 = vector.broadcast %43 : vector<512x1xf32> to vector<512x784xf32>
    %45 = arith.mulf %32, %44 : vector<512x784xf32>
    %46 = vector.broadcast %39 : vector<512x1xf32> to vector<512x784xf32>
    %47 = arith.addf %45, %46 : vector<512x784xf32>
    %c0_21 = arith.constant 0 : index
    %c0_22 = arith.constant 0 : index
    %48 = vector.load %arg5[%c0_21, %c0_22] : memref<512x784xf32, #tpu.memory_space<vmem>>, vector<512x784xf32>
    tpu.vector_store %arg5[%c0_21, %c0_22], %47 {strides = array<i32>} : memref<512x784xf32, #tpu.memory_space<vmem>>, vector<512x784xf32>,
    return
  }
  func.func @transform_0(%arg0: i32) -> (i32, i32) {
    %c0_i32 = arith.constant 0 : i32
    %c0_i32_0 = arith.constant 0 : i32
    %c0_i32_1 = arith.constant 0 : i32
    return %c0_i32, %c0_i32_0 : i32, i32
  }
  func.func @transform_1(%arg0: i32) -> (i32, i32) {
    %c0_i32 = arith.constant 0 : i32
    %c0_i32_0 = arith.constant 0 : i32
    %c0_i32_1 = arith.constant 0 : i32
    return %c0_i32, %c0_i32_0 : i32, i32
  }
  func.func @transform_2(%arg0: i32) -> (i32, i32) {
    %c0_i32 = arith.constant 0 : i32
    %c0_i32_0 = arith.constant 0 : i32
    return %arg0, %c0_i32 : i32, i32
  }
  func.func @transform_3(%arg0: i32) -> (i32, i32) {
    %c0_i32 = arith.constant 0 : i32
    %c0_i32_0 = arith.constant 0 : i32
    return %arg0, %c0_i32 : i32, i32
  }
  func.func @transform_4(%arg0: i32) -> (i32, i32) {
    %c0_i32 = arith.constant 0 : i32
    %c0_i32_0 = arith.constant 0 : i32
    return %arg0, %c0_i32 : i32, i32
  }
}

</mosaic_0001>

<llo_original>
// kernel: bn_relu_conv1x1_bn.1
$region0: #{bn_relu_conv1x1_bn.1}
  #allocation0 [shape = 'u32[]', space=smem, size = 0x4, offset = 0x4, fixed_abs, tag = 'smem constant byte address 0x4 - core index']
  #allocation1 [shape = 'u32[144,128]{1,0:T(1,128)}', space=vmem, size = 0x12000, scoped, tag = 'internal scratch']
  %s0 = inlined_call_operand.vmem [shape: f32[256,784], index: 0, kind: input, shape index: {}]
  %s1 = inlined_call_operand.vmem [shape: f32[256,2], index: 1, kind: input, shape index: {}]
  %s2 = inlined_call_operand.vmem [shape: bf16[1024,256], index: 2, kind: input, shape index: {}]
  %s3 = inlined_call_operand.vmem [shape: f32[1024,2], index: 3, kind: input, shape index: {}]
  %s4 = inlined_call_operand.vmem [shape: f32[1024,784], index: 4, kind: output, shape index: {}]
  %s5 = sld [smem:[#allocation0]]
  $region49: #{bn_relu_conv1x1_bn.1} parent=0
    _
  %s7 = ssub.s32 1, %s5
  %s8 = scalar_select 0, %s7, %s5
  loop: start=0, step=1, limit=4
  $region2: #{bn_relu_conv1x1_bn.1} parent=0 // loop_pre_header
    _
  $region3: #{bn_relu_conv1x1_bn.1} parent=0 // loop_header
    %s10 = sphi 0, %s14
    %p11 = scmp.ge.s32.totalorder %s10, 4
    %s18 = sphi 0, %s18
    %s20 = sphi 0, %s18
    %s21 = sphi 0, %s20
    %s35 = sphi 0, %s21
    %s39 = sphi 0, %s39
    %s41 = sphi 0, %s39
    %s42 = sphi 0, %s41
    %s56 = sphi 0, %s42
    %s62 = sphi 0, %s64
    %s65 = sphi 0, %s62
    %s66 = sphi 0, %s65
    %s82 = sphi 0, %s66
    %s88 = sphi 0, %s90
    %s91 = sphi 0, %s88
    %s92 = sphi 0, %s91
    %s108 = sphi 0, %s92
    %s114 = sphi 0, %s116
    %s117 = sphi 0, %s114
    %s118 = sphi 0, %s117
    %s134 = sphi 0, %s118
  $region4: #{bn_relu_conv1x1_bn.1} parent=0 // loop_header_branch
    %13 = sbr.rel (%p11) target = $region8
  $region5: #{bn_relu_conv1x1_bn.1} parent=0 // loop_body
    %s15 = ssub.s32 %s10, 1
    %s16 = ssub.s32 %s10, 2
    %s17 = sadd.s32 %s10, 1
    %s19 = sadd.s32 %s18, 1
    %p22 = scmp.eq.s32.totalorder %s10, 1
    %p23 = scmp.ne.s32.totalorder %s18, %s20
    %p24 = scmp.eq.s32.totalorder %s10, 0
    %p25 = por %p23, %p24
    %p26 = scmp.ne.s32.totalorder %s18, %s20
    %p27 = scmp.eq.s32.totalorder %s15, 1
    %p28 = por %p26, %p27
    %p29 = scmp.ne.s32.totalorder %s20, %s21
    %p30 = scmp.eq.s32.totalorder %s15, 0
    %p31 = por %p29, %p30
    %p32 = scmp.ne.s32.totalorder %s20, %s21
    %p33 = scmp.eq.s32.totalorder %s16, 1
    %p34 = por %p32, %p33
    %p36 = scmp.ne.s32.totalorder %s21, %s35
    %p37 = scmp.eq.s32.totalorder %s16, 0
    %p38 = por %p36, %p37
    %s40 = sadd.s32 %s39, 1
    %p43 = scmp.eq.s32.totalorder %s10, 1
    %p44 = scmp.ne.s32.totalorder %s39, %s41
    %p45 = scmp.eq.s32.totalorder %s10, 0
    %p46 = por %p44, %p45
    %p47 = scmp.ne.s32.totalorder %s39, %s41
    %p48 = scmp.eq.s32.totalorder %s15, 1
    %p49 = por %p47, %p48
    %p50 = scmp.ne.s32.totalorder %s41, %s42
    %p51 = scmp.eq.s32.totalorder %s15, 0
    %p52 = por %p50, %p51
    %p53 = scmp.ne.s32.totalorder %s41, %s42
    %p54 = scmp.eq.s32.totalorder %s16, 1
    %p55 = por %p53, %p54
    %p57 = scmp.ne.s32.totalorder %s42, %s56
    %p58 = scmp.eq.s32.totalorder %s16, 0
    %p59 = por %p57, %p58
    %s60 = ssub.s32 %s10, %s17
    %p61 = scmp.eq.s32.totalorder %s60, 0
    %s63 = sadd.s32 %s62, 1
    %s64 = scalar_select %p61, %s62, %s63
    %p67 = pneg %p61
    %p68 = scmp.eq.s32.totalorder %s10, 1
    %p69 = por %p67, %p68
    %p70 = scmp.ne.s32.totalorder %s62, %s65
    %p71 = scmp.eq.s32.totalorder %s10, 0
    %p72 = por %p70, %p71
    %p73 = scmp.ne.s32.totalorder %s62, %s65
    %p74 = scmp.eq.s32.totalorder %s15, 1
    %p75 = por %p73, %p74
    %p76 = scmp.ne.s32.totalorder %s65, %s66
    %p77 = scmp.eq.s32.totalorder %s15, 0
    %p78 = por %p76, %p77
    %p79 = scmp.ne.s32.totalorder %s65, %s66
    %p80 = scmp.eq.s32.totalorder %s16, 1
    %p81 = por %p79, %p80
    %p83 = scmp.ne.s32.totalorder %s66, %s82
    %p84 = scmp.eq.s32.totalorder %s16, 0
    %p85 = por %p83, %p84
    %s86 = ssub.s32 %s10, %s17
    %p87 = scmp.eq.s32.totalorder %s86, 0
    %s89 = sadd.s32 %s88, 1
    %s90 = scalar_select %p87, %s88, %s89
    %p93 = pneg %p87
    %p94 = scmp.eq.s32.totalorder %s10, 1
    %p95 = por %p93, %p94
    %p96 = scmp.ne.s32.totalorder %s88, %s91
    %p97 = scmp.eq.s32.totalorder %s10, 0
    %p98 = por %p96, %p97
    %p99 = scmp.ne.s32.totalorder %s88, %s91
    %p100 = scmp.eq.s32.totalorder %s15, 1
    %p101 = por %p99, %p100
    %p102 = scmp.ne.s32.totalorder %s91, %s92
    %p103 = scmp.eq.s32.totalorder %s15, 0
    %p104 = por %p102, %p103
    %p105 = scmp.ne.s32.totalorder %s91, %s92
    %p106 = scmp.eq.s32.totalorder %s16, 1
    %p107 = por %p105, %p106
    %p109 = scmp.ne.s32.totalorder %s92, %s108
    %p110 = scmp.eq.s32.totalorder %s16, 0
    %p111 = por %p109, %p110
    %s112 = ssub.s32 %s10, %s17
    %p113 = scmp.eq.s32.totalorder %s112, 0
    %s115 = sadd.s32 %s114, 1
    %s116 = scalar_select %p113, %s114, %s115
    %p119 = pneg %p113
    %p120 = scmp.eq.s32.totalorder %s10, 1
    %p121 = por %p119, %p120
    %p122 = scmp.ne.s32.totalorder %s114, %s117
    %p123 = scmp.eq.s32.totalorder %s10, 0
    %p124 = por %p122, %p123
    %p125 = scmp.ne.s32.totalorder %s114, %s117
    %p126 = scmp.eq.s32.totalorder %s15, 1
    %p127 = por %p125, %p126
    %p128 = scmp.ne.s32.totalorder %s117, %s118
    %p129 = scmp.eq.s32.totalorder %s15, 0
    %p130 = por %p128, %p129
    %p131 = scmp.ne.s32.totalorder %s117, %s118
    %p132 = scmp.eq.s32.totalorder %s16, 1
    %p133 = por %p131, %p132
    %p135 = scmp.ne.s32.totalorder %s118, %s134
    %p136 = scmp.eq.s32.totalorder %s16, 0
    %p137 = por %p135, %p136
    %p138 = scmp.le.s32.totalorder 1, %s10
    %p139 = scmp.lt.s32.totalorder %s10, 3
    %p140 = pnand %p138, %p139
    %p141 = pneg %p140
    // Predicated region
    $region9: #{bn_relu_conv1x1_bn.1} parent=5 // pred_check
      _
    $region10: #{bn_relu_conv1x1_bn.1} parent=5 // pred_check_branch
      %143 = sbr.rel (%p140) target = $region12
    $region11: #{bn_relu_conv1x1_bn.1} parent=5 // pred_region
      %s144 = ssub.s32 %s10, 1
      // Predicated region
      $region13: #{bn_relu_conv1x1_bn.1} parent=11 // pred_check
        %p145 = pneg %p31
      $region14: #{bn_relu_conv1x1_bn.1} parent=11 // pred_check_branch
        %147 = sbr.rel (%p145) target = $region16
      $region15: #{bn_relu_conv1x1_bn.1} parent=11 // pred_region
        _
      $region16: #{bn_relu_conv1x1_bn.1} parent=11 // pred_fallthru
        _
      // Predicated region
      $region17: #{bn_relu_conv1x1_bn.1} parent=11 // pred_check
        %p148 = pneg %p52
      $region18: #{bn_relu_conv1x1_bn.1} parent=11 // pred_check_branch
        %150 = sbr.rel (%p148) target = $region20
      $region19: #{bn_relu_conv1x1_bn.1} parent=11 // pred_region
        _
      $region20: #{bn_relu_conv1x1_bn.1} parent=11 // pred_fallthru
        _
    $region12: #{bn_relu_conv1x1_bn.1} parent=5 // pred_fallthru
      _
    %p151 = scmp.lt.s32.totalorder %s10, 2
    // Predicated region
    $region21: #{bn_relu_conv1x1_bn.1} parent=5 // pred_check
      %p152 = pneg %p151
    $region22: #{bn_relu_conv1x1_bn.1} parent=5 // pred_check_branch
      %154 = sbr.rel (%p152) target = $region24
    $region23: #{bn_relu_conv1x1_bn.1} parent=5 // pred_region
      // Predicated region
      $region25: #{bn_relu_conv1x1_bn.1} parent=23 // pred_check
        %p155 = pneg %p72
      $region26: #{bn_relu_conv1x1_bn.1} parent=23 // pred_check_branch
        %157 = sbr.rel (%p155) target = $region28
      $region27: #{bn_relu_conv1x1_bn.1} parent=23 // pred_region
        %s158 = smul.u32 64, %s10
        %p159 = scmp.lt.s32.totalorder %s158, 127
        %s160 = scalar_select %p159, %s158, 127
        %s161 = smul.addr %s160, 2
        %s162 = smul.addr %s161, 4
        %s163 = scalar_lea.vmem %s2, %s162
        %s164 = smul.u32 64, %s10
      $region28: #{bn_relu_conv1x1_bn.1} parent=23 // pred_fallthru
        _
      // Predicated region
      $region29: #{bn_relu_conv1x1_bn.1} parent=23 // pred_check
        %p165 = pneg %p98
      $region30: #{bn_relu_conv1x1_bn.1} parent=23 // pred_check_branch
        %167 = sbr.rel (%p165) target = $region32
      $region31: #{bn_relu_conv1x1_bn.1} parent=23 // pred_region
        %s168 = smul.u32 64, %s10
        %p169 = scmp.lt.s32.totalorder %s168, 127
        %s170 = scalar_select %p169, %s168, 127
        %s171 = smul.addr %s170, 8
        %s172 = scalar_lea.vmem %s3, %s171
        %s173 = smul.u32 64, %s10
      $region32: #{bn_relu_conv1x1_bn.1} parent=23 // pred_fallthru
        _
    $region24: #{bn_relu_conv1x1_bn.1} parent=5 // pred_fallthru
      _
    %p174 = scmp.le.s32.totalorder 1, %s10
    %p175 = scmp.lt.s32.totalorder %s10, 3
    %p176 = pnand %p174, %p175
    %p177 = pneg %p176
    // Predicated region
    $region33: #{bn_relu_conv1x1_bn.1} parent=5 // pred_check
      _
    $region34: #{bn_relu_conv1x1_bn.1} parent=5 // pred_check_branch
      %179 = sbr.rel (%p176) target = $region36
    $region35: #{bn_relu_conv1x1_bn.1} parent=5 // pred_region
      %s180 = ssub.s32 %s10, 1
      %p181 = pneg %p31
      %p182 = pneg %p28
      %p183 = pneg %p52
      %p184 = pneg %p49
      %s185 = smul.u32 64, %s15
      %p186 = scmp.lt.s32.totalorder %s185, 127
      %s187 = scalar_select %p186, %s185, 127
      %s188 = smul.addr %s187, 2
      %s189 = smul.addr %s188, 4
      %s190 = scalar_lea.vmem %s2, %s189
      %p191 = pneg %p78
      %p192 = pneg %p75
      %s193 = smul.u32 64, %s15
      %p194 = scmp.lt.s32.totalorder %s193, 127
      %s195 = scalar_select %p194, %s193, 127
      %s196 = smul.addr %s195, 8
      %s197 = scalar_lea.vmem %s3, %s196
      %p198 = pneg %p104
      %p199 = pneg %p101
      %p200 = pneg %p130
      %p201 = pneg %p127
      %s202 = smul.u32 64, %s15
      %p203 = scmp.lt.s32.totalorder %s202, 127
      %s204 = scalar_select %p203, %s202, 127
      %s205 = smul.addr %s204, 7
      %s206 = smul.addr %s205, 8
      %s207 = scalar_lea.vmem %s4, %s206
      %s208 = smul.u32 64, %s15
      %p209 = scmp.lt.s32.totalorder %s208, 127
      %s210 = scalar_select %p209, %s208, 127
      %s211 = smul.addr %s210, 2
      %s212 = smul.addr %s211, 4
      %s213 = scalar_lea.vmem %s2, %s212
      %s214 = smul.u32 64, %s15
      %s215 = smul.u32 64, %s15
      %p216 = scmp.lt.s32.totalorder %s215, 127
      %s217 = scalar_select %p216, %s215, 127
      %s218 = smul.addr %s217, 8
      %s219 = scalar_lea.vmem %s3, %s218
      %s220 = smul.u32 64, %s15
      %s221 = smul.u32 64, %s15
      %p222 = scmp.lt.s32.totalorder %s221, 127
      %s223 = scalar_select %p222, %s221, 127
      %s224 = smul.addr %s223, 7
      %s225 = smul.addr %s224, 8
      %s226 = scalar_lea.vmem %s4, %s225
      %s227 = smul.u32 64, %s15
      %v229 = vld [vmem:[%s0] sm:$0xff]
      %v230 = vld [vmem:[%s0 + $0x8] sm:$0xff]
      %v231 = vld [vmem:[%s0 + $0x10] sm:$0xff]
      %v232 = vld [vmem:[%s0 + $0x18] sm:$0xff]
      %v233 = vld [vmem:[%s0 + $0x20] sm:$0xff]
      %v234 = vld [vmem:[%s0 + $0x28] sm:$0xff]
      %v235 = vld [vmem:[%s0 + $0x30] sm:$0xff]
      %v236 = vld [vmem:[%s0 + $0x38] sm:$0xff]
      %v237 = vld [vmem:[%s0 + $0x40] sm:$0xff]
      %v238 = vld [vmem:[%s0 + $0x48] sm:$0xff]
      %v239 = vld [vmem:[%s0 + $0x50] sm:$0xff]
      %v240 = vld [vmem:[%s0 + $0x58] sm:$0xff]
      %v241 = vld [vmem:[%s0 + $0x60] sm:$0xff]
      %v242 = vld [vmem:[%s0 + $0x68] sm:$0xff]
      %v243 = vld [vmem:[%s0 + $0x70] sm:$0xff]
      %v244 = vld [vmem:[%s0 + $0x78] sm:$0xff]
      %v245 = vld [vmem:[%s0 + $0x80] sm:$0xff]
      %v246 = vld [vmem:[%s0 + $0x88] sm:$0xff]
      %v247 = vld [vmem:[%s0 + $0x90] sm:$0xff]
      %v248 = vld [vmem:[%s0 + $0x98] sm:$0xff]
      %v249 = vld [vmem:[%s0 + $0xa0] sm:$0xff]
      %v250 = vld [vmem:[%s0 + $0xa8] sm:$0xff]
      %v251 = vld [vmem:[%s0 + $0xb0] sm:$0xff]
      %v252 = vld [vmem:[%s0 + $0xb8] sm:$0xff]
      %v253 = vld [vmem:[%s0 + $0xc0] sm:$0xff]
      %v254 = vld [vmem:[%s0 + $0xc8] sm:$0xff]
      %v255 = vld [vmem:[%s0 + $0xd0] sm:$0xff]
      %v256 = vld [vmem:[%s0 + $0xd8] sm:$0xff]
      %v257 = vld [vmem:[%s0 + $0xe0] sm:$0xff]
      %v258 = vld [vmem:[%s0 + $0xe8] sm:$0xff]
      %v259 = vld [vmem:[%s0 + $0xf0] sm:$0xff]
      %v260 = vld [vmem:[%s0 + $0xf8] sm:$0xff]
      %v261 = vld [vmem:[%s0 + $0x100] sm:$0xff]
      %v262 = vld [vmem:[%s0 + $0x108] sm:$0xff]
      %v263 = vld [vmem:[%s0 + $0x110] sm:$0xff]
      %v264 = vld [vmem:[%s0 + $0x118] sm:$0xff]
      %v265 = vld [vmem:[%s0 + $0x120] sm:$0xff]
      %v266 = vld [vmem:[%s0 + $0x128] sm:$0xff]
      %v267 = vld [vmem:[%s0 + $0x130] sm:$0xff]
      %v268 = vld [vmem:[%s0 + $0x138] sm:$0xff]
      %v269 = vld [vmem:[%s0 + $0x140] sm:$0xff]
      %v270 = vld [vmem:[%s0 + $0x148] sm:$0xff]
      %v271 = vld [vmem:[%s0 + $0x150] sm:$0xff]
      %v272 = vld [vmem:[%s0 + $0x158] sm:$0xff]
      %v273 = vld [vmem:[%s0 + $0x160] sm:$0xff]
      %v274 = vld [vmem:[%s0 + $0x168] sm:$0xff]
      %v275 = vld [vmem:[%s0 + $0x170] sm:$0xff]
      %v276 = vld [vmem:[%s0 + $0x178] sm:$0xff]
      %v277 = vld [vmem:[%s0 + $0x180] sm:$0xff]
      %v278 = vld [vmem:[%s0 + $0x188] sm:$0xff]
      %v279 = vld [vmem:[%s0 + $0x190] sm:$0xff]
      %v280 = vld [vmem:[%s0 + $0x198] sm:$0xff]
      %v281 = vld [vmem:[%s0 + $0x1a0] sm:$0xff]
      %v282 = vld [vmem:[%s0 + $0x1a8] sm:$0xff]
      %v283 = vld [vmem:[%s0 + $0x1b0] sm:$0xff]
      %v284 = vld [vmem:[%s0 + $0x1b8] sm:$0xff]
      %v285 = vld [vmem:[%s0 + $0x1c0] sm:$0xff]
      %v286 = vld [vmem:[%s0 + $0x1c8] sm:$0xff]
      %v287 = vld [vmem:[%s0 + $0x1d0] sm:$0xff]
      %v288 = vld [vmem:[%s0 + $0x1d8] sm:$0xff]
      %v289 = vld [vmem:[%s0 + $0x1e0] sm:$0xff]
      %v290 = vld [vmem:[%s0 + $0x1e8] sm:$0xff]
      %v291 = vld [vmem:[%s0 + $0x1f0] sm:$0xff]
      %v292 = vld [vmem:[%s0 + $0x1f8] sm:$0xff]
      %v293 = vld [vmem:[%s0 + $0x200] sm:$0xff]
      %v294 = vld [vmem:[%s0 + $0x208] sm:$0xff]
      %v295 = vld [vmem:[%s0 + $0x210] sm:$0xff]
      %v296 = vld [vmem:[%s0 + $0x218] sm:$0xff]
      %v297 = vld [vmem:[%s0 + $0x220] sm:$0xff]
      %v298 = vld [vmem:[%s0 + $0x228] sm:$0xff]
      %v299 = vld [vmem:[%s0 + $0x230] sm:$0xff]
      %v300 = vld [vmem:[%s0 + $0x238] sm:$0xff]
      %v301 = vld [vmem:[%s0 + $0x240] sm:$0xff]
      %v302 = vld [vmem:[%s0 + $0x248] sm:$0xff]
      %v303 = vld [vmem:[%s0 + $0x250] sm:$0xff]
      %v304 = vld [vmem:[%s0 + $0x258] sm:$0xff]
      %v305 = vld [vmem:[%s0 + $0x260] sm:$0xff]
      %v306 = vld [vmem:[%s0 + $0x268] sm:$0xff]
      %v307 = vld [vmem:[%s0 + $0x270] sm:$0xff]
      %v308 = vld [vmem:[%s0 + $0x278] sm:$0xff]
      %v309 = vld [vmem:[%s0 + $0x280] sm:$0xff]
      %v310 = vld [vmem:[%s0 + $0x288] sm:$0xff]
      %v311 = vld [vmem:[%s0 + $0x290] sm:$0xff]
      %v312 = vld [vmem:[%s0 + $0x298] sm:$0xff]
      %v313 = vld [vmem:[%s0 + $0x2a0] sm:$0xff]
      %v314 = vld [vmem:[%s0 + $0x2a8] sm:$0xff]
      %v315 = vld [vmem:[%s0 + $0x2b0] sm:$0xff]
      %v316 = vld [vmem:[%s0 + $0x2b8] sm:$0xff]
      %v317 = vld [vmem:[%s0 + $0x2c0] sm:$0xff]
      %v318 = vld [vmem:[%s0 + $0x2c8] sm:$0xff]
      %v319 = vld [vmem:[%s0 + $0x2d0] sm:$0xff]
      %v320 = vld [vmem:[%s0 + $0x2d8] sm:$0xff]
      %v321 = vld [vmem:[%s0 + $0x2e0] sm:$0xff]
      %v322 = vld [vmem:[%s0 + $0x2e8] sm:$0xff]
      %v323 = vld [vmem:[%s0 + $0x2f0] sm:$0xff]
      %v324 = vld [vmem:[%s0 + $0x2f8] sm:$0xff]
      %v325 = vld [vmem:[%s0 + $0x300] sm:$0xff]
      %v326 = vld [vmem:[%s0 + $0x308] sm:$0xff]
      %v327 = vld [vmem:[%s0 + $0x310] sm:$0xff]
      %v328 = vld [vmem:[%s0 + $0x318] sm:$0xff]
      %v329 = vld [vmem:[%s0 + $0x320] sm:$0xff]
      %v330 = vld [vmem:[%s0 + $0x328] sm:$0xff]
      %v331 = vld [vmem:[%s0 + $0x330] sm:$0xff]
      %v332 = vld [vmem:[%s0 + $0x338] sm:$0xff]
      %v333 = vld [vmem:[%s0 + $0x340] sm:$0xff]
      %v334 = vld [vmem:[%s0 + $0x348] sm:$0xff]
      %v335 = vld [vmem:[%s0 + $0x350] sm:$0xff]
      %v336 = vld [vmem:[%s0 + $0x358] sm:$0xff]
      %v337 = vld [vmem:[%s0 + $0x360] sm:$0xff]
      %v338 = vld [vmem:[%s0 + $0x368] sm:$0xff]
      %v339 = vld [vmem:[%s0 + $0x370] sm:$0xff]
      %v340 = vld [vmem:[%s0 + $0x378] sm:$0xff]
      %v341 = vld [vmem:[%s0 + $0x380] sm:$0xff]
      %v342 = vld [vmem:[%s0 + $0x388] sm:$0xff]
      %v343 = vld [vmem:[%s0 + $0x390] sm:$0xff]
      %v344 = vld [vmem:[%s0 + $0x398] sm:$0xff]
      %v345 = vld [vmem:[%s0 + $0x3a0] sm:$0xff]
      %v346 = vld [vmem:[%s0 + $0x3a8] sm:$0xff]
      %v347 = vld [vmem:[%s0 + $0x3b0] sm:$0xff]
      %v348 = vld [vmem:[%s0 + $0x3b8] sm:$0xff]
      %v349 = vld [vmem:[%s0 + $0x3c0] sm:$0xff]
      %v350 = vld [vmem:[%s0 + $0x3c8] sm:$0xff]
      %v351 = vld [vmem:[%s0 + $0x3d0] sm:$0xff]
      %v352 = vld [vmem:[%s0 + $0x3d8] sm:$0xff]
      %v353 = vld [vmem:[%s0 + $0x3e0] sm:$0xff]
      %v354 = vld [vmem:[%s0 + $0x3e8] sm:$0xff]
      %v355 = vld [vmem:[%s0 + $0x3f0] sm:$0xff]
      %v356 = vld [vmem:[%s0 + $0x3f8] sm:$0xff]
      %v357 = vld [vmem:[%s0 + $0x400] sm:$0xff]
      %v358 = vld [vmem:[%s0 + $0x408] sm:$0xff]
      %v359 = vld [vmem:[%s0 + $0x410] sm:$0xff]
      %v360 = vld [vmem:[%s0 + $0x418] sm:$0xff]
      %v361 = vld [vmem:[%s0 + $0x420] sm:$0xff]
      %v362 = vld [vmem:[%s0 + $0x428] sm:$0xff]
      %v363 = vld [vmem:[%s0 + $0x430] sm:$0xff]
      %v364 = vld [vmem:[%s0 + $0x438] sm:$0xff]
      %v365 = vld [vmem:[%s0 + $0x440] sm:$0xff]
      %v366 = vld [vmem:[%s0 + $0x448] sm:$0xff]
      %v367 = vld [vmem:[%s0 + $0x450] sm:$0xff]
      %v368 = vld [vmem:[%s0 + $0x458] sm:$0xff]
      %v369 = vld [vmem:[%s0 + $0x460] sm:$0xff]
      %v370 = vld [vmem:[%s0 + $0x468] sm:$0xff]
      %v371 = vld [vmem:[%s0 + $0x470] sm:$0xff]
      %v372 = vld [vmem:[%s0 + $0x478] sm:$0xff]
      %v373 = vld [vmem:[%s0 + $0x480] sm:$0xff]
      %v374 = vld [vmem:[%s0 + $0x488] sm:$0xff]
      %v375 = vld [vmem:[%s0 + $0x490] sm:$0xff]
      %v376 = vld [vmem:[%s0 + $0x498] sm:$0xff]
      %v377 = vld [vmem:[%s0 + $0x4a0] sm:$0xff]
      %v378 = vld [vmem:[%s0 + $0x4a8] sm:$0xff]
      %v379 = vld [vmem:[%s0 + $0x4b0] sm:$0xff]
      %v380 = vld [vmem:[%s0 + $0x4b8] sm:$0xff]
      %v381 = vld [vmem:[%s0 + $0x4c0] sm:$0xff]
      %v382 = vld [vmem:[%s0 + $0x4c8] sm:$0xff]
      %v383 = vld [vmem:[%s0 + $0x4d0] sm:$0xff]
      %v384 = vld [vmem:[%s0 + $0x4d8] sm:$0xff]
      %v385 = vld [vmem:[%s0 + $0x4e0] sm:$0xff]
      %v386 = vld [vmem:[%s0 + $0x4e8] sm:$0xff]
      %v387 = vld [vmem:[%s0 + $0x4f0] sm:$0xff]
      %v388 = vld [vmem:[%s0 + $0x4f8] sm:$0xff]
      %v389 = vld [vmem:[%s0 + $0x500] sm:$0xff]
      %v390 = vld [vmem:[%s0 + $0x508] sm:$0xff]
      %v391 = vld [vmem:[%s0 + $0x510] sm:$0xff]
      %v392 = vld [vmem:[%s0 + $0x518] sm:$0xff]
      %v393 = vld [vmem:[%s0 + $0x520] sm:$0xff]
      %v394 = vld [vmem:[%s0 + $0x528] sm:$0xff]
      %v395 = vld [vmem:[%s0 + $0x530] sm:$0xff]
      %v396 = vld [vmem:[%s0 + $0x538] sm:$0xff]
      %v397 = vld [vmem:[%s0 + $0x540] sm:$0xff]
      %v398 = vld [vmem:[%s0 + $0x548] sm:$0xff]
      %v399 = vld [vmem:[%s0 + $0x550] sm:$0xff]
      %v400 = vld [vmem:[%s0 + $0x558] sm:$0xff]
      %v401 = vld [vmem:[%s0 + $0x560] sm:$0xff]
      %v402 = vld [vmem:[%s0 + $0x568] sm:$0xff]
      %v403 = vld [vmem:[%s0 + $0x570] sm:$0xff]
      %v404 = vld [vmem:[%s0 + $0x578] sm:$0xff]
      %v405 = vld [vmem:[%s0 + $0x580] sm:$0xff]
      %v406 = vld [vmem:[%s0 + $0x588] sm:$0xff]
      %v407 = vld [vmem:[%s0 + $0x590] sm:$0xff]
      %v408 = vld [vmem:[%s0 + $0x598] sm:$0xff]
      %v409 = vld [vmem:[%s0 + $0x5a0] sm:$0xff]
      %v410 = vld [vmem:[%s0 + $0x5a8] sm:$0xff]
      %v411 = vld [vmem:[%s0 + $0x5b0] sm:$0xff]
      %v412 = vld [vmem:[%s0 + $0x5b8] sm:$0xff]
      %v413 = vld [vmem:[%s0 + $0x5c0] sm:$0xff]
      %v414 = vld [vmem:[%s0 + $0x5c8] sm:$0xff]
      %v415 = vld [vmem:[%s0 + $0x5d0] sm:$0xff]
      %v416 = vld [vmem:[%s0 + $0x5d8] sm:$0xff]
      %v417 = vld [vmem:[%s0 + $0x5e0] sm:$0xff]
      %v418 = vld [vmem:[%s0 + $0x5e8] sm:$0xff]
      %v419 = vld [vmem:[%s0 + $0x5f0] sm:$0xff]
      %v420 = vld [vmem:[%s0 + $0x5f8] sm:$0xff]
      %v421 = vld [vmem:[%s0 + $0x600] sm:$0xff]
      %v422 = vld [vmem:[%s0 + $0x608] sm:$0xff]
      %v423 = vld [vmem:[%s0 + $0x610] sm:$0xff]
      %v424 = vld [vmem:[%s0 + $0x618] sm:$0xff]
      %v425 = vld [vmem:[%s0 + $0x620] sm:$0xff]
      %v426 = vld [vmem:[%s0 + $0x628] sm:$0xff]
      %v427 = vld [vmem:[%s0 + $0x630] sm:$0xff]
      %v428 = vld [vmem:[%s0 + $0x638] sm:$0xff]
      %v429 = vld [vmem:[%s0 + $0x640] sm:$0xff]
      %v430 = vld [vmem:[%s0 + $0x648] sm:$0xff]
      %v431 = vld [vmem:[%s0 + $0x650] sm:$0xff]
      %v432 = vld [vmem:[%s0 + $0x658] sm:$0xff]
      %v433 = vld [vmem:[%s0 + $0x660] sm:$0xff]
      %v434 = vld [vmem:[%s0 + $0x668] sm:$0xff]
      %v435 = vld [vmem:[%s0 + $0x670] sm:$0xff]
      %v436 = vld [vmem:[%s0 + $0x678] sm:$0xff]
      %v437 = vld [vmem:[%s0 + $0x680] sm:$0xff]
      %v438 = vld [vmem:[%s0 + $0x688] sm:$0xff]
      %v439 = vld [vmem:[%s0 + $0x690] sm:$0xff]
      %v440 = vld [vmem:[%s0 + $0x698] sm:$0xff]
      %v441 = vld [vmem:[%s0 + $0x6a0] sm:$0xff]
      %v442 = vld [vmem:[%s0 + $0x6a8] sm:$0xff]
      %v443 = vld [vmem:[%s0 + $0x6b0] sm:$0xff]
      %v444 = vld [vmem:[%s0 + $0x6b8] sm:$0xff]
      %v445 = vld [vmem:[%s0 + $0x6c0] sm:$0xff]
      %v446 = vld [vmem:[%s0 + $0x6c8] sm:$0xff]
      %v447 = vld [vmem:[%s0 + $0x6d0] sm:$0xff]
      %v448 = vld [vmem:[%s0 + $0x6d8] sm:$0xff]
      %v449 = vld [vmem:[%s0 + $0x6e0] sm:$0xff]
      %v450 = vld [vmem:[%s0 + $0x6e8] sm:$0xff]
      %v451 = vld [vmem:[%s0 + $0x6f0] sm:$0xff]
      %v452 = vld [vmem:[%s0 + $0x6f8] sm:$0xff]
      %v453 = vadd.f32 %v229, %v230
      %v454 = vadd.f32 %v453, %v231
      %v455 = vadd.f32 %v454, %v232
      %v456 = vadd.f32 %v455, %v233
      %v457 = vadd.f32 %v456, %v234
      %vm458 = vcmask 130048
      %v459 = vsel %vm458, %v235, 0.0
      %v460 = vadd.f32 %v457, %v459
      %461 = vadd.xlane.f32.xlu0 %v460
      %v462 = vpop.xlane.xlu0 %461
      %v463 = vadd.f32 %v236, %v237
      %v464 = vadd.f32 %v463, %v238
      %v465 = vadd.f32 %v464, %v239
      %v466 = vadd.f32 %v465, %v240
      %v467 = vadd.f32 %v466, %v241
      %v468 = vsel %vm458, %v242, 0.0
      %v469 = vadd.f32 %v467, %v468
      %470 = vadd.xlane.f32.xlu0 %v469
      %v471 = vpop.xlane.xlu0 %470
      %v472 = vadd.f32 %v243, %v244
      %v473 = vadd.f32 %v472, %v245
      %v474 = vadd.f32 %v473, %v246
      %v475 = vadd.f32 %v474, %v247
      %v476 = vadd.f32 %v475, %v248
      %v477 = vsel %vm458, %v249, 0.0
      %v478 = vadd.f32 %v476, %v477
      %479 = vadd.xlane.f32.xlu0 %v478
      %v480 = vpop.xlane.xlu0 %479
      %v481 = vadd.f32 %v250, %v251
      %v482 = vadd.f32 %v481, %v252
      %v483 = vadd.f32 %v482, %v253
      %v484 = vadd.f32 %v483, %v254
      %v485 = vadd.f32 %v484, %v255
      %v486 = vsel %vm458, %v256, 0.0
      %v487 = vadd.f32 %v485, %v486
      %488 = vadd.xlane.f32.xlu0 %v487
      %v489 = vpop.xlane.xlu0 %488
      %v490 = vadd.f32 %v257, %v258
      %v491 = vadd.f32 %v490, %v259
      %v492 = vadd.f32 %v491, %v260
      %v493 = vadd.f32 %v492, %v261
      %v494 = vadd.f32 %v493, %v262
      %v495 = vsel %vm458, %v263, 0.0
      %v496 = vadd.f32 %v494, %v495
      %497 = vadd.xlane.f32.xlu0 %v496
      %v498 = vpop.xlane.xlu0 %497
      %v499 = vadd.f32 %v264, %v265
      %v500 = vadd.f32 %v499, %v266
      %v501 = vadd.f32 %v500, %v267
      %v502 = vadd.f32 %v501, %v268
      %v503 = vadd.f32 %v502, %v269
      %v504 = vsel %vm458, %v270, 0.0
      %v505 = vadd.f32 %v503, %v504
      %506 = vadd.xlane.f32.xlu0 %v505
      %v507 = vpop.xlane.xlu0 %506
      %v508 = vadd.f32 %v271, %v272
      %v509 = vadd.f32 %v508, %v273
      %v510 = vadd.f32 %v509, %v274
      %v511 = vadd.f32 %v510, %v275
      %v512 = vadd.f32 %v511, %v276
      %v513 = vsel %vm458, %v277, 0.0
      %v514 = vadd.f32 %v512, %v513
      %515 = vadd.xlane.f32.xlu0 %v514
      %v516 = vpop.xlane.xlu0 %515
      %v517 = vadd.f32 %v278, %v279
      %v518 = vadd.f32 %v517, %v280
      %v519 = vadd.f32 %v518, %v281
      %v520 = vadd.f32 %v519, %v282
      %v521 = vadd.f32 %v520, %v283
      %v522 = vsel %vm458, %v284, 0.0
      %v523 = vadd.f32 %v521, %v522
      %524 = vadd.xlane.f32.xlu0 %v523
      %v525 = vpop.xlane.xlu0 %524
      %v526 = vadd.f32 %v285, %v286
      %v527 = vadd.f32 %v526, %v287
      %v528 = vadd.f32 %v527, %v288
      %v529 = vadd.f32 %v528, %v289
      %v530 = vadd.f32 %v529, %v290
      %v531 = vsel %vm458, %v291, 0.0
      %v532 = vadd.f32 %v530, %v531
      %533 = vadd.xlane.f32.xlu0 %v532
      %v534 = vpop.xlane.xlu0 %533
      %v535 = vadd.f32 %v292, %v293
      %v536 = vadd.f32 %v535, %v294
      %v537 = vadd.f32 %v536, %v295
      %v538 = vadd.f32 %v537, %v296
      %v539 = vadd.f32 %v538, %v297
      %v540 = vsel %vm458, %v298, 0.0
      %v541 = vadd.f32 %v539, %v540
      %542 = vadd.xlane.f32.xlu0 %v541
      %v543 = vpop.xlane.xlu0 %542
      %v544 = vadd.f32 %v299, %v300
      %v545 = vadd.f32 %v544, %v301
      %v546 = vadd.f32 %v545, %v302
      %v547 = vadd.f32 %v546, %v303
      %v548 = vadd.f32 %v547, %v304
      %v549 = vsel %vm458, %v305, 0.0
      %v550 = vadd.f32 %v548, %v549
      %551 = vadd.xlane.f32.xlu0 %v550
      %v552 = vpop.xlane.xlu0 %551
      %v553 = vadd.f32 %v306, %v307
      %v554 = vadd.f32 %v553, %v308
      %v555 = vadd.f32 %v554, %v309
      %v556 = vadd.f32 %v555, %v310
      %v557 = vadd.f32 %v556, %v311
      %v558 = vsel %vm458, %v312, 0.0
      %v559 = vadd.f32 %v557, %v558
      %560 = vadd.xlane.f32.xlu0 %v559
      %v561 = vpop.xlane.xlu0 %560
      %v562 = vadd.f32 %v313, %v314
      %v563 = vadd.f32 %v562, %v315
      %v564 = vadd.f32 %v563, %v316
      %v565 = vadd.f32 %v564, %v317
      %v566 = vadd.f32 %v565, %v318
      %v567 = vsel %vm458, %v319, 0.0
      %v568 = vadd.f32 %v566, %v567
      %569 = vadd.xlane.f32.xlu0 %v568
      %v570 = vpop.xlane.xlu0 %569
      %v571 = vadd.f32 %v320, %v321
      %v572 = vadd.f32 %v571, %v322
      %v573 = vadd.f32 %v572, %v323
      %v574 = vadd.f32 %v573, %v324
      %v575 = vadd.f32 %v574, %v325
      %v576 = vsel %vm458, %v326, 0.0
      %v577 = vadd.f32 %v575, %v576
      %578 = vadd.xlane.f32.xlu0 %v577
      %v579 = vpop.xlane.xlu0 %578
      %v580 = vadd.f32 %v327, %v328
      %v581 = vadd.f32 %v580, %v329
      %v582 = vadd.f32 %v581, %v330
      %v583 = vadd.f32 %v582, %v331
      %v584 = vadd.f32 %v583, %v332
      %v585 = vsel %vm458, %v333, 0.0
      %v586 = vadd.f32 %v584, %v585
      %587 = vadd.xlane.f32.xlu0 %v586
      %v588 = vpop.xlane.xlu0 %587
      %v589 = vadd.f32 %v334, %v335
      %v590 = vadd.f32 %v589, %v336
      %v591 = vadd.f32 %v590, %v337
      %v592 = vadd.f32 %v591, %v338
      %v593 = vadd.f32 %v592, %v339
      %v594 = vsel %vm458, %v340, 0.0
      %v595 = vadd.f32 %v593, %v594
      %596 = vadd.xlane.f32.xlu0 %v595
      %v597 = vpop.xlane.xlu0 %596
      %v598 = vadd.f32 %v341, %v342
      %v599 = vadd.f32 %v598, %v343
      %v600 = vadd.f32 %v599, %v344
      %v601 = vadd.f32 %v600, %v345
      %v602 = vadd.f32 %v601, %v346
      %v603 = vsel %vm458, %v347, 0.0
      %v604 = vadd.f32 %v602, %v603
      %605 = vadd.xlane.f32.xlu0 %v604
      %v606 = vpop.xlane.xlu0 %605
      %v607 = vadd.f32 %v348, %v349
      %v608 = vadd.f32 %v607, %v350
      %v609 = vadd.f32 %v608, %v351
      %v610 = vadd.f32 %v609, %v352
      %v611 = vadd.f32 %v610, %v353
      %v612 = vsel %vm458, %v354, 0.0
      %v613 = vadd.f32 %v611, %v612
      %614 = vadd.xlane.f32.xlu0 %v613
      %v615 = vpop.xlane.xlu0 %614
      %v616 = vadd.f32 %v355, %v356
      %v617 = vadd.f32 %v616, %v357
      %v618 = vadd.f32 %v617, %v358
      %v619 = vadd.f32 %v618, %v359
      %v620 = vadd.f32 %v619, %v360
      %v621 = vsel %vm458, %v361, 0.0
      %v622 = vadd.f32 %v620, %v621
      %623 = vadd.xlane.f32.xlu0 %v622
      %v624 = vpop.xlane.xlu0 %623
      %v625 = vadd.f32 %v362, %v363
      %v626 = vadd.f32 %v625, %v364
      %v627 = vadd.f32 %v626, %v365
      %v628 = vadd.f32 %v627, %v366
      %v629 = vadd.f32 %v628, %v367
      %v630 = vsel %vm458, %v368, 0.0
      %v631 = vadd.f32 %v629, %v630
      %632 = vadd.xlane.f32.xlu0 %v631
      %v633 = vpop.xlane.xlu0 %632
      %v634 = vadd.f32 %v369, %v370
      %v635 = vadd.f32 %v634, %v371
      %v636 = vadd.f32 %v635, %v372
      %v637 = vadd.f32 %v636, %v373
      %v638 = vadd.f32 %v637, %v374
      %v639 = vsel %vm458, %v375, 0.0
      %v640 = vadd.f32 %v638, %v639
      %641 = vadd.xlane.f32.xlu0 %v640
      %v642 = vpop.xlane.xlu0 %641
      %v643 = vadd.f32 %v376, %v377
      %v644 = vadd.f32 %v643, %v378
      %v645 = vadd.f32 %v644, %v379
      %v646 = vadd.f32 %v645, %v380
      %v647 = vadd.f32 %v646, %v381
      %v648 = vsel %vm458, %v382, 0.0
      %v649 = vadd.f32 %v647, %v648
      %650 = vadd.xlane.f32.xlu0 %v649
      %v651 = vpop.xlane.xlu0 %650
      %v652 = vadd.f32 %v383, %v384
      %v653 = vadd.f32 %v652, %v385
      %v654 = vadd.f32 %v653, %v386
      %v655 = vadd.f32 %v654, %v387
      %v656 = vadd.f32 %v655, %v388
      %v657 = vsel %vm458, %v389, 0.0
      %v658 = vadd.f32 %v656, %v657
      %659 = vadd.xlane.f32.xlu0 %v658
      %v660 = vpop.xlane.xlu0 %659
      %v661 = vadd.f32 %v390, %v391
      %v662 = vadd.f32 %v661, %v392
      %v663 = vadd.f32 %v662, %v393
      %v664 = vadd.f32 %v663, %v394
      %v665 = vadd.f32 %v664, %v395
      %v666 = vsel %vm458, %v396, 0.0
      %v667 = vadd.f32 %v665, %v666
      %668 = vadd.xlane.f32.xlu0 %v667
      %v669 = vpop.xlane.xlu0 %668
      %v670 = vadd.f32 %v397, %v398
      %v671 = vadd.f32 %v670, %v399
      %v672 = vadd.f32 %v671, %v400
      %v673 = vadd.f32 %v672, %v401
      %v674 = vadd.f32 %v673, %v402
      %v675 = vsel %vm458, %v403, 0.0
      %v676 = vadd.f32 %v674, %v675
      %677 = vadd.xlane.f32.xlu0 %v676
      %v678 = vpop.xlane.xlu0 %677
      %v679 = vadd.f32 %v404, %v405
      %v680 = vadd.f32 %v679, %v406
      %v681 = vadd.f32 %v680, %v407
      %v682 = vadd.f32 %v681, %v408
      %v683 = vadd.f32 %v682, %v409
      %v684 = vsel %vm458, %v410, 0.0
      %v685 = vadd.f32 %v683, %v684
      %686 = vadd.xlane.f32.xlu0 %v685
      %v687 = vpop.xlane.xlu0 %686
      %v688 = vadd.f32 %v411, %v412
      %v689 = vadd.f32 %v688, %v413
      %v690 = vadd.f32 %v689, %v414
      %v691 = vadd.f32 %v690, %v415
      %v692 = vadd.f32 %v691, %v416
      %v693 = vsel %vm458, %v417, 0.0
      %v694 = vadd.f32 %v692, %v693
      %695 = vadd.xlane.f32.xlu0 %v694
      %v696 = vpop.xlane.xlu0 %695
      %v697 = vadd.f32 %v418, %v419
      %v698 = vadd.f32 %v697, %v420
      %v699 = vadd.f32 %v698, %v421
      %v700 = vadd.f32 %v699, %v422
      %v701 = vadd.f32 %v700, %v423
      %v702 = vsel %vm458, %v424, 0.0
      %v703 = vadd.f32 %v701, %v702
      %704 = vadd.xlane.f32.xlu0 %v703
      %v705 = vpop.xlane.xlu0 %704
      %v706 = vadd.f32 %v425, %v426
      %v707 = vadd.f32 %v706, %v427
      %v708 = vadd.f32 %v707, %v428
      %v709 = vadd.f32 %v708, %v429
      %v710 = vadd.f32 %v709, %v430
      %v711 = vsel %vm458, %v431, 0.0
      %v712 = vadd.f32 %v710, %v711
      %713 = vadd.xlane.f32.xlu0 %v712
      %v714 = vpop.xlane.xlu0 %713
      %v715 = vadd.f32 %v432, %v433
      %v716 = vadd.f32 %v715, %v434
      %v717 = vadd.f32 %v716, %v435
      %v718 = vadd.f32 %v717, %v436
      %v719 = vadd.f32 %v718, %v437
      %v720 = vsel %vm458, %v438, 0.0
      %v721 = vadd.f32 %v719, %v720
      %722 = vadd.xlane.f32.xlu0 %v721
      %v723 = vpop.xlane.xlu0 %722
      %v724 = vadd.f32 %v439, %v440
      %v725 = vadd.f32 %v724, %v441
      %v726 = vadd.f32 %v725, %v442
      %v727 = vadd.f32 %v726, %v443
      %v728 = vadd.f32 %v727, %v444
      %v729 = vsel %vm458, %v445, 0.0
      %v730 = vadd.f32 %v728, %v729
      %731 = vadd.xlane.f32.xlu0 %v730
      %v732 = vpop.xlane.xlu0 %731
      %v733 = vadd.f32 %v446, %v447
      %v734 = vadd.f32 %v733, %v448
      %v735 = vadd.f32 %v734, %v449
      %v736 = vadd.f32 %v735, %v450
      %v737 = vadd.f32 %v736, %v451
      %v738 = vsel %vm458, %v452, 0.0
      %v739 = vadd.f32 %v737, %v738
      %740 = vadd.xlane.f32.xlu0 %v739
      %v741 = vpop.xlane.xlu0 %740
      %v742 = vmul.f32 %v462, 0.0012755102
      %v743 = vmul.f32 %v471, 0.0012755102
      %v744 = vmul.f32 %v480, 0.0012755102
      %v745 = vmul.f32 %v489, 0.0012755102
      %v746 = vmul.f32 %v498, 0.0012755102
      %v747 = vmul.f32 %v507, 0.0012755102
      %v748 = vmul.f32 %v516, 0.0012755102
      %v749 = vmul.f32 %v525, 0.0012755102
      %v750 = vmul.f32 %v534, 0.0012755102
      %v751 = vmul.f32 %v543, 0.0012755102
      %v752 = vmul.f32 %v552, 0.0012755102
      %v753 = vmul.f32 %v561, 0.0012755102
      %v754 = vmul.f32 %v570, 0.0012755102
      %v755 = vmul.f32 %v579, 0.0012755102
      %v756 = vmul.f32 %v588, 0.0012755102
      %v757 = vmul.f32 %v597, 0.0012755102
      %v758 = vmul.f32 %v606, 0.0012755102
      %v759 = vmul.f32 %v615, 0.0012755102
      %v760 = vmul.f32 %v624, 0.0012755102
      %v761 = vmul.f32 %v633, 0.0012755102
      %v762 = vmul.f32 %v642, 0.0012755102
      %v763 = vmul.f32 %v651, 0.0012755102
      %v764 = vmul.f32 %v660, 0.0012755102
      %v765 = vmul.f32 %v669, 0.0012755102
      %v766 = vmul.f32 %v678, 0.0012755102
      %v767 = vmul.f32 %v687, 0.0012755102
      %v768 = vmul.f32 %v696, 0.0012755102
      %v769 = vmul.f32 %v705, 0.0012755102
      %v770 = vmul.f32 %v714, 0.0012755102
      %v771 = vmul.f32 %v723, 0.0012755102
      %v772 = vmul.f32 %v732, 0.0012755102
      %v773 = vmul.f32 %v741, 0.0012755102
      %v774 = vsub.f32 %v229, %v742
      %v775 = vsub.f32 %v230, %v742
      %v776 = vsub.f32 %v231, %v742
      %v777 = vsub.f32 %v232, %v742
      %v778 = vsub.f32 %v233, %v742
      %v779 = vsub.f32 %v234, %v742
      %v780 = vsub.f32 %v235, %v742
      %v781 = vsub.f32 %v236, %v743
      %v782 = vsub.f32 %v237, %v743
      %v783 = vsub.f32 %v238, %v743
      %v784 = vsub.f32 %v239, %v743
      %v785 = vsub.f32 %v240, %v743
      %v786 = vsub.f32 %v241, %v743
      %v787 = vsub.f32 %v242, %v743
      %v788 = vsub.f32 %v243, %v744
      %v789 = vsub.f32 %v244, %v744
      %v790 = vsub.f32 %v245, %v744
      %v791 = vsub.f32 %v246, %v744
      %v792 = vsub.f32 %v247, %v744
      %v793 = vsub.f32 %v248, %v744
      %v794 = vsub.f32 %v249, %v744
      %v795 = vsub.f32 %v250, %v745
      %v796 = vsub.f32 %v251, %v745
      %v797 = vsub.f32 %v252, %v745
      %v798 = vsub.f32 %v253, %v745
      %v799 = vsub.f32 %v254, %v745
      %v800 = vsub.f32 %v255, %v745
      %v801 = vsub.f32 %v256, %v745
      %v802 = vsub.f32 %v257, %v746
      %v803 = vsub.f32 %v258, %v746
      %v804 = vsub.f32 %v259, %v746
      %v805 = vsub.f32 %v260, %v746
      %v806 = vsub.f32 %v261, %v746
      %v807 = vsub.f32 %v262, %v746
      %v808 = vsub.f32 %v263, %v746
      %v809 = vsub.f32 %v264, %v747
      %v810 = vsub.f32 %v265, %v747
      %v811 = vsub.f32 %v266, %v747
      %v812 = vsub.f32 %v267, %v747
      %v813 = vsub.f32 %v268, %v747
      %v814 = vsub.f32 %v269, %v747
      %v815 = vsub.f32 %v270, %v747
      %v816 = vsub.f32 %v271, %v748
      %v817 = vsub.f32 %v272, %v748
      %v818 = vsub.f32 %v273, %v748
      %v819 = vsub.f32 %v274, %v748
      %v820 = vsub.f32 %v275, %v748
      %v821 = vsub.f32 %v276, %v748
      %v822 = vsub.f32 %v277, %v748
      %v823 = vsub.f32 %v278, %v749
      %v824 = vsub.f32 %v279, %v749
      %v825 = vsub.f32 %v280, %v749
      %v826 = vsub.f32 %v281, %v749
      %v827 = vsub.f32 %v282, %v749
      %v828 = vsub.f32 %v283, %v749
      %v829 = vsub.f32 %v284, %v749
      %v830 = vsub.f32 %v285, %v750
      %v831 = vsub.f32 %v286, %v750
      %v832 = vsub.f32 %v287, %v750
      %v833 = vsub.f32 %v288, %v750
      %v834 = vsub.f32 %v289, %v750
      %v835 = vsub.f32 %v290, %v750
      %v836 = vsub.f32 %v291, %v750
      %v837 = vsub.f32 %v292, %v751
      %v838 = vsub.f32 %v293, %v751
      %v839 = vsub.f32 %v294, %v751
      %v840 = vsub.f32 %v295, %v751
      %v841 = vsub.f32 %v296, %v751
      %v842 = vsub.f32 %v297, %v751
      %v843 = vsub.f32 %v298, %v751
      %v844 = vsub.f32 %v299, %v752
      %v845 = vsub.f32 %v300, %v752
      %v846 = vsub.f32 %v301, %v752
      %v847 = vsub.f32 %v302, %v752
      %v848 = vsub.f32 %v303, %v752
      %v849 = vsub.f32 %v304, %v752
      %v850 = vsub.f32 %v305, %v752
      %v851 = vsub.f32 %v306, %v753
      %v852 = vsub.f32 %v307, %v753
      %v853 = vsub.f32 %v308, %v753
      %v854 = vsub.f32 %v309, %v753
      %v855 = vsub.f32 %v310, %v753
      %v856 = vsub.f32 %v311, %v753
      %v857 = vsub.f32 %v312, %v753
      %v858 = vsub.f32 %v313, %v754
      %v859 = vsub.f32 %v314, %v754
      %v860 = vsub.f32 %v315, %v754
      %v861 = vsub.f32 %v316, %v754
      %v862 = vsub.f32 %v317, %v754
      %v863 = vsub.f32 %v318, %v754
      %v864 = vsub.f32 %v319, %v754
      %v865 = vsub.f32 %v320, %v755
      %v866 = vsub.f32 %v321, %v755
      %v867 = vsub.f32 %v322, %v755
      %v868 = vsub.f32 %v323, %v755
      %v869 = vsub.f32 %v324, %v755
      %v870 = vsub.f32 %v325, %v755
      %v871 = vsub.f32 %v326, %v755
      %v872 = vsub.f32 %v327, %v756
      %v873 = vsub.f32 %v328, %v756
      %v874 = vsub.f32 %v329, %v756
      %v875 = vsub.f32 %v330, %v756
      %v876 = vsub.f32 %v331, %v756
      %v877 = vsub.f32 %v332, %v756
      %v878 = vsub.f32 %v333, %v756
      %v879 = vsub.f32 %v334, %v757
      %v880 = vsub.f32 %v335, %v757
      %v881 = vsub.f32 %v336, %v757
      %v882 = vsub.f32 %v337, %v757
      %v883 = vsub.f32 %v338, %v757
      %v884 = vsub.f32 %v339, %v757
      %v885 = vsub.f32 %v340, %v757
      %v886 = vsub.f32 %v341, %v758
      %v887 = vsub.f32 %v342, %v758
      %v888 = vsub.f32 %v343, %v758
      %v889 = vsub.f32 %v344, %v758
      %v890 = vsub.f32 %v345, %v758
      %v891 = vsub.f32 %v346, %v758
      %v892 = vsub.f32 %v347, %v758
      %v893 = vsub.f32 %v348, %v759
      %v894 = vsub.f32 %v349, %v759
      %v895 = vsub.f32 %v350, %v759
      %v896 = vsub.f32 %v351, %v759
      %v897 = vsub.f32 %v352, %v759
      %v898 = vsub.f32 %v353, %v759
      %v899 = vsub.f32 %v354, %v759
      %v900 = vsub.f32 %v355, %v760
      %v901 = vsub.f32 %v356, %v760
      %v902 = vsub.f32 %v357, %v760
      %v903 = vsub.f32 %v358, %v760
      %v904 = vsub.f32 %v359, %v760
      %v905 = vsub.f32 %v360, %v760
      %v906 = vsub.f32 %v361, %v760
      %v907 = vsub.f32 %v362, %v761
      %v908 = vsub.f32 %v363, %v761
      %v909 = vsub.f32 %v364, %v761
      %v910 = vsub.f32 %v365, %v761
      %v911 = vsub.f32 %v366, %v761
      %v912 = vsub.f32 %v367, %v761
      %v913 = vsub.f32 %v368, %v761
      %v914 = vsub.f32 %v369, %v762
      %v915 = vsub.f32 %v370, %v762
      %v916 = vsub.f32 %v371, %v762
      %v917 = vsub.f32 %v372, %v762
      %v918 = vsub.f32 %v373, %v762
      %v919 = vsub.f32 %v374, %v762
      %v920 = vsub.f32 %v375, %v762
      %v921 = vsub.f32 %v376, %v763
      %v922 = vsub.f32 %v377, %v763
      %v923 = vsub.f32 %v378, %v763
      %v924 = vsub.f32 %v379, %v763
      %v925 = vsub.f32 %v380, %v763
      %v926 = vsub.f32 %v381, %v763
      %v927 = vsub.f32 %v382, %v763
      %v928 = vsub.f32 %v383, %v764
      %v929 = vsub.f32 %v384, %v764
      %v930 = vsub.f32 %v385, %v764
      %v931 = vsub.f32 %v386, %v764
      %v932 = vsub.f32 %v387, %v764
      %v933 = vsub.f32 %v388, %v764
      %v934 = vsub.f32 %v389, %v764
      %v935 = vsub.f32 %v390, %v765
      %v936 = vsub.f32 %v391, %v765
      %v937 = vsub.f32 %v392, %v765
      %v938 = vsub.f32 %v393, %v765
      %v939 = vsub.f32 %v394, %v765
      %v940 = vsub.f32 %v395, %v765
      %v941 = vsub.f32 %v396, %v765
      %v942 = vsub.f32 %v397, %v766
      %v943 = vsub.f32 %v398, %v766
      %v944 = vsub.f32 %v399, %v766
      %v945 = vsub.f32 %v400, %v766
      %v946 = vsub.f32 %v401, %v766
      %v947 = vsub.f32 %v402, %v766
      %v948 = vsub.f32 %v403, %v766
      %v949 = vsub.f32 %v404, %v767
      %v950 = vsub.f32 %v405, %v767
      %v951 = vsub.f32 %v406, %v767
      %v952 = vsub.f32 %v407, %v767
      %v953 = vsub.f32 %v408, %v767
      %v954 = vsub.f32 %v409, %v767
      %v955 = vsub.f32 %v410, %v767
      %v956 = vsub.f32 %v411, %v768
      %v957 = vsub.f32 %v412, %v768
      %v958 = vsub.f32 %v413, %v768
      %v959 = vsub.f32 %v414, %v768
      %v960 = vsub.f32 %v415, %v768
      %v961 = vsub.f32 %v416, %v768
      %v962 = vsub.f32 %v417, %v768
      %v963 = vsub.f32 %v418, %v769
      %v964 = vsub.f32 %v419, %v769
      %v965 = vsub.f32 %v420, %v769
      %v966 = vsub.f32 %v421, %v769
      %v967 = vsub.f32 %v422, %v769
      %v968 = vsub.f32 %v423, %v769
      %v969 = vsub.f32 %v424, %v769
      %v970 = vsub.f32 %v425, %v770
      %v971 = vsub.f32 %v426, %v770
      %v972 = vsub.f32 %v427, %v770
      %v973 = vsub.f32 %v428, %v770
      %v974 = vsub.f32 %v429, %v770
      %v975 = vsub.f32 %v430, %v770
      %v976 = vsub.f32 %v431, %v770
      %v977 = vsub.f32 %v432, %v771
      %v978 = vsub.f32 %v433, %v771
      %v979 = vsub.f32 %v434, %v771
      %v980 = vsub.f32 %v435, %v771
      %v981 = vsub.f32 %v436, %v771
      %v982 = vsub.f32 %v437, %v771
      %v983 = vsub.f32 %v438, %v771
      %v984 = vsub.f32 %v439, %v772
      %v985 = vsub.f32 %v440, %v772
      %v986 = vsub.f32 %v441, %v772
      %v987 = vsub.f32 %v442, %v772
      %v988 = vsub.f32 %v443, %v772
      %v989 = vsub.f32 %v444, %v772
      %v990 = vsub.f32 %v445, %v772
      %v991 = vsub.f32 %v446, %v773
      %v992 = vsub.f32 %v447, %v773
      %v993 = vsub.f32 %v448, %v773
      %v994 = vsub.f32 %v449, %v773
      %v995 = vsub.f32 %v450, %v773
      %v996 = vsub.f32 %v451, %v773
      %v997 = vsub.f32 %v452, %v773
      %v998 = vmul.f32 %v774, %v774
      %v999 = vmul.f32 %v775, %v775
      %v1000 = vmul.f32 %v776, %v776
      %v1001 = vmul.f32 %v777, %v777
      %v1002 = vmul.f32 %v778, %v778
      %v1003 = vmul.f32 %v779, %v779
      %v1004 = vmul.f32 %v780, %v780
      %v1005 = vmul.f32 %v781, %v781
      %v1006 = vmul.f32 %v782, %v782
      %v1007 = vmul.f32 %v783, %v783
      %v1008 = vmul.f32 %v784, %v784
      %v1009 = vmul.f32 %v785, %v785
      %v1010 = vmul.f32 %v786, %v786
      %v1011 = vmul.f32 %v787, %v787
      %v1012 = vmul.f32 %v788, %v788
      %v1013 = vmul.f32 %v789, %v789
      %v1014 = vmul.f32 %v790, %v790
      %v1015 = vmul.f32 %v791, %v791
      %v1016 = vmul.f32 %v792, %v792
      %v1017 = vmul.f32 %v793, %v793
      %v1018 = vmul.f32 %v794, %v794
      %v1019 = vmul.f32 %v795, %v795
      %v1020 = vmul.f32 %v796, %v796
      %v1021 = vmul.f32 %v797, %v797
      %v1022 = vmul.f32 %v798, %v798
      %v1023 = vmul.f32 %v799, %v799
      %v1024 = vmul.f32 %v800, %v800
      %v1025 = vmul.f32 %v801, %v801
      %v1026 = vmul.f32 %v802, %v802
      %v1027 = vmul.f32 %v803, %v803
      %v1028 = vmul.f32 %v804, %v804
      %v1029 = vmul.f32 %v805, %v805
      %v1030 = vmul.f32 %v806, %v806
      %v1031 = vmul.f32 %v807, %v807
      %v1032 = vmul.f32 %v808, %v808
      %v1033 = vmul.f32 %v809, %v809
      %v1034 = vmul.f32 %v810, %v810
      %v1035 = vmul.f32 %v811, %v811
      %v1036 = vmul.f32 %v812, %v812
      %v1037 = vmul.f32 %v813, %v813
      %v1038 = vmul.f32 %v814, %v814
      %v1039 = vmul.f32 %v815, %v815
      %v1040 = vmul.f32 %v816, %v816
      %v1041 = vmul.f32 %v817, %v817
      %v1042 = vmul.f32 %v818, %v818
      %v1043 = vmul.f32 %v819, %v819
      %v1044 = vmul.f32 %v820, %v820
      %v1045 = vmul.f32 %v821, %v821
      %v1046 = vmul.f32 %v822, %v822
      %v1047 = vmul.f32 %v823, %v823
      %v1048 = vmul.f32 %v824, %v824
      %v1049 = vmul.f32 %v825, %v825
      %v1050 = vmul.f32 %v826, %v826
      %v1051 = vmul.f32 %v827, %v827
      %v1052 = vmul.f32 %v828, %v828
      %v1053 = vmul.f32 %v829, %v829
      %v1054 = vmul.f32 %v830, %v830
      %v1055 = vmul.f32 %v831, %v831
      %v1056 = vmul.f32 %v832, %v832
      %v1057 = vmul.f32 %v833, %v833
      %v1058 = vmul.f32 %v834, %v834
      %v1059 = vmul.f32 %v835, %v835
      %v1060 = vmul.f32 %v836, %v836
      %v1061 = vmul.f32 %v837, %v837
      %v1062 = vmul.f32 %v838, %v838
      %v1063 = vmul.f32 %v839, %v839
      %v1064 = vmul.f32 %v840, %v840
      %v1065 = vmul.f32 %v841, %v841
      %v1066 = vmul.f32 %v842, %v842
      %v1067 = vmul.f32 %v843, %v843
      %v1068 = vmul.f32 %v844, %v844
      %v1069 = vmul.f32 %v845, %v845
      %v1070 = vmul.f32 %v846, %v846
      %v1071 = vmul.f32 %v847, %v847
      %v1072 = vmul.f32 %v848, %v848
      %v1073 = vmul.f32 %v849, %v849
      %v1074 = vmul.f32 %v850, %v850
      %v1075 = vmul.f32 %v851, %v851
      %v1076 = vmul.f32 %v852, %v852
      %v1077 = vmul.f32 %v853, %v853
      %v1078 = vmul.f32 %v854, %v854
      %v1079 = vmul.f32 %v855, %v855
      %v1080 = vmul.f32 %v856, %v856
      %v1081 = vmul.f32 %v857, %v857
      %v1082 = vmul.f32 %v858, %v858
      %v1083 = vmul.f32 %v859, %v859
      %v1084 = vmul.f32 %v860, %v860
      %v1085 = vmul.f32 %v861, %v861
      %v1086 = vmul.f32 %v862, %v862
      %v1087 = vmul.f32 %v863, %v863
      %v1088 = vmul.f32 %v864, %v864
      %v1089 = vmul.f32 %v865, %v865
      %v1090 = vmul.f32 %v866, %v866
      %v1091 = vmul.f32 %v867, %v867
      %v1092 = vmul.f32 %v868, %v868
      %v1093 = vmul.f32 %v869, %v869
      %v1094 = vmul.f32 %v870, %v870
      %v1095 = vmul.f32 %v871, %v871
      %v1096 = vmul.f32 %v872, %v872
      %v1097 = vmul.f32 %v873, %v873
      %v1098 = vmul.f32 %v874, %v874
      %v1099 = vmul.f32 %v875, %v875
      %v1100 = vmul.f32 %v876, %v876
      %v1101 = vmul.f32 %v877, %v877
      %v1102 = vmul.f32 %v878, %v878
      %v1103 = vmul.f32 %v879, %v879
      %v1104 = vmul.f32 %v880, %v880
      %v1105 = vmul.f32 %v881, %v881
      %v1106 = vmul.f32 %v882, %v882
      %v1107 = vmul.f32 %v883, %v883
      %v1108 = vmul.f32 %v884, %v884
      %v1109 = vmul.f32 %v885, %v885
      %v1110 = vmul.f32 %v886, %v886
      %v1111 = vmul.f32 %v887, %v887
      %v1112 = vmul.f32 %v888, %v888
      %v1113 = vmul.f32 %v889, %v889
      %v1114 = vmul.f32 %v890, %v890
      %v1115 = vmul.f32 %v891, %v891
      %v1116 = vmul.f32 %v892, %v892
      %v1117 = vmul.f32 %v893, %v893
      %v1118 = vmul.f32 %v894, %v894
      %v1119 = vmul.f32 %v895, %v895
      %v1120 = vmul.f32 %v896, %v896
      %v1121 = vmul.f32 %v897, %v897
      %v1122 = vmul.f32 %v898, %v898
      %v1123 = vmul.f32 %v899, %v899
      %v1124 = vmul.f32 %v900, %v900
      %v1125 = vmul.f32 %v901, %v901
      %v1126 = vmul.f32 %v902, %v902
      %v1127 = vmul.f32 %v903, %v903
      %v1128 = vmul.f32 %v904, %v904
      %v1129 = vmul.f32 %v905, %v905
      %v1130 = vmul.f32 %v906, %v906
      %v1131 = vmul.f32 %v907, %v907
      %v1132 = vmul.f32 %v908, %v908
      %v1133 = vmul.f32 %v909, %v909
      %v1134 = vmul.f32 %v910, %v910
      %v1135 = vmul.f32 %v911, %v911
      %v1136 = vmul.f32 %v912, %v912
      %v1137 = vmul.f32 %v913, %v913
      %v1138 = vmul.f32 %v914, %v914
      %v1139 = vmul.f32 %v915, %v915
      %v1140 = vmul.f32 %v916, %v916
      %v1141 = vmul.f32 %v917, %v917
      %v1142 = vmul.f32 %v918, %v918
      %v1143 = vmul.f32 %v919, %v919
      %v1144 = vmul.f32 %v920, %v920
      %v1145 = vmul.f32 %v921, %v921
      %v1146 = vmul.f32 %v922, %v922
      %v1147 = vmul.f32 %v923, %v923
      %v1148 = vmul.f32 %v924, %v924
      %v1149 = vmul.f32 %v925, %v925
      %v1150 = vmul.f32 %v926, %v926
      %v1151 = vmul.f32 %v927, %v927
      %v1152 = vmul.f32 %v928, %v928
      %v1153 = vmul.f32 %v929, %v929
      %v1154 = vmul.f32 %v930, %v930
      %v1155 = vmul.f32 %v931, %v931
      %v1156 = vmul.f32 %v932, %v932
      %v1157 = vmul.f32 %v933, %v933
      %v1158 = vmul.f32 %v934, %v934
      %v1159 = vmul.f32 %v935, %v935
      %v1160 = vmul.f32 %v936, %v936
      %v1161 = vmul.f32 %v937, %v937
      %v1162 = vmul.f32 %v938, %v938
      %v1163 = vmul.f32 %v939, %v939
      %v1164 = vmul.f32 %v940, %v940
      %v1165 = vmul.f32 %v941, %v941
      %v1166 = vmul.f32 %v942, %v942
      %v1167 = vmul.f32 %v943, %v943
      %v1168 = vmul.f32 %v944, %v944
      %v1169 = vmul.f32 %v945, %v945
      %v1170 = vmul.f32 %v946, %v946
      %v1171 = vmul.f32 %v947, %v947
      %v1172 = vmul.f32 %v948, %v948
      %v1173 = vmul.f32 %v949, %v949
      %v1174 = vmul.f32 %v950, %v950
      %v1175 = vmul.f32 %v951, %v951
      %v1176 = vmul.f32 %v952, %v952
      %v1177 = vmul.f32 %v953, %v953
      %v1178 = vmul.f32 %v954, %v954
      %v1179 = vmul.f32 %v955, %v955
      %v1180 = vmul.f32 %v956, %v956
      %v1181 = vmul.f32 %v957, %v957
      %v1182 = vmul.f32 %v958, %v958
      %v1183 = vmul.f32 %v959, %v959
      %v1184 = vmul.f32 %v960, %v960
      %v1185 = vmul.f32 %v961, %v961
      %v1186 = vmul.f32 %v962, %v962
      %v1187 = vmul.f32 %v963, %v963
      %v1188 = vmul.f32 %v964, %v964
      %v1189 = vmul.f32 %v965, %v965
      %v1190 = vmul.f32 %v966, %v966
      %v1191 = vmul.f32 %v967, %v967
      %v1192 = vmul.f32 %v968, %v968
      %v1193 = vmul.f32 %v969, %v969
      %v1194 = vmul.f32 %v970, %v970
      %v1195 = vmul.f32 %v971, %v971
      %v1196 = vmul.f32 %v972, %v972
      %v1197 = vmul.f32 %v973, %v973
      %v1198 = vmul.f32 %v974, %v974
      %v1199 = vmul.f32 %v975, %v975
      %v1200 = vmul.f32 %v976, %v976
      %v1201 = vmul.f32 %v977, %v977
      %v1202 = vmul.f32 %v978, %v978
      %v1203 = vmul.f32 %v979, %v979
      %v1204 = vmul.f32 %v980, %v980
      %v1205 = vmul.f32 %v981, %v981
      %v1206 = vmul.f32 %v982, %v982
      %v1207 = vmul.f32 %v983, %v983
      %v1208 = vmul.f32 %v984, %v984
      %v1209 = vmul.f32 %v985, %v985
      %v1210 = vmul.f32 %v986, %v986
      %v1211 = vmul.f32 %v987, %v987
      %v1212 = vmul.f32 %v988, %v988
      %v1213 = vmul.f32 %v989, %v989
      %v1214 = vmul.f32 %v990, %v990
      %v1215 = vmul.f32 %v991, %v991
      %v1216 = vmul.f32 %v992, %v992
      %v1217 = vmul.f32 %v993, %v993
      %v1218 = vmul.f32 %v994, %v994
      %v1219 = vmul.f32 %v995, %v995
      %v1220 = vmul.f32 %v996, %v996
      %v1221 = vmul.f32 %v997, %v997
      %v1222 = vadd.f32 %v998, %v999
      %v1223 = vadd.f32 %v1222, %v1000
      %v1224 = vadd.f32 %v1223, %v1001
      %v1225 = vadd.f32 %v1224, %v1002
      %v1226 = vadd.f32 %v1225, %v1003
      %v1227 = vsel %vm458, %v1004, 0.0
      %v1228 = vadd.f32 %v1226, %v1227
      %1229 = vadd.xlane.f32.xlu0 %v1228
      %v1230 = vpop.xlane.xlu0 %1229
      %v1231 = vadd.f32 %v1005, %v1006
      %v1232 = vadd.f32 %v1231, %v1007
      %v1233 = vadd.f32 %v1232, %v1008
      %v1234 = vadd.f32 %v1233, %v1009
      %v1235 = vadd.f32 %v1234, %v1010
      %v1236 = vsel %vm458, %v1011, 0.0
      %v1237 = vadd.f32 %v1235, %v1236
      %1238 = vadd.xlane.f32.xlu0 %v1237
      %v1239 = vpop.xlane.xlu0 %1238
      %v1240 = vadd.f32 %v1012, %v1013
      %v1241 = vadd.f32 %v1240, %v1014
      %v1242 = vadd.f32 %v1241, %v1015
      %v1243 = vadd.f32 %v1242, %v1016
      %v1244 = vadd.f32 %v1243, %v1017
      %v1245 = vsel %vm458, %v1018, 0.0
      %v1246 = vadd.f32 %v1244, %v1245
      %1247 = vadd.xlane.f32.xlu0 %v1246
      %v1248 = vpop.xlane.xlu0 %1247
      %v1249 = vadd.f32 %v1019, %v1020
      %v1250 = vadd.f32 %v1249, %v1021
      %v1251 = vadd.f32 %v1250, %v1022
      %v1252 = vadd.f32 %v1251, %v1023
      %v1253 = vadd.f32 %v1252, %v1024
      %v1254 = vsel %vm458, %v1025, 0.0
      %v1255 = vadd.f32 %v1253, %v1254
      %1256 = vadd.xlane.f32.xlu0 %v1255
      %v1257 = vpop.xlane.xlu0 %1256
      %v1258 = vadd.f32 %v1026, %v1027
      %v1259 = vadd.f32 %v1258, %v1028
      %v1260 = vadd.f32 %v1259, %v1029
      %v1261 = vadd.f32 %v1260, %v1030
      %v1262 = vadd.f32 %v1261, %v1031
      %v1263 = vsel %vm458, %v1032, 0.0
      %v1264 = vadd.f32 %v1262, %v1263
      %1265 = vadd.xlane.f32.xlu0 %v1264
      %v1266 = vpop.xlane.xlu0 %1265
      %v1267 = vadd.f32 %v1033, %v1034
      %v1268 = vadd.f32 %v1267, %v1035
      %v1269 = vadd.f32 %v1268, %v1036
      %v1270 = vadd.f32 %v1269, %v1037
      %v1271 = vadd.f32 %v1270, %v1038
      %v1272 = vsel %vm458, %v1039, 0.0
      %v1273 = vadd.f32 %v1271, %v1272
      %1274 = vadd.xlane.f32.xlu0 %v1273
      %v1275 = vpop.xlane.xlu0 %1274
      %v1276 = vadd.f32 %v1040, %v1041
      %v1277 = vadd.f32 %v1276, %v1042
      %v1278 = vadd.f32 %v1277, %v1043
      %v1279 = vadd.f32 %v1278, %v1044
      %v1280 = vadd.f32 %v1279, %v1045
      %v1281 = vsel %vm458, %v1046, 0.0
      %v1282 = vadd.f32 %v1280, %v1281
      %1283 = vadd.xlane.f32.xlu0 %v1282
      %v1284 = vpop.xlane.xlu0 %1283
      %v1285 = vadd.f32 %v1047, %v1048
      %v1286 = vadd.f32 %v1285, %v1049
      %v1287 = vadd.f32 %v1286, %v1050
      %v1288 = vadd.f32 %v1287, %v1051
      %v1289 = vadd.f32 %v1288, %v1052
      %v1290 = vsel %vm458, %v1053, 0.0
      %v1291 = vadd.f32 %v1289, %v1290
      %1292 = vadd.xlane.f32.xlu0 %v1291
      %v1293 = vpop.xlane.xlu0 %1292
      %v1294 = vadd.f32 %v1054, %v1055
      %v1295 = vadd.f32 %v1294, %v1056
      %v1296 = vadd.f32 %v1295, %v1057
      %v1297 = vadd.f32 %v1296, %v1058
      %v1298 = vadd.f32 %v1297, %v1059
      %v1299 = vsel %vm458, %v1060, 0.0
      %v1300 = vadd.f32 %v1298, %v1299
      %1301 = vadd.xlane.f32.xlu0 %v1300
      %v1302 = vpop.xlane.xlu0 %1301
      %v1303 = vadd.f32 %v1061, %v1062
      %v1304 = vadd.f32 %v1303, %v1063
      %v1305 = vadd.f32 %v1304, %v1064
      %v1306 = vadd.f32 %v1305, %v1065
      %v1307 = vadd.f32 %v1306, %v1066
      %v1308 = vsel %vm458, %v1067, 0.0
      %v1309 = vadd.f32 %v1307, %v1308
      %1310 = vadd.xlane.f32.xlu0 %v1309
      %v1311 = vpop.xlane.xlu0 %1310
      %v1312 = vadd.f32 %v1068, %v1069
      %v1313 = vadd.f32 %v1312, %v1070
      %v1314 = vadd.f32 %v1313, %v1071
      %v1315 = vadd.f32 %v1314, %v1072
      %v1316 = vadd.f32 %v1315, %v1073
      %v1317 = vsel %vm458, %v1074, 0.0
      %v1318 = vadd.f32 %v1316, %v1317
      %1319 = vadd.xlane.f32.xlu0 %v1318
      %v1320 = vpop.xlane.xlu0 %1319
      %v1321 = vadd.f32 %v1075, %v1076
      %v1322 = vadd.f32 %v1321, %v1077
      %v1323 = vadd.f32 %v1322, %v1078
      %v1324 = vadd.f32 %v1323, %v1079
      %v1325 = vadd.f32 %v1324, %v1080
      %v1326 = vsel %vm458, %v1081, 0.0
      %v1327 = vadd.f32 %v1325, %v1326
      %1328 = vadd.xlane.f32.xlu0 %v1327
      %v1329 = vpop.xlane.xlu0 %1328
      %v1330 = vadd.f32 %v1082, %v1083
      %v1331 = vadd.f32 %v1330, %v1084
      %v1332 = vadd.f32 %v1331, %v1085
      %v1333 = vadd.f32 %v1332, %v1086
      %v1334 = vadd.f32 %v1333, %v1087
      %v1335 = vsel %vm458, %v1088, 0.0
      %v1336 = vadd.f32 %v1334, %v1335
      %1337 = vadd.xlane.f32.xlu0 %v1336
      %v1338 = vpop.xlane.xlu0 %1337
      %v1339 = vadd.f32 %v1089, %v1090
      %v1340 = vadd.f32 %v1339, %v1091
      %v1341 = vadd.f32 %v1340, %v1092
      %v1342 = vadd.f32 %v1341, %v1093
      %v1343 = vadd.f32 %v1342, %v1094
      %v1344 = vsel %vm458, %v1095, 0.0
      %v1345 = vadd.f32 %v1343, %v1344
      %1346 = vadd.xlane.f32.xlu0 %v1345
      %v1347 = vpop.xlane.xlu0 %1346
      %v1348 = vadd.f32 %v1096, %v1097
      %v1349 = vadd.f32 %v1348, %v1098
      %v1350 = vadd.f32 %v1349, %v1099
      %v1351 = vadd.f32 %v1350, %v1100
      %v1352 = vadd.f32 %v1351, %v1101
      %v1353 = vsel %vm458, %v1102, 0.0
      %v1354 = vadd.f32 %v1352, %v1353
      %1355 = vadd.xlane.f32.xlu0 %v1354
      %v1356 = vpop.xlane.xlu0 %1355
      %v1357 = vadd.f32 %v1103, %v1104
      %v1358 = vadd.f32 %v1357, %v1105
      %v1359 = vadd.f32 %v1358, %v1106
      %v1360 = vadd.f32 %v1359, %v1107
      %v1361 = vadd.f32 %v1360, %v1108
      %v1362 = vsel %vm458, %v1109, 0.0
      %v1363 = vadd.f32 %v1361, %v1362
      %1364 = vadd.xlane.f32.xlu0 %v1363
      %v1365 = vpop.xlane.xlu0 %1364
      %v1366 = vadd.f32 %v1110, %v1111
      %v1367 = vadd.f32 %v1366, %v1112
      %v1368 = vadd.f32 %v1367, %v1113
      %v1369 = vadd.f32 %v1368, %v1114
      %v1370 = vadd.f32 %v1369, %v1115
      %v1371 = vsel %vm458, %v1116, 0.0
      %v1372 = vadd.f32 %v1370, %v1371
      %1373 = vadd.xlane.f32.xlu0 %v1372
      %v1374 = vpop.xlane.xlu0 %1373
      %v1375 = vadd.f32 %v1117, %v1118
      %v1376 = vadd.f32 %v1375, %v1119
      %v1377 = vadd.f32 %v1376, %v1120
      %v1378 = vadd.f32 %v1377, %v1121
      %v1379 = vadd.f32 %v1378, %v1122
      %v1380 = vsel %vm458, %v1123, 0.0
      %v1381 = vadd.f32 %v1379, %v1380
      %1382 = vadd.xlane.f32.xlu0 %v1381
      %v1383 = vpop.xlane.xlu0 %1382
      %v1384 = vadd.f32 %v1124, %v1125
      %v1385 = vadd.f32 %v1384, %v1126
      %v1386 = vadd.f32 %v1385, %v1127
      %v1387 = vadd.f32 %v1386, %v1128
      %v1388 = vadd.f32 %v1387, %v1129
      %v1389 = vsel %vm458, %v1130, 0.0
      %v1390 = vadd.f32 %v1388, %v1389
      %1391 = vadd.xlane.f32.xlu0 %v1390
      %v1392 = vpop.xlane.xlu0 %1391
      %v1393 = vadd.f32 %v1131, %v1132
      %v1394 = vadd.f32 %v1393, %v1133
      %v1395 = vadd.f32 %v1394, %v1134
      %v1396 = vadd.f32 %v1395, %v1135
      %v1397 = vadd.f32 %v1396, %v1136
      %v1398 = vsel %vm458, %v1137, 0.0
      %v1399 = vadd.f32 %v1397, %v1398
      %1400 = vadd.xlane.f32.xlu0 %v1399
      %v1401 = vpop.xlane.xlu0 %1400
      %v1402 = vadd.f32 %v1138, %v1139
      %v1403 = vadd.f32 %v1402, %v1140
      %v1404 = vadd.f32 %v1403, %v1141
      %v1405 = vadd.f32 %v1404, %v1142
      %v1406 = vadd.f32 %v1405, %v1143
      %v1407 = vsel %vm458, %v1144, 0.0
      %v1408 = vadd.f32 %v1406, %v1407
      %1409 = vadd.xlane.f32.xlu0 %v1408
      %v1410 = vpop.xlane.xlu0 %1409
      %v1411 = vadd.f32 %v1145, %v1146
      %v1412 = vadd.f32 %v1411, %v1147
      %v1413 = vadd.f32 %v1412, %v1148
      %v1414 = vadd.f32 %v1413, %v1149
      %v1415 = vadd.f32 %v1414, %v1150
      %v1416 = vsel %vm458, %v1151, 0.0
      %v1417 = vadd.f32 %v1415, %v1416
      %1418 = vadd.xlane.f32.xlu0 %v1417
      %v1419 = vpop.xlane.xlu0 %1418
      %v1420 = vadd.f32 %v1152, %v1153
      %v1421 = vadd.f32 %v1420, %v1154
      %v1422 = vadd.f32 %v1421, %v1155
      %v1423 = vadd.f32 %v1422, %v1156
      %v1424 = vadd.f32 %v1423, %v1157
      %v1425 = vsel %vm458, %v1158, 0.0
      %v1426 = vadd.f32 %v1424, %v1425
      %1427 = vadd.xlane.f32.xlu0 %v1426
      %v1428 = vpop.xlane.xlu0 %1427
      %v1429 = vadd.f32 %v1159, %v1160
      %v1430 = vadd.f32 %v1429, %v1161
      %v1431 = vadd.f32 %v1430, %v1162
      %v1432 = vadd.f32 %v1431, %v1163
      %v1433 = vadd.f32 %v1432, %v1164
      %v1434 = vsel %vm458, %v1165, 0.0
      %v1435 = vadd.f32 %v1433, %v1434
      %1436 = vadd.xlane.f32.xlu0 %v1435
      %v1437 = vpop.xlane.xlu0 %1436
      %v1438 = vadd.f32 %v1166, %v1167
      %v1439 = vadd.f32 %v1438, %v1168
      %v1440 = vadd.f32 %v1439, %v1169
      %v1441 = vadd.f32 %v1440, %v1170
      %v1442 = vadd.f32 %v1441, %v1171
      %v1443 = vsel %vm458, %v1172, 0.0
      %v1444 = vadd.f32 %v1442, %v1443
      %1445 = vadd.xlane.f32.xlu0 %v1444
      %v1446 = vpop.xlane.xlu0 %1445
      %v1447 = vadd.f32 %v1173, %v1174
      %v1448 = vadd.f32 %v1447, %v1175
      %v1449 = vadd.f32 %v1448, %v1176
      %v1450 = vadd.f32 %v1449, %v1177
      %v1451 = vadd.f32 %v1450, %v1178
      %v1452 = vsel %vm458, %v1179, 0.0
      %v1453 = vadd.f32 %v1451, %v1452
      %1454 = vadd.xlane.f32.xlu0 %v1453
      %v1455 = vpop.xlane.xlu0 %1454
      %v1456 = vadd.f32 %v1180, %v1181
      %v1457 = vadd.f32 %v1456, %v1182
      %v1458 = vadd.f32 %v1457, %v1183
      %v1459 = vadd.f32 %v1458, %v1184
      %v1460 = vadd.f32 %v1459, %v1185
      %v1461 = vsel %vm458, %v1186, 0.0
      %v1462 = vadd.f32 %v1460, %v1461
      %1463 = vadd.xlane.f32.xlu0 %v1462
      %v1464 = vpop.xlane.xlu0 %1463
      %v1465 = vadd.f32 %v1187, %v1188
      %v1466 = vadd.f32 %v1465, %v1189
      %v1467 = vadd.f32 %v1466, %v1190
      %v1468 = vadd.f32 %v1467, %v1191
      %v1469 = vadd.f32 %v1468, %v1192
      %v1470 = vsel %vm458, %v1193, 0.0
      %v1471 = vadd.f32 %v1469, %v1470
      %1472 = vadd.xlane.f32.xlu0 %v1471
      %v1473 = vpop.xlane.xlu0 %1472
      %v1474 = vadd.f32 %v1194, %v1195
      %v1475 = vadd.f32 %v1474, %v1196
      %v1476 = vadd.f32 %v1475, %v1197
      %v1477 = vadd.f32 %v1476, %v1198
      %v1478 = vadd.f32 %v1477, %v1199
      %v1479 = vsel %vm458, %v1200, 0.0
      %v1480 = vadd.f32 %v1478, %v1479
      %1481 = vadd.xlane.f32.xlu0 %v1480
      %v1482 = vpop.xlane.xlu0 %1481
      %v1483 = vadd.f32 %v1201, %v1202
      %v1484 = vadd.f32 %v1483, %v1203
      %v1485 = vadd.f32 %v1484, %v1204
      %v1486 = vadd.f32 %v1485, %v1205
      %v1487 = vadd.f32 %v1486, %v1206
      %v1488 = vsel %vm458, %v1207, 0.0
      %v1489 = vadd.f32 %v1487, %v1488
      %1490 = vadd.xlane.f32.xlu0 %v1489
      %v1491 = vpop.xlane.xlu0 %1490
      %v1492 = vadd.f32 %v1208, %v1209
      %v1493 = vadd.f32 %v1492, %v1210
      %v1494 = vadd.f32 %v1493, %v1211
      %v1495 = vadd.f32 %v1494, %v1212
      %v1496 = vadd.f32 %v1495, %v1213
      %v1497 = vsel %vm458, %v1214, 0.0
      %v1498 = vadd.f32 %v1496, %v1497
      %1499 = vadd.xlane.f32.xlu0 %v1498
      %v1500 = vpop.xlane.xlu0 %1499
      %v1501 = vadd.f32 %v1215, %v1216
      %v1502 = vadd.f32 %v1501, %v1217
      %v1503 = vadd.f32 %v1502, %v1218
      %v1504 = vadd.f32 %v1503, %v1219
      %v1505 = vadd.f32 %v1504, %v1220
      %v1506 = vsel %vm458, %v1221, 0.0
      %v1507 = vadd.f32 %v1505, %v1506
      %1508 = vadd.xlane.f32.xlu0 %v1507
      %v1509 = vpop.xlane.xlu0 %1508
      %v1510 = vmul.f32 %v1230, 0.0012755102
      %v1511 = vmul.f32 %v1239, 0.0012755102
      %v1512 = vmul.f32 %v1248, 0.0012755102
      %v1513 = vmul.f32 %v1257, 0.0012755102
      %v1514 = vmul.f32 %v1266, 0.0012755102
      %v1515 = vmul.f32 %v1275, 0.0012755102
      %v1516 = vmul.f32 %v1284, 0.0012755102
      %v1517 = vmul.f32 %v1293, 0.0012755102
      %v1518 = vmul.f32 %v1302, 0.0012755102
      %v1519 = vmul.f32 %v1311, 0.0012755102
      %v1520 = vmul.f32 %v1320, 0.0012755102
      %v1521 = vmul.f32 %v1329, 0.0012755102
      %v1522 = vmul.f32 %v1338, 0.0012755102
      %v1523 = vmul.f32 %v1347, 0.0012755102
      %v1524 = vmul.f32 %v1356, 0.0012755102
      %v1525 = vmul.f32 %v1365, 0.0012755102
      %v1526 = vmul.f32 %v1374, 0.0012755102
      %v1527 = vmul.f32 %v1383, 0.0012755102
      %v1528 = vmul.f32 %v1392, 0.0012755102
      %v1529 = vmul.f32 %v1401, 0.0012755102
      %v1530 = vmul.f32 %v1410, 0.0012755102
      %v1531 = vmul.f32 %v1419, 0.0012755102
      %v1532 = vmul.f32 %v1428, 0.0012755102
      %v1533 = vmul.f32 %v1437, 0.0012755102
      %v1534 = vmul.f32 %v1446, 0.0012755102
      %v1535 = vmul.f32 %v1455, 0.0012755102
      %v1536 = vmul.f32 %v1464, 0.0012755102
      %v1537 = vmul.f32 %v1473, 0.0012755102
      %v1538 = vmul.f32 %v1482, 0.0012755102
      %v1539 = vmul.f32 %v1491, 0.0012755102
      %v1540 = vmul.f32 %v1500, 0.0012755102
      %v1541 = vmul.f32 %v1509, 0.0012755102
      %v1542 = vld [vmem:[%s1] sm:$0xff]
      %v1543 = vld [vmem:[%s1 + $0x8] sm:$0xff]
      %v1544 = vld [vmem:[%s1 + $0x10] sm:$0xff]
      %v1545 = vld [vmem:[%s1 + $0x18] sm:$0xff]
      %v1546 = vld [vmem:[%s1 + $0x20] sm:$0xff]
      %v1547 = vld [vmem:[%s1 + $0x28] sm:$0xff]
      %v1548 = vld [vmem:[%s1 + $0x30] sm:$0xff]
      %v1549 = vld [vmem:[%s1 + $0x38] sm:$0xff]
      %v1550 = vld [vmem:[%s1 + $0x40] sm:$0xff]
      %v1551 = vld [vmem:[%s1 + $0x48] sm:$0xff]
      %v1552 = vld [vmem:[%s1 + $0x50] sm:$0xff]
      %v1553 = vld [vmem:[%s1 + $0x58] sm:$0xff]
      %v1554 = vld [vmem:[%s1 + $0x60] sm:$0xff]
      %v1555 = vld [vmem:[%s1 + $0x68] sm:$0xff]
      %v1556 = vld [vmem:[%s1 + $0x70] sm:$0xff]
      %v1557 = vld [vmem:[%s1 + $0x78] sm:$0xff]
      %v1558 = vld [vmem:[%s1 + $0x80] sm:$0xff]
      %v1559 = vld [vmem:[%s1 + $0x88] sm:$0xff]
      %v1560 = vld [vmem:[%s1 + $0x90] sm:$0xff]
      %v1561 = vld [vmem:[%s1 + $0x98] sm:$0xff]
      %v1562 = vld [vmem:[%s1 + $0xa0] sm:$0xff]
      %v1563 = vld [vmem:[%s1 + $0xa8] sm:$0xff]
      %v1564 = vld [vmem:[%s1 + $0xb0] sm:$0xff]
      %v1565 = vld [vmem:[%s1 + $0xb8] sm:$0xff]
      %v1566 = vld [vmem:[%s1 + $0xc0] sm:$0xff]
      %v1567 = vld [vmem:[%s1 + $0xc8] sm:$0xff]
      %v1568 = vld [vmem:[%s1 + $0xd0] sm:$0xff]
      %v1569 = vld [vmem:[%s1 + $0xd8] sm:$0xff]
      %v1570 = vld [vmem:[%s1 + $0xe0] sm:$0xff]
      %v1571 = vld [vmem:[%s1 + $0xe8] sm:$0xff]
      %v1572 = vld [vmem:[%s1 + $0xf0] sm:$0xff]
      %v1573 = vld [vmem:[%s1 + $0xf8] sm:$0xff]
      %v1574 = vadd.f32 %v1510, 1e-05
      %v1575 = vadd.f32 %v1511, 1e-05
      %v1576 = vadd.f32 %v1512, 1e-05
      %v1577 = vadd.f32 %v1513, 1e-05
      %v1578 = vadd.f32 %v1514, 1e-05
      %v1579 = vadd.f32 %v1515, 1e-05
      %v1580 = vadd.f32 %v1516, 1e-05
      %v1581 = vadd.f32 %v1517, 1e-05
      %v1582 = vadd.f32 %v1518, 1e-05
      %v1583 = vadd.f32 %v1519, 1e-05
      %v1584 = vadd.f32 %v1520, 1e-05
      %v1585 = vadd.f32 %v1521, 1e-05
      %v1586 = vadd.f32 %v1522, 1e-05
      %v1587 = vadd.f32 %v1523, 1e-05
      %v1588 = vadd.f32 %v1524, 1e-05
      %v1589 = vadd.f32 %v1525, 1e-05
      %v1590 = vadd.f32 %v1526, 1e-05
      %v1591 = vadd.f32 %v1527, 1e-05
      %v1592 = vadd.f32 %v1528, 1e-05
      %v1593 = vadd.f32 %v1529, 1e-05
      %v1594 = vadd.f32 %v1530, 1e-05
      %v1595 = vadd.f32 %v1531, 1e-05
      %v1596 = vadd.f32 %v1532, 1e-05
      %v1597 = vadd.f32 %v1533, 1e-05
      %v1598 = vadd.f32 %v1534, 1e-05
      %v1599 = vadd.f32 %v1535, 1e-05
      %v1600 = vadd.f32 %v1536, 1e-05
      %v1601 = vadd.f32 %v1537, 1e-05
      %v1602 = vadd.f32 %v1538, 1e-05
      %v1603 = vadd.f32 %v1539, 1e-05
      %v1604 = vadd.f32 %v1540, 1e-05
      %v1605 = vadd.f32 %v1541, 1e-05
      %v1606 = vrsqrt.pop %v1574
      %v1607 = vrsqrt.pop %v1575
      %v1608 = vrsqrt.pop %v1576
      %v1609 = vrsqrt.pop %v1577
      %v1610 = vrsqrt.pop %v1578
      %v1611 = vrsqrt.pop %v1579
      %v1612 = vrsqrt.pop %v1580
      %v1613 = vrsqrt.pop %v1581
      %v1614 = vrsqrt.pop %v1582
      %v1615 = vrsqrt.pop %v1583
      %v1616 = vrsqrt.pop %v1584
      %v1617 = vrsqrt.pop %v1585
      %v1618 = vrsqrt.pop %v1586
      %v1619 = vrsqrt.pop %v1587
      %v1620 = vrsqrt.pop %v1588
      %v1621 = vrsqrt.pop %v1589
      %v1622 = vrsqrt.pop %v1590
      %v1623 = vrsqrt.pop %v1591
      %v1624 = vrsqrt.pop %v1592
      %v1625 = vrsqrt.pop %v1593
      %v1626 = vrsqrt.pop %v1594
      %v1627 = vrsqrt.pop %v1595
      %v1628 = vrsqrt.pop %v1596
      %v1629 = vrsqrt.pop %v1597
      %v1630 = vrsqrt.pop %v1598
      %v1631 = vrsqrt.pop %v1599
      %v1632 = vrsqrt.pop %v1600
      %v1633 = vrsqrt.pop %v1601
      %v1634 = vrsqrt.pop %v1602
      %v1635 = vrsqrt.pop %v1603
      %v1636 = vrsqrt.pop %v1604
      %v1637 = vrsqrt.pop %v1605
      %v1638 = vmul.f32 %v1542, %v1606
      %v1639 = vmul.f32 %v1543, %v1607
      %v1640 = vmul.f32 %v1544, %v1608
      %v1641 = vmul.f32 %v1545, %v1609
      %v1642 = vmul.f32 %v1546, %v1610
      %v1643 = vmul.f32 %v1547, %v1611
      %v1644 = vmul.f32 %v1548, %v1612
      %v1645 = vmul.f32 %v1549, %v1613
      %v1646 = vmul.f32 %v1550, %v1614
      %v1647 = vmul.f32 %v1551, %v1615
      %v1648 = vmul.f32 %v1552, %v1616
      %v1649 = vmul.f32 %v1553, %v1617
      %v1650 = vmul.f32 %v1554, %v1618
      %v1651 = vmul.f32 %v1555, %v1619
      %v1652 = vmul.f32 %v1556, %v1620
      %v1653 = vmul.f32 %v1557, %v1621
      %v1654 = vmul.f32 %v1558, %v1622
      %v1655 = vmul.f32 %v1559, %v1623
      %v1656 = vmul.f32 %v1560, %v1624
      %v1657 = vmul.f32 %v1561, %v1625
      %v1658 = vmul.f32 %v1562, %v1626
      %v1659 = vmul.f32 %v1563, %v1627
      %v1660 = vmul.f32 %v1564, %v1628
      %v1661 = vmul.f32 %v1565, %v1629
      %v1662 = vmul.f32 %v1566, %v1630
      %v1663 = vmul.f32 %v1567, %v1631
      %v1664 = vmul.f32 %v1568, %v1632
      %v1665 = vmul.f32 %v1569, %v1633
      %v1666 = vmul.f32 %v1570, %v1634
      %v1667 = vmul.f32 %v1571, %v1635
      %v1668 = vmul.f32 %v1572, %v1636
      %v1669 = vmul.f32 %v1573, %v1637
      %1671 = vset.pattern.permute.xlu0 0
      %1672 = vperm.xlu0 %1671, %v1638
      %v1673 = vpop.permute.xlu0 %1672
      %1676 = vset.pattern.permute.xlu0 0
      %1677 = vperm.xlu0 %1676, %v1639
      %v1678 = vpop.permute.xlu0 %1677
      %1681 = vset.pattern.permute.xlu0 0
      %1682 = vperm.xlu0 %1681, %v1640
      %v1683 = vpop.permute.xlu0 %1682
      %1686 = vset.pattern.permute.xlu0 0
      %1687 = vperm.xlu0 %1686, %v1641
      %v1688 = vpop.permute.xlu0 %1687
      %1691 = vset.pattern.permute.xlu0 0
      %1692 = vperm.xlu0 %1691, %v1642
      %v1693 = vpop.permute.xlu0 %1692
      %1696 = vset.pattern.permute.xlu0 0
      %1697 = vperm.xlu0 %1696, %v1643
      %v1698 = vpop.permute.xlu0 %1697
      %1701 = vset.pattern.permute.xlu0 0
      %1702 = vperm.xlu0 %1701, %v1644
      %v1703 = vpop.permute.xlu0 %1702
      %1706 = vset.pattern.permute.xlu0 0
      %1707 = vperm.xlu0 %1706, %v1645
      %v1708 = vpop.permute.xlu0 %1707
      %1711 = vset.pattern.permute.xlu0 0
      %1712 = vperm.xlu0 %1711, %v1646
      %v1713 = vpop.permute.xlu0 %1712
      %1716 = vset.pattern.permute.xlu0 0
      %1717 = vperm.xlu0 %1716, %v1647
      %v1718 = vpop.permute.xlu0 %1717
      %1721 = vset.pattern.permute.xlu0 0
      %1722 = vperm.xlu0 %1721, %v1648
      %v1723 = vpop.permute.xlu0 %1722
      %1726 = vset.pattern.permute.xlu0 0
      %1727 = vperm.xlu0 %1726, %v1649
      %v1728 = vpop.permute.xlu0 %1727
      %1731 = vset.pattern.permute.xlu0 0
      %1732 = vperm.xlu0 %1731, %v1650
      %v1733 = vpop.permute.xlu0 %1732
      %1736 = vset.pattern.permute.xlu0 0
      %1737 = vperm.xlu0 %1736, %v1651
      %v1738 = vpop.permute.xlu0 %1737
      %1741 = vset.pattern.permute.xlu0 0
      %1742 = vperm.xlu0 %1741, %v1652
      %v1743 = vpop.permute.xlu0 %1742
      %1746 = vset.pattern.permute.xlu0 0
      %1747 = vperm.xlu0 %1746, %v1653
      %v1748 = vpop.permute.xlu0 %1747
      %1751 = vset.pattern.permute.xlu0 0
      %1752 = vperm.xlu0 %1751, %v1654
      %v1753 = vpop.permute.xlu0 %1752
      %1756 = vset.pattern.permute.xlu0 0
      %1757 = vperm.xlu0 %1756, %v1655
      %v1758 = vpop.permute.xlu0 %1757
      %1761 = vset.pattern.permute.xlu0 0
      %1762 = vperm.xlu0 %1761, %v1656
      %v1763 = vpop.permute.xlu0 %1762
      %1766 = vset.pattern.permute.xlu0 0
      %1767 = vperm.xlu0 %1766, %v1657
      %v1768 = vpop.permute.xlu0 %1767
      %1771 = vset.pattern.permute.xlu0 0
      %1772 = vperm.xlu0 %1771, %v1658
      %v1773 = vpop.permute.xlu0 %1772
      %1776 = vset.pattern.permute.xlu0 0
      %1777 = vperm.xlu0 %1776, %v1659
      %v1778 = vpop.permute.xlu0 %1777
      %1781 = vset.pattern.permute.xlu0 0
      %1782 = vperm.xlu0 %1781, %v1660
      %v1783 = vpop.permute.xlu0 %1782
      %1786 = vset.pattern.permute.xlu0 0
      %1787 = vperm.xlu0 %1786, %v1661
      %v1788 = vpop.permute.xlu0 %1787
      %1791 = vset.pattern.permute.xlu0 0
      %1792 = vperm.xlu0 %1791, %v1662
      %v1793 = vpop.permute.xlu0 %1792
      %1796 = vset.pattern.permute.xlu0 0
      %1797 = vperm.xlu0 %1796, %v1663
      %v1798 = vpop.permute.xlu0 %1797
      %1801 = vset.pattern.permute.xlu0 0
      %1802 = vperm.xlu0 %1801, %v1664
      %v1803 = vpop.permute.xlu0 %1802
      %1806 = vset.pattern.permute.xlu0 0
      %1807 = vperm.xlu0 %1806, %v1665
      %v1808 = vpop.permute.xlu0 %1807
      %1811 = vset.pattern.permute.xlu0 0
      %1812 = vperm.xlu0 %1811, %v1666
      %v1813 = vpop.permute.xlu0 %1812
      %1816 = vset.pattern.permute.xlu0 0
      %1817 = vperm.xlu0 %1816, %v1667
      %v1818 = vpop.permute.xlu0 %1817
      %1821 = vset.pattern.permute.xlu0 0
      %1822 = vperm.xlu0 %1821, %v1668
      %v1823 = vpop.permute.xlu0 %1822
      %1826 = vset.pattern.permute.xlu0 0
      %1827 = vperm.xlu0 %1826, %v1669
      %v1828 = vpop.permute.xlu0 %1827
      %v1830 = vmul.f32 %v774, %v1673
      %v1831 = vmul.f32 %v775, %v1673
      %v1832 = vmul.f32 %v776, %v1673
      %v1833 = vmul.f32 %v777, %v1673
      %v1834 = vmul.f32 %v778, %v1673
      %v1835 = vmul.f32 %v779, %v1673
      %v1836 = vmul.f32 %v780, %v1673
      %v1837 = vmul.f32 %v781, %v1678
      %v1838 = vmul.f32 %v782, %v1678
      %v1839 = vmul.f32 %v783, %v1678
      %v1840 = vmul.f32 %v784, %v1678
      %v1841 = vmul.f32 %v785, %v1678
      %v1842 = vmul.f32 %v786, %v1678
      %v1843 = vmul.f32 %v787, %v1678
      %v1844 = vmul.f32 %v788, %v1683
      %v1845 = vmul.f32 %v789, %v1683
      %v1846 = vmul.f32 %v790, %v1683
      %v1847 = vmul.f32 %v791, %v1683
      %v1848 = vmul.f32 %v792, %v1683
      %v1849 = vmul.f32 %v793, %v1683
      %v1850 = vmul.f32 %v794, %v1683
      %v1851 = vmul.f32 %v795, %v1688
      %v1852 = vmul.f32 %v796, %v1688
      %v1853 = vmul.f32 %v797, %v1688
      %v1854 = vmul.f32 %v798, %v1688
      %v1855 = vmul.f32 %v799, %v1688
      %v1856 = vmul.f32 %v800, %v1688
      %v1857 = vmul.f32 %v801, %v1688
      %v1858 = vmul.f32 %v802, %v1693
      %v1859 = vmul.f32 %v803, %v1693
      %v1860 = vmul.f32 %v804, %v1693
      %v1861 = vmul.f32 %v805, %v1693
      %v1862 = vmul.f32 %v806, %v1693
      %v1863 = vmul.f32 %v807, %v1693
      %v1864 = vmul.f32 %v808, %v1693
      %v1865 = vmul.f32 %v809, %v1698
      %v1866 = vmul.f32 %v810, %v1698
      %v1867 = vmul.f32 %v811, %v1698
      %v1868 = vmul.f32 %v812, %v1698
      %v1869 = vmul.f32 %v813, %v1698
      %v1870 = vmul.f32 %v814, %v1698
      %v1871 = vmul.f32 %v815, %v1698
      %v1872 = vmul.f32 %v816, %v1703
      %v1873 = vmul.f32 %v817, %v1703
      %v1874 = vmul.f32 %v818, %v1703
      %v1875 = vmul.f32 %v819, %v1703
      %v1876 = vmul.f32 %v820, %v1703
      %v1877 = vmul.f32 %v821, %v1703
      %v1878 = vmul.f32 %v822, %v1703
      %v1879 = vmul.f32 %v823, %v1708
      %v1880 = vmul.f32 %v824, %v1708
      %v1881 = vmul.f32 %v825, %v1708
      %v1882 = vmul.f32 %v826, %v1708
      %v1883 = vmul.f32 %v827, %v1708
      %v1884 = vmul.f32 %v828, %v1708
      %v1885 = vmul.f32 %v829, %v1708
      %v1886 = vmul.f32 %v830, %v1713
      %v1887 = vmul.f32 %v831, %v1713
      %v1888 = vmul.f32 %v832, %v1713
      %v1889 = vmul.f32 %v833, %v1713
      %v1890 = vmul.f32 %v834, %v1713
      %v1891 = vmul.f32 %v835, %v1713
      %v1892 = vmul.f32 %v836, %v1713
      %v1893 = vmul.f32 %v837, %v1718
      %v1894 = vmul.f32 %v838, %v1718
      %v1895 = vmul.f32 %v839, %v1718
      %v1896 = vmul.f32 %v840, %v1718
      %v1897 = vmul.f32 %v841, %v1718
      %v1898 = vmul.f32 %v842, %v1718
      %v1899 = vmul.f32 %v843, %v1718
      %v1900 = vmul.f32 %v844, %v1723
      %v1901 = vmul.f32 %v845, %v1723
      %v1902 = vmul.f32 %v846, %v1723
      %v1903 = vmul.f32 %v847, %v1723
      %v1904 = vmul.f32 %v848, %v1723
      %v1905 = vmul.f32 %v849, %v1723
      %v1906 = vmul.f32 %v850, %v1723
      %v1907 = vmul.f32 %v851, %v1728
      %v1908 = vmul.f32 %v852, %v1728
      %v1909 = vmul.f32 %v853, %v1728
      %v1910 = vmul.f32 %v854, %v1728
      %v1911 = vmul.f32 %v855, %v1728
      %v1912 = vmul.f32 %v856, %v1728
      %v1913 = vmul.f32 %v857, %v1728
      %v1914 = vmul.f32 %v858, %v1733
      %v1915 = vmul.f32 %v859, %v1733
      %v1916 = vmul.f32 %v860, %v1733
      %v1917 = vmul.f32 %v861, %v1733
      %v1918 = vmul.f32 %v862, %v1733
      %v1919 = vmul.f32 %v863, %v1733
      %v1920 = vmul.f32 %v864, %v1733
      %v1921 = vmul.f32 %v865, %v1738
      %v1922 = vmul.f32 %v866, %v1738
      %v1923 = vmul.f32 %v867, %v1738
      %v1924 = vmul.f32 %v868, %v1738
      %v1925 = vmul.f32 %v869, %v1738
      %v1926 = vmul.f32 %v870, %v1738
      %v1927 = vmul.f32 %v871, %v1738
      %v1928 = vmul.f32 %v872, %v1743
      %v1929 = vmul.f32 %v873, %v1743
      %v1930 = vmul.f32 %v874, %v1743
      %v1931 = vmul.f32 %v875, %v1743
      %v1932 = vmul.f32 %v876, %v1743
      %v1933 = vmul.f32 %v877, %v1743
      %v1934 = vmul.f32 %v878, %v1743
      %v1935 = vmul.f32 %v879, %v1748
      %v1936 = vmul.f32 %v880, %v1748
      %v1937 = vmul.f32 %v881, %v1748
      %v1938 = vmul.f32 %v882, %v1748
      %v1939 = vmul.f32 %v883, %v1748
      %v1940 = vmul.f32 %v884, %v1748
      %v1941 = vmul.f32 %v885, %v1748
      %v1942 = vmul.f32 %v886, %v1753
      %v1943 = vmul.f32 %v887, %v1753
      %v1944 = vmul.f32 %v888, %v1753
      %v1945 = vmul.f32 %v889, %v1753
      %v1946 = vmul.f32 %v890, %v1753
      %v1947 = vmul.f32 %v891, %v1753
      %v1948 = vmul.f32 %v892, %v1753
      %v1949 = vmul.f32 %v893, %v1758
      %v1950 = vmul.f32 %v894, %v1758
      %v1951 = vmul.f32 %v895, %v1758
      %v1952 = vmul.f32 %v896, %v1758
      %v1953 = vmul.f32 %v897, %v1758
      %v1954 = vmul.f32 %v898, %v1758
      %v1955 = vmul.f32 %v899, %v1758
      %v1956 = vmul.f32 %v900, %v1763
      %v1957 = vmul.f32 %v901, %v1763
      %v1958 = vmul.f32 %v902, %v1763
      %v1959 = vmul.f32 %v903, %v1763
      %v1960 = vmul.f32 %v904, %v1763
      %v1961 = vmul.f32 %v905, %v1763
      %v1962 = vmul.f32 %v906, %v1763
      %v1963 = vmul.f32 %v907, %v1768
      %v1964 = vmul.f32 %v908, %v1768
      %v1965 = vmul.f32 %v909, %v1768
      %v1966 = vmul.f32 %v910, %v1768
      %v1967 = vmul.f32 %v911, %v1768
      %v1968 = vmul.f32 %v912, %v1768
      %v1969 = vmul.f32 %v913, %v1768
      %v1970 = vmul.f32 %v914, %v1773
      %v1971 = vmul.f32 %v915, %v1773
      %v1972 = vmul.f32 %v916, %v1773
      %v1973 = vmul.f32 %v917, %v1773
      %v1974 = vmul.f32 %v918, %v1773
      %v1975 = vmul.f32 %v919, %v1773
      %v1976 = vmul.f32 %v920, %v1773
      %v1977 = vmul.f32 %v921, %v1778
      %v1978 = vmul.f32 %v922, %v1778
      %v1979 = vmul.f32 %v923, %v1778
      %v1980 = vmul.f32 %v924, %v1778
      %v1981 = vmul.f32 %v925, %v1778
      %v1982 = vmul.f32 %v926, %v1778
      %v1983 = vmul.f32 %v927, %v1778
      %v1984 = vmul.f32 %v928, %v1783
      %v1985 = vmul.f32 %v929, %v1783
      %v1986 = vmul.f32 %v930, %v1783
      %v1987 = vmul.f32 %v931, %v1783
      %v1988 = vmul.f32 %v932, %v1783
      %v1989 = vmul.f32 %v933, %v1783
      %v1990 = vmul.f32 %v934, %v1783
      %v1991 = vmul.f32 %v935, %v1788
      %v1992 = vmul.f32 %v936, %v1788
      %v1993 = vmul.f32 %v937, %v1788
      %v1994 = vmul.f32 %v938, %v1788
      %v1995 = vmul.f32 %v939, %v1788
      %v1996 = vmul.f32 %v940, %v1788
      %v1997 = vmul.f32 %v941, %v1788
      %v1998 = vmul.f32 %v942, %v1793
      %v1999 = vmul.f32 %v943, %v1793
      %v2000 = vmul.f32 %v944, %v1793
      %v2001 = vmul.f32 %v945, %v1793
      %v2002 = vmul.f32 %v946, %v1793
      %v2003 = vmul.f32 %v947, %v1793
      %v2004 = vmul.f32 %v948, %v1793
      %v2005 = vmul.f32 %v949, %v1798
      %v2006 = vmul.f32 %v950, %v1798
      %v2007 = vmul.f32 %v951, %v1798
      %v2008 = vmul.f32 %v952, %v1798
      %v2009 = vmul.f32 %v953, %v1798
      %v2010 = vmul.f32 %v954, %v1798
      %v2011 = vmul.f32 %v955, %v1798
      %v2012 = vmul.f32 %v956, %v1803
      %v2013 = vmul.f32 %v957, %v1803
      %v2014 = vmul.f32 %v958, %v1803
      %v2015 = vmul.f32 %v959, %v1803
      %v2016 = vmul.f32 %v960, %v1803
      %v2017 = vmul.f32 %v961, %v1803
      %v2018 = vmul.f32 %v962, %v1803
      %v2019 = vmul.f32 %v963, %v1808
      %v2020 = vmul.f32 %v964, %v1808
      %v2021 = vmul.f32 %v965, %v1808
      %v2022 = vmul.f32 %v966, %v1808
      %v2023 = vmul.f32 %v967, %v1808
      %v2024 = vmul.f32 %v968, %v1808
      %v2025 = vmul.f32 %v969, %v1808
      %v2026 = vmul.f32 %v970, %v1813
      %v2027 = vmul.f32 %v971, %v1813
      %v2028 = vmul.f32 %v972, %v1813
      %v2029 = vmul.f32 %v973, %v1813
      %v2030 = vmul.f32 %v974, %v1813
      %v2031 = vmul.f32 %v975, %v1813
      %v2032 = vmul.f32 %v976, %v1813
      %v2033 = vmul.f32 %v977, %v1818
      %v2034 = vmul.f32 %v978, %v1818
      %v2035 = vmul.f32 %v979, %v1818
      %v2036 = vmul.f32 %v980, %v1818
      %v2037 = vmul.f32 %v981, %v1818
      %v2038 = vmul.f32 %v982, %v1818
      %v2039 = vmul.f32 %v983, %v1818
      %v2040 = vmul.f32 %v984, %v1823
      %v2041 = vmul.f32 %v985, %v1823
      %v2042 = vmul.f32 %v986, %v1823
      %v2043 = vmul.f32 %v987, %v1823
      %v2044 = vmul.f32 %v988, %v1823
      %v2045 = vmul.f32 %v989, %v1823
      %v2046 = vmul.f32 %v990, %v1823
      %v2047 = vmul.f32 %v991, %v1828
      %v2048 = vmul.f32 %v992, %v1828
      %v2049 = vmul.f32 %v993, %v1828
      %v2050 = vmul.f32 %v994, %v1828
      %v2051 = vmul.f32 %v995, %v1828
      %v2052 = vmul.f32 %v996, %v1828
      %v2053 = vmul.f32 %v997, %v1828
      %2055 = vset.pattern.permute.xlu0 1
      %2056 = vperm.xlu0 %2055, %v1542
      %v2057 = vpop.permute.xlu0 %2056
      %2060 = vset.pattern.permute.xlu0 1
      %2061 = vperm.xlu0 %2060, %v1543
      %v2062 = vpop.permute.xlu0 %2061
      %2065 = vset.pattern.permute.xlu0 1
      %2066 = vperm.xlu0 %2065, %v1544
      %v2067 = vpop.permute.xlu0 %2066
      %2070 = vset.pattern.permute.xlu0 1
      %2071 = vperm.xlu0 %2070, %v1545
      %v2072 = vpop.permute.xlu0 %2071
      %2075 = vset.pattern.permute.xlu0 1
      %2076 = vperm.xlu0 %2075, %v1546
      %v2077 = vpop.permute.xlu0 %2076
      %2080 = vset.pattern.permute.xlu0 1
      %2081 = vperm.xlu0 %2080, %v1547
      %v2082 = vpop.permute.xlu0 %2081
      %2085 = vset.pattern.permute.xlu0 1
      %2086 = vperm.xlu0 %2085, %v1548
      %v2087 = vpop.permute.xlu0 %2086
      %2090 = vset.pattern.permute.xlu0 1
      %2091 = vperm.xlu0 %2090, %v1549
      %v2092 = vpop.permute.xlu0 %2091
      %2095 = vset.pattern.permute.xlu0 1
      %2096 = vperm.xlu0 %2095, %v1550
      %v2097 = vpop.permute.xlu0 %2096
      %2100 = vset.pattern.permute.xlu0 1
      %2101 = vperm.xlu0 %2100, %v1551
      %v2102 = vpop.permute.xlu0 %2101
      %2105 = vset.pattern.permute.xlu0 1
      %2106 = vperm.xlu0 %2105, %v1552
      %v2107 = vpop.permute.xlu0 %2106
      %2110 = vset.pattern.permute.xlu0 1
      %2111 = vperm.xlu0 %2110, %v1553
      %v2112 = vpop.permute.xlu0 %2111
      %2115 = vset.pattern.permute.xlu0 1
      %2116 = vperm.xlu0 %2115, %v1554
      %v2117 = vpop.permute.xlu0 %2116
      %2120 = vset.pattern.permute.xlu0 1
      %2121 = vperm.xlu0 %2120, %v1555
      %v2122 = vpop.permute.xlu0 %2121
      %2125 = vset.pattern.permute.xlu0 1
      %2126 = vperm.xlu0 %2125, %v1556
      %v2127 = vpop.permute.xlu0 %2126
      %2130 = vset.pattern.permute.xlu0 1
      %2131 = vperm.xlu0 %2130, %v1557
      %v2132 = vpop.permute.xlu0 %2131
      %2135 = vset.pattern.permute.xlu0 1
      %2136 = vperm.xlu0 %2135, %v1558
      %v2137 = vpop.permute.xlu0 %2136
      %2140 = vset.pattern.permute.xlu0 1
      %2141 = vperm.xlu0 %2140, %v1559
      %v2142 = vpop.permute.xlu0 %2141
      %2145 = vset.pattern.permute.xlu0 1
      %2146 = vperm.xlu0 %2145, %v1560
      %v2147 = vpop.permute.xlu0 %2146
      %2150 = vset.pattern.permute.xlu0 1
      %2151 = vperm.xlu0 %2150, %v1561
      %v2152 = vpop.permute.xlu0 %2151
      %2155 = vset.pattern.permute.xlu0 1
      %2156 = vperm.xlu0 %2155, %v1562
      %v2157 = vpop.permute.xlu0 %2156
      %2160 = vset.pattern.permute.xlu0 1
      %2161 = vperm.xlu0 %2160, %v1563
      %v2162 = vpop.permute.xlu0 %2161
      %2165 = vset.pattern.permute.xlu0 1
      %2166 = vperm.xlu0 %2165, %v1564
      %v2167 = vpop.permute.xlu0 %2166
      %2170 = vset.pattern.permute.xlu0 1
      %2171 = vperm.xlu0 %2170, %v1565
      %v2172 = vpop.permute.xlu0 %2171
      %2175 = vset.pattern.permute.xlu0 1
      %2176 = vperm.xlu0 %2175, %v1566
      %v2177 = vpop.permute.xlu0 %2176
      %2180 = vset.pattern.permute.xlu0 1
      %2181 = vperm.xlu0 %2180, %v1567
      %v2182 = vpop.permute.xlu0 %2181
      %2185 = vset.pattern.permute.xlu0 1
      %2186 = vperm.xlu0 %2185, %v1568
      %v2187 = vpop.permute.xlu0 %2186
      %2190 = vset.pattern.permute.xlu0 1
      %2191 = vperm.xlu0 %2190, %v1569
      %v2192 = vpop.permute.xlu0 %2191
      %2195 = vset.pattern.permute.xlu0 1
      %2196 = vperm.xlu0 %2195, %v1570
      %v2197 = vpop.permute.xlu0 %2196
      %2200 = vset.pattern.permute.xlu0 1
      %2201 = vperm.xlu0 %2200, %v1571
      %v2202 = vpop.permute.xlu0 %2201
      %2205 = vset.pattern.permute.xlu0 1
      %2206 = vperm.xlu0 %2205, %v1572
      %v2207 = vpop.permute.xlu0 %2206
      %2210 = vset.pattern.permute.xlu0 1
      %2211 = vperm.xlu0 %2210, %v1573
      %v2212 = vpop.permute.xlu0 %2211
      %v2214 = vadd.f32 %v1830, %v2057
      %v2215 = vadd.f32 %v1831, %v2057
      %v2216 = vadd.f32 %v1832, %v2057
      %v2217 = vadd.f32 %v1833, %v2057
      %v2218 = vadd.f32 %v1834, %v2057
      %v2219 = vadd.f32 %v1835, %v2057
      %v2220 = vadd.f32 %v1836, %v2057
      %v2221 = vadd.f32 %v1837, %v2062
      %v2222 = vadd.f32 %v1838, %v2062
      %v2223 = vadd.f32 %v1839, %v2062
      %v2224 = vadd.f32 %v1840, %v2062
      %v2225 = vadd.f32 %v1841, %v2062
      %v2226 = vadd.f32 %v1842, %v2062
      %v2227 = vadd.f32 %v1843, %v2062
      %v2228 = vadd.f32 %v1844, %v2067
      %v2229 = vadd.f32 %v1845, %v2067
      %v2230 = vadd.f32 %v1846, %v2067
      %v2231 = vadd.f32 %v1847, %v2067
      %v2232 = vadd.f32 %v1848, %v2067
      %v2233 = vadd.f32 %v1849, %v2067
      %v2234 = vadd.f32 %v1850, %v2067
      %v2235 = vadd.f32 %v1851, %v2072
      %v2236 = vadd.f32 %v1852, %v2072
      %v2237 = vadd.f32 %v1853, %v2072
      %v2238 = vadd.f32 %v1854, %v2072
      %v2239 = vadd.f32 %v1855, %v2072
      %v2240 = vadd.f32 %v1856, %v2072
      %v2241 = vadd.f32 %v1857, %v2072
      %v2242 = vadd.f32 %v1858, %v2077
      %v2243 = vadd.f32 %v1859, %v2077
      %v2244 = vadd.f32 %v1860, %v2077
      %v2245 = vadd.f32 %v1861, %v2077
      %v2246 = vadd.f32 %v1862, %v2077
      %v2247 = vadd.f32 %v1863, %v2077
      %v2248 = vadd.f32 %v1864, %v2077
      %v2249 = vadd.f32 %v1865, %v2082
      %v2250 = vadd.f32 %v1866, %v2082
      %v2251 = vadd.f32 %v1867, %v2082
      %v2252 = vadd.f32 %v1868, %v2082
      %v2253 = vadd.f32 %v1869, %v2082
      %v2254 = vadd.f32 %v1870, %v2082
      %v2255 = vadd.f32 %v1871, %v2082
      %v2256 = vadd.f32 %v1872, %v2087
      %v2257 = vadd.f32 %v1873, %v2087
      %v2258 = vadd.f32 %v1874, %v2087
      %v2259 = vadd.f32 %v1875, %v2087
      %v2260 = vadd.f32 %v1876, %v2087
      %v2261 = vadd.f32 %v1877, %v2087
      %v2262 = vadd.f32 %v1878, %v2087
      %v2263 = vadd.f32 %v1879, %v2092
      %v2264 = vadd.f32 %v1880, %v2092
      %v2265 = vadd.f32 %v1881, %v2092
      %v2266 = vadd.f32 %v1882, %v2092
      %v2267 = vadd.f32 %v1883, %v2092
      %v2268 = vadd.f32 %v1884, %v2092
      %v2269 = vadd.f32 %v1885, %v2092
      %v2270 = vadd.f32 %v1886, %v2097
      %v2271 = vadd.f32 %v1887, %v2097
      %v2272 = vadd.f32 %v1888, %v2097
      %v2273 = vadd.f32 %v1889, %v2097
      %v2274 = vadd.f32 %v1890, %v2097
      %v2275 = vadd.f32 %v1891, %v2097
      %v2276 = vadd.f32 %v1892, %v2097
      %v2277 = vadd.f32 %v1893, %v2102
      %v2278 = vadd.f32 %v1894, %v2102
      %v2279 = vadd.f32 %v1895, %v2102
      %v2280 = vadd.f32 %v1896, %v2102
      %v2281 = vadd.f32 %v1897, %v2102
      %v2282 = vadd.f32 %v1898, %v2102
      %v2283 = vadd.f32 %v1899, %v2102
      %v2284 = vadd.f32 %v1900, %v2107
      %v2285 = vadd.f32 %v1901, %v2107
      %v2286 = vadd.f32 %v1902, %v2107
      %v2287 = vadd.f32 %v1903, %v2107
      %v2288 = vadd.f32 %v1904, %v2107
      %v2289 = vadd.f32 %v1905, %v2107
      %v2290 = vadd.f32 %v1906, %v2107
      %v2291 = vadd.f32 %v1907, %v2112
      %v2292 = vadd.f32 %v1908, %v2112
      %v2293 = vadd.f32 %v1909, %v2112
      %v2294 = vadd.f32 %v1910, %v2112
      %v2295 = vadd.f32 %v1911, %v2112
      %v2296 = vadd.f32 %v1912, %v2112
      %v2297 = vadd.f32 %v1913, %v2112
      %v2298 = vadd.f32 %v1914, %v2117
      %v2299 = vadd.f32 %v1915, %v2117
      %v2300 = vadd.f32 %v1916, %v2117
      %v2301 = vadd.f32 %v1917, %v2117
      %v2302 = vadd.f32 %v1918, %v2117
      %v2303 = vadd.f32 %v1919, %v2117
      %v2304 = vadd.f32 %v1920, %v2117
      %v2305 = vadd.f32 %v1921, %v2122
      %v2306 = vadd.f32 %v1922, %v2122
      %v2307 = vadd.f32 %v1923, %v2122
      %v2308 = vadd.f32 %v1924, %v2122
      %v2309 = vadd.f32 %v1925, %v2122
      %v2310 = vadd.f32 %v1926, %v2122
      %v2311 = vadd.f32 %v1927, %v2122
      %v2312 = vadd.f32 %v1928, %v2127
      %v2313 = vadd.f32 %v1929, %v2127
      %v2314 = vadd.f32 %v1930, %v2127
      %v2315 = vadd.f32 %v1931, %v2127
      %v2316 = vadd.f32 %v1932, %v2127
      %v2317 = vadd.f32 %v1933, %v2127
      %v2318 = vadd.f32 %v1934, %v2127
      %v2319 = vadd.f32 %v1935, %v2132
      %v2320 = vadd.f32 %v1936, %v2132
      %v2321 = vadd.f32 %v1937, %v2132
      %v2322 = vadd.f32 %v1938, %v2132
      %v2323 = vadd.f32 %v1939, %v2132
      %v2324 = vadd.f32 %v1940, %v2132
      %v2325 = vadd.f32 %v1941, %v2132
      %v2326 = vadd.f32 %v1942, %v2137
      %v2327 = vadd.f32 %v1943, %v2137
      %v2328 = vadd.f32 %v1944, %v2137
      %v2329 = vadd.f32 %v1945, %v2137
      %v2330 = vadd.f32 %v1946, %v2137
      %v2331 = vadd.f32 %v1947, %v2137
      %v2332 = vadd.f32 %v1948, %v2137
      %v2333 = vadd.f32 %v1949, %v2142
      %v2334 = vadd.f32 %v1950, %v2142
      %v2335 = vadd.f32 %v1951, %v2142
      %v2336 = vadd.f32 %v1952, %v2142
      %v2337 = vadd.f32 %v1953, %v2142
      %v2338 = vadd.f32 %v1954, %v2142
      %v2339 = vadd.f32 %v1955, %v2142
      %v2340 = vadd.f32 %v1956, %v2147
      %v2341 = vadd.f32 %v1957, %v2147
      %v2342 = vadd.f32 %v1958, %v2147
      %v2343 = vadd.f32 %v1959, %v2147
      %v2344 = vadd.f32 %v1960, %v2147
      %v2345 = vadd.f32 %v1961, %v2147
      %v2346 = vadd.f32 %v1962, %v2147
      %v2347 = vadd.f32 %v1963, %v2152
      %v2348 = vadd.f32 %v1964, %v2152
      %v2349 = vadd.f32 %v1965, %v2152
      %v2350 = vadd.f32 %v1966, %v2152
      %v2351 = vadd.f32 %v1967, %v2152
      %v2352 = vadd.f32 %v1968, %v2152
      %v2353 = vadd.f32 %v1969, %v2152
      %v2354 = vadd.f32 %v1970, %v2157
      %v2355 = vadd.f32 %v1971, %v2157
      %v2356 = vadd.f32 %v1972, %v2157
      %v2357 = vadd.f32 %v1973, %v2157
      %v2358 = vadd.f32 %v1974, %v2157
      %v2359 = vadd.f32 %v1975, %v2157
      %v2360 = vadd.f32 %v1976, %v2157
      %v2361 = vadd.f32 %v1977, %v2162
      %v2362 = vadd.f32 %v1978, %v2162
      %v2363 = vadd.f32 %v1979, %v2162
      %v2364 = vadd.f32 %v1980, %v2162
      %v2365 = vadd.f32 %v1981, %v2162
      %v2366 = vadd.f32 %v1982, %v2162
      %v2367 = vadd.f32 %v1983, %v2162
      %v2368 = vadd.f32 %v1984, %v2167
      %v2369 = vadd.f32 %v1985, %v2167
      %v2370 = vadd.f32 %v1986, %v2167
      %v2371 = vadd.f32 %v1987, %v2167
      %v2372 = vadd.f32 %v1988, %v2167
      %v2373 = vadd.f32 %v1989, %v2167
      %v2374 = vadd.f32 %v1990, %v2167
      %v2375 = vadd.f32 %v1991, %v2172
      %v2376 = vadd.f32 %v1992, %v2172
      %v2377 = vadd.f32 %v1993, %v2172
      %v2378 = vadd.f32 %v1994, %v2172
      %v2379 = vadd.f32 %v1995, %v2172
      %v2380 = vadd.f32 %v1996, %v2172
      %v2381 = vadd.f32 %v1997, %v2172
      %v2382 = vadd.f32 %v1998, %v2177
      %v2383 = vadd.f32 %v1999, %v2177
      %v2384 = vadd.f32 %v2000, %v2177
      %v2385 = vadd.f32 %v2001, %v2177
      %v2386 = vadd.f32 %v2002, %v2177
      %v2387 = vadd.f32 %v2003, %v2177
      %v2388 = vadd.f32 %v2004, %v2177
      %v2389 = vadd.f32 %v2005, %v2182
      %v2390 = vadd.f32 %v2006, %v2182
      %v2391 = vadd.f32 %v2007, %v2182
      %v2392 = vadd.f32 %v2008, %v2182
      %v2393 = vadd.f32 %v2009, %v2182
      %v2394 = vadd.f32 %v2010, %v2182
      %v2395 = vadd.f32 %v2011, %v2182
      %v2396 = vadd.f32 %v2012, %v2187
      %v2397 = vadd.f32 %v2013, %v2187
      %v2398 = vadd.f32 %v2014, %v2187
      %v2399 = vadd.f32 %v2015, %v2187
      %v2400 = vadd.f32 %v2016, %v2187
      %v2401 = vadd.f32 %v2017, %v2187
      %v2402 = vadd.f32 %v2018, %v2187
      %v2403 = vadd.f32 %v2019, %v2192
      %v2404 = vadd.f32 %v2020, %v2192
      %v2405 = vadd.f32 %v2021, %v2192
      %v2406 = vadd.f32 %v2022, %v2192
      %v2407 = vadd.f32 %v2023, %v2192
      %v2408 = vadd.f32 %v2024, %v2192
      %v2409 = vadd.f32 %v2025, %v2192
      %v2410 = vadd.f32 %v2026, %v2197
      %v2411 = vadd.f32 %v2027, %v2197
      %v2412 = vadd.f32 %v2028, %v2197
      %v2413 = vadd.f32 %v2029, %v2197
      %v2414 = vadd.f32 %v2030, %v2197
      %v2415 = vadd.f32 %v2031, %v2197
      %v2416 = vadd.f32 %v2032, %v2197
      %v2417 = vadd.f32 %v2033, %v2202
      %v2418 = vadd.f32 %v2034, %v2202
      %v2419 = vadd.f32 %v2035, %v2202
      %v2420 = vadd.f32 %v2036, %v2202
      %v2421 = vadd.f32 %v2037, %v2202
      %v2422 = vadd.f32 %v2038, %v2202
      %v2423 = vadd.f32 %v2039, %v2202
      %v2424 = vadd.f32 %v2040, %v2207
      %v2425 = vadd.f32 %v2041, %v2207
      %v2426 = vadd.f32 %v2042, %v2207
      %v2427 = vadd.f32 %v2043, %v2207
      %v2428 = vadd.f32 %v2044, %v2207
      %v2429 = vadd.f32 %v2045, %v2207
      %v2430 = vadd.f32 %v2046, %v2207
      %v2431 = vadd.f32 %v2047, %v2212
      %v2432 = vadd.f32 %v2048, %v2212
      %v2433 = vadd.f32 %v2049, %v2212
      %v2434 = vadd.f32 %v2050, %v2212
      %v2435 = vadd.f32 %v2051, %v2212
      %v2436 = vadd.f32 %v2052, %v2212
      %v2437 = vadd.f32 %v2053, %v2212
      %v2438 = vmax.f32 %v2214, 0.0
      %v2439 = vmax.f32 %v2215, 0.0
      %v2440 = vmax.f32 %v2216, 0.0
      %v2441 = vmax.f32 %v2217, 0.0
      %v2442 = vmax.f32 %v2218, 0.0
      %v2443 = vmax.f32 %v2219, 0.0
      %v2444 = vmax.f32 %v2220, 0.0
      %v2445 = vmax.f32 %v2221, 0.0
      %v2446 = vmax.f32 %v2222, 0.0
      %v2447 = vmax.f32 %v2223, 0.0
      %v2448 = vmax.f32 %v2224, 0.0
      %v2449 = vmax.f32 %v2225, 0.0
      %v2450 = vmax.f32 %v2226, 0.0
      %v2451 = vmax.f32 %v2227, 0.0
      %v2452 = vmax.f32 %v2228, 0.0
      %v2453 = vmax.f32 %v2229, 0.0
      %v2454 = vmax.f32 %v2230, 0.0
      %v2455 = vmax.f32 %v2231, 0.0
      %v2456 = vmax.f32 %v2232, 0.0
      %v2457 = vmax.f32 %v2233, 0.0
      %v2458 = vmax.f32 %v2234, 0.0
      %v2459 = vmax.f32 %v2235, 0.0
      %v2460 = vmax.f32 %v2236, 0.0
      %v2461 = vmax.f32 %v2237, 0.0
      %v2462 = vmax.f32 %v2238, 0.0
      %v2463 = vmax.f32 %v2239, 0.0
      %v2464 = vmax.f32 %v2240, 0.0
      %v2465 = vmax.f32 %v2241, 0.0
      %v2466 = vmax.f32 %v2242, 0.0
      %v2467 = vmax.f32 %v2243, 0.0
      %v2468 = vmax.f32 %v2244, 0.0
      %v2469 = vmax.f32 %v2245, 0.0
      %v2470 = vmax.f32 %v2246, 0.0
      %v2471 = vmax.f32 %v2247, 0.0
      %v2472 = vmax.f32 %v2248, 0.0
      %v2473 = vmax.f32 %v2249, 0.0
      %v2474 = vmax.f32 %v2250, 0.0
      %v2475 = vmax.f32 %v2251, 0.0
      %v2476 = vmax.f32 %v2252, 0.0
      %v2477 = vmax.f32 %v2253, 0.0
      %v2478 = vmax.f32 %v2254, 0.0
      %v2479 = vmax.f32 %v2255, 0.0
      %v2480 = vmax.f32 %v2256, 0.0
      %v2481 = vmax.f32 %v2257, 0.0
      %v2482 = vmax.f32 %v2258, 0.0
      %v2483 = vmax.f32 %v2259, 0.0
      %v2484 = vmax.f32 %v2260, 0.0
      %v2485 = vmax.f32 %v2261, 0.0
      %v2486 = vmax.f32 %v2262, 0.0
      %v2487 = vmax.f32 %v2263, 0.0
      %v2488 = vmax.f32 %v2264, 0.0
      %v2489 = vmax.f32 %v2265, 0.0
      %v2490 = vmax.f32 %v2266, 0.0
      %v2491 = vmax.f32 %v2267, 0.0
      %v2492 = vmax.f32 %v2268, 0.0
      %v2493 = vmax.f32 %v2269, 0.0
      %v2494 = vmax.f32 %v2270, 0.0
      %v2495 = vmax.f32 %v2271, 0.0
      %v2496 = vmax.f32 %v2272, 0.0
      %v2497 = vmax.f32 %v2273, 0.0
      %v2498 = vmax.f32 %v2274, 0.0
      %v2499 = vmax.f32 %v2275, 0.0
      %v2500 = vmax.f32 %v2276, 0.0
      %v2501 = vmax.f32 %v2277, 0.0
      %v2502 = vmax.f32 %v2278, 0.0
      %v2503 = vmax.f32 %v2279, 0.0
      %v2504 = vmax.f32 %v2280, 0.0
      %v2505 = vmax.f32 %v2281, 0.0
      %v2506 = vmax.f32 %v2282, 0.0
      %v2507 = vmax.f32 %v2283, 0.0
      %v2508 = vmax.f32 %v2284, 0.0
      %v2509 = vmax.f32 %v2285, 0.0
      %v2510 = vmax.f32 %v2286, 0.0
      %v2511 = vmax.f32 %v2287, 0.0
      %v2512 = vmax.f32 %v2288, 0.0
      %v2513 = vmax.f32 %v2289, 0.0
      %v2514 = vmax.f32 %v2290, 0.0
      %v2515 = vmax.f32 %v2291, 0.0
      %v2516 = vmax.f32 %v2292, 0.0
      %v2517 = vmax.f32 %v2293, 0.0
      %v2518 = vmax.f32 %v2294, 0.0
      %v2519 = vmax.f32 %v2295, 0.0
      %v2520 = vmax.f32 %v2296, 0.0
      %v2521 = vmax.f32 %v2297, 0.0
      %v2522 = vmax.f32 %v2298, 0.0
      %v2523 = vmax.f32 %v2299, 0.0
      %v2524 = vmax.f32 %v2300, 0.0
      %v2525 = vmax.f32 %v2301, 0.0
      %v2526 = vmax.f32 %v2302, 0.0
      %v2527 = vmax.f32 %v2303, 0.0
      %v2528 = vmax.f32 %v2304, 0.0
      %v2529 = vmax.f32 %v2305, 0.0
      %v2530 = vmax.f32 %v2306, 0.0
      %v2531 = vmax.f32 %v2307, 0.0
      %v2532 = vmax.f32 %v2308, 0.0
      %v2533 = vmax.f32 %v2309, 0.0
      %v2534 = vmax.f32 %v2310, 0.0
      %v2535 = vmax.f32 %v2311, 0.0
      %v2536 = vmax.f32 %v2312, 0.0
      %v2537 = vmax.f32 %v2313, 0.0
      %v2538 = vmax.f32 %v2314, 0.0
      %v2539 = vmax.f32 %v2315, 0.0
      %v2540 = vmax.f32 %v2316, 0.0
      %v2541 = vmax.f32 %v2317, 0.0
      %v2542 = vmax.f32 %v2318, 0.0
      %v2543 = vmax.f32 %v2319, 0.0
      %v2544 = vmax.f32 %v2320, 0.0
      %v2545 = vmax.f32 %v2321, 0.0
      %v2546 = vmax.f32 %v2322, 0.0
      %v2547 = vmax.f32 %v2323, 0.0
      %v2548 = vmax.f32 %v2324, 0.0
      %v2549 = vmax.f32 %v2325, 0.0
      %v2550 = vmax.f32 %v2326, 0.0
      %v2551 = vmax.f32 %v2327, 0.0
      %v2552 = vmax.f32 %v2328, 0.0
      %v2553 = vmax.f32 %v2329, 0.0
      %v2554 = vmax.f32 %v2330, 0.0
      %v2555 = vmax.f32 %v2331, 0.0
      %v2556 = vmax.f32 %v2332, 0.0
      %v2557 = vmax.f32 %v2333, 0.0
      %v2558 = vmax.f32 %v2334, 0.0
      %v2559 = vmax.f32 %v2335, 0.0
      %v2560 = vmax.f32 %v2336, 0.0
      %v2561 = vmax.f32 %v2337, 0.0
      %v2562 = vmax.f32 %v2338, 0.0
      %v2563 = vmax.f32 %v2339, 0.0
      %v2564 = vmax.f32 %v2340, 0.0
      %v2565 = vmax.f32 %v2341, 0.0
      %v2566 = vmax.f32 %v2342, 0.0
      %v2567 = vmax.f32 %v2343, 0.0
      %v2568 = vmax.f32 %v2344, 0.0
      %v2569 = vmax.f32 %v2345, 0.0
      %v2570 = vmax.f32 %v2346, 0.0
      %v2571 = vmax.f32 %v2347, 0.0
      %v2572 = vmax.f32 %v2348, 0.0
      %v2573 = vmax.f32 %v2349, 0.0
      %v2574 = vmax.f32 %v2350, 0.0
      %v2575 = vmax.f32 %v2351, 0.0
      %v2576 = vmax.f32 %v2352, 0.0
      %v2577 = vmax.f32 %v2353, 0.0
      %v2578 = vmax.f32 %v2354, 0.0
      %v2579 = vmax.f32 %v2355, 0.0
      %v2580 = vmax.f32 %v2356, 0.0
      %v2581 = vmax.f32 %v2357, 0.0
      %v2582 = vmax.f32 %v2358, 0.0
      %v2583 = vmax.f32 %v2359, 0.0
      %v2584 = vmax.f32 %v2360, 0.0
      %v2585 = vmax.f32 %v2361, 0.0
      %v2586 = vmax.f32 %v2362, 0.0
      %v2587 = vmax.f32 %v2363, 0.0
      %v2588 = vmax.f32 %v2364, 0.0
      %v2589 = vmax.f32 %v2365, 0.0
      %v2590 = vmax.f32 %v2366, 0.0
      %v2591 = vmax.f32 %v2367, 0.0
      %v2592 = vmax.f32 %v2368, 0.0
      %v2593 = vmax.f32 %v2369, 0.0
      %v2594 = vmax.f32 %v2370, 0.0
      %v2595 = vmax.f32 %v2371, 0.0
      %v2596 = vmax.f32 %v2372, 0.0
      %v2597 = vmax.f32 %v2373, 0.0
      %v2598 = vmax.f32 %v2374, 0.0
      %v2599 = vmax.f32 %v2375, 0.0
      %v2600 = vmax.f32 %v2376, 0.0
      %v2601 = vmax.f32 %v2377, 0.0
      %v2602 = vmax.f32 %v2378, 0.0
      %v2603 = vmax.f32 %v2379, 0.0
      %v2604 = vmax.f32 %v2380, 0.0
      %v2605 = vmax.f32 %v2381, 0.0
      %v2606 = vmax.f32 %v2382, 0.0
      %v2607 = vmax.f32 %v2383, 0.0
      %v2608 = vmax.f32 %v2384, 0.0
      %v2609 = vmax.f32 %v2385, 0.0
      %v2610 = vmax.f32 %v2386, 0.0
      %v2611 = vmax.f32 %v2387, 0.0
      %v2612 = vmax.f32 %v2388, 0.0
      %v2613 = vmax.f32 %v2389, 0.0
      %v2614 = vmax.f32 %v2390, 0.0
      %v2615 = vmax.f32 %v2391, 0.0
      %v2616 = vmax.f32 %v2392, 0.0
      %v2617 = vmax.f32 %v2393, 0.0
      %v2618 = vmax.f32 %v2394, 0.0
      %v2619 = vmax.f32 %v2395, 0.0
      %v2620 = vmax.f32 %v2396, 0.0
      %v2621 = vmax.f32 %v2397, 0.0
      %v2622 = vmax.f32 %v2398, 0.0
      %v2623 = vmax.f32 %v2399, 0.0
      %v2624 = vmax.f32 %v2400, 0.0
      %v2625 = vmax.f32 %v2401, 0.0
      %v2626 = vmax.f32 %v2402, 0.0
      %v2627 = vmax.f32 %v2403, 0.0
      %v2628 = vmax.f32 %v2404, 0.0
      %v2629 = vmax.f32 %v2405, 0.0
      %v2630 = vmax.f32 %v2406, 0.0
      %v2631 = vmax.f32 %v2407, 0.0
      %v2632 = vmax.f32 %v2408, 0.0
      %v2633 = vmax.f32 %v2409, 0.0
      %v2634 = vmax.f32 %v2410, 0.0
      %v2635 = vmax.f32 %v2411, 0.0
      %v2636 = vmax.f32 %v2412, 0.0
      %v2637 = vmax.f32 %v2413, 0.0
      %v2638 = vmax.f32 %v2414, 0.0
      %v2639 = vmax.f32 %v2415, 0.0
      %v2640 = vmax.f32 %v2416, 0.0
      %v2641 = vmax.f32 %v2417, 0.0
      %v2642 = vmax.f32 %v2418, 0.0
      %v2643 = vmax.f32 %v2419, 0.0
      %v2644 = vmax.f32 %v2420, 0.0
      %v2645 = vmax.f32 %v2421, 0.0
      %v2646 = vmax.f32 %v2422, 0.0
      %v2647 = vmax.f32 %v2423, 0.0
      %v2648 = vmax.f32 %v2424, 0.0
      %v2649 = vmax.f32 %v2425, 0.0
      %v2650 = vmax.f32 %v2426, 0.0
      %v2651 = vmax.f32 %v2427, 0.0
      %v2652 = vmax.f32 %v2428, 0.0
      %v2653 = vmax.f32 %v2429, 0.0
      %v2654 = vmax.f32 %v2430, 0.0
      %v2655 = vmax.f32 %v2431, 0.0
      %v2656 = vmax.f32 %v2432, 0.0
      %v2657 = vmax.f32 %v2433, 0.0
      %v2658 = vmax.f32 %v2434, 0.0
      %v2659 = vmax.f32 %v2435, 0.0
      %v2660 = vmax.f32 %v2436, 0.0
      %v2661 = vmax.f32 %v2437, 0.0
      %v2662 = vpack.c.bf16 %v2445, %v2438
      %v2663 = vpack.c.bf16 %v2446, %v2439
      %v2664 = vpack.c.bf16 %v2447, %v2440
      %v2665 = vpack.c.bf16 %v2448, %v2441
      %v2666 = vpack.c.bf16 %v2449, %v2442
      %v2667 = vpack.c.bf16 %v2450, %v2443
      %v2668 = vpack.c.bf16 %v2451, %v2444
      %v2669 = vpack.c.bf16 %v2459, %v2452
      %v2670 = vpack.c.bf16 %v2460, %v2453
      %v2671 = vpack.c.bf16 %v2461, %v2454
      %v2672 = vpack.c.bf16 %v2462, %v2455
      %v2673 = vpack.c.bf16 %v2463, %v2456
      %v2674 = vpack.c.bf16 %v2464, %v2457
      %v2675 = vpack.c.bf16 %v2465, %v2458
      %v2676 = vpack.c.bf16 %v2473, %v2466
      %v2677 = vpack.c.bf16 %v2474, %v2467
      %v2678 = vpack.c.bf16 %v2475, %v2468
      %v2679 = vpack.c.bf16 %v2476, %v2469
      %v2680 = vpack.c.bf16 %v2477, %v2470
      %v2681 = vpack.c.bf16 %v2478, %v2471
      %v2682 = vpack.c.bf16 %v2479, %v2472
      %v2683 = vpack.c.bf16 %v2487, %v2480
      %v2684 = vpack.c.bf16 %v2488, %v2481
      %v2685 = vpack.c.bf16 %v2489, %v2482
      %v2686 = vpack.c.bf16 %v2490, %v2483
      %v2687 = vpack.c.bf16 %v2491, %v2484
      %v2688 = vpack.c.bf16 %v2492, %v2485
      %v2689 = vpack.c.bf16 %v2493, %v2486
      %v2690 = vpack.c.bf16 %v2501, %v2494
      %v2691 = vpack.c.bf16 %v2502, %v2495
      %v2692 = vpack.c.bf16 %v2503, %v2496
      %v2693 = vpack.c.bf16 %v2504, %v2497
      %v2694 = vpack.c.bf16 %v2505, %v2498
      %v2695 = vpack.c.bf16 %v2506, %v2499
      %v2696 = vpack.c.bf16 %v2507, %v2500
      %v2697 = vpack.c.bf16 %v2515, %v2508
      %v2698 = vpack.c.bf16 %v2516, %v2509
      %v2699 = vpack.c.bf16 %v2517, %v2510
      %v2700 = vpack.c.bf16 %v2518, %v2511
      %v2701 = vpack.c.bf16 %v2519, %v2512
      %v2702 = vpack.c.bf16 %v2520, %v2513
      %v2703 = vpack.c.bf16 %v2521, %v2514
      %v2704 = vpack.c.bf16 %v2529, %v2522
      %v2705 = vpack.c.bf16 %v2530, %v2523
      %v2706 = vpack.c.bf16 %v2531, %v2524
      %v2707 = vpack.c.bf16 %v2532, %v2525
      %v2708 = vpack.c.bf16 %v2533, %v2526
      %v2709 = vpack.c.bf16 %v2534, %v2527
      %v2710 = vpack.c.bf16 %v2535, %v2528
      %v2711 = vpack.c.bf16 %v2543, %v2536
      %v2712 = vpack.c.bf16 %v2544, %v2537
      %v2713 = vpack.c.bf16 %v2545, %v2538
      %v2714 = vpack.c.bf16 %v2546, %v2539
      %v2715 = vpack.c.bf16 %v2547, %v2540
      %v2716 = vpack.c.bf16 %v2548, %v2541
      %v2717 = vpack.c.bf16 %v2549, %v2542
      %v2718 = vpack.c.bf16 %v2557, %v2550
      %v2719 = vpack.c.bf16 %v2558, %v2551
      %v2720 = vpack.c.bf16 %v2559, %v2552
      %v2721 = vpack.c.bf16 %v2560, %v2553
      %v2722 = vpack.c.bf16 %v2561, %v2554
      %v2723 = vpack.c.bf16 %v2562, %v2555
      %v2724 = vpack.c.bf16 %v2563, %v2556
      %v2725 = vpack.c.bf16 %v2571, %v2564
      %v2726 = vpack.c.bf16 %v2572, %v2565
      %v2727 = vpack.c.bf16 %v2573, %v2566
      %v2728 = vpack.c.bf16 %v2574, %v2567
      %v2729 = vpack.c.bf16 %v2575, %v2568
      %v2730 = vpack.c.bf16 %v2576, %v2569
      %v2731 = vpack.c.bf16 %v2577, %v2570
      %v2732 = vpack.c.bf16 %v2585, %v2578
      %v2733 = vpack.c.bf16 %v2586, %v2579
      %v2734 = vpack.c.bf16 %v2587, %v2580
      %v2735 = vpack.c.bf16 %v2588, %v2581
      %v2736 = vpack.c.bf16 %v2589, %v2582
      %v2737 = vpack.c.bf16 %v2590, %v2583
      %v2738 = vpack.c.bf16 %v2591, %v2584
      %v2739 = vpack.c.bf16 %v2599, %v2592
      %v2740 = vpack.c.bf16 %v2600, %v2593
      %v2741 = vpack.c.bf16 %v2601, %v2594
      %v2742 = vpack.c.bf16 %v2602, %v2595
      %v2743 = vpack.c.bf16 %v2603, %v2596
      %v2744 = vpack.c.bf16 %v2604, %v2597
      %v2745 = vpack.c.bf16 %v2605, %v2598
      %v2746 = vpack.c.bf16 %v2613, %v2606
      %v2747 = vpack.c.bf16 %v2614, %v2607
      %v2748 = vpack.c.bf16 %v2615, %v2608
      %v2749 = vpack.c.bf16 %v2616, %v2609
      %v2750 = vpack.c.bf16 %v2617, %v2610
      %v2751 = vpack.c.bf16 %v2618, %v2611
      %v2752 = vpack.c.bf16 %v2619, %v2612
      %v2753 = vpack.c.bf16 %v2627, %v2620
      %v2754 = vpack.c.bf16 %v2628, %v2621
      %v2755 = vpack.c.bf16 %v2629, %v2622
      %v2756 = vpack.c.bf16 %v2630, %v2623
      %v2757 = vpack.c.bf16 %v2631, %v2624
      %v2758 = vpack.c.bf16 %v2632, %v2625
      %v2759 = vpack.c.bf16 %v2633, %v2626
      %v2760 = vpack.c.bf16 %v2641, %v2634
      %v2761 = vpack.c.bf16 %v2642, %v2635
      %v2762 = vpack.c.bf16 %v2643, %v2636
      %v2763 = vpack.c.bf16 %v2644, %v2637
      %v2764 = vpack.c.bf16 %v2645, %v2638
      %v2765 = vpack.c.bf16 %v2646, %v2639
      %v2766 = vpack.c.bf16 %v2647, %v2640
      %v2767 = vpack.c.bf16 %v2655, %v2648
      %v2768 = vpack.c.bf16 %v2656, %v2649
      %v2769 = vpack.c.bf16 %v2657, %v2650
      %v2770 = vpack.c.bf16 %v2658, %v2651
      %v2771 = vpack.c.bf16 %v2659, %v2652
      %v2772 = vpack.c.bf16 %v2660, %v2653
      %v2773 = vpack.c.bf16 %v2661, %v2654
      %v2774 = vld [vmem:[%s213] sm:$0xff]
      %v2775 = vld [vmem:[%s213 + $0x8] sm:$0xff]
      %v2776 = vld [vmem:[%s213 + $0x10] sm:$0xff]
      %v2777 = vld [vmem:[%s213 + $0x18] sm:$0xff]
      %v2778 = vld [vmem:[%s213 + $0x20] sm:$0xff]
      %v2779 = vld [vmem:[%s213 + $0x28] sm:$0xff]
      %v2780 = vld [vmem:[%s213 + $0x30] sm:$0xff]
      %v2781 = vld [vmem:[%s213 + $0x38] sm:$0xff]
      %v2782 = vld [vmem:[%s213 + $0x40] sm:$0xff]
      %v2783 = vld [vmem:[%s213 + $0x48] sm:$0xff]
      %v2784 = vld [vmem:[%s213 + $0x50] sm:$0xff]
      %v2785 = vld [vmem:[%s213 + $0x58] sm:$0xff]
      %v2786 = vld [vmem:[%s213 + $0x60] sm:$0xff]
      %v2787 = vld [vmem:[%s213 + $0x68] sm:$0xff]
      %v2788 = vld [vmem:[%s213 + $0x70] sm:$0xff]
      %v2789 = vld [vmem:[%s213 + $0x78] sm:$0xff]
      %v2790 = vld [vmem:[%s213 + $0x80] sm:$0xff]
      %v2791 = vld [vmem:[%s213 + $0x88] sm:$0xff]
      %v2792 = vld [vmem:[%s213 + $0x90] sm:$0xff]
      %v2793 = vld [vmem:[%s213 + $0x98] sm:$0xff]
      %v2794 = vld [vmem:[%s213 + $0xa0] sm:$0xff]
      %v2795 = vld [vmem:[%s213 + $0xa8] sm:$0xff]
      %v2796 = vld [vmem:[%s213 + $0xb0] sm:$0xff]
      %v2797 = vld [vmem:[%s213 + $0xb8] sm:$0xff]
      %v2798 = vld [vmem:[%s213 + $0xc0] sm:$0xff]
      %v2799 = vld [vmem:[%s213 + $0xc8] sm:$0xff]
      %v2800 = vld [vmem:[%s213 + $0xd0] sm:$0xff]
      %v2801 = vld [vmem:[%s213 + $0xd8] sm:$0xff]
      %v2802 = vld [vmem:[%s213 + $0xe0] sm:$0xff]
      %v2803 = vld [vmem:[%s213 + $0xe8] sm:$0xff]
      %v2804 = vld [vmem:[%s213 + $0xf0] sm:$0xff]
      %v2805 = vld [vmem:[%s213 + $0xf8] sm:$0xff]
      %v2806 = vld [vmem:[%s213 + $0x100] sm:$0xff]
      %v2807 = vld [vmem:[%s213 + $0x108] sm:$0xff]
      %v2808 = vld [vmem:[%s213 + $0x110] sm:$0xff]
      %v2809 = vld [vmem:[%s213 + $0x118] sm:$0xff]
      %v2810 = vld [vmem:[%s213 + $0x120] sm:$0xff]
      %v2811 = vld [vmem:[%s213 + $0x128] sm:$0xff]
      %v2812 = vld [vmem:[%s213 + $0x130] sm:$0xff]
      %v2813 = vld [vmem:[%s213 + $0x138] sm:$0xff]
      %v2814 = vld [vmem:[%s213 + $0x140] sm:$0xff]
      %v2815 = vld [vmem:[%s213 + $0x148] sm:$0xff]
      %v2816 = vld [vmem:[%s213 + $0x150] sm:$0xff]
      %v2817 = vld [vmem:[%s213 + $0x158] sm:$0xff]
      %v2818 = vld [vmem:[%s213 + $0x160] sm:$0xff]
      %v2819 = vld [vmem:[%s213 + $0x168] sm:$0xff]
      %v2820 = vld [vmem:[%s213 + $0x170] sm:$0xff]
      %v2821 = vld [vmem:[%s213 + $0x178] sm:$0xff]
      %v2822 = vld [vmem:[%s213 + $0x180] sm:$0xff]
      %v2823 = vld [vmem:[%s213 + $0x188] sm:$0xff]
      %v2824 = vld [vmem:[%s213 + $0x190] sm:$0xff]
      %v2825 = vld [vmem:[%s213 + $0x198] sm:$0xff]
      %v2826 = vld [vmem:[%s213 + $0x1a0] sm:$0xff]
      %v2827 = vld [vmem:[%s213 + $0x1a8] sm:$0xff]
      %v2828 = vld [vmem:[%s213 + $0x1b0] sm:$0xff]
      %v2829 = vld [vmem:[%s213 + $0x1b8] sm:$0xff]
      %v2830 = vld [vmem:[%s213 + $0x1c0] sm:$0xff]
      %v2831 = vld [vmem:[%s213 + $0x1c8] sm:$0xff]
      %v2832 = vld [vmem:[%s213 + $0x1d0] sm:$0xff]
      %v2833 = vld [vmem:[%s213 + $0x1d8] sm:$0xff]
      %v2834 = vld [vmem:[%s213 + $0x1e0] sm:$0xff]
      %v2835 = vld [vmem:[%s213 + $0x1e8] sm:$0xff]
      %v2836 = vld [vmem:[%s213 + $0x1f0] sm:$0xff]
      %v2837 = vld [vmem:[%s213 + $0x1f8] sm:$0xff]
      %v2902 = vunpack.c.l.b16 %v2774
      %v2903 = vunpack.c.h.b16 %v2774
      %v2904 = vunpack.c.l.b16 %v2775
      %v2905 = vunpack.c.h.b16 %v2775
      %v2906 = vunpack.c.l.b16 %v2776
      %v2907 = vunpack.c.h.b16 %v2776
      %v2908 = vunpack.c.l.b16 %v2777
      %v2909 = vunpack.c.h.b16 %v2777
      %v2910 = vunpack.c.l.b16 %v2778
      %v2911 = vunpack.c.h.b16 %v2778
      %v2912 = vunpack.c.l.b16 %v2779
      %v2913 = vunpack.c.h.b16 %v2779
      %v2914 = vunpack.c.l.b16 %v2780
      %v2915 = vunpack.c.h.b16 %v2780
      %v2916 = vunpack.c.l.b16 %v2781
      %v2917 = vunpack.c.h.b16 %v2781
      %v2918 = vunpack.c.l.b16 %v2782
      %v2919 = vunpack.c.h.b16 %v2782
      %v2920 = vunpack.c.l.b16 %v2783
      %v2921 = vunpack.c.h.b16 %v2783
      %v2922 = vunpack.c.l.b16 %v2784
      %v2923 = vunpack.c.h.b16 %v2784
      %v2924 = vunpack.c.l.b16 %v2785
      %v2925 = vunpack.c.h.b16 %v2785
      %v2926 = vunpack.c.l.b16 %v2786
      %v2927 = vunpack.c.h.b16 %v2786
      %v2928 = vunpack.c.l.b16 %v2787
      %v2929 = vunpack.c.h.b16 %v2787
      %v2930 = vunpack.c.l.b16 %v2788
      %v2931 = vunpack.c.h.b16 %v2788
      %v2932 = vunpack.c.l.b16 %v2789
      %v2933 = vunpack.c.h.b16 %v2789
      %v2934 = vunpack.c.l.b16 %v2790
      %v2935 = vunpack.c.h.b16 %v2790
      %v2936 = vunpack.c.l.b16 %v2791
      %v2937 = vunpack.c.h.b16 %v2791
      %v2938 = vunpack.c.l.b16 %v2792
      %v2939 = vunpack.c.h.b16 %v2792
      %v2940 = vunpack.c.l.b16 %v2793
      %v2941 = vunpack.c.h.b16 %v2793
      %v2942 = vunpack.c.l.b16 %v2794
      %v2943 = vunpack.c.h.b16 %v2794
      %v2944 = vunpack.c.l.b16 %v2795
      %v2945 = vunpack.c.h.b16 %v2795
      %v2946 = vunpack.c.l.b16 %v2796
      %v2947 = vunpack.c.h.b16 %v2796
      %v2948 = vunpack.c.l.b16 %v2797
      %v2949 = vunpack.c.h.b16 %v2797
      %v2950 = vunpack.c.l.b16 %v2798
      %v2951 = vunpack.c.h.b16 %v2798
      %v2952 = vunpack.c.l.b16 %v2799
      %v2953 = vunpack.c.h.b16 %v2799
      %v2954 = vunpack.c.l.b16 %v2800
      %v2955 = vunpack.c.h.b16 %v2800
      %v2956 = vunpack.c.l.b16 %v2801
      %v2957 = vunpack.c.h.b16 %v2801
      %v2958 = vunpack.c.l.b16 %v2802
      %v2959 = vunpack.c.h.b16 %v2802
      %v2960 = vunpack.c.l.b16 %v2803
      %v2961 = vunpack.c.h.b16 %v2803
      %v2962 = vunpack.c.l.b16 %v2804
      %v2963 = vunpack.c.h.b16 %v2804
      %v2964 = vunpack.c.l.b16 %v2805
      %v2965 = vunpack.c.h.b16 %v2805
      %v2966 = vunpack.c.l.b16 %v2806
      %v2967 = vunpack.c.h.b16 %v2806
      %v2968 = vunpack.c.l.b16 %v2807
      %v2969 = vunpack.c.h.b16 %v2807
      %v2970 = vunpack.c.l.b16 %v2808
      %v2971 = vunpack.c.h.b16 %v2808
      %v2972 = vunpack.c.l.b16 %v2809
      %v2973 = vunpack.c.h.b16 %v2809
      %v2974 = vunpack.c.l.b16 %v2810
      %v2975 = vunpack.c.h.b16 %v2810
      %v2976 = vunpack.c.l.b16 %v2811
      %v2977 = vunpack.c.h.b16 %v2811
      %v2978 = vunpack.c.l.b16 %v2812
      %v2979 = vunpack.c.h.b16 %v2812
      %v2980 = vunpack.c.l.b16 %v2813
      %v2981 = vunpack.c.h.b16 %v2813
      %v2982 = vunpack.c.l.b16 %v2814
      %v2983 = vunpack.c.h.b16 %v2814
      %v2984 = vunpack.c.l.b16 %v2815
      %v2985 = vunpack.c.h.b16 %v2815
      %v2986 = vunpack.c.l.b16 %v2816
      %v2987 = vunpack.c.h.b16 %v2816
      %v2988 = vunpack.c.l.b16 %v2817
      %v2989 = vunpack.c.h.b16 %v2817
      %v2990 = vunpack.c.l.b16 %v2818
      %v2991 = vunpack.c.h.b16 %v2818
      %v2992 = vunpack.c.l.b16 %v2819
      %v2993 = vunpack.c.h.b16 %v2819
      %v2994 = vunpack.c.l.b16 %v2820
      %v2995 = vunpack.c.h.b16 %v2820
      %v2996 = vunpack.c.l.b16 %v2821
      %v2997 = vunpack.c.h.b16 %v2821
      %v2998 = vunpack.c.l.b16 %v2822
      %v2999 = vunpack.c.h.b16 %v2822
      %v3000 = vunpack.c.l.b16 %v2823
      %v3001 = vunpack.c.h.b16 %v2823
      %v3002 = vunpack.c.l.b16 %v2824
      %v3003 = vunpack.c.h.b16 %v2824
      %v3004 = vunpack.c.l.b16 %v2825
      %v3005 = vunpack.c.h.b16 %v2825
      %v3006 = vunpack.c.l.b16 %v2826
      %v3007 = vunpack.c.h.b16 %v2826
      %v3008 = vunpack.c.l.b16 %v2827
      %v3009 = vunpack.c.h.b16 %v2827
      %v3010 = vunpack.c.l.b16 %v2828
      %v3011 = vunpack.c.h.b16 %v2828
      %v3012 = vunpack.c.l.b16 %v2829
      %v3013 = vunpack.c.h.b16 %v2829
      %v3014 = vunpack.c.l.b16 %v2830
      %v3015 = vunpack.c.h.b16 %v2830
      %v3016 = vunpack.c.l.b16 %v2831
      %v3017 = vunpack.c.h.b16 %v2831
      %v3018 = vunpack.c.l.b16 %v2832
      %v3019 = vunpack.c.h.b16 %v2832
      %v3020 = vunpack.c.l.b16 %v2833
      %v3021 = vunpack.c.h.b16 %v2833
      %v3022 = vunpack.c.l.b16 %v2834
      %v3023 = vunpack.c.h.b16 %v2834
      %v3024 = vunpack.c.l.b16 %v2835
      %v3025 = vunpack.c.h.b16 %v2835
      %v3026 = vunpack.c.l.b16 %v2836
      %v3027 = vunpack.c.h.b16 %v2836
      %v3028 = vunpack.c.l.b16 %v2837
      %v3029 = vunpack.c.h.b16 %v2837
      %v3030 = vpack.c.b16 %v2904, %v2902
      %v3031 = vpack.c.b16 %v2905, %v2903
      %v3032 = vpack.c.b16 %v2908, %v2906
      %v3033 = vpack.c.b16 %v2909, %v2907
      %v3034 = vpack.c.b16 %v2912, %v2910
      %v3035 = vpack.c.b16 %v2913, %v2911
      %v3036 = vpack.c.b16 %v2916, %v2914
      %v3037 = vpack.c.b16 %v2917, %v2915
      %v3038 = vpack.c.b16 %v2920, %v2918
      %v3039 = vpack.c.b16 %v2921, %v2919
      %v3040 = vpack.c.b16 %v2924, %v2922
      %v3041 = vpack.c.b16 %v2925, %v2923
      %v3042 = vpack.c.b16 %v2928, %v2926
      %v3043 = vpack.c.b16 %v2929, %v2927
      %v3044 = vpack.c.b16 %v2932, %v2930
      %v3045 = vpack.c.b16 %v2933, %v2931
      %v3046 = vpack.c.b16 %v2936, %v2934
      %v3047 = vpack.c.b16 %v2937, %v2935
      %v3048 = vpack.c.b16 %v2940, %v2938
      %v3049 = vpack.c.b16 %v2941, %v2939
      %v3050 = vpack.c.b16 %v2944, %v2942
      %v3051 = vpack.c.b16 %v2945, %v2943
      %v3052 = vpack.c.b16 %v2948, %v2946
      %v3053 = vpack.c.b16 %v2949, %v2947
      %v3054 = vpack.c.b16 %v2952, %v2950
      %v3055 = vpack.c.b16 %v2953, %v2951
      %v3056 = vpack.c.b16 %v2956, %v2954
      %v3057 = vpack.c.b16 %v2957, %v2955
      %v3058 = vpack.c.b16 %v2960, %v2958
      %v3059 = vpack.c.b16 %v2961, %v2959
      %v3060 = vpack.c.b16 %v2964, %v2962
      %v3061 = vpack.c.b16 %v2965, %v2963
      %v3062 = vpack.c.b16 %v2968, %v2966
      %v3063 = vpack.c.b16 %v2969, %v2967
      %v3064 = vpack.c.b16 %v2972, %v2970
      %v3065 = vpack.c.b16 %v2973, %v2971
      %v3066 = vpack.c.b16 %v2976, %v2974
      %v3067 = vpack.c.b16 %v2977, %v2975
      %v3068 = vpack.c.b16 %v2980, %v2978
      %v3069 = vpack.c.b16 %v2981, %v2979
      %v3070 = vpack.c.b16 %v2984, %v2982
      %v3071 = vpack.c.b16 %v2985, %v2983
      %v3072 = vpack.c.b16 %v2988, %v2986
      %v3073 = vpack.c.b16 %v2989, %v2987
      %v3074 = vpack.c.b16 %v2992, %v2990
      %v3075 = vpack.c.b16 %v2993, %v2991
      %v3076 = vpack.c.b16 %v2996, %v2994
      %v3077 = vpack.c.b16 %v2997, %v2995
      %v3078 = vpack.c.b16 %v3000, %v2998
      %v3079 = vpack.c.b16 %v3001, %v2999
      %v3080 = vpack.c.b16 %v3004, %v3002
      %v3081 = vpack.c.b16 %v3005, %v3003
      %v3082 = vpack.c.b16 %v3008, %v3006
      %v3083 = vpack.c.b16 %v3009, %v3007
      %v3084 = vpack.c.b16 %v3012, %v3010
      %v3085 = vpack.c.b16 %v3013, %v3011
      %v3086 = vpack.c.b16 %v3016, %v3014
      %v3087 = vpack.c.b16 %v3017, %v3015
      %v3088 = vpack.c.b16 %v3020, %v3018
      %v3089 = vpack.c.b16 %v3021, %v3019
      %v3090 = vpack.c.b16 %v3024, %v3022
      %v3091 = vpack.c.b16 %v3025, %v3023
      %v3092 = vpack.c.b16 %v3028, %v3026
      %v3093 = vpack.c.b16 %v3029, %v3027
      %3158 = vmatprep.subr.bf16.mxu0 %v2663
      %3159 = vmatpush1.bf16.msra.mxu0 %v2662
      %3160 = vmatprep.subr.bf16.mxu0 %v2670
      %3161 = vmatpush1.bf16.msra.mxu0 %v2669
      %3162 = vmatprep.subr.bf16.mxu0 %v2677
      %3163 = vmatpush1.bf16.msra.mxu0 %v2676
      %3164 = vmatprep.subr.bf16.mxu0 %v2684
      %3165 = vmatpush1.bf16.msra.mxu0 %v2683
      %3166 = vmatprep.subr.bf16.mxu0 %v2691
      %3167 = vmatpush1.bf16.msra.mxu0 %v2690
      %3168 = vmatprep.subr.bf16.mxu0 %v2698
      %3169 = vmatpush1.bf16.msra.mxu0 %v2697
      %3170 = vmatprep.subr.bf16.mxu0 %v2705
      %3171 = vmatpush1.bf16.msra.mxu0 %v2704
      %3172 = vmatprep.subr.bf16.mxu0 %v2712
      %3173 = vmatpush1.bf16.msra.mxu0 %v2711
      %3174 = vmatprep.subr.bf16.mxu0 %v2719
      %3175 = vmatpush1.bf16.msra.mxu0 %v2718
      %3176 = vmatprep.subr.bf16.mxu0 %v2726
      %3177 = vmatpush1.bf16.msra.mxu0 %v2725
      %3178 = vmatprep.subr.bf16.mxu0 %v2733
      %3179 = vmatpush1.bf16.msra.mxu0 %v2732
      %3180 = vmatprep.subr.bf16.mxu0 %v2740
      %3181 = vmatpush1.bf16.msra.mxu0 %v2739
      %3182 = vmatprep.subr.bf16.mxu0 %v2747
      %3183 = vmatpush1.bf16.msra.mxu0 %v2746
      %3184 = vmatprep.subr.bf16.mxu0 %v2754
      %3185 = vmatpush1.bf16.msra.mxu0 %v2753
      %3186 = vmatprep.subr.bf16.mxu0 %v2761
      %3187 = vmatpush1.bf16.msra.mxu0 %v2760
      %3188 = vmatprep.subr.bf16.mxu0 %v2768
      %3189 = vmatpush1.bf16.msra.mxu0 %v2767
      %3190 = vmatprep.mubr.bf16.mxu0 %v3031
      %3191 = vmatmul.mubr.bf16.gmra.mrb[0].mxu0 %v3030
      %v3192 = vpop.f32.mrb[0].mxu0
      %v3193 = vadd.f32 0.0, %v3192
      %v3194 = vpop.f32.mrb[0].mxu0
      %v3195 = vadd.f32 0.0, %v3194
      %v3196 = vpop.f32.mrb[0].mxu0
      %v3197 = vadd.f32 0.0, %v3196
      %v3198 = vpop.f32.mrb[0].mxu0
      %v3199 = vadd.f32 0.0, %v3198
      %3200 = vmatprep.mubr.bf16.mxu0 %v3033
      %3201 = vmatmul.mubr.bf16.gmra.mrb[0].mxu0 %v3032
      %v3202 = vpop.f32.mrb[0].mxu0
      %v3203 = vadd.f32 0.0, %v3202
      %v3204 = vpop.f32.mrb[0].mxu0
      %v3205 = vadd.f32 0.0, %v3204
      %v3206 = vpop.f32.mrb[0].mxu0
      %v3207 = vadd.f32 0.0, %v3206
      %v3208 = vpop.f32.mrb[0].mxu0
      %v3209 = vadd.f32 0.0, %v3208
      %3210 = vmatprep.mubr.bf16.mxu0 %v3035
      %3211 = vmatmul.mubr.bf16.gmra.mrb[0].mxu0 %v3034
      %v3212 = vpop.f32.mrb[0].mxu0
      %v3213 = vadd.f32 0.0, %v3212
      %v3214 = vpop.f32.mrb[0].mxu0
      %v3215 = vadd.f32 0.0, %v3214
      %v3216 = vpop.f32.mrb[0].mxu0
      %v3217 = vadd.f32 0.0, %v3216
      %v3218 = vpop.f32.mrb[0].mxu0
      %v3219 = vadd.f32 0.0, %v3218
      %3220 = vmatprep.mubr.bf16.mxu0 %v3037
      %3221 = vmatmul.mubr.bf16.gmra.mrb[0].mxu0 %v3036
      %v3222 = vpop.f32.mrb[0].mxu0
      %v3223 = vadd.f32 0.0, %v3222
      %v3224 = vpop.f32.mrb[0].mxu0
      %v3225 = vadd.f32 0.0, %v3224
      %v3226 = vpop.f32.mrb[0].mxu0
      %v3227 = vadd.f32 0.0, %v3226
      %v3228 = vpop.f32.mrb[0].mxu0
      %v3229 = vadd.f32 0.0, %v3228
      %3230 = vmatprep.mubr.bf16.mxu0 %v3039
      %3231 = vmatmul.mubr.bf16.gmra.mrb[0].mxu0 %v3038
      %v3232 = vpop.f32.mrb[0].mxu0
      %v3233 = vadd.f32 0.0, %v3232
      %v3234 = vpop.f32.mrb[0].mxu0
      %v3235 = vadd.f32 0.0, %v3234
      %v3236 = vpop.f32.mrb[0].mxu0
      %v3237 = vadd.f32 0.0, %v3236
      %v3238 = vpop.f32.mrb[0].mxu0
      %v3239 = vadd.f32 0.0, %v3238
      %3240 = vmatprep.mubr.bf16.mxu0 %v3041
      %3241 = vmatmul.mubr.bf16.gmra.mrb[0].mxu0 %v3040
      %v3242 = vpop.f32.mrb[0].mxu0
      %v3243 = vadd.f32 0.0, %v3242
      %v3244 = vpop.f32.mrb[0].mxu0
      %v3245 = vadd.f32 0.0, %v3244
      %v3246 = vpop.f32.mrb[0].mxu0
      %v3247 = vadd.f32 0.0, %v3246
      %v3248 = vpop.f32.mrb[0].mxu0
      %v3249 = vadd.f32 0.0, %v3248
      %3250 = vmatprep.mubr.bf16.mxu0 %v3043
      %3251 = vmatmul.mubr.bf16.gmra.mrb[0].mxu0 %v3042
      %v3252 = vpop.f32.mrb[0].mxu0
      %v3253 = vadd.f32 0.0, %v3252
      %v3254 = vpop.f32.mrb[0].mxu0
      %v3255 = vadd.f32 0.0, %v3254
      %v3256 = vpop.f32.mrb[0].mxu0
      %v3257 = vadd.f32 0.0, %v3256
      %v3258 = vpop.f32.mrb[0].mxu0
      %v3259 = vadd.f32 0.0, %v3258
      %3260 = vmatprep.mubr.bf16.mxu0 %v3045
      %3261 = vmatmul.mubr.bf16.gmra.mrb[0].mxu0 %v3044
      %v3262 = vpop.f32.mrb[0].mxu0
      %v3263 = vadd.f32 0.0, %v3262
      %v3264 = vpop.f32.mrb[0].mxu0
      %v3265 = vadd.f32 0.0, %v3264
      %v3266 = vpop.f32.mrb[0].mxu0
      %v3267 = vadd.f32 0.0, %v3266
      %v3268 = vpop.f32.mrb[0].mxu0
      %v3269 = vadd.f32 0.0, %v3268
      %3270 = vmatprep.mubr.bf16.mxu0 %v3047
      %3271 = vmatmul.mubr.bf16.gmra.mrb[0].mxu0 %v3046
      %v3272 = vpop.f32.mrb[0].mxu0
      %v3273 = vadd.f32 0.0, %v3272
      %v3274 = vpop.f32.mrb[0].mxu0
      %v3275 = vadd.f32 0.0, %v3274
      %v3276 = vpop.f32.mrb[0].mxu0
      %v3277 = vadd.f32 0.0, %v3276
      %v3278 = vpop.f32.mrb[0].mxu0
      %v3279 = vadd.f32 0.0, %v3278
      %3280 = vmatprep.mubr.bf16.mxu0 %v3049
      %3281 = vmatmul.mubr.bf16.gmra.mrb[0].mxu0 %v3048
      %v3282 = vpop.f32.mrb[0].mxu0
      %v3283 = vadd.f32 0.0, %v3282
      %v3284 = vpop.f32.mrb[0].mxu0
      %v3285 = vadd.f32 0.0, %v3284
      %v3286 = vpop.f32.mrb[0].mxu0
      %v3287 = vadd.f32 0.0, %v3286
      %v3288 = vpop.f32.mrb[0].mxu0
      %v3289 = vadd.f32 0.0, %v3288
      %3290 = vmatprep.mubr.bf16.mxu0 %v3051
      %3291 = vmatmul.mubr.bf16.gmra.mrb[0].mxu0 %v3050
      %v3292 = vpop.f32.mrb[0].mxu0
      %v3293 = vadd.f32 0.0, %v3292
      %v3294 = vpop.f32.mrb[0].mxu0
      %v3295 = vadd.f32 0.0, %v3294
      %v3296 = vpop.f32.mrb[0].mxu0
      %v3297 = vadd.f32 0.0, %v3296
      %v3298 = vpop.f32.mrb[0].mxu0
      %v3299 = vadd.f32 0.0, %v3298
      %3300 = vmatprep.mubr.bf16.mxu0 %v3053
      %3301 = vmatmul.mubr.bf16.gmra.mrb[0].mxu0 %v3052
      %v3302 = vpop.f32.mrb[0].mxu0
      %v3303 = vadd.f32 0.0, %v3302
      %v3304 = vpop.f32.mrb[0].mxu0
      %v3305 = vadd.f32 0.0, %v3304
      %v3306 = vpop.f32.mrb[0].mxu0
      %v3307 = vadd.f32 0.0, %v3306
      %v3308 = vpop.f32.mrb[0].mxu0
      %v3309 = vadd.f32 0.0, %v3308
      %3310 = vmatprep.mubr.bf16.mxu0 %v3055
      %3311 = vmatmul.mubr.bf16.gmra.mrb[0].mxu0 %v3054
      %v3312 = vpop.f32.mrb[0].mxu0
      %v3313 = vadd.f32 0.0, %v3312
      %v3314 = vpop.f32.mrb[0].mxu0
      %v3315 = vadd.f32 0.0, %v3314
      %v3316 = vpop.f32.mrb[0].mxu0
      %v3317 = vadd.f32 0.0, %v3316
      %v3318 = vpop.f32.mrb[0].mxu0
      %v3319 = vadd.f32 0.0, %v3318
      %3320 = vmatprep.mubr.bf16.mxu0 %v3057
      %3321 = vmatmul.mubr.bf16.gmra.mrb[0].mxu0 %v3056
      %v3322 = vpop.f32.mrb[0].mxu0
      %v3323 = vadd.f32 0.0, %v3322
      %v3324 = vpop.f32.mrb[0].mxu0
      %v3325 = vadd.f32 0.0, %v3324
      %v3326 = vpop.f32.mrb[0].mxu0
      %v3327 = vadd.f32 0.0, %v3326
      %v3328 = vpop.f32.mrb[0].mxu0
      %v3329 = vadd.f32 0.0, %v3328
      %3330 = vmatprep.mubr.bf16.mxu0 %v3059
      %3331 = vmatmul.mubr.bf16.gmra.mrb[0].mxu0 %v3058
      %v3332 = vpop.f32.mrb[0].mxu0
      %v3333 = vadd.f32 0.0, %v3332
      %v3334 = vpop.f32.mrb[0].mxu0
      %v3335 = vadd.f32 0.0, %v3334
      %v3336 = vpop.f32.mrb[0].mxu0
      %v3337 = vadd.f32 0.0, %v3336
      %v3338 = vpop.f32.mrb[0].mxu0
      %v3339 = vadd.f32 0.0, %v3338
      %3340 = vmatprep.mubr.bf16.mxu0 %v3061
      %3341 = vmatmul.mubr.bf16.gmra.mrb[0].mxu0 %v3060
      %v3342 = vpop.f32.mrb[0].mxu0
      %v3343 = vadd.f32 0.0, %v3342
      %v3344 = vpop.f32.mrb[0].mxu0
      %v3345 = vadd.f32 0.0, %v3344
      %v3346 = vpop.f32.mrb[0].mxu0
      %v3347 = vadd.f32 0.0, %v3346
      %v3348 = vpop.f32.mrb[0].mxu0
      %v3349 = vadd.f32 0.0, %v3348
      %3350 = vmatprep.mubr.bf16.mxu0 %v3063
      %3351 = vmatmul.mubr.bf16.gmra.mrb[0].mxu0 %v3062
      %v3352 = vpop.f32.mrb[0].mxu0
      %v3353 = vadd.f32 0.0, %v3352
      %v3354 = vpop.f32.mrb[0].mxu0
      %v3355 = vadd.f32 0.0, %v3354
      %v3356 = vpop.f32.mrb[0].mxu0
      %v3357 = vadd.f32 0.0, %v3356
      %v3358 = vpop.f32.mrb[0].mxu0
      %v3359 = vadd.f32 0.0, %v3358
      %3360 = vmatprep.mubr.bf16.mxu0 %v3065
      %3361 = vmatmul.mubr.bf16.gmra.mrb[0].mxu0 %v3064
      %v3362 = vpop.f32.mrb[0].mxu0
      %v3363 = vadd.f32 0.0, %v3362
      %v3364 = vpop.f32.mrb[0].mxu0
      %v3365 = vadd.f32 0.0, %v3364
      %v3366 = vpop.f32.mrb[0].mxu0
      %v3367 = vadd.f32 0.0, %v3366
      %v3368 = vpop.f32.mrb[0].mxu0
      %v3369 = vadd.f32 0.0, %v3368
      %3370 = vmatprep.mubr.bf16.mxu0 %v3067
      %3371 = vmatmul.mubr.bf16.gmra.mrb[0].mxu0 %v3066
      %v3372 = vpop.f32.mrb[0].mxu0
      %v3373 = vadd.f32 0.0, %v3372
      %v3374 = vpop.f32.mrb[0].mxu0
      %v3375 = vadd.f32 0.0, %v3374
      %v3376 = vpop.f32.mrb[0].mxu0
      %v3377 = vadd.f32 0.0, %v3376
      %v3378 = vpop.f32.mrb[0].mxu0
      %v3379 = vadd.f32 0.0, %v3378
      %3380 = vmatprep.mubr.bf16.mxu0 %v3069
      %3381 = vmatmul.mubr.bf16.gmra.mrb[0].mxu0 %v3068
      %v3382 = vpop.f32.mrb[0].mxu0
      %v3383 = vadd.f32 0.0, %v3382
      %v3384 = vpop.f32.mrb[0].mxu0
      %v3385 = vadd.f32 0.0, %v3384
      %v3386 = vpop.f32.mrb[0].mxu0
      %v3387 = vadd.f32 0.0, %v3386
      %v3388 = vpop.f32.mrb[0].mxu0
      %v3389 = vadd.f32 0.0, %v3388
      %3390 = vmatprep.mubr.bf16.mxu0 %v3071
      %3391 = vmatmul.mubr.bf16.gmra.mrb[0].mxu0 %v3070
      %v3392 = vpop.f32.mrb[0].mxu0
      %v3393 = vadd.f32 0.0, %v3392
      %v3394 = vpop.f32.mrb[0].mxu0
      %v3395 = vadd.f32 0.0, %v3394
      %v3396 = vpop.f32.mrb[0].mxu0
      %v3397 = vadd.f32 0.0, %v3396
      %v3398 = vpop.f32.mrb[0].mxu0
      %v3399 = vadd.f32 0.0, %v3398
      %3400 = vmatprep.mubr.bf16.mxu0 %v3073
      %3401 = vmatmul.mubr.bf16.gmra.mrb[0].mxu0 %v3072
      %v3402 = vpop.f32.mrb[0].mxu0
      %v3403 = vadd.f32 0.0, %v3402
      %v3404 = vpop.f32.mrb[0].mxu0
      %v3405 = vadd.f32 0.0, %v3404
      %v3406 = vpop.f32.mrb[0].mxu0
      %v3407 = vadd.f32 0.0, %v3406
      %v3408 = vpop.f32.mrb[0].mxu0
      %v3409 = vadd.f32 0.0, %v3408
      %3410 = vmatprep.mubr.bf16.mxu0 %v3075
      %3411 = vmatmul.mubr.bf16.gmra.mrb[0].mxu0 %v3074
      %v3412 = vpop.f32.mrb[0].mxu0
      %v3413 = vadd.f32 0.0, %v3412
      %v3414 = vpop.f32.mrb[0].mxu0
      %v3415 = vadd.f32 0.0, %v3414
      %v3416 = vpop.f32.mrb[0].mxu0
      %v3417 = vadd.f32 0.0, %v3416
      %v3418 = vpop.f32.mrb[0].mxu0
      %v3419 = vadd.f32 0.0, %v3418
      %3420 = vmatprep.mubr.bf16.mxu0 %v3077
      %3421 = vmatmul.mubr.bf16.gmra.mrb[0].mxu0 %v3076
      %v3422 = vpop.f32.mrb[0].mxu0
      %v3423 = vadd.f32 0.0, %v3422
      %v3424 = vpop.f32.mrb[0].mxu0
      %v3425 = vadd.f32 0.0, %v3424
      %v3426 = vpop.f32.mrb[0].mxu0
      %v3427 = vadd.f32 0.0, %v3426
      %v3428 = vpop.f32.mrb[0].mxu0
      %v3429 = vadd.f32 0.0, %v3428
      %3430 = vmatprep.mubr.bf16.mxu0 %v3079
      %3431 = vmatmul.mubr.bf16.gmra.mrb[0].mxu0 %v3078
      %v3432 = vpop.f32.mrb[0].mxu0
      %v3433 = vadd.f32 0.0, %v3432
      %v3434 = vpop.f32.mrb[0].mxu0
      %v3435 = vadd.f32 0.0, %v3434
      %v3436 = vpop.f32.mrb[0].mxu0
      %v3437 = vadd.f32 0.0, %v3436
      %v3438 = vpop.f32.mrb[0].mxu0
      %v3439 = vadd.f32 0.0, %v3438
      %3440 = vmatprep.mubr.bf16.mxu0 %v3081
      %3441 = vmatmul.mubr.bf16.gmra.mrb[0].mxu0 %v3080
      %v3442 = vpop.f32.mrb[0].mxu0
      %v3443 = vadd.f32 0.0, %v3442
      %v3444 = vpop.f32.mrb[0].mxu0
      %v3445 = vadd.f32 0.0, %v3444
      %v3446 = vpop.f32.mrb[0].mxu0
      %v3447 = vadd.f32 0.0, %v3446
      %v3448 = vpop.f32.mrb[0].mxu0
      %v3449 = vadd.f32 0.0, %v3448
      %3450 = vmatprep.mubr.bf16.mxu0 %v3083
      %3451 = vmatmul.mubr.bf16.gmra.mrb[0].mxu0 %v3082
      %v3452 = vpop.f32.mrb[0].mxu0
      %v3453 = vadd.f32 0.0, %v3452
      %v3454 = vpop.f32.mrb[0].mxu0
      %v3455 = vadd.f32 0.0, %v3454
      %v3456 = vpop.f32.mrb[0].mxu0
      %v3457 = vadd.f32 0.0, %v3456
      %v3458 = vpop.f32.mrb[0].mxu0
      %v3459 = vadd.f32 0.0, %v3458
      %3460 = vmatprep.mubr.bf16.mxu0 %v3085
      %3461 = vmatmul.mubr.bf16.gmra.mrb[0].mxu0 %v3084
      %v3462 = vpop.f32.mrb[0].mxu0
      %v3463 = vadd.f32 0.0, %v3462
      %v3464 = vpop.f32.mrb[0].mxu0
      %v3465 = vadd.f32 0.0, %v3464
      %v3466 = vpop.f32.mrb[0].mxu0
      %v3467 = vadd.f32 0.0, %v3466
      %v3468 = vpop.f32.mrb[0].mxu0
      %v3469 = vadd.f32 0.0, %v3468
      %3470 = vmatprep.mubr.bf16.mxu0 %v3087
      %3471 = vmatmul.mubr.bf16.gmra.mrb[0].mxu0 %v3086
      %v3472 = vpop.f32.mrb[0].mxu0
      %v3473 = vadd.f32 0.0, %v3472
      %v3474 = vpop.f32.mrb[0].mxu0
      %v3475 = vadd.f32 0.0, %v3474
      %v3476 = vpop.f32.mrb[0].mxu0
      %v3477 = vadd.f32 0.0, %v3476
      %v3478 = vpop.f32.mrb[0].mxu0
      %v3479 = vadd.f32 0.0, %v3478
      %3480 = vmatprep.mubr.bf16.mxu0 %v3089
      %3481 = vmatmul.mubr.bf16.gmra.mrb[0].mxu0 %v3088
      %v3482 = vpop.f32.mrb[0].mxu0
      %v3483 = vadd.f32 0.0, %v3482
      %v3484 = vpop.f32.mrb[0].mxu0
      %v3485 = vadd.f32 0.0, %v3484
      %v3486 = vpop.f32.mrb[0].mxu0
      %v3487 = vadd.f32 0.0, %v3486
      %v3488 = vpop.f32.mrb[0].mxu0
      %v3489 = vadd.f32 0.0, %v3488
      %3490 = vmatprep.mubr.bf16.mxu0 %v3091
      %3491 = vmatmul.mubr.bf16.gmra.mrb[0].mxu0 %v3090
      %v3492 = vpop.f32.mrb[0].mxu0
      %v3493 = vadd.f32 0.0, %v3492
      %v3494 = vpop.f32.mrb[0].mxu0
      %v3495 = vadd.f32 0.0, %v3494
      %v3496 = vpop.f32.mrb[0].mxu0
      %v3497 = vadd.f32 0.0, %v3496
      %v3498 = vpop.f32.mrb[0].mxu0
      %v3499 = vadd.f32 0.0, %v3498
      %3500 = vmatprep.mubr.bf16.mxu0 %v3093
      %3501 = vmatmul.mubr.bf16.gmra.mrb[0].mxu0 %v3092
      %v3502 = vpop.f32.mrb[0].mxu0
      %v3503 = vadd.f32 0.0, %v3502
      %v3504 = vpop.f32.mrb[0].mxu0
      %v3505 = vadd.f32 0.0, %v3504
      %v3506 = vpop.f32.mrb[0].mxu0
      %v3507 = vadd.f32 0.0, %v3506
      %v3508 = vpop.f32.mrb[0].mxu0
      %v3509 = vadd.f32 0.0, %v3508
      %3510 = vdwg.mxu0
      %3511 = vmatprep.subr.bf16.mxu0 %v2665
      %3512 = vmatpush1.bf16.msra.mxu0 %v2664
      %3513 = vmatprep.subr.bf16.mxu0 %v2672
      %3514 = vmatpush1.bf16.msra.mxu0 %v2671
      %3515 = vmatprep.subr.bf16.mxu0 %v2679
      %3516 = vmatpush1.bf16.msra.mxu0 %v2678
      %3517 = vmatprep.subr.bf16.mxu0 %v2686
      %3518 = vmatpush1.bf16.msra.mxu0 %v2685
      %3519 = vmatprep.subr.bf16.mxu0 %v2693
      %3520 = vmatpush1.bf16.msra.mxu0 %v2692
      %3521 = vmatprep.subr.bf16.mxu0 %v2700
      %3522 = vmatpush1.bf16.msra.mxu0 %v2699
      %3523 = vmatprep.subr.bf16.mxu0 %v2707
      %3524 = vmatpush1.bf16.msra.mxu0 %v2706
      %3525 = vmatprep.subr.bf16.mxu0 %v2714
      %3526 = vmatpush1.bf16.msra.mxu0 %v2713
      %3527 = vmatprep.subr.bf16.mxu0 %v2721
      %3528 = vmatpush1.bf16.msra.mxu0 %v2720
      %3529 = vmatprep.subr.bf16.mxu0 %v2728
      %3530 = vmatpush1.bf16.msra.mxu0 %v2727
      %3531 = vmatprep.subr.bf16.mxu0 %v2735
      %3532 = vmatpush1.bf16.msra.mxu0 %v2734
      %3533 = vmatprep.subr.bf16.mxu0 %v2742
      %3534 = vmatpush1.bf16.msra.mxu0 %v2741
      %3535 = vmatprep.subr.bf16.mxu0 %v2749
      %3536 = vmatpush1.bf16.msra.mxu0 %v2748
      %3537 = vmatprep.subr.bf16.mxu0 %v2756
      %3538 = vmatpush1.bf16.msra.mxu0 %v2755
      %3539 = vmatprep.subr.bf16.mxu0 %v2763
      %3540 = vmatpush1.bf16.msra.mxu0 %v2762
      %3541 = vmatprep.subr.bf16.mxu0 %v2770
      %3542 = vmatpush1.bf16.msra.mxu0 %v2769
      %3543 = vmatprep.mubr.bf16.mxu0 %v3031
      %3544 = vmatmul.mubr.bf16.gmra.mrb[0].mxu0 %v3030
      %v3545 = vpop.f32.mrb[0].mxu0
      %v3546 = vadd.f32 0.0, %v3545
      %v3547 = vpop.f32.mrb[0].mxu0
      %v3548 = vadd.f32 0.0, %v3547
      %v3549 = vpop.f32.mrb[0].mxu0
      %v3550 = vadd.f32 0.0, %v3549
      %v3551 = vpop.f32.mrb[0].mxu0
      %v3552 = vadd.f32 0.0, %v3551
      %3553 = vmatprep.mubr.bf16.mxu0 %v3033
      %3554 = vmatmul.mubr.bf16.gmra.mrb[0].mxu0 %v3032
      %v3555 = vpop.f32.mrb[0].mxu0
      %v3556 = vadd.f32 0.0, %v3555
      %v3557 = vpop.f32.mrb[0].mxu0
      %v3558 = vadd.f32 0.0, %v3557
      %v3559 = vpop.f32.mrb[0].mxu0
      %v3560 = vadd.f32 0.0, %v3559
      %v3561 = vpop.f32.mrb[0].mxu0
      %v3562 = vadd.f32 0.0, %v3561
      %3563 = vmatprep.mubr.bf16.mxu0 %v3035
      %3564 = vmatmul.mubr.bf16.gmra.mrb[0].mxu0 %v3034
      %v3565 = vpop.f32.mrb[0].mxu0
      %v3566 = vadd.f32 0.0, %v3565
      %v3567 = vpop.f32.mrb[0].mxu0
      %v3568 = vadd.f32 0.0, %v3567
      %v3569 = vpop.f32.mrb[0].mxu0
      %v3570 = vadd.f32 0.0, %v3569
      %v3571 = vpop.f32.mrb[0].mxu0
      %v3572 = vadd.f32 0.0, %v3571
      %3573 = vmatprep.mubr.bf16.mxu0 %v3037
      %3574 = vmatmul.mubr.bf16.gmra.mrb[0].mxu0 %v3036
      %v3575 = vpop.f32.mrb[0].mxu0
      %v3576 = vadd.f32 0.0, %v3575
      %v3577 = vpop.f32.mrb[0].mxu0
      %v3578 = vadd.f32 0.0, %v3577
      %v3579 = vpop.f32.mrb[0].mxu0
      %v3580 = vadd.f32 0.0, %v3579
      %v3581 = vpop.f32.mrb[0].mxu0
      %v3582 = vadd.f32 0.0, %v3581
      %3583 = vmatprep.mubr.bf16.mxu0 %v3039
      %3584 = vmatmul.mubr.bf16.gmra.mrb[0].mxu0 %v3038
      %v3585 = vpop.f32.mrb[0].mxu0
      %v3586 = vadd.f32 0.0, %v3585
      %v3587 = vpop.f32.mrb[0].mxu0
      %v3588 = vadd.f32 0.0, %v3587
      %v3589 = vpop.f32.mrb[0].mxu0
      %v3590 = vadd.f32 0.0, %v3589
      %v3591 = vpop.f32.mrb[0].mxu0
      %v3592 = vadd.f32 0.0, %v3591
      %3593 = vmatprep.mubr.bf16.mxu0 %v3041
      %3594 = vmatmul.mubr.bf16.gmra.mrb[0].mxu0 %v3040
      %v3595 = vpop.f32.mrb[0].mxu0
      %v3596 = vadd.f32 0.0, %v3595
      %v3597 = vpop.f32.mrb[0].mxu0
      %v3598 = vadd.f32 0.0, %v3597
      %v3599 = vpop.f32.mrb[0].mxu0
      %v3600 = vadd.f32 0.0, %v3599
      %v3601 = vpop.f32.mrb[0].mxu0
      %v3602 = vadd.f32 0.0, %v3601
      %3603 = vmatprep.mubr.bf16.mxu0 %v3043
      %3604 = vmatmul.mubr.bf16.gmra.mrb[0].mxu0 %v3042
      %v3605 = vpop.f32.mrb[0].mxu0
      %v3606 = vadd.f32 0.0, %v3605
      %v3607 = vpop.f32.mrb[0].mxu0
      %v3608 = vadd.f32 0.0, %v3607
      %v3609 = vpop.f32.mrb[0].mxu0
      %v3610 = vadd.f32 0.0, %v3609
      %v3611 = vpop.f32.mrb[0].mxu0
      %v3612 = vadd.f32 0.0, %v3611
      %3613 = vmatprep.mubr.bf16.mxu0 %v3045
      %3614 = vmatmul.mubr.bf16.gmra.mrb[0].mxu0 %v3044
      %v3615 = vpop.f32.mrb[0].mxu0
      %v3616 = vadd.f32 0.0, %v3615
      %v3617 = vpop.f32.mrb[0].mxu0
      %v3618 = vadd.f32 0.0, %v3617
      %v3619 = vpop.f32.mrb[0].mxu0
      %v3620 = vadd.f32 0.0, %v3619
      %v3621 = vpop.f32.mrb[0].mxu0
      %v3622 = vadd.f32 0.0, %v3621
      %3623 = vmatprep.mubr.bf16.mxu0 %v3047
      %3624 = vmatmul.mubr.bf16.gmra.mrb[0].mxu0 %v3046
      %v3625 = vpop.f32.mrb[0].mxu0
      %v3626 = vadd.f32 0.0, %v3625
      %v3627 = vpop.f32.mrb[0].mxu0
      %v3628 = vadd.f32 0.0, %v3627
      %v3629 = vpop.f32.mrb[0].mxu0
      %v3630 = vadd.f32 0.0, %v3629
      %v3631 = vpop.f32.mrb[0].mxu0
      %v3632 = vadd.f32 0.0, %v3631
      %3633 = vmatprep.mubr.bf16.mxu0 %v3049
      %3634 = vmatmul.mubr.bf16.gmra.mrb[0].mxu0 %v3048
      %v3635 = vpop.f32.mrb[0].mxu0
      %v3636 = vadd.f32 0.0, %v3635
      %v3637 = vpop.f32.mrb[0].mxu0
      %v3638 = vadd.f32 0.0, %v3637
      %v3639 = vpop.f32.mrb[0].mxu0
      %v3640 = vadd.f32 0.0, %v3639
      %v3641 = vpop.f32.mrb[0].mxu0
      %v3642 = vadd.f32 0.0, %v3641
      %3643 = vmatprep.mubr.bf16.mxu0 %v3051
      %3644 = vmatmul.mubr.bf16.gmra.mrb[0].mxu0 %v3050
      %v3645 = vpop.f32.mrb[0].mxu0
      %v3646 = vadd.f32 0.0, %v3645
      %v3647 = vpop.f32.mrb[0].mxu0
      %v3648 = vadd.f32 0.0, %v3647
      %v3649 = vpop.f32.mrb[0].mxu0
      %v3650 = vadd.f32 0.0, %v3649
      %v3651 = vpop.f32.mrb[0].mxu0
      %v3652 = vadd.f32 0.0, %v3651
      %3653 = vmatprep.mubr.bf16.mxu0 %v3053
      %3654 = vmatmul.mubr.bf16.gmra.mrb[0].mxu0 %v3052
      %v3655 = vpop.f32.mrb[0].mxu0
      %v3656 = vadd.f32 0.0, %v3655
      %v3657 = vpop.f32.mrb[0].mxu0
      %v3658 = vadd.f32 0.0, %v3657
      %v3659 = vpop.f32.mrb[0].mxu0
      %v3660 = vadd.f32 0.0, %v3659
      %v3661 = vpop.f32.mrb[0].mxu0
      %v3662 = vadd.f32 0.0, %v3661
      %3663 = vmatprep.mubr.bf16.mxu0 %v3055
      %3664 = vmatmul.mubr.bf16.gmra.mrb[0].mxu0 %v3054
      %v3665 = vpop.f32.mrb[0].mxu0
      %v3666 = vadd.f32 0.0, %v3665
      %v3667 = vpop.f32.mrb[0].mxu0
      %v3668 = vadd.f32 0.0, %v3667
      %v3669 = vpop.f32.mrb[0].mxu0
      %v3670 = vadd.f32 0.0, %v3669
      %v3671 = vpop.f32.mrb[0].mxu0
      %v3672 = vadd.f32 0.0, %v3671
      %3673 = vmatprep.mubr.bf16.mxu0 %v3057
      %3674 = vmatmul.mubr.bf16.gmra.mrb[0].mxu0 %v3056
      %v3675 = vpop.f32.mrb[0].mxu0
      %v3676 = vadd.f32 0.0, %v3675
      %v3677 = vpop.f32.mrb[0].mxu0
      %v3678 = vadd.f32 0.0, %v3677
      %v3679 = vpop.f32.mrb[0].mxu0
      %v3680 = vadd.f32 0.0, %v3679
      %v3681 = vpop.f32.mrb[0].mxu0
      %v3682 = vadd.f32 0.0, %v3681
      %3683 = vmatprep.mubr.bf16.mxu0 %v3059
      %3684 = vmatmul.mubr.bf16.gmra.mrb[0].mxu0 %v3058
      %v3685 = vpop.f32.mrb[0].mxu0
      %v3686 = vadd.f32 0.0, %v3685
      %v3687 = vpop.f32.mrb[0].mxu0
      %v3688 = vadd.f32 0.0, %v3687
      %v3689 = vpop.f32.mrb[0].mxu0
      %v3690 = vadd.f32 0.0, %v3689
      %v3691 = vpop.f32.mrb[0].mxu0
      %v3692 = vadd.f32 0.0, %v3691
      %3693 = vmatprep.mubr.bf16.mxu0 %v3061
      %3694 = vmatmul.mubr.bf16.gmra.mrb[0].mxu0 %v3060
      %v3695 = vpop.f32.mrb[0].mxu0
      %v3696 = vadd.f32 0.0, %v3695
      %v3697 = vpop.f32.mrb[0].mxu0
      %v3698 = vadd.f32 0.0, %v3697
      %v3699 = vpop.f32.mrb[0].mxu0
      %v3700 = vadd.f32 0.0, %v3699
      %v3701 = vpop.f32.mrb[0].mxu0
      %v3702 = vadd.f32 0.0, %v3701
      %3703 = vmatprep.mubr.bf16.mxu0 %v3063
      %3704 = vmatmul.mubr.bf16.gmra.mrb[0].mxu0 %v3062
      %v3705 = vpop.f32.mrb[0].mxu0
      %v3706 = vadd.f32 0.0, %v3705
      %v3707 = vpop.f32.mrb[0].mxu0
      %v3708 = vadd.f32 0.0, %v3707
      %v3709 = vpop.f32.mrb[0].mxu0
      %v3710 = vadd.f32 0.0, %v3709
      %v3711 = vpop.f32.mrb[0].mxu0
      %v3712 = vadd.f32 0.0, %v3711
      %3713 = vmatprep.mubr.bf16.mxu0 %v3065
      %3714 = vmatmul.mubr.bf16.gmra.mrb[0].mxu0 %v3064
      %v3715 = vpop.f32.mrb[0].mxu0
      %v3716 = vadd.f32 0.0, %v3715
      %v3717 = vpop.f32.mrb[0].mxu0
      %v3718 = vadd.f32 0.0, %v3717
      %v3719 = vpop.f32.mrb[0].mxu0
      %v3720 = vadd.f32 0.0, %v3719
      %v3721 = vpop.f32.mrb[0].mxu0
      %v3722 = vadd.f32 0.0, %v3721
      %3723 = vmatprep.mubr.bf16.mxu0 %v3067
      %3724 = vmatmul.mubr.bf16.gmra.mrb[0].mxu0 %v3066
      %v3725 = vpop.f32.mrb[0].mxu0
      %v3726 = vadd.f32 0.0, %v3725
      %v3727 = vpop.f32.mrb[0].mxu0
      %v3728 = vadd.f32 0.0, %v3727
      %v3729 = vpop.f32.mrb[0].mxu0
      %v3730 = vadd.f32 0.0, %v3729
      %v3731 = vpop.f32.mrb[0].mxu0
      %v3732 = vadd.f32 0.0, %v3731
      %3733 = vmatprep.mubr.bf16.mxu0 %v3069
      %3734 = vmatmul.mubr.bf16.gmra.mrb[0].mxu0 %v3068
      %v3735 = vpop.f32.mrb[0].mxu0
      %v3736 = vadd.f32 0.0, %v3735
      %v3737 = vpop.f32.mrb[0].mxu0
      %v3738 = vadd.f32 0.0, %v3737
      %v3739 = vpop.f32.mrb[0].mxu0
      %v3740 = vadd.f32 0.0, %v3739
      %v3741 = vpop.f32.mrb[0].mxu0
      %v3742 = vadd.f32 0.0, %v3741
      %3743 = vmatprep.mubr.bf16.mxu0 %v3071
      %3744 = vmatmul.mubr.bf16.gmra.mrb[0].mxu0 %v3070
      %v3745 = vpop.f32.mrb[0].mxu0
      %v3746 = vadd.f32 0.0, %v3745
      %v3747 = vpop.f32.mrb[0].mxu0
      %v3748 = vadd.f32 0.0, %v3747
      %v3749 = vpop.f32.mrb[0].mxu0
      %v3750 = vadd.f32 0.0, %v3749
      %v3751 = vpop.f32.mrb[0].mxu0
      %v3752 = vadd.f32 0.0, %v3751
      %3753 = vmatprep.mubr.bf16.mxu0 %v3073
      %3754 = vmatmul.mubr.bf16.gmra.mrb[0].mxu0 %v3072
      %v3755 = vpop.f32.mrb[0].mxu0
      %v3756 = vadd.f32 0.0, %v3755
      %v3757 = vpop.f32.mrb[0].mxu0
      %v3758 = vadd.f32 0.0, %v3757
      %v3759 = vpop.f32.mrb[0].mxu0
      %v3760 = vadd.f32 0.0, %v3759
      %v3761 = vpop.f32.mrb[0].mxu0
      %v3762 = vadd.f32 0.0, %v3761
      %3763 = vmatprep.mubr.bf16.mxu0 %v3075
      %3764 = vmatmul.mubr.bf16.gmra.mrb[0].mxu0 %v3074
      %v3765 = vpop.f32.mrb[0].mxu0
      %v3766 = vadd.f32 0.0, %v3765
      %v3767 = vpop.f32.mrb[0].mxu0
      %v3768 = vadd.f32 0.0, %v3767
      %v3769 = vpop.f32.mrb[0].mxu0
      %v3770 = vadd.f32 0.0, %v3769
      %v3771 = vpop.f32.mrb[0].mxu0
      %v3772 = vadd.f32 0.0, %v3771
      %3773 = vmatprep.mubr.bf16.mxu0 %v3077
      %3774 = vmatmul.mubr.bf16.gmra.mrb[0].mxu0 %v3076
      %v3775 = vpop.f32.mrb[0].mxu0
      %v3776 = vadd.f32 0.0, %v3775
      %v3777 = vpop.f32.mrb[0].mxu0
      %v3778 = vadd.f32 0.0, %v3777
      %v3779 = vpop.f32.mrb[0].mxu0
      %v3780 = vadd.f32 0.0, %v3779
      %v3781 = vpop.f32.mrb[0].mxu0
      %v3782 = vadd.f32 0.0, %v3781
      %3783 = vmatprep.mubr.bf16.mxu0 %v3079
      %3784 = vmatmul.mubr.bf16.gmra.mrb[0].mxu0 %v3078
      %v3785 = vpop.f32.mrb[0].mxu0
      %v3786 = vadd.f32 0.0, %v3785
      %v3787 = vpop.f32.mrb[0].mxu0
      %v3788 = vadd.f32 0.0, %v3787
      %v3789 = vpop.f32.mrb[0].mxu0
      %v3790 = vadd.f32 0.0, %v3789
      %v3791 = vpop.f32.mrb[0].mxu0
      %v3792 = vadd.f32 0.0, %v3791
      %3793 = vmatprep.mubr.bf16.mxu0 %v3081
      %3794 = vmatmul.mubr.bf16.gmra.mrb[0].mxu0 %v3080
      %v3795 = vpop.f32.mrb[0].mxu0
      %v3796 = vadd.f32 0.0, %v3795
      %v3797 = vpop.f32.mrb[0].mxu0
      %v3798 = vadd.f32 0.0, %v3797
      %v3799 = vpop.f32.mrb[0].mxu0
      %v3800 = vadd.f32 0.0, %v3799
      %v3801 = vpop.f32.mrb[0].mxu0
      %v3802 = vadd.f32 0.0, %v3801
      %3803 = vmatprep.mubr.bf16.mxu0 %v3083
      %3804 = vmatmul.mubr.bf16.gmra.mrb[0].mxu0 %v3082
      %v3805 = vpop.f32.mrb[0].mxu0
      %v3806 = vadd.f32 0.0, %v3805
      %v3807 = vpop.f32.mrb[0].mxu0
      %v3808 = vadd.f32 0.0, %v3807
      %v3809 = vpop.f32.mrb[0].mxu0
      %v3810 = vadd.f32 0.0, %v3809
      %v3811 = vpop.f32.mrb[0].mxu0
      %v3812 = vadd.f32 0.0, %v3811
      %3813 = vmatprep.mubr.bf16.mxu0 %v3085
      %3814 = vmatmul.mubr.bf16.gmra.mrb[0].mxu0 %v3084
      %v3815 = vpop.f32.mrb[0].mxu0
      %v3816 = vadd.f32 0.0, %v3815
      %v3817 = vpop.f32.mrb[0].mxu0
      %v3818 = vadd.f32 0.0, %v3817
      %v3819 = vpop.f32.mrb[0].mxu0
      %v3820 = vadd.f32 0.0, %v3819
      %v3821 = vpop.f32.mrb[0].mxu0
      %v3822 = vadd.f32 0.0, %v3821
      %3823 = vmatprep.mubr.bf16.mxu0 %v3087
      %3824 = vmatmul.mubr.bf16.gmra.mrb[0].mxu0 %v3086
      %v3825 = vpop.f32.mrb[0].mxu0
      %v3826 = vadd.f32 0.0, %v3825
      %v3827 = vpop.f32.mrb[0].mxu0
      %v3828 = vadd.f32 0.0, %v3827
      %v3829 = vpop.f32.mrb[0].mxu0
      %v3830 = vadd.f32 0.0, %v3829
      %v3831 = vpop.f32.mrb[0].mxu0
      %v3832 = vadd.f32 0.0, %v3831
      %3833 = vmatprep.mubr.bf16.mxu0 %v3089
      %3834 = vmatmul.mubr.bf16.gmra.mrb[0].mxu0 %v3088
      %v3835 = vpop.f32.mrb[0].mxu0
      %v3836 = vadd.f32 0.0, %v3835
      %v3837 = vpop.f32.mrb[0].mxu0
      %v3838 = vadd.f32 0.0, %v3837
      %v3839 = vpop.f32.mrb[0].mxu0
      %v3840 = vadd.f32 0.0, %v3839
      %v3841 = vpop.f32.mrb[0].mxu0
      %v3842 = vadd.f32 0.0, %v3841
      %3843 = vmatprep.mubr.bf16.mxu0 %v3091
      %3844 = vmatmul.mubr.bf16.gmra.mrb[0].mxu0 %v3090
      %v3845 = vpop.f32.mrb[0].mxu0
      %v3846 = vadd.f32 0.0, %v3845
      %v3847 = vpop.f32.mrb[0].mxu0
      %v3848 = vadd.f32 0.0, %v3847
      %v3849 = vpop.f32.mrb[0].mxu0
      %v3850 = vadd.f32 0.0, %v3849
      %v3851 = vpop.f32.mrb[0].mxu0
      %v3852 = vadd.f32 0.0, %v3851
      %3853 = vmatprep.mubr.bf16.mxu0 %v3093
      %3854 = vmatmul.mubr.bf16.gmra.mrb[0].mxu0 %v3092
      %v3855 = vpop.f32.mrb[0].mxu0
      %v3856 = vadd.f32 0.0, %v3855
      %v3857 = vpop.f32.mrb[0].mxu0
      %v3858 = vadd.f32 0.0, %v3857
      %v3859 = vpop.f32.mrb[0].mxu0
      %v3860 = vadd.f32 0.0, %v3859
      %v3861 = vpop.f32.mrb[0].mxu0
      %v3862 = vadd.f32 0.0, %v3861
      %3863 = vdwg.mxu0
      %3864 = vmatprep.subr.bf16.mxu0 %v2667
      %3865 = vmatpush1.bf16.msra.mxu0 %v2666
      %3866 = vmatprep.subr.bf16.mxu0 %v2674
      %3867 = vmatpush1.bf16.msra.mxu0 %v2673
      %3868 = vmatprep.subr.bf16.mxu0 %v2681
      %3869 = vmatpush1.bf16.msra.mxu0 %v2680
      %3870 = vmatprep.subr.bf16.mxu0 %v2688
      %3871 = vmatpush1.bf16.msra.mxu0 %v2687
      %3872 = vmatprep.subr.bf16.mxu0 %v2695
      %3873 = vmatpush1.bf16.msra.mxu0 %v2694
      %3874 = vmatprep.subr.bf16.mxu0 %v2702
      %3875 = vmatpush1.bf16.msra.mxu0 %v2701
      %3876 = vmatprep.subr.bf16.mxu0 %v2709
      %3877 = vmatpush1.bf16.msra.mxu0 %v2708
      %3878 = vmatprep.subr.bf16.mxu0 %v2716
      %3879 = vmatpush1.bf16.msra.mxu0 %v2715
      %3880 = vmatprep.subr.bf16.mxu0 %v2723
      %3881 = vmatpush1.bf16.msra.mxu0 %v2722
      %3882 = vmatprep.subr.bf16.mxu0 %v2730
      %3883 = vmatpush1.bf16.msra.mxu0 %v2729
      %3884 = vmatprep.subr.bf16.mxu0 %v2737
      %3885 = vmatpush1.bf16.msra.mxu0 %v2736
      %3886 = vmatprep.subr.bf16.mxu0 %v2744
      %3887 = vmatpush1.bf16.msra.mxu0 %v2743
      %3888 = vmatprep.subr.bf16.mxu0 %v2751
      %3889 = vmatpush1.bf16.msra.mxu0 %v2750
      %3890 = vmatprep.subr.bf16.mxu0 %v2758
      %3891 = vmatpush1.bf16.msra.mxu0 %v2757
      %3892 = vmatprep.subr.bf16.mxu0 %v2765
      %3893 = vmatpush1.bf16.msra.mxu0 %v2764
      %3894 = vmatprep.subr.bf16.mxu0 %v2772
      %3895 = vmatpush1.bf16.msra.mxu0 %v2771
      %3896 = vmatprep.mubr.bf16.mxu0 %v3031
      %3897 = vmatmul.mubr.bf16.gmra.mrb[0].mxu0 %v3030
      %v3898 = vpop.f32.mrb[0].mxu0
      %v3899 = vadd.f32 0.0, %v3898
      %v3900 = vpop.f32.mrb[0].mxu0
      %v3901 = vadd.f32 0.0, %v3900
      %v3902 = vpop.f32.mrb[0].mxu0
      %v3903 = vadd.f32 0.0, %v3902
      %v3904 = vpop.f32.mrb[0].mxu0
      %v3905 = vadd.f32 0.0, %v3904
      %3906 = vmatprep.mubr.bf16.mxu0 %v3033
      %3907 = vmatmul.mubr.bf16.gmra.mrb[0].mxu0 %v3032
      %v3908 = vpop.f32.mrb[0].mxu0
      %v3909 = vadd.f32 0.0, %v3908
      %v3910 = vpop.f32.mrb[0].mxu0
      %v3911 = vadd.f32 0.0, %v3910
      %v3912 = vpop.f32.mrb[0].mxu0
      %v3913 = vadd.f32 0.0, %v3912
      %v3914 = vpop.f32.mrb[0].mxu0
      %v3915 = vadd.f32 0.0, %v3914
      %3916 = vmatprep.mubr.bf16.mxu0 %v3035
      %3917 = vmatmul.mubr.bf16.gmra.mrb[0].mxu0 %v3034
      %v3918 = vpop.f32.mrb[0].mxu0
      %v3919 = vadd.f32 0.0, %v3918
      %v3920 = vpop.f32.mrb[0].mxu0
      %v3921 = vadd.f32 0.0, %v3920
      %v3922 = vpop.f32.mrb[0].mxu0
      %v3923 = vadd.f32 0.0, %v3922
      %v3924 = vpop.f32.mrb[0].mxu0
      %v3925 = vadd.f32 0.0, %v3924
      %3926 = vmatprep.mubr.bf16.mxu0 %v3037
      %3927 = vmatmul.mubr.bf16.gmra.mrb[0].mxu0 %v3036
      %v3928 = vpop.f32.mrb[0].mxu0
      %v3929 = vadd.f32 0.0, %v3928
      %v3930 = vpop.f32.mrb[0].mxu0
      %v3931 = vadd.f32 0.0, %v3930
      %v3932 = vpop.f32.mrb[0].mxu0
      %v3933 = vadd.f32 0.0, %v3932
      %v3934 = vpop.f32.mrb[0].mxu0
      %v3935 = vadd.f32 0.0, %v3934
      %3936 = vmatprep.mubr.bf16.mxu0 %v3039
      %3937 = vmatmul.mubr.bf16.gmra.mrb[0].mxu0 %v3038
      %v3938 = vpop.f32.mrb[0].mxu0
      %v3939 = vadd.f32 0.0, %v3938
      %v3940 = vpop.f32.mrb[0].mxu0
      %v3941 = vadd.f32 0.0, %v3940
      %v3942 = vpop.f32.mrb[0].mxu0
      %v3943 = vadd.f32 0.0, %v3942
      %v3944 = vpop.f32.mrb[0].mxu0
      %v3945 = vadd.f32 0.0, %v3944
      %3946 = vmatprep.mubr.bf16.mxu0 %v3041
      %3947 = vmatmul.mubr.bf16.gmra.mrb[0].mxu0 %v3040
      %v3948 = vpop.f32.mrb[0].mxu0
      %v3949 = vadd.f32 0.0, %v3948
      %v3950 = vpop.f32.mrb[0].mxu0
      %v3951 = vadd.f32 0.0, %v3950
      %v3952 = vpop.f32.mrb[0].mxu0
      %v3953 = vadd.f32 0.0, %v3952
      %v3954 = vpop.f32.mrb[0].mxu0
      %v3955 = vadd.f32 0.0, %v3954
      %3956 = vmatprep.mubr.bf16.mxu0 %v3043
      %3957 = vmatmul.mubr.bf16.gmra.mrb[0].mxu0 %v3042
      %v3958 = vpop.f32.mrb[0].mxu0
      %v3959 = vadd.f32 0.0, %v3958
      %v3960 = vpop.f32.mrb[0].mxu0
      %v3961 = vadd.f32 0.0, %v3960
      %v3962 = vpop.f32.mrb[0].mxu0
      %v3963 = vadd.f32 0.0, %v3962
      %v3964 = vpop.f32.mrb[0].mxu0
      %v3965 = vadd.f32 0.0, %v3964
      %3966 = vmatprep.mubr.bf16.mxu0 %v3045
      %3967 = vmatmul.mubr.bf16.gmra.mrb[0].mxu0 %v3044
      %v3968 = vpop.f32.mrb[0].mxu0
      %v3969 = vadd.f32 0.0, %v3968
      %v3970 = vpop.f32.mrb[0].mxu0
      %v3971 = vadd.f32 0.0, %v3970
      %v3972 = vpop.f32.mrb[0].mxu0
      %v3973 = vadd.f32 0.0, %v3972
      %v3974 = vpop.f32.mrb[0].mxu0
      %v3975 = vadd.f32 0.0, %v3974
      %3976 = vmatprep.mubr.bf16.mxu0 %v3047
      %3977 = vmatmul.mubr.bf16.gmra.mrb[0].mxu0 %v3046
      %v3978 = vpop.f32.mrb[0].mxu0
      %v3979 = vadd.f32 0.0, %v3978
      %v3980 = vpop.f32.mrb[0].mxu0
      %v3981 = vadd.f32 0.0, %v3980
      %v3982 = vpop.f32.mrb[0].mxu0
      %v3983 = vadd.f32 0.0, %v3982
      %v3984 = vpop.f32.mrb[0].mxu0
      %v3985 = vadd.f32 0.0, %v3984
      %3986 = vmatprep.mubr.bf16.mxu0 %v3049
      %3987 = vmatmul.mubr.bf16.gmra.mrb[0].mxu0 %v3048
      %v3988 = vpop.f32.mrb[0].mxu0
      %v3989 = vadd.f32 0.0, %v3988
      %v3990 = vpop.f32.mrb[0].mxu0
      %v3991 = vadd.f32 0.0, %v3990
      %v3992 = vpop.f32.mrb[0].mxu0
      %v3993 = vadd.f32 0.0, %v3992
      %v3994 = vpop.f32.mrb[0].mxu0
      %v3995 = vadd.f32 0.0, %v3994
      %3996 = vmatprep.mubr.bf16.mxu0 %v3051
      %3997 = vmatmul.mubr.bf16.gmra.mrb[0].mxu0 %v3050
      %v3998 = vpop.f32.mrb[0].mxu0
      %v3999 = vadd.f32 0.0, %v3998
      %v4000 = vpop.f32.mrb[0].mxu0
      %v4001 = vadd.f32 0.0, %v4000
      %v4002 = vpop.f32.mrb[0].mxu0
      %v4003 = vadd.f32 0.0, %v4002
      %v4004 = vpop.f32.mrb[0].mxu0
      %v4005 = vadd.f32 0.0, %v4004
      %4006 = vmatprep.mubr.bf16.mxu0 %v3053
      %4007 = vmatmul.mubr.bf16.gmra.mrb[0].mxu0 %v3052
      %v4008 = vpop.f32.mrb[0].mxu0
      %v4009 = vadd.f32 0.0, %v4008
      %v4010 = vpop.f32.mrb[0].mxu0
      %v4011 = vadd.f32 0.0, %v4010
      %v4012 = vpop.f32.mrb[0].mxu0
      %v4013 = vadd.f32 0.0, %v4012
      %v4014 = vpop.f32.mrb[0].mxu0
      %v4015 = vadd.f32 0.0, %v4014
      %4016 = vmatprep.mubr.bf16.mxu0 %v3055
      %4017 = vmatmul.mubr.bf16.gmra.mrb[0].mxu0 %v3054
      %v4018 = vpop.f32.mrb[0].mxu0
      %v4019 = vadd.f32 0.0, %v4018
      %v4020 = vpop.f32.mrb[0].mxu0
      %v4021 = vadd.f32 0.0, %v4020
      %v4022 = vpop.f32.mrb[0].mxu0
      %v4023 = vadd.f32 0.0, %v4022
      %v4024 = vpop.f32.mrb[0].mxu0
      %v4025 = vadd.f32 0.0, %v4024
      %4026 = vmatprep.mubr.bf16.mxu0 %v3057
      %4027 = vmatmul.mubr.bf16.gmra.mrb[0].mxu0 %v3056
      %v4028 = vpop.f32.mrb[0].mxu0
      %v4029 = vadd.f32 0.0, %v4028
      %v4030 = vpop.f32.mrb[0].mxu0
      %v4031 = vadd.f32 0.0, %v4030
      %v4032 = vpop.f32.mrb[0].mxu0
      %v4033 = vadd.f32 0.0, %v4032
      %v4034 = vpop.f32.mrb[0].mxu0
      %v4035 = vadd.f32 0.0, %v4034
      %4036 = vmatprep.mubr.bf16.mxu0 %v3059
      %4037 = vmatmul.mubr.bf16.gmra.mrb[0].mxu0 %v3058
      %v4038 = vpop.f32.mrb[0].mxu0
      %v4039 = vadd.f32 0.0, %v4038
      %v4040 = vpop.f32.mrb[0].mxu0
      %v4041 = vadd.f32 0.0, %v4040
      %v4042 = vpop.f32.mrb[0].mxu0
      %v4043 = vadd.f32 0.0, %v4042
      %v4044 = vpop.f32.mrb[0].mxu0
      %v4045 = vadd.f32 0.0, %v4044
      %4046 = vmatprep.mubr.bf16.mxu0 %v3061
      %4047 = vmatmul.mubr.bf16.gmra.mrb[0].mxu0 %v3060
      %v4048 = vpop.f32.mrb[0].mxu0
      %v4049 = vadd.f32 0.0, %v4048
      %v4050 = vpop.f32.mrb[0].mxu0
      %v4051 = vadd.f32 0.0, %v4050
      %v4052 = vpop.f32.mrb[0].mxu0
      %v4053 = vadd.f32 0.0, %v4052
      %v4054 = vpop.f32.mrb[0].mxu0
      %v4055 = vadd.f32 0.0, %v4054
      %4056 = vmatprep.mubr.bf16.mxu0 %v3063
      %4057 = vmatmul.mubr.bf16.gmra.mrb[0].mxu0 %v3062
      %v4058 = vpop.f32.mrb[0].mxu0
      %v4059 = vadd.f32 0.0, %v4058
      %v4060 = vpop.f32.mrb[0].mxu0
      %v4061 = vadd.f32 0.0, %v4060
      %v4062 = vpop.f32.mrb[0].mxu0
      %v4063 = vadd.f32 0.0, %v4062
      %v4064 = vpop.f32.mrb[0].mxu0
      %v4065 = vadd.f32 0.0, %v4064
      %4066 = vmatprep.mubr.bf16.mxu0 %v3065
      %4067 = vmatmul.mubr.bf16.gmra.mrb[0].mxu0 %v3064
      %v4068 = vpop.f32.mrb[0].mxu0
      %v4069 = vadd.f32 0.0, %v4068
      %v4070 = vpop.f32.mrb[0].mxu0
      %v4071 = vadd.f32 0.0, %v4070
      %v4072 = vpop.f32.mrb[0].mxu0
      %v4073 = vadd.f32 0.0, %v4072
      %v4074 = vpop.f32.mrb[0].mxu0
      %v4075 = vadd.f32 0.0, %v4074
      %4076 = vmatprep.mubr.bf16.mxu0 %v3067
      %4077 = vmatmul.mubr.bf16.gmra.mrb[0].mxu0 %v3066
      %v4078 = vpop.f32.mrb[0].mxu0
      %v4079 = vadd.f32 0.0, %v4078
      %v4080 = vpop.f32.mrb[0].mxu0
      %v4081 = vadd.f32 0.0, %v4080
      %v4082 = vpop.f32.mrb[0].mxu0
      %v4083 = vadd.f32 0.0, %v4082
      %v4084 = vpop.f32.mrb[0].mxu0
      %v4085 = vadd.f32 0.0, %v4084
      %4086 = vmatprep.mubr.bf16.mxu0 %v3069
      %4087 = vmatmul.mubr.bf16.gmra.mrb[0].mxu0 %v3068
      %v4088 = vpop.f32.mrb[0].mxu0
      %v4089 = vadd.f32 0.0, %v4088
      %v4090 = vpop.f32.mrb[0].mxu0
      %v4091 = vadd.f32 0.0, %v4090
      %v4092 = vpop.f32.mrb[0].mxu0
      %v4093 = vadd.f32 0.0, %v4092
      %v4094 = vpop.f32.mrb[0].mxu0
      %v4095 = vadd.f32 0.0, %v4094
      %4096 = vmatprep.mubr.bf16.mxu0 %v3071
      %4097 = vmatmul.mubr.bf16.gmra.mrb[0].mxu0 %v3070
      %v4098 = vpop.f32.mrb[0].mxu0
      %v4099 = vadd.f32 0.0, %v4098
      %v4100 = vpop.f32.mrb[0].mxu0
      %v4101 = vadd.f32 0.0, %v4100
      %v4102 = vpop.f32.mrb[0].mxu0
      %v4103 = vadd.f32 0.0, %v4102
      %v4104 = vpop.f32.mrb[0].mxu0
      %v4105 = vadd.f32 0.0, %v4104
      %4106 = vmatprep.mubr.bf16.mxu0 %v3073
      %4107 = vmatmul.mubr.bf16.gmra.mrb[0].mxu0 %v3072
      %v4108 = vpop.f32.mrb[0].mxu0
      %v4109 = vadd.f32 0.0, %v4108
      %v4110 = vpop.f32.mrb[0].mxu0
      %v4111 = vadd.f32 0.0, %v4110
      %v4112 = vpop.f32.mrb[0].mxu0
      %v4113 = vadd.f32 0.0, %v4112
      %v4114 = vpop.f32.mrb[0].mxu0
      %v4115 = vadd.f32 0.0, %v4114
      %4116 = vmatprep.mubr.bf16.mxu0 %v3075
      %4117 = vmatmul.mubr.bf16.gmra.mrb[0].mxu0 %v3074
      %v4118 = vpop.f32.mrb[0].mxu0
      %v4119 = vadd.f32 0.0, %v4118
      %v4120 = vpop.f32.mrb[0].mxu0
      %v4121 = vadd.f32 0.0, %v4120
      %v4122 = vpop.f32.mrb[0].mxu0
      %v4123 = vadd.f32 0.0, %v4122
      %v4124 = vpop.f32.mrb[0].mxu0
      %v4125 = vadd.f32 0.0, %v4124
      %4126 = vmatprep.mubr.bf16.mxu0 %v3077
      %4127 = vmatmul.mubr.bf16.gmra.mrb[0].mxu0 %v3076
      %v4128 = vpop.f32.mrb[0].mxu0
      %v4129 = vadd.f32 0.0, %v4128
      %v4130 = vpop.f32.mrb[0].mxu0
      %v4131 = vadd.f32 0.0, %v4130
      %v4132 = vpop.f32.mrb[0].mxu0
      %v4133 = vadd.f32 0.0, %v4132
      %v4134 = vpop.f32.mrb[0].mxu0
      %v4135 = vadd.f32 0.0, %v4134
      %4136 = vmatprep.mubr.bf16.mxu0 %v3079
      %4137 = vmatmul.mubr.bf16.gmra.mrb[0].mxu0 %v3078
      %v4138 = vpop.f32.mrb[0].mxu0
      %v4139 = vadd.f32 0.0, %v4138
      %v4140 = vpop.f32.mrb[0].mxu0
      %v4141 = vadd.f32 0.0, %v4140
      %v4142 = vpop.f32.mrb[0].mxu0
      %v4143 = vadd.f32 0.0, %v4142
      %v4144 = vpop.f32.mrb[0].mxu0
      %v4145 = vadd.f32 0.0, %v4144
      %4146 = vmatprep.mubr.bf16.mxu0 %v3081
      %4147 = vmatmul.mubr.bf16.gmra.mrb[0].mxu0 %v3080
      %v4148 = vpop.f32.mrb[0].mxu0
      %v4149 = vadd.f32 0.0, %v4148
      %v4150 = vpop.f32.mrb[0].mxu0
      %v4151 = vadd.f32 0.0, %v4150
      %v4152 = vpop.f32.mrb[0].mxu0
      %v4153 = vadd.f32 0.0, %v4152
      %v4154 = vpop.f32.mrb[0].mxu0
      %v4155 = vadd.f32 0.0, %v4154
      %4156 = vmatprep.mubr.bf16.mxu0 %v3083
      %4157 = vmatmul.mubr.bf16.gmra.mrb[0].mxu0 %v3082
      %v4158 = vpop.f32.mrb[0].mxu0
      %v4159 = vadd.f32 0.0, %v4158
      %v4160 = vpop.f32.mrb[0].mxu0
      %v4161 = vadd.f32 0.0, %v4160
      %v4162 = vpop.f32.mrb[0].mxu0
      %v4163 = vadd.f32 0.0, %v4162
      %v4164 = vpop.f32.mrb[0].mxu0
      %v4165 = vadd.f32 0.0, %v4164
      %4166 = vmatprep.mubr.bf16.mxu0 %v3085
      %4167 = vmatmul.mubr.bf16.gmra.mrb[0].mxu0 %v3084
      %v4168 = vpop.f32.mrb[0].mxu0
      %v4169 = vadd.f32 0.0, %v4168
      %v4170 = vpop.f32.mrb[0].mxu0
      %v4171 = vadd.f32 0.0, %v4170
      %v4172 = vpop.f32.mrb[0].mxu0
      %v4173 = vadd.f32 0.0, %v4172
      %v4174 = vpop.f32.mrb[0].mxu0
      %v4175 = vadd.f32 0.0, %v4174
      %4176 = vmatprep.mubr.bf16.mxu0 %v3087
      %4177 = vmatmul.mubr.bf16.gmra.mrb[0].mxu0 %v3086
      %v4178 = vpop.f32.mrb[0].mxu0
      %v4179 = vadd.f32 0.0, %v4178
      %v4180 = vpop.f32.mrb[0].mxu0
      %v4181 = vadd.f32 0.0, %v4180
      %v4182 = vpop.f32.mrb[0].mxu0
      %v4183 = vadd.f32 0.0, %v4182
      %v4184 = vpop.f32.mrb[0].mxu0
      %v4185 = vadd.f32 0.0, %v4184
      %4186 = vmatprep.mubr.bf16.mxu0 %v3089
      %4187 = vmatmul.mubr.bf16.gmra.mrb[0].mxu0 %v3088
      %v4188 = vpop.f32.mrb[0].mxu0
      %v4189 = vadd.f32 0.0, %v4188
      %v4190 = vpop.f32.mrb[0].mxu0
      %v4191 = vadd.f32 0.0, %v4190
      %v4192 = vpop.f32.mrb[0].mxu0
      %v4193 = vadd.f32 0.0, %v4192
      %v4194 = vpop.f32.mrb[0].mxu0
      %v4195 = vadd.f32 0.0, %v4194
      %4196 = vmatprep.mubr.bf16.mxu0 %v3091
      %4197 = vmatmul.mubr.bf16.gmra.mrb[0].mxu0 %v3090
      %v4198 = vpop.f32.mrb[0].mxu0
      %v4199 = vadd.f32 0.0, %v4198
      %v4200 = vpop.f32.mrb[0].mxu0
      %v4201 = vadd.f32 0.0, %v4200
      %v4202 = vpop.f32.mrb[0].mxu0
      %v4203 = vadd.f32 0.0, %v4202
      %v4204 = vpop.f32.mrb[0].mxu0
      %v4205 = vadd.f32 0.0, %v4204
      %4206 = vmatprep.mubr.bf16.mxu0 %v3093
      %4207 = vmatmul.mubr.bf16.gmra.mrb[0].mxu0 %v3092
      %v4208 = vpop.f32.mrb[0].mxu0
      %v4209 = vadd.f32 0.0, %v4208
      %v4210 = vpop.f32.mrb[0].mxu0
      %v4211 = vadd.f32 0.0, %v4210
      %v4212 = vpop.f32.mrb[0].mxu0
      %v4213 = vadd.f32 0.0, %v4212
      %v4214 = vpop.f32.mrb[0].mxu0
      %v4215 = vadd.f32 0.0, %v4214
      %4216 = vdwg.mxu0
      %4217 = vmatprep.subr.bf16.mxu0 0
      %4218 = vmatpush1.bf16.msra.mxu0 %v2668
      %4219 = vmatprep.subr.bf16.mxu0 0
      %4220 = vmatpush1.bf16.msra.mxu0 %v2675
      %4221 = vmatprep.subr.bf16.mxu0 0
      %4222 = vmatpush1.bf16.msra.mxu0 %v2682
      %4223 = vmatprep.subr.bf16.mxu0 0
      %4224 = vmatpush1.bf16.msra.mxu0 %v2689
      %4225 = vmatprep.subr.bf16.mxu0 0
      %4226 = vmatpush1.bf16.msra.mxu0 %v2696
      %4227 = vmatprep.subr.bf16.mxu0 0
      %4228 = vmatpush1.bf16.msra.mxu0 %v2703
      %4229 = vmatprep.subr.bf16.mxu0 0
      %4230 = vmatpush1.bf16.msra.mxu0 %v2710
      %4231 = vmatprep.subr.bf16.mxu0 0
      %4232 = vmatpush1.bf16.msra.mxu0 %v2717
      %4233 = vmatprep.subr.bf16.mxu0 0
      %4234 = vmatpush1.bf16.msra.mxu0 %v2724
      %4235 = vmatprep.subr.bf16.mxu0 0
      %4236 = vmatpush1.bf16.msra.mxu0 %v2731
      %4237 = vmatprep.subr.bf16.mxu0 0
      %4238 = vmatpush1.bf16.msra.mxu0 %v2738
      %4239 = vmatprep.subr.bf16.mxu0 0
      %4240 = vmatpush1.bf16.msra.mxu0 %v2745
      %4241 = vmatprep.subr.bf16.mxu0 0
      %4242 = vmatpush1.bf16.msra.mxu0 %v2752
      %4243 = vmatprep.subr.bf16.mxu0 0
      %4244 = vmatpush1.bf16.msra.mxu0 %v2759
      %4245 = vmatprep.subr.bf16.mxu0 0
      %4246 = vmatpush1.bf16.msra.mxu0 %v2766
      %4247 = vmatprep.subr.bf16.mxu0 0
      %4248 = vmatpush1.bf16.msra.mxu0 %v2773
      %4249 = vmatprep.mubr.bf16.mxu0 %v3031
      %4250 = vmatmul.mubr.bf16.gmra.mrb[0].mxu0 %v3030
      %v4251 = vpop.f32.mrb[0].mxu0
      %v4252 = vadd.f32 0.0, %v4251
      %v4253 = vpop.f32.mrb[0].mxu0
      %v4254 = vpop.f32.mrb[0].mxu0
      %v4255 = vadd.f32 0.0, %v4254
      %v4256 = vpop.f32.mrb[0].mxu0
      %4257 = vmatprep.mubr.bf16.mxu0 %v3033
      %4258 = vmatmul.mubr.bf16.gmra.mrb[0].mxu0 %v3032
      %v4259 = vpop.f32.mrb[0].mxu0
      %v4260 = vadd.f32 0.0, %v4259
      %v4261 = vpop.f32.mrb[0].mxu0
      %v4262 = vpop.f32.mrb[0].mxu0
      %v4263 = vadd.f32 0.0, %v4262
      %v4264 = vpop.f32.mrb[0].mxu0
      %4265 = vmatprep.mubr.bf16.mxu0 %v3035
      %4266 = vmatmul.mubr.bf16.gmra.mrb[0].mxu0 %v3034
      %v4267 = vpop.f32.mrb[0].mxu0
      %v4268 = vadd.f32 0.0, %v4267
      %v4269 = vpop.f32.mrb[0].mxu0
      %v4270 = vpop.f32.mrb[0].mxu0
      %v4271 = vadd.f32 0.0, %v4270
      %v4272 = vpop.f32.mrb[0].mxu0
      %4273 = vmatprep.mubr.bf16.mxu0 %v3037
      %4274 = vmatmul.mubr.bf16.gmra.mrb[0].mxu0 %v3036
      %v4275 = vpop.f32.mrb[0].mxu0
      %v4276 = vadd.f32 0.0, %v4275
      %v4277 = vpop.f32.mrb[0].mxu0
      %v4278 = vpop.f32.mrb[0].mxu0
      %v4279 = vadd.f32 0.0, %v4278
      %v4280 = vpop.f32.mrb[0].mxu0
      %4281 = vmatprep.mubr.bf16.mxu0 %v3039
      %4282 = vmatmul.mubr.bf16.gmra.mrb[0].mxu0 %v3038
      %v4283 = vpop.f32.mrb[0].mxu0
      %v4284 = vadd.f32 0.0, %v4283
      %v4285 = vpop.f32.mrb[0].mxu0
      %v4286 = vpop.f32.mrb[0].mxu0
      %v4287 = vadd.f32 0.0, %v4286
      %v4288 = vpop.f32.mrb[0].mxu0
      %4289 = vmatprep.mubr.bf16.mxu0 %v3041
      %4290 = vmatmul.mubr.bf16.gmra.mrb[0].mxu0 %v3040
      %v4291 = vpop.f32.mrb[0].mxu0
      %v4292 = vadd.f32 0.0, %v4291
      %v4293 = vpop.f32.mrb[0].mxu0
      %v4294 = vpop.f32.mrb[0].mxu0
      %v4295 = vadd.f32 0.0, %v4294
      %v4296 = vpop.f32.mrb[0].mxu0
      %4297 = vmatprep.mubr.bf16.mxu0 %v3043
      %4298 = vmatmul.mubr.bf16.gmra.mrb[0].mxu0 %v3042
      %v4299 = vpop.f32.mrb[0].mxu0
      %v4300 = vadd.f32 0.0, %v4299
      %v4301 = vpop.f32.mrb[0].mxu0
      %v4302 = vpop.f32.mrb[0].mxu0
      %v4303 = vadd.f32 0.0, %v4302
      %v4304 = vpop.f32.mrb[0].mxu0
      %4305 = vmatprep.mubr.bf16.mxu0 %v3045
      %4306 = vmatmul.mubr.bf16.gmra.mrb[0].mxu0 %v3044
      %v4307 = vpop.f32.mrb[0].mxu0
      %v4308 = vadd.f32 0.0, %v4307
      %v4309 = vpop.f32.mrb[0].mxu0
      %v4310 = vpop.f32.mrb[0].mxu0
      %v4311 = vadd.f32 0.0, %v4310
      %v4312 = vpop.f32.mrb[0].mxu0
      %4313 = vmatprep.mubr.bf16.mxu0 %v3047
      %4314 = vmatmul.mubr.bf16.gmra.mrb[0].mxu0 %v3046
      %v4315 = vpop.f32.mrb[0].mxu0
      %v4316 = vadd.f32 0.0, %v4315
      %v4317 = vpop.f32.mrb[0].mxu0
      %v4318 = vpop.f32.mrb[0].mxu0
      %v4319 = vadd.f32 0.0, %v4318
      %v4320 = vpop.f32.mrb[0].mxu0
      %4321 = vmatprep.mubr.bf16.mxu0 %v3049
      %4322 = vmatmul.mubr.bf16.gmra.mrb[0].mxu0 %v3048
      %v4323 = vpop.f32.mrb[0].mxu0
      %v4324 = vadd.f32 0.0, %v4323
      %v4325 = vpop.f32.mrb[0].mxu0
      %v4326 = vpop.f32.mrb[0].mxu0
      %v4327 = vadd.f32 0.0, %v4326
      %v4328 = vpop.f32.mrb[0].mxu0
      %4329 = vmatprep.mubr.bf16.mxu0 %v3051
      %4330 = vmatmul.mubr.bf16.gmra.mrb[0].mxu0 %v3050
      %v4331 = vpop.f32.mrb[0].mxu0
      %v4332 = vadd.f32 0.0, %v4331
      %v4333 = vpop.f32.mrb[0].mxu0
      %v4334 = vpop.f32.mrb[0].mxu0
      %v4335 = vadd.f32 0.0, %v4334
      %v4336 = vpop.f32.mrb[0].mxu0
      %4337 = vmatprep.mubr.bf16.mxu0 %v3053
      %4338 = vmatmul.mubr.bf16.gmra.mrb[0].mxu0 %v3052
      %v4339 = vpop.f32.mrb[0].mxu0
      %v4340 = vadd.f32 0.0, %v4339
      %v4341 = vpop.f32.mrb[0].mxu0
      %v4342 = vpop.f32.mrb[0].mxu0
      %v4343 = vadd.f32 0.0, %v4342
      %v4344 = vpop.f32.mrb[0].mxu0
      %4345 = vmatprep.mubr.bf16.mxu0 %v3055
      %4346 = vmatmul.mubr.bf16.gmra.mrb[0].mxu0 %v3054
      %v4347 = vpop.f32.mrb[0].mxu0
      %v4348 = vadd.f32 0.0, %v4347
      %v4349 = vpop.f32.mrb[0].mxu0
      %v4350 = vpop.f32.mrb[0].mxu0
      %v4351 = vadd.f32 0.0, %v4350
      %v4352 = vpop.f32.mrb[0].mxu0
      %4353 = vmatprep.mubr.bf16.mxu0 %v3057
      %4354 = vmatmul.mubr.bf16.gmra.mrb[0].mxu0 %v3056
      %v4355 = vpop.f32.mrb[0].mxu0
      %v4356 = vadd.f32 0.0, %v4355
      %v4357 = vpop.f32.mrb[0].mxu0
      %v4358 = vpop.f32.mrb[0].mxu0
      %v4359 = vadd.f32 0.0, %v4358
      %v4360 = vpop.f32.mrb[0].mxu0
      %4361 = vmatprep.mubr.bf16.mxu0 %v3059
      %4362 = vmatmul.mubr.bf16.gmra.mrb[0].mxu0 %v3058
      %v4363 = vpop.f32.mrb[0].mxu0
      %v4364 = vadd.f32 0.0, %v4363
      %v4365 = vpop.f32.mrb[0].mxu0
      %v4366 = vpop.f32.mrb[0].mxu0
      %v4367 = vadd.f32 0.0, %v4366
      %v4368 = vpop.f32.mrb[0].mxu0
      %4369 = vmatprep.mubr.bf16.mxu0 %v3061
      %4370 = vmatmul.mubr.bf16.gmra.mrb[0].mxu0 %v3060
      %v4371 = vpop.f32.mrb[0].mxu0
      %v4372 = vadd.f32 0.0, %v4371
      %v4373 = vpop.f32.mrb[0].mxu0
      %v4374 = vpop.f32.mrb[0].mxu0
      %v4375 = vadd.f32 0.0, %v4374
      %v4376 = vpop.f32.mrb[0].mxu0
      %4377 = vmatprep.mubr.bf16.mxu0 %v3063
      %4378 = vmatmul.mubr.bf16.gmra.mrb[0].mxu0 %v3062
      %v4379 = vpop.f32.mrb[0].mxu0
      %v4380 = vadd.f32 0.0, %v4379
      %v4381 = vpop.f32.mrb[0].mxu0
      %v4382 = vpop.f32.mrb[0].mxu0
      %v4383 = vadd.f32 0.0, %v4382
      %v4384 = vpop.f32.mrb[0].mxu0
      %4385 = vmatprep.mubr.bf16.mxu0 %v3065
      %4386 = vmatmul.mubr.bf16.gmra.mrb[0].mxu0 %v3064
      %v4387 = vpop.f32.mrb[0].mxu0
      %v4388 = vadd.f32 0.0, %v4387
      %v4389 = vpop.f32.mrb[0].mxu0
      %v4390 = vpop.f32.mrb[0].mxu0
      %v4391 = vadd.f32 0.0, %v4390
      %v4392 = vpop.f32.mrb[0].mxu0
      %4393 = vmatprep.mubr.bf16.mxu0 %v3067
      %4394 = vmatmul.mubr.bf16.gmra.mrb[0].mxu0 %v3066
      %v4395 = vpop.f32.mrb[0].mxu0
      %v4396 = vadd.f32 0.0, %v4395
      %v4397 = vpop.f32.mrb[0].mxu0
      %v4398 = vpop.f32.mrb[0].mxu0
      %v4399 = vadd.f32 0.0, %v4398
      %v4400 = vpop.f32.mrb[0].mxu0
      %4401 = vmatprep.mubr.bf16.mxu0 %v3069
      %4402 = vmatmul.mubr.bf16.gmra.mrb[0].mxu0 %v3068
      %v4403 = vpop.f32.mrb[0].mxu0
      %v4404 = vadd.f32 0.0, %v4403
      %v4405 = vpop.f32.mrb[0].mxu0
      %v4406 = vpop.f32.mrb[0].mxu0
      %v4407 = vadd.f32 0.0, %v4406
      %v4408 = vpop.f32.mrb[0].mxu0
      %4409 = vmatprep.mubr.bf16.mxu0 %v3071
      %4410 = vmatmul.mubr.bf16.gmra.mrb[0].mxu0 %v3070
      %v4411 = vpop.f32.mrb[0].mxu0
      %v4412 = vadd.f32 0.0, %v4411
      %v4413 = vpop.f32.mrb[0].mxu0
      %v4414 = vpop.f32.mrb[0].mxu0
      %v4415 = vadd.f32 0.0, %v4414
      %v4416 = vpop.f32.mrb[0].mxu0
      %4417 = vmatprep.mubr.bf16.mxu0 %v3073
      %4418 = vmatmul.mubr.bf16.gmra.mrb[0].mxu0 %v3072
      %v4419 = vpop.f32.mrb[0].mxu0
      %v4420 = vadd.f32 0.0, %v4419
      %v4421 = vpop.f32.mrb[0].mxu0
      %v4422 = vpop.f32.mrb[0].mxu0
      %v4423 = vadd.f32 0.0, %v4422
      %v4424 = vpop.f32.mrb[0].mxu0
      %4425 = vmatprep.mubr.bf16.mxu0 %v3075
      %4426 = vmatmul.mubr.bf16.gmra.mrb[0].mxu0 %v3074
      %v4427 = vpop.f32.mrb[0].mxu0
      %v4428 = vadd.f32 0.0, %v4427
      %v4429 = vpop.f32.mrb[0].mxu0
      %v4430 = vpop.f32.mrb[0].mxu0
      %v4431 = vadd.f32 0.0, %v4430
      %v4432 = vpop.f32.mrb[0].mxu0
      %4433 = vmatprep.mubr.bf16.mxu0 %v3077
      %4434 = vmatmul.mubr.bf16.gmra.mrb[0].mxu0 %v3076
      %v4435 = vpop.f32.mrb[0].mxu0
      %v4436 = vadd.f32 0.0, %v4435
      %v4437 = vpop.f32.mrb[0].mxu0
      %v4438 = vpop.f32.mrb[0].mxu0
      %v4439 = vadd.f32 0.0, %v4438
      %v4440 = vpop.f32.mrb[0].mxu0
      %4441 = vmatprep.mubr.bf16.mxu0 %v3079
      %4442 = vmatmul.mubr.bf16.gmra.mrb[0].mxu0 %v3078
      %v4443 = vpop.f32.mrb[0].mxu0
      %v4444 = vadd.f32 0.0, %v4443
      %v4445 = vpop.f32.mrb[0].mxu0
      %v4446 = vpop.f32.mrb[0].mxu0
      %v4447 = vadd.f32 0.0, %v4446
      %v4448 = vpop.f32.mrb[0].mxu0
      %4449 = vmatprep.mubr.bf16.mxu0 %v3081
      %4450 = vmatmul.mubr.bf16.gmra.mrb[0].mxu0 %v3080
      %v4451 = vpop.f32.mrb[0].mxu0
      %v4452 = vadd.f32 0.0, %v4451
      %v4453 = vpop.f32.mrb[0].mxu0
      %v4454 = vpop.f32.mrb[0].mxu0
      %v4455 = vadd.f32 0.0, %v4454
      %v4456 = vpop.f32.mrb[0].mxu0
      %4457 = vmatprep.mubr.bf16.mxu0 %v3083
      %4458 = vmatmul.mubr.bf16.gmra.mrb[0].mxu0 %v3082
      %v4459 = vpop.f32.mrb[0].mxu0
      %v4460 = vadd.f32 0.0, %v4459
      %v4461 = vpop.f32.mrb[0].mxu0
      %v4462 = vpop.f32.mrb[0].mxu0
      %v4463 = vadd.f32 0.0, %v4462
      %v4464 = vpop.f32.mrb[0].mxu0
      %4465 = vmatprep.mubr.bf16.mxu0 %v3085
      %4466 = vmatmul.mubr.bf16.gmra.mrb[0].mxu0 %v3084
      %v4467 = vpop.f32.mrb[0].mxu0
      %v4468 = vadd.f32 0.0, %v4467
      %v4469 = vpop.f32.mrb[0].mxu0
      %v4470 = vpop.f32.mrb[0].mxu0
      %v4471 = vadd.f32 0.0, %v4470
      %v4472 = vpop.f32.mrb[0].mxu0
      %4473 = vmatprep.mubr.bf16.mxu0 %v3087
      %4474 = vmatmul.mubr.bf16.gmra.mrb[0].mxu0 %v3086
      %v4475 = vpop.f32.mrb[0].mxu0
      %v4476 = vadd.f32 0.0, %v4475
      %v4477 = vpop.f32.mrb[0].mxu0
      %v4478 = vpop.f32.mrb[0].mxu0
      %v4479 = vadd.f32 0.0, %v4478
      %v4480 = vpop.f32.mrb[0].mxu0
      %4481 = vmatprep.mubr.bf16.mxu0 %v3089
      %4482 = vmatmul.mubr.bf16.gmra.mrb[0].mxu0 %v3088
      %v4483 = vpop.f32.mrb[0].mxu0
      %v4484 = vadd.f32 0.0, %v4483
      %v4485 = vpop.f32.mrb[0].mxu0
      %v4486 = vpop.f32.mrb[0].mxu0
      %v4487 = vadd.f32 0.0, %v4486
      %v4488 = vpop.f32.mrb[0].mxu0
      %4489 = vmatprep.mubr.bf16.mxu0 %v3091
      %4490 = vmatmul.mubr.bf16.gmra.mrb[0].mxu0 %v3090
      %v4491 = vpop.f32.mrb[0].mxu0
      %v4492 = vadd.f32 0.0, %v4491
      %v4493 = vpop.f32.mrb[0].mxu0
      %v4494 = vpop.f32.mrb[0].mxu0
      %v4495 = vadd.f32 0.0, %v4494
      %v4496 = vpop.f32.mrb[0].mxu0
      %4497 = vmatprep.mubr.bf16.mxu0 %v3093
      %4498 = vmatmul.mubr.bf16.gmra.mrb[0].mxu0 %v3092
      %v4499 = vpop.f32.mrb[0].mxu0
      %v4500 = vadd.f32 0.0, %v4499
      %v4501 = vpop.f32.mrb[0].mxu0
      %v4502 = vpop.f32.mrb[0].mxu0
      %v4503 = vadd.f32 0.0, %v4502
      %v4504 = vpop.f32.mrb[0].mxu0
      %4505 = vdwg.mxu0
      %v4506 = vadd.f32 %v3193, %v3195
      %v4507 = vadd.f32 %v4506, %v3546
      %v4508 = vadd.f32 %v4507, %v3548
      %v4509 = vadd.f32 %v4508, %v3899
      %v4510 = vadd.f32 %v4509, %v3901
      %v4511 = vsel %vm458, %v4252, 0.0
      %v4512 = vadd.f32 %v4510, %v4511
      %4513 = vadd.xlane.f32.xlu0 %v4512
      %v4514 = vpop.xlane.xlu0 %4513
      %v4515 = vadd.f32 %v3197, %v3199
      %v4516 = vadd.f32 %v4515, %v3550
      %v4517 = vadd.f32 %v4516, %v3552
      %v4518 = vadd.f32 %v4517, %v3903
      %v4519 = vadd.f32 %v4518, %v3905
      %v4520 = vsel %vm458, %v4255, 0.0
      %v4521 = vadd.f32 %v4519, %v4520
      %4522 = vadd.xlane.f32.xlu0 %v4521
      %v4523 = vpop.xlane.xlu0 %4522
      %v4524 = vadd.f32 %v3203, %v3205
      %v4525 = vadd.f32 %v4524, %v3556
      %v4526 = vadd.f32 %v4525, %v3558
      %v4527 = vadd.f32 %v4526, %v3909
      %v4528 = vadd.f32 %v4527, %v3911
      %v4529 = vsel %vm458, %v4260, 0.0
      %v4530 = vadd.f32 %v4528, %v4529
      %4531 = vadd.xlane.f32.xlu0 %v4530
      %v4532 = vpop.xlane.xlu0 %4531
      %v4533 = vadd.f32 %v3207, %v3209
      %v4534 = vadd.f32 %v4533, %v3560
      %v4535 = vadd.f32 %v4534, %v3562
      %v4536 = vadd.f32 %v4535, %v3913
      %v4537 = vadd.f32 %v4536, %v3915
      %v4538 = vsel %vm458, %v4263, 0.0
      %v4539 = vadd.f32 %v4537, %v4538
      %4540 = vadd.xlane.f32.xlu0 %v4539
      %v4541 = vpop.xlane.xlu0 %4540
      %v4542 = vadd.f32 %v3213, %v3215
      %v4543 = vadd.f32 %v4542, %v3566
      %v4544 = vadd.f32 %v4543, %v3568
      %v4545 = vadd.f32 %v4544, %v3919
      %v4546 = vadd.f32 %v4545, %v3921
      %v4547 = vsel %vm458, %v4268, 0.0
      %v4548 = vadd.f32 %v4546, %v4547
      %4549 = vadd.xlane.f32.xlu0 %v4548
      %v4550 = vpop.xlane.xlu0 %4549
      %v4551 = vadd.f32 %v3217, %v3219
      %v4552 = vadd.f32 %v4551, %v3570
      %v4553 = vadd.f32 %v4552, %v3572
      %v4554 = vadd.f32 %v4553, %v3923
      %v4555 = vadd.f32 %v4554, %v3925
      %v4556 = vsel %vm458, %v4271, 0.0
      %v4557 = vadd.f32 %v4555, %v4556
      %4558 = vadd.xlane.f32.xlu0 %v4557
      %v4559 = vpop.xlane.xlu0 %4558
      %v4560 = vadd.f32 %v3223, %v3225
      %v4561 = vadd.f32 %v4560, %v3576
      %v4562 = vadd.f32 %v4561, %v3578
      %v4563 = vadd.f32 %v4562, %v3929
      %v4564 = vadd.f32 %v4563, %v3931
      %v4565 = vsel %vm458, %v4276, 0.0
      %v4566 = vadd.f32 %v4564, %v4565
      %4567 = vadd.xlane.f32.xlu0 %v4566
      %v4568 = vpop.xlane.xlu0 %4567
      %v4569 = vadd.f32 %v3227, %v3229
      %v4570 = vadd.f32 %v4569, %v3580
      %v4571 = vadd.f32 %v4570, %v3582
      %v4572 = vadd.f32 %v4571, %v3933
      %v4573 = vadd.f32 %v4572, %v3935
      %v4574 = vsel %vm458, %v4279, 0.0
      %v4575 = vadd.f32 %v4573, %v4574
      %4576 = vadd.xlane.f32.xlu0 %v4575
      %v4577 = vpop.xlane.xlu0 %4576
      %v4578 = vadd.f32 %v3233, %v3235
      %v4579 = vadd.f32 %v4578, %v3586
      %v4580 = vadd.f32 %v4579, %v3588
      %v4581 = vadd.f32 %v4580, %v3939
      %v4582 = vadd.f32 %v4581, %v3941
      %v4583 = vsel %vm458, %v4284, 0.0
      %v4584 = vadd.f32 %v4582, %v4583
      %4585 = vadd.xlane.f32.xlu0 %v4584
      %v4586 = vpop.xlane.xlu0 %4585
      %v4587 = vadd.f32 %v3237, %v3239
      %v4588 = vadd.f32 %v4587, %v3590
      %v4589 = vadd.f32 %v4588, %v3592
      %v4590 = vadd.f32 %v4589, %v3943
      %v4591 = vadd.f32 %v4590, %v3945
      %v4592 = vsel %vm458, %v4287, 0.0
      %v4593 = vadd.f32 %v4591, %v4592
      %4594 = vadd.xlane.f32.xlu0 %v4593
      %v4595 = vpop.xlane.xlu0 %4594
      %v4596 = vadd.f32 %v3243, %v3245
      %v4597 = vadd.f32 %v4596, %v3596
      %v4598 = vadd.f32 %v4597, %v3598
      %v4599 = vadd.f32 %v4598, %v3949
      %v4600 = vadd.f32 %v4599, %v3951
      %v4601 = vsel %vm458, %v4292, 0.0
      %v4602 = vadd.f32 %v4600, %v4601
      %4603 = vadd.xlane.f32.xlu0 %v4602
      %v4604 = vpop.xlane.xlu0 %4603
      %v4605 = vadd.f32 %v3247, %v3249
      %v4606 = vadd.f32 %v4605, %v3600
      %v4607 = vadd.f32 %v4606, %v3602
      %v4608 = vadd.f32 %v4607, %v3953
      %v4609 = vadd.f32 %v4608, %v3955
      %v4610 = vsel %vm458, %v4295, 0.0
      %v4611 = vadd.f32 %v4609, %v4610
      %4612 = vadd.xlane.f32.xlu0 %v4611
      %v4613 = vpop.xlane.xlu0 %4612
      %v4614 = vadd.f32 %v3253, %v3255
      %v4615 = vadd.f32 %v4614, %v3606
      %v4616 = vadd.f32 %v4615, %v3608
      %v4617 = vadd.f32 %v4616, %v3959
      %v4618 = vadd.f32 %v4617, %v3961
      %v4619 = vsel %vm458, %v4300, 0.0
      %v4620 = vadd.f32 %v4618, %v4619
      %4621 = vadd.xlane.f32.xlu0 %v4620
      %v4622 = vpop.xlane.xlu0 %4621
      %v4623 = vadd.f32 %v3257, %v3259
      %v4624 = vadd.f32 %v4623, %v3610
      %v4625 = vadd.f32 %v4624, %v3612
      %v4626 = vadd.f32 %v4625, %v3963
      %v4627 = vadd.f32 %v4626, %v3965
      %v4628 = vsel %vm458, %v4303, 0.0
      %v4629 = vadd.f32 %v4627, %v4628
      %4630 = vadd.xlane.f32.xlu0 %v4629
      %v4631 = vpop.xlane.xlu0 %4630
      %v4632 = vadd.f32 %v3263, %v3265
      %v4633 = vadd.f32 %v4632, %v3616
      %v4634 = vadd.f32 %v4633, %v3618
      %v4635 = vadd.f32 %v4634, %v3969
      %v4636 = vadd.f32 %v4635, %v3971
      %v4637 = vsel %vm458, %v4308, 0.0
      %v4638 = vadd.f32 %v4636, %v4637
      %4639 = vadd.xlane.f32.xlu0 %v4638
      %v4640 = vpop.xlane.xlu0 %4639
      %v4641 = vadd.f32 %v3267, %v3269
      %v4642 = vadd.f32 %v4641, %v3620
      %v4643 = vadd.f32 %v4642, %v3622
      %v4644 = vadd.f32 %v4643, %v3973
      %v4645 = vadd.f32 %v4644, %v3975
      %v4646 = vsel %vm458, %v4311, 0.0
      %v4647 = vadd.f32 %v4645, %v4646
      %4648 = vadd.xlane.f32.xlu0 %v4647
      %v4649 = vpop.xlane.xlu0 %4648
      %v4650 = vadd.f32 %v3273, %v3275
      %v4651 = vadd.f32 %v4650, %v3626
      %v4652 = vadd.f32 %v4651, %v3628
      %v4653 = vadd.f32 %v4652, %v3979
      %v4654 = vadd.f32 %v4653, %v3981
      %v4655 = vsel %vm458, %v4316, 0.0
      %v4656 = vadd.f32 %v4654, %v4655
      %4657 = vadd.xlane.f32.xlu0 %v4656
      %v4658 = vpop.xlane.xlu0 %4657
      %v4659 = vadd.f32 %v3277, %v3279
      %v4660 = vadd.f32 %v4659, %v3630
      %v4661 = vadd.f32 %v4660, %v3632
      %v4662 = vadd.f32 %v4661, %v3983
      %v4663 = vadd.f32 %v4662, %v3985
      %v4664 = vsel %vm458, %v4319, 0.0
      %v4665 = vadd.f32 %v4663, %v4664
      %4666 = vadd.xlane.f32.xlu0 %v4665
      %v4667 = vpop.xlane.xlu0 %4666
      %v4668 = vadd.f32 %v3283, %v3285
      %v4669 = vadd.f32 %v4668, %v3636
      %v4670 = vadd.f32 %v4669, %v3638
      %v4671 = vadd.f32 %v4670, %v3989
      %v4672 = vadd.f32 %v4671, %v3991
      %v4673 = vsel %vm458, %v4324, 0.0
      %v4674 = vadd.f32 %v4672, %v4673
      %4675 = vadd.xlane.f32.xlu0 %v4674
      %v4676 = vpop.xlane.xlu0 %4675
      %v4677 = vadd.f32 %v3287, %v3289
      %v4678 = vadd.f32 %v4677, %v3640
      %v4679 = vadd.f32 %v4678, %v3642
      %v4680 = vadd.f32 %v4679, %v3993
      %v4681 = vadd.f32 %v4680, %v3995
      %v4682 = vsel %vm458, %v4327, 0.0
      %v4683 = vadd.f32 %v4681, %v4682
      %4684 = vadd.xlane.f32.xlu0 %v4683
      %v4685 = vpop.xlane.xlu0 %4684
      %v4686 = vadd.f32 %v3293, %v3295
      %v4687 = vadd.f32 %v4686, %v3646
      %v4688 = vadd.f32 %v4687, %v3648
      %v4689 = vadd.f32 %v4688, %v3999
      %v4690 = vadd.f32 %v4689, %v4001
      %v4691 = vsel %vm458, %v4332, 0.0
      %v4692 = vadd.f32 %v4690, %v4691
      %4693 = vadd.xlane.f32.xlu0 %v4692
      %v4694 = vpop.xlane.xlu0 %4693
      %v4695 = vadd.f32 %v3297, %v3299
      %v4696 = vadd.f32 %v4695, %v3650
      %v4697 = vadd.f32 %v4696, %v3652
      %v4698 = vadd.f32 %v4697, %v4003
      %v4699 = vadd.f32 %v4698, %v4005
      %v4700 = vsel %vm458, %v4335, 0.0
      %v4701 = vadd.f32 %v4699, %v4700
      %4702 = vadd.xlane.f32.xlu0 %v4701
      %v4703 = vpop.xlane.xlu0 %4702
      %v4704 = vadd.f32 %v3303, %v3305
      %v4705 = vadd.f32 %v4704, %v3656
      %v4706 = vadd.f32 %v4705, %v3658
      %v4707 = vadd.f32 %v4706, %v4009
      %v4708 = vadd.f32 %v4707, %v4011
      %v4709 = vsel %vm458, %v4340, 0.0
      %v4710 = vadd.f32 %v4708, %v4709
      %4711 = vadd.xlane.f32.xlu0 %v4710
      %v4712 = vpop.xlane.xlu0 %4711
      %v4713 = vadd.f32 %v3307, %v3309
      %v4714 = vadd.f32 %v4713, %v3660
      %v4715 = vadd.f32 %v4714, %v3662
      %v4716 = vadd.f32 %v4715, %v4013
      %v4717 = vadd.f32 %v4716, %v4015
      %v4718 = vsel %vm458, %v4343, 0.0
      %v4719 = vadd.f32 %v4717, %v4718
      %4720 = vadd.xlane.f32.xlu0 %v4719
      %v4721 = vpop.xlane.xlu0 %4720
      %v4722 = vadd.f32 %v3313, %v3315
      %v4723 = vadd.f32 %v4722, %v3666
      %v4724 = vadd.f32 %v4723, %v3668
      %v4725 = vadd.f32 %v4724, %v4019
      %v4726 = vadd.f32 %v4725, %v4021
      %v4727 = vsel %vm458, %v4348, 0.0
      %v4728 = vadd.f32 %v4726, %v4727
      %4729 = vadd.xlane.f32.xlu0 %v4728
      %v4730 = vpop.xlane.xlu0 %4729
      %v4731 = vadd.f32 %v3317, %v3319
      %v4732 = vadd.f32 %v4731, %v3670
      %v4733 = vadd.f32 %v4732, %v3672
      %v4734 = vadd.f32 %v4733, %v4023
      %v4735 = vadd.f32 %v4734, %v4025
      %v4736 = vsel %vm458, %v4351, 0.0
      %v4737 = vadd.f32 %v4735, %v4736
      %4738 = vadd.xlane.f32.xlu0 %v4737
      %v4739 = vpop.xlane.xlu0 %4738
      %v4740 = vadd.f32 %v3323, %v3325
      %v4741 = vadd.f32 %v4740, %v3676
      %v4742 = vadd.f32 %v4741, %v3678
      %v4743 = vadd.f32 %v4742, %v4029
      %v4744 = vadd.f32 %v4743, %v4031
      %v4745 = vsel %vm458, %v4356, 0.0
      %v4746 = vadd.f32 %v4744, %v4745
      %4747 = vadd.xlane.f32.xlu0 %v4746
      %v4748 = vpop.xlane.xlu0 %4747
      %v4749 = vadd.f32 %v3327, %v3329
      %v4750 = vadd.f32 %v4749, %v3680
      %v4751 = vadd.f32 %v4750, %v3682
      %v4752 = vadd.f32 %v4751, %v4033
      %v4753 = vadd.f32 %v4752, %v4035
      %v4754 = vsel %vm458, %v4359, 0.0
      %v4755 = vadd.f32 %v4753, %v4754
      %4756 = vadd.xlane.f32.xlu0 %v4755
      %v4757 = vpop.xlane.xlu0 %4756
      %v4758 = vadd.f32 %v3333, %v3335
      %v4759 = vadd.f32 %v4758, %v3686
      %v4760 = vadd.f32 %v4759, %v3688
      %v4761 = vadd.f32 %v4760, %v4039
      %v4762 = vadd.f32 %v4761, %v4041
      %v4763 = vsel %vm458, %v4364, 0.0
      %v4764 = vadd.f32 %v4762, %v4763
      %4765 = vadd.xlane.f32.xlu0 %v4764
      %v4766 = vpop.xlane.xlu0 %4765
      %v4767 = vadd.f32 %v3337, %v3339
      %v4768 = vadd.f32 %v4767, %v3690
      %v4769 = vadd.f32 %v4768, %v3692
      %v4770 = vadd.f32 %v4769, %v4043
      %v4771 = vadd.f32 %v4770, %v4045
      %v4772 = vsel %vm458, %v4367, 0.0
      %v4773 = vadd.f32 %v4771, %v4772
      %4774 = vadd.xlane.f32.xlu0 %v4773
      %v4775 = vpop.xlane.xlu0 %4774
      %v4776 = vadd.f32 %v3343, %v3345
      %v4777 = vadd.f32 %v4776, %v3696
      %v4778 = vadd.f32 %v4777, %v3698
      %v4779 = vadd.f32 %v4778, %v4049
      %v4780 = vadd.f32 %v4779, %v4051
      %v4781 = vsel %vm458, %v4372, 0.0
      %v4782 = vadd.f32 %v4780, %v4781
      %4783 = vadd.xlane.f32.xlu0 %v4782
      %v4784 = vpop.xlane.xlu0 %4783
      %v4785 = vadd.f32 %v3347, %v3349
      %v4786 = vadd.f32 %v4785, %v3700
      %v4787 = vadd.f32 %v4786, %v3702
      %v4788 = vadd.f32 %v4787, %v4053
      %v4789 = vadd.f32 %v4788, %v4055
      %v4790 = vsel %vm458, %v4375, 0.0
      %v4791 = vadd.f32 %v4789, %v4790
      %4792 = vadd.xlane.f32.xlu0 %v4791
      %v4793 = vpop.xlane.xlu0 %4792
      %v4794 = vadd.f32 %v3353, %v3355
      %v4795 = vadd.f32 %v4794, %v3706
      %v4796 = vadd.f32 %v4795, %v3708
      %v4797 = vadd.f32 %v4796, %v4059
      %v4798 = vadd.f32 %v4797, %v4061
      %v4799 = vsel %vm458, %v4380, 0.0
      %v4800 = vadd.f32 %v4798, %v4799
      %4801 = vadd.xlane.f32.xlu0 %v4800
      %v4802 = vpop.xlane.xlu0 %4801
      %v4803 = vadd.f32 %v3357, %v3359
      %v4804 = vadd.f32 %v4803, %v3710
      %v4805 = vadd.f32 %v4804, %v3712
      %v4806 = vadd.f32 %v4805, %v4063
      %v4807 = vadd.f32 %v4806, %v4065
      %v4808 = vsel %vm458, %v4383, 0.0
      %v4809 = vadd.f32 %v4807, %v4808
      %4810 = vadd.xlane.f32.xlu0 %v4809
      %v4811 = vpop.xlane.xlu0 %4810
      %v4812 = vadd.f32 %v3363, %v3365
      %v4813 = vadd.f32 %v4812, %v3716
      %v4814 = vadd.f32 %v4813, %v3718
      %v4815 = vadd.f32 %v4814, %v4069
      %v4816 = vadd.f32 %v4815, %v4071
      %v4817 = vsel %vm458, %v4388, 0.0
      %v4818 = vadd.f32 %v4816, %v4817
      %4819 = vadd.xlane.f32.xlu0 %v4818
      %v4820 = vpop.xlane.xlu0 %4819
      %v4821 = vadd.f32 %v3367, %v3369
      %v4822 = vadd.f32 %v4821, %v3720
      %v4823 = vadd.f32 %v4822, %v3722
      %v4824 = vadd.f32 %v4823, %v4073
      %v4825 = vadd.f32 %v4824, %v4075
      %v4826 = vsel %vm458, %v4391, 0.0
      %v4827 = vadd.f32 %v4825, %v4826
      %4828 = vadd.xlane.f32.xlu0 %v4827
      %v4829 = vpop.xlane.xlu0 %4828
      %v4830 = vadd.f32 %v3373, %v3375
      %v4831 = vadd.f32 %v4830, %v3726
      %v4832 = vadd.f32 %v4831, %v3728
      %v4833 = vadd.f32 %v4832, %v4079
      %v4834 = vadd.f32 %v4833, %v4081
      %v4835 = vsel %vm458, %v4396, 0.0
      %v4836 = vadd.f32 %v4834, %v4835
      %4837 = vadd.xlane.f32.xlu0 %v4836
      %v4838 = vpop.xlane.xlu0 %4837
      %v4839 = vadd.f32 %v3377, %v3379
      %v4840 = vadd.f32 %v4839, %v3730
      %v4841 = vadd.f32 %v4840, %v3732
      %v4842 = vadd.f32 %v4841, %v4083
      %v4843 = vadd.f32 %v4842, %v4085
      %v4844 = vsel %vm458, %v4399, 0.0
      %v4845 = vadd.f32 %v4843, %v4844
      %4846 = vadd.xlane.f32.xlu0 %v4845
      %v4847 = vpop.xlane.xlu0 %4846
      %v4848 = vadd.f32 %v3383, %v3385
      %v4849 = vadd.f32 %v4848, %v3736
      %v4850 = vadd.f32 %v4849, %v3738
      %v4851 = vadd.f32 %v4850, %v4089
      %v4852 = vadd.f32 %v4851, %v4091
      %v4853 = vsel %vm458, %v4404, 0.0
      %v4854 = vadd.f32 %v4852, %v4853
      %4855 = vadd.xlane.f32.xlu0 %v4854
      %v4856 = vpop.xlane.xlu0 %4855
      %v4857 = vadd.f32 %v3387, %v3389
      %v4858 = vadd.f32 %v4857, %v3740
      %v4859 = vadd.f32 %v4858, %v3742
      %v4860 = vadd.f32 %v4859, %v4093
      %v4861 = vadd.f32 %v4860, %v4095
      %v4862 = vsel %vm458, %v4407, 0.0
      %v4863 = vadd.f32 %v4861, %v4862
      %4864 = vadd.xlane.f32.xlu0 %v4863
      %v4865 = vpop.xlane.xlu0 %4864
      %v4866 = vadd.f32 %v3393, %v3395
      %v4867 = vadd.f32 %v4866, %v3746
      %v4868 = vadd.f32 %v4867, %v3748
      %v4869 = vadd.f32 %v4868, %v4099
      %v4870 = vadd.f32 %v4869, %v4101
      %v4871 = vsel %vm458, %v4412, 0.0
      %v4872 = vadd.f32 %v4870, %v4871
      %4873 = vadd.xlane.f32.xlu0 %v4872
      %v4874 = vpop.xlane.xlu0 %4873
      %v4875 = vadd.f32 %v3397, %v3399
      %v4876 = vadd.f32 %v4875, %v3750
      %v4877 = vadd.f32 %v4876, %v3752
      %v4878 = vadd.f32 %v4877, %v4103
      %v4879 = vadd.f32 %v4878, %v4105
      %v4880 = vsel %vm458, %v4415, 0.0
      %v4881 = vadd.f32 %v4879, %v4880
      %4882 = vadd.xlane.f32.xlu0 %v4881
      %v4883 = vpop.xlane.xlu0 %4882
      %v4884 = vadd.f32 %v3403, %v3405
      %v4885 = vadd.f32 %v4884, %v3756
      %v4886 = vadd.f32 %v4885, %v3758
      %v4887 = vadd.f32 %v4886, %v4109
      %v4888 = vadd.f32 %v4887, %v4111
      %v4889 = vsel %vm458, %v4420, 0.0
      %v4890 = vadd.f32 %v4888, %v4889
      %4891 = vadd.xlane.f32.xlu0 %v4890
      %v4892 = vpop.xlane.xlu0 %4891
      %v4893 = vadd.f32 %v3407, %v3409
      %v4894 = vadd.f32 %v4893, %v3760
      %v4895 = vadd.f32 %v4894, %v3762
      %v4896 = vadd.f32 %v4895, %v4113
      %v4897 = vadd.f32 %v4896, %v4115
      %v4898 = vsel %vm458, %v4423, 0.0
      %v4899 = vadd.f32 %v4897, %v4898
      %4900 = vadd.xlane.f32.xlu0 %v4899
      %v4901 = vpop.xlane.xlu0 %4900
      %v4902 = vadd.f32 %v3413, %v3415
      %v4903 = vadd.f32 %v4902, %v3766
      %v4904 = vadd.f32 %v4903, %v3768
      %v4905 = vadd.f32 %v4904, %v4119
      %v4906 = vadd.f32 %v4905, %v4121
      %v4907 = vsel %vm458, %v4428, 0.0
      %v4908 = vadd.f32 %v4906, %v4907
      %4909 = vadd.xlane.f32.xlu0 %v4908
      %v4910 = vpop.xlane.xlu0 %4909
      %v4911 = vadd.f32 %v3417, %v3419
      %v4912 = vadd.f32 %v4911, %v3770
      %v4913 = vadd.f32 %v4912, %v3772
      %v4914 = vadd.f32 %v4913, %v4123
      %v4915 = vadd.f32 %v4914, %v4125
      %v4916 = vsel %vm458, %v4431, 0.0
      %v4917 = vadd.f32 %v4915, %v4916
      %4918 = vadd.xlane.f32.xlu0 %v4917
      %v4919 = vpop.xlane.xlu0 %4918
      %v4920 = vadd.f32 %v3423, %v3425
      %v4921 = vadd.f32 %v4920, %v3776
      %v4922 = vadd.f32 %v4921, %v3778
      %v4923 = vadd.f32 %v4922, %v4129
      %v4924 = vadd.f32 %v4923, %v4131
      %v4925 = vsel %vm458, %v4436, 0.0
      %v4926 = vadd.f32 %v4924, %v4925
      %4927 = vadd.xlane.f32.xlu0 %v4926
      %v4928 = vpop.xlane.xlu0 %4927
      %v4929 = vadd.f32 %v3427, %v3429
      %v4930 = vadd.f32 %v4929, %v3780
      %v4931 = vadd.f32 %v4930, %v3782
      %v4932 = vadd.f32 %v4931, %v4133
      %v4933 = vadd.f32 %v4932, %v4135
      %v4934 = vsel %vm458, %v4439, 0.0
      %v4935 = vadd.f32 %v4933, %v4934
      %4936 = vadd.xlane.f32.xlu0 %v4935
      %v4937 = vpop.xlane.xlu0 %4936
      %v4938 = vadd.f32 %v3433, %v3435
      %v4939 = vadd.f32 %v4938, %v3786
      %v4940 = vadd.f32 %v4939, %v3788
      %v4941 = vadd.f32 %v4940, %v4139
      %v4942 = vadd.f32 %v4941, %v4141
      %v4943 = vsel %vm458, %v4444, 0.0
      %v4944 = vadd.f32 %v4942, %v4943
      %4945 = vadd.xlane.f32.xlu0 %v4944
      %v4946 = vpop.xlane.xlu0 %4945
      %v4947 = vadd.f32 %v3437, %v3439
      %v4948 = vadd.f32 %v4947, %v3790
      %v4949 = vadd.f32 %v4948, %v3792
      %v4950 = vadd.f32 %v4949, %v4143
      %v4951 = vadd.f32 %v4950, %v4145
      %v4952 = vsel %vm458, %v4447, 0.0
      %v4953 = vadd.f32 %v4951, %v4952
      %4954 = vadd.xlane.f32.xlu0 %v4953
      %v4955 = vpop.xlane.xlu0 %4954
      %v4956 = vadd.f32 %v3443, %v3445
      %v4957 = vadd.f32 %v4956, %v3796
      %v4958 = vadd.f32 %v4957, %v3798
      %v4959 = vadd.f32 %v4958, %v4149
      %v4960 = vadd.f32 %v4959, %v4151
      %v4961 = vsel %vm458, %v4452, 0.0
      %v4962 = vadd.f32 %v4960, %v4961
      %4963 = vadd.xlane.f32.xlu0 %v4962
      %v4964 = vpop.xlane.xlu0 %4963
      %v4965 = vadd.f32 %v3447, %v3449
      %v4966 = vadd.f32 %v4965, %v3800
      %v4967 = vadd.f32 %v4966, %v3802
      %v4968 = vadd.f32 %v4967, %v4153
      %v4969 = vadd.f32 %v4968, %v4155
      %v4970 = vsel %vm458, %v4455, 0.0
      %v4971 = vadd.f32 %v4969, %v4970
      %4972 = vadd.xlane.f32.xlu0 %v4971
      %v4973 = vpop.xlane.xlu0 %4972
      %v4974 = vadd.f32 %v3453, %v3455
      %v4975 = vadd.f32 %v4974, %v3806
      %v4976 = vadd.f32 %v4975, %v3808
      %v4977 = vadd.f32 %v4976, %v4159
      %v4978 = vadd.f32 %v4977, %v4161
      %v4979 = vsel %vm458, %v4460, 0.0
      %v4980 = vadd.f32 %v4978, %v4979
      %4981 = vadd.xlane.f32.xlu0 %v4980
      %v4982 = vpop.xlane.xlu0 %4981
      %v4983 = vadd.f32 %v3457, %v3459
      %v4984 = vadd.f32 %v4983, %v3810
      %v4985 = vadd.f32 %v4984, %v3812
      %v4986 = vadd.f32 %v4985, %v4163
      %v4987 = vadd.f32 %v4986, %v4165
      %v4988 = vsel %vm458, %v4463, 0.0
      %v4989 = vadd.f32 %v4987, %v4988
      %4990 = vadd.xlane.f32.xlu0 %v4989
      %v4991 = vpop.xlane.xlu0 %4990
      %v4992 = vadd.f32 %v3463, %v3465
      %v4993 = vadd.f32 %v4992, %v3816
      %v4994 = vadd.f32 %v4993, %v3818
      %v4995 = vadd.f32 %v4994, %v4169
      %v4996 = vadd.f32 %v4995, %v4171
      %v4997 = vsel %vm458, %v4468, 0.0
      %v4998 = vadd.f32 %v4996, %v4997
      %4999 = vadd.xlane.f32.xlu0 %v4998
      %v5000 = vpop.xlane.xlu0 %4999
      %v5001 = vadd.f32 %v3467, %v3469
      %v5002 = vadd.f32 %v5001, %v3820
      %v5003 = vadd.f32 %v5002, %v3822
      %v5004 = vadd.f32 %v5003, %v4173
      %v5005 = vadd.f32 %v5004, %v4175
      %v5006 = vsel %vm458, %v4471, 0.0
      %v5007 = vadd.f32 %v5005, %v5006
      %5008 = vadd.xlane.f32.xlu0 %v5007
      %v5009 = vpop.xlane.xlu0 %5008
      %v5010 = vadd.f32 %v3473, %v3475
      %v5011 = vadd.f32 %v5010, %v3826
      %v5012 = vadd.f32 %v5011, %v3828
      %v5013 = vadd.f32 %v5012, %v4179
      %v5014 = vadd.f32 %v5013, %v4181
      %v5015 = vsel %vm458, %v4476, 0.0
      %v5016 = vadd.f32 %v5014, %v5015
      %5017 = vadd.xlane.f32.xlu0 %v5016
      %v5018 = vpop.xlane.xlu0 %5017
      %v5019 = vadd.f32 %v3477, %v3479
      %v5020 = vadd.f32 %v5019, %v3830
      %v5021 = vadd.f32 %v5020, %v3832
      %v5022 = vadd.f32 %v5021, %v4183
      %v5023 = vadd.f32 %v5022, %v4185
      %v5024 = vsel %vm458, %v4479, 0.0
      %v5025 = vadd.f32 %v5023, %v5024
      %5026 = vadd.xlane.f32.xlu0 %v5025
      %v5027 = vpop.xlane.xlu0 %5026
      %v5028 = vadd.f32 %v3483, %v3485
      %v5029 = vadd.f32 %v5028, %v3836
      %v5030 = vadd.f32 %v5029, %v3838
      %v5031 = vadd.f32 %v5030, %v4189
      %v5032 = vadd.f32 %v5031, %v4191
      %v5033 = vsel %vm458, %v4484, 0.0
      %v5034 = vadd.f32 %v5032, %v5033
      %5035 = vadd.xlane.f32.xlu0 %v5034
      %v5036 = vpop.xlane.xlu0 %5035
      %v5037 = vadd.f32 %v3487, %v3489
      %v5038 = vadd.f32 %v5037, %v3840
      %v5039 = vadd.f32 %v5038, %v3842
      %v5040 = vadd.f32 %v5039, %v4193
      %v5041 = vadd.f32 %v5040, %v4195
      %v5042 = vsel %vm458, %v4487, 0.0
      %v5043 = vadd.f32 %v5041, %v5042
      %5044 = vadd.xlane.f32.xlu0 %v5043
      %v5045 = vpop.xlane.xlu0 %5044
      %v5046 = vadd.f32 %v3493, %v3495
      %v5047 = vadd.f32 %v5046, %v3846
      %v5048 = vadd.f32 %v5047, %v3848
      %v5049 = vadd.f32 %v5048, %v4199
      %v5050 = vadd.f32 %v5049, %v4201
      %v5051 = vsel %vm458, %v4492, 0.0
      %v5052 = vadd.f32 %v5050, %v5051
      %5053 = vadd.xlane.f32.xlu0 %v5052
      %v5054 = vpop.xlane.xlu0 %5053
      %v5055 = vadd.f32 %v3497, %v3499
      %v5056 = vadd.f32 %v5055, %v3850
      %v5057 = vadd.f32 %v5056, %v3852
      %v5058 = vadd.f32 %v5057, %v4203
      %v5059 = vadd.f32 %v5058, %v4205
      %v5060 = vsel %vm458, %v4495, 0.0
      %v5061 = vadd.f32 %v5059, %v5060
      %5062 = vadd.xlane.f32.xlu0 %v5061
      %v5063 = vpop.xlane.xlu0 %5062
      %v5064 = vadd.f32 %v3503, %v3505
      %v5065 = vadd.f32 %v5064, %v3856
      %v5066 = vadd.f32 %v5065, %v3858
      %v5067 = vadd.f32 %v5066, %v4209
      %v5068 = vadd.f32 %v5067, %v4211
      %v5069 = vsel %vm458, %v4500, 0.0
      %v5070 = vadd.f32 %v5068, %v5069
      %5071 = vadd.xlane.f32.xlu0 %v5070
      %v5072 = vpop.xlane.xlu0 %5071
      %v5073 = vadd.f32 %v3507, %v3509
      %v5074 = vadd.f32 %v5073, %v3860
      %v5075 = vadd.f32 %v5074, %v3862
      %v5076 = vadd.f32 %v5075, %v4213
      %v5077 = vadd.f32 %v5076, %v4215
      %v5078 = vsel %vm458, %v4503, 0.0
      %v5079 = vadd.f32 %v5077, %v5078
      %5080 = vadd.xlane.f32.xlu0 %v5079
      %v5081 = vpop.xlane.xlu0 %5080
      %v5082 = vmul.f32 %v4514, 0.0012755102
      %v5083 = vmul.f32 %v4523, 0.0012755102
      %v5084 = vmul.f32 %v4532, 0.0012755102
      %v5085 = vmul.f32 %v4541, 0.0012755102
      %v5086 = vmul.f32 %v4550, 0.0012755102
      %v5087 = vmul.f32 %v4559, 0.0012755102
      %v5088 = vmul.f32 %v4568, 0.0012755102
      %v5089 = vmul.f32 %v4577, 0.0012755102
      %v5090 = vmul.f32 %v4586, 0.0012755102
      %v5091 = vmul.f32 %v4595, 0.0012755102
      %v5092 = vmul.f32 %v4604, 0.0012755102
      %v5093 = vmul.f32 %v4613, 0.0012755102
      %v5094 = vmul.f32 %v4622, 0.0012755102
      %v5095 = vmul.f32 %v4631, 0.0012755102
      %v5096 = vmul.f32 %v4640, 0.0012755102
      %v5097 = vmul.f32 %v4649, 0.0012755102
      %v5098 = vmul.f32 %v4658, 0.0012755102
      %v5099 = vmul.f32 %v4667, 0.0012755102
      %v5100 = vmul.f32 %v4676, 0.0012755102
      %v5101 = vmul.f32 %v4685, 0.0012755102
      %v5102 = vmul.f32 %v4694, 0.0012755102
      %v5103 = vmul.f32 %v4703, 0.0012755102
      %v5104 = vmul.f32 %v4712, 0.0012755102
      %v5105 = vmul.f32 %v4721, 0.0012755102
      %v5106 = vmul.f32 %v4730, 0.0012755102
      %v5107 = vmul.f32 %v4739, 0.0012755102
      %v5108 = vmul.f32 %v4748, 0.0012755102
      %v5109 = vmul.f32 %v4757, 0.0012755102
      %v5110 = vmul.f32 %v4766, 0.0012755102
      %v5111 = vmul.f32 %v4775, 0.0012755102
      %v5112 = vmul.f32 %v4784, 0.0012755102
      %v5113 = vmul.f32 %v4793, 0.0012755102
      %v5114 = vmul.f32 %v4802, 0.0012755102
      %v5115 = vmul.f32 %v4811, 0.0012755102
      %v5116 = vmul.f32 %v4820, 0.0012755102
      %v5117 = vmul.f32 %v4829, 0.0012755102
      %v5118 = vmul.f32 %v4838, 0.0012755102
      %v5119 = vmul.f32 %v4847, 0.0012755102
      %v5120 = vmul.f32 %v4856, 0.0012755102
      %v5121 = vmul.f32 %v4865, 0.0012755102
      %v5122 = vmul.f32 %v4874, 0.0012755102
      %v5123 = vmul.f32 %v4883, 0.0012755102
      %v5124 = vmul.f32 %v4892, 0.0012755102
      %v5125 = vmul.f32 %v4901, 0.0012755102
      %v5126 = vmul.f32 %v4910, 0.0012755102
      %v5127 = vmul.f32 %v4919, 0.0012755102
      %v5128 = vmul.f32 %v4928, 0.0012755102
      %v5129 = vmul.f32 %v4937, 0.0012755102
      %v5130 = vmul.f32 %v4946, 0.0012755102
      %v5131 = vmul.f32 %v4955, 0.0012755102
      %v5132 = vmul.f32 %v4964, 0.0012755102
      %v5133 = vmul.f32 %v4973, 0.0012755102
      %v5134 = vmul.f32 %v4982, 0.0012755102
      %v5135 = vmul.f32 %v4991, 0.0012755102
      %v5136 = vmul.f32 %v5000, 0.0012755102
      %v5137 = vmul.f32 %v5009, 0.0012755102
      %v5138 = vmul.f32 %v5018, 0.0012755102
      %v5139 = vmul.f32 %v5027, 0.0012755102
      %v5140 = vmul.f32 %v5036, 0.0012755102
      %v5141 = vmul.f32 %v5045, 0.0012755102
      %v5142 = vmul.f32 %v5054, 0.0012755102
      %v5143 = vmul.f32 %v5063, 0.0012755102
      %v5144 = vmul.f32 %v5072, 0.0012755102
      %v5145 = vmul.f32 %v5081, 0.0012755102
      %v5146 = vsub.f32 %v3193, %v5082
      %v5147 = vsub.f32 %v3195, %v5082
      %v5148 = vsub.f32 %v3546, %v5082
      %v5149 = vsub.f32 %v3548, %v5082
      %v5150 = vsub.f32 %v3899, %v5082
      %v5151 = vsub.f32 %v3901, %v5082
      %v5152 = vsub.f32 %v4252, %v5082
      %v5153 = vsub.f32 %v3197, %v5083
      %v5154 = vsub.f32 %v3199, %v5083
      %v5155 = vsub.f32 %v3550, %v5083
      %v5156 = vsub.f32 %v3552, %v5083
      %v5157 = vsub.f32 %v3903, %v5083
      %v5158 = vsub.f32 %v3905, %v5083
      %v5159 = vsub.f32 %v4255, %v5083
      %v5160 = vsub.f32 %v3203, %v5084
      %v5161 = vsub.f32 %v3205, %v5084
      %v5162 = vsub.f32 %v3556, %v5084
      %v5163 = vsub.f32 %v3558, %v5084
      %v5164 = vsub.f32 %v3909, %v5084
      %v5165 = vsub.f32 %v3911, %v5084
      %v5166 = vsub.f32 %v4260, %v5084
      %v5167 = vsub.f32 %v3207, %v5085
      %v5168 = vsub.f32 %v3209, %v5085
      %v5169 = vsub.f32 %v3560, %v5085
      %v5170 = vsub.f32 %v3562, %v5085
      %v5171 = vsub.f32 %v3913, %v5085
      %v5172 = vsub.f32 %v3915, %v5085
      %v5173 = vsub.f32 %v4263, %v5085
      %v5174 = vsub.f32 %v3213, %v5086
      %v5175 = vsub.f32 %v3215, %v5086
      %v5176 = vsub.f32 %v3566, %v5086
      %v5177 = vsub.f32 %v3568, %v5086
      %v5178 = vsub.f32 %v3919, %v5086
      %v5179 = vsub.f32 %v3921, %v5086
      %v5180 = vsub.f32 %v4268, %v5086
      %v5181 = vsub.f32 %v3217, %v5087
      %v5182 = vsub.f32 %v3219, %v5087
      %v5183 = vsub.f32 %v3570, %v5087
      %v5184 = vsub.f32 %v3572, %v5087
      %v5185 = vsub.f32 %v3923, %v5087
      %v5186 = vsub.f32 %v3925, %v5087
      %v5187 = vsub.f32 %v4271, %v5087
      %v5188 = vsub.f32 %v3223, %v5088
      %v5189 = vsub.f32 %v3225, %v5088
      %v5190 = vsub.f32 %v3576, %v5088
      %v5191 = vsub.f32 %v3578, %v5088
      %v5192 = vsub.f32 %v3929, %v5088
      %v5193 = vsub.f32 %v3931, %v5088
      %v5194 = vsub.f32 %v4276, %v5088
      %v5195 = vsub.f32 %v3227, %v5089
      %v5196 = vsub.f32 %v3229, %v5089
      %v5197 = vsub.f32 %v3580, %v5089
      %v5198 = vsub.f32 %v3582, %v5089
      %v5199 = vsub.f32 %v3933, %v5089
      %v5200 = vsub.f32 %v3935, %v5089
      %v5201 = vsub.f32 %v4279, %v5089
      %v5202 = vsub.f32 %v3233, %v5090
      %v5203 = vsub.f32 %v3235, %v5090
      %v5204 = vsub.f32 %v3586, %v5090
      %v5205 = vsub.f32 %v3588, %v5090
      %v5206 = vsub.f32 %v3939, %v5090
      %v5207 = vsub.f32 %v3941, %v5090
      %v5208 = vsub.f32 %v4284, %v5090
      %v5209 = vsub.f32 %v3237, %v5091
      %v5210 = vsub.f32 %v3239, %v5091
      %v5211 = vsub.f32 %v3590, %v5091
      %v5212 = vsub.f32 %v3592, %v5091
      %v5213 = vsub.f32 %v3943, %v5091
      %v5214 = vsub.f32 %v3945, %v5091
      %v5215 = vsub.f32 %v4287, %v5091
      %v5216 = vsub.f32 %v3243, %v5092
      %v5217 = vsub.f32 %v3245, %v5092
      %v5218 = vsub.f32 %v3596, %v5092
      %v5219 = vsub.f32 %v3598, %v5092
      %v5220 = vsub.f32 %v3949, %v5092
      %v5221 = vsub.f32 %v3951, %v5092
      %v5222 = vsub.f32 %v4292, %v5092
      %v5223 = vsub.f32 %v3247, %v5093
      %v5224 = vsub.f32 %v3249, %v5093
      %v5225 = vsub.f32 %v3600, %v5093
      %v5226 = vsub.f32 %v3602, %v5093
      %v5227 = vsub.f32 %v3953, %v5093
      %v5228 = vsub.f32 %v3955, %v5093
      %v5229 = vsub.f32 %v4295, %v5093
      %v5230 = vsub.f32 %v3253, %v5094
      %v5231 = vsub.f32 %v3255, %v5094
      %v5232 = vsub.f32 %v3606, %v5094
      %v5233 = vsub.f32 %v3608, %v5094
      %v5234 = vsub.f32 %v3959, %v5094
      %v5235 = vsub.f32 %v3961, %v5094
      %v5236 = vsub.f32 %v4300, %v5094
      %v5237 = vsub.f32 %v3257, %v5095
      %v5238 = vsub.f32 %v3259, %v5095
      %v5239 = vsub.f32 %v3610, %v5095
      %v5240 = vsub.f32 %v3612, %v5095
      %v5241 = vsub.f32 %v3963, %v5095
      %v5242 = vsub.f32 %v3965, %v5095
      %v5243 = vsub.f32 %v4303, %v5095
      %v5244 = vsub.f32 %v3263, %v5096
      %v5245 = vsub.f32 %v3265, %v5096
      %v5246 = vsub.f32 %v3616, %v5096
      %v5247 = vsub.f32 %v3618, %v5096
      %v5248 = vsub.f32 %v3969, %v5096
      %v5249 = vsub.f32 %v3971, %v5096
      %v5250 = vsub.f32 %v4308, %v5096
      %v5251 = vsub.f32 %v3267, %v5097
      %v5252 = vsub.f32 %v3269, %v5097
      %v5253 = vsub.f32 %v3620, %v5097
      %v5254 = vsub.f32 %v3622, %v5097
      %v5255 = vsub.f32 %v3973, %v5097
      %v5256 = vsub.f32 %v3975, %v5097
      %v5257 = vsub.f32 %v4311, %v5097
      %v5258 = vsub.f32 %v3273, %v5098
      %v5259 = vsub.f32 %v3275, %v5098
      %v5260 = vsub.f32 %v3626, %v5098
      %v5261 = vsub.f32 %v3628, %v5098
      %v5262 = vsub.f32 %v3979, %v5098
      %v5263 = vsub.f32 %v3981, %v5098
      %v5264 = vsub.f32 %v4316, %v5098
      %v5265 = vsub.f32 %v3277, %v5099
      %v5266 = vsub.f32 %v3279, %v5099
      %v5267 = vsub.f32 %v3630, %v5099
      %v5268 = vsub.f32 %v3632, %v5099
      %v5269 = vsub.f32 %v3983, %v5099
      %v5270 = vsub.f32 %v3985, %v5099
      %v5271 = vsub.f32 %v4319, %v5099
      %v5272 = vsub.f32 %v3283, %v5100
      %v5273 = vsub.f32 %v3285, %v5100
      %v5274 = vsub.f32 %v3636, %v5100
      %v5275 = vsub.f32 %v3638, %v5100
      %v5276 = vsub.f32 %v3989, %v5100
      %v5277 = vsub.f32 %v3991, %v5100
      %v5278 = vsub.f32 %v4324, %v5100
      %v5279 = vsub.f32 %v3287, %v5101
      %v5280 = vsub.f32 %v3289, %v5101
      %v5281 = vsub.f32 %v3640, %v5101
      %v5282 = vsub.f32 %v3642, %v5101
      %v5283 = vsub.f32 %v3993, %v5101
      %v5284 = vsub.f32 %v3995, %v5101
      %v5285 = vsub.f32 %v4327, %v5101
      %v5286 = vsub.f32 %v3293, %v5102
      %v5287 = vsub.f32 %v3295, %v5102
      %v5288 = vsub.f32 %v3646, %v5102
      %v5289 = vsub.f32 %v3648, %v5102
      %v5290 = vsub.f32 %v3999, %v5102
      %v5291 = vsub.f32 %v4001, %v5102
      %v5292 = vsub.f32 %v4332, %v5102
      %v5293 = vsub.f32 %v3297, %v5103
      %v5294 = vsub.f32 %v3299, %v5103
      %v5295 = vsub.f32 %v3650, %v5103
      %v5296 = vsub.f32 %v3652, %v5103
      %v5297 = vsub.f32 %v4003, %v5103
      %v5298 = vsub.f32 %v4005, %v5103
      %v5299 = vsub.f32 %v4335, %v5103
      %v5300 = vsub.f32 %v3303, %v5104
      %v5301 = vsub.f32 %v3305, %v5104
      %v5302 = vsub.f32 %v3656, %v5104
      %v5303 = vsub.f32 %v3658, %v5104
      %v5304 = vsub.f32 %v4009, %v5104
      %v5305 = vsub.f32 %v4011, %v5104
      %v5306 = vsub.f32 %v4340, %v5104
      %v5307 = vsub.f32 %v3307, %v5105
      %v5308 = vsub.f32 %v3309, %v5105
      %v5309 = vsub.f32 %v3660, %v5105
      %v5310 = vsub.f32 %v3662, %v5105
      %v5311 = vsub.f32 %v4013, %v5105
      %v5312 = vsub.f32 %v4015, %v5105
      %v5313 = vsub.f32 %v4343, %v5105
      %v5314 = vsub.f32 %v3313, %v5106
      %v5315 = vsub.f32 %v3315, %v5106
      %v5316 = vsub.f32 %v3666, %v5106
      %v5317 = vsub.f32 %v3668, %v5106
      %v5318 = vsub.f32 %v4019, %v5106
      %v5319 = vsub.f32 %v4021, %v5106
      %v5320 = vsub.f32 %v4348, %v5106
      %v5321 = vsub.f32 %v3317, %v5107
      %v5322 = vsub.f32 %v3319, %v5107
      %v5323 = vsub.f32 %v3670, %v5107
      %v5324 = vsub.f32 %v3672, %v5107
      %v5325 = vsub.f32 %v4023, %v5107
      %v5326 = vsub.f32 %v4025, %v5107
      %v5327 = vsub.f32 %v4351, %v5107
      %v5328 = vsub.f32 %v3323, %v5108
      %v5329 = vsub.f32 %v3325, %v5108
      %v5330 = vsub.f32 %v3676, %v5108
      %v5331 = vsub.f32 %v3678, %v5108
      %v5332 = vsub.f32 %v4029, %v5108
      %v5333 = vsub.f32 %v4031, %v5108
      %v5334 = vsub.f32 %v4356, %v5108
      %v5335 = vsub.f32 %v3327, %v5109
      %v5336 = vsub.f32 %v3329, %v5109
      %v5337 = vsub.f32 %v3680, %v5109
      %v5338 = vsub.f32 %v3682, %v5109
      %v5339 = vsub.f32 %v4033, %v5109
      %v5340 = vsub.f32 %v4035, %v5109
      %v5341 = vsub.f32 %v4359, %v5109
      %v5342 = vsub.f32 %v3333, %v5110
      %v5343 = vsub.f32 %v3335, %v5110
      %v5344 = vsub.f32 %v3686, %v5110
      %v5345 = vsub.f32 %v3688, %v5110
      %v5346 = vsub.f32 %v4039, %v5110
      %v5347 = vsub.f32 %v4041, %v5110
      %v5348 = vsub.f32 %v4364, %v5110
      %v5349 = vsub.f32 %v3337, %v5111
      %v5350 = vsub.f32 %v3339, %v5111
      %v5351 = vsub.f32 %v3690, %v5111
      %v5352 = vsub.f32 %v3692, %v5111
      %v5353 = vsub.f32 %v4043, %v5111
      %v5354 = vsub.f32 %v4045, %v5111
      %v5355 = vsub.f32 %v4367, %v5111
      %v5356 = vsub.f32 %v3343, %v5112
      %v5357 = vsub.f32 %v3345, %v5112
      %v5358 = vsub.f32 %v3696, %v5112
      %v5359 = vsub.f32 %v3698, %v5112
      %v5360 = vsub.f32 %v4049, %v5112
      %v5361 = vsub.f32 %v4051, %v5112
      %v5362 = vsub.f32 %v4372, %v5112
      %v5363 = vsub.f32 %v3347, %v5113
      %v5364 = vsub.f32 %v3349, %v5113
      %v5365 = vsub.f32 %v3700, %v5113
      %v5366 = vsub.f32 %v3702, %v5113
      %v5367 = vsub.f32 %v4053, %v5113
      %v5368 = vsub.f32 %v4055, %v5113
      %v5369 = vsub.f32 %v4375, %v5113
      %v5370 = vsub.f32 %v3353, %v5114
      %v5371 = vsub.f32 %v3355, %v5114
      %v5372 = vsub.f32 %v3706, %v5114
      %v5373 = vsub.f32 %v3708, %v5114
      %v5374 = vsub.f32 %v4059, %v5114
      %v5375 = vsub.f32 %v4061, %v5114
      %v5376 = vsub.f32 %v4380, %v5114
      %v5377 = vsub.f32 %v3357, %v5115
      %v5378 = vsub.f32 %v3359, %v5115
      %v5379 = vsub.f32 %v3710, %v5115
      %v5380 = vsub.f32 %v3712, %v5115
      %v5381 = vsub.f32 %v4063, %v5115
      %v5382 = vsub.f32 %v4065, %v5115
      %v5383 = vsub.f32 %v4383, %v5115
      %v5384 = vsub.f32 %v3363, %v5116
      %v5385 = vsub.f32 %v3365, %v5116
      %v5386 = vsub.f32 %v3716, %v5116
      %v5387 = vsub.f32 %v3718, %v5116
      %v5388 = vsub.f32 %v4069, %v5116
      %v5389 = vsub.f32 %v4071, %v5116
      %v5390 = vsub.f32 %v4388, %v5116
      %v5391 = vsub.f32 %v3367, %v5117
      %v5392 = vsub.f32 %v3369, %v5117
      %v5393 = vsub.f32 %v3720, %v5117
      %v5394 = vsub.f32 %v3722, %v5117
      %v5395 = vsub.f32 %v4073, %v5117
      %v5396 = vsub.f32 %v4075, %v5117
      %v5397 = vsub.f32 %v4391, %v5117
      %v5398 = vsub.f32 %v3373, %v5118
      %v5399 = vsub.f32 %v3375, %v5118
      %v5400 = vsub.f32 %v3726, %v5118
      %v5401 = vsub.f32 %v3728, %v5118
      %v5402 = vsub.f32 %v4079, %v5118
      %v5403 = vsub.f32 %v4081, %v5118
      %v5404 = vsub.f32 %v4396, %v5118
      %v5405 = vsub.f32 %v3377, %v5119
      %v5406 = vsub.f32 %v3379, %v5119
      %v5407 = vsub.f32 %v3730, %v5119
      %v5408 = vsub.f32 %v3732, %v5119
      %v5409 = vsub.f32 %v4083, %v5119
      %v5410 = vsub.f32 %v4085, %v5119
      %v5411 = vsub.f32 %v4399, %v5119
      %v5412 = vsub.f32 %v3383, %v5120
      %v5413 = vsub.f32 %v3385, %v5120
      %v5414 = vsub.f32 %v3736, %v5120
      %v5415 = vsub.f32 %v3738, %v5120
      %v5416 = vsub.f32 %v4089, %v5120
      %v5417 = vsub.f32 %v4091, %v5120
      %v5418 = vsub.f32 %v4404, %v5120
      %v5419 = vsub.f32 %v3387, %v5121
      %v5420 = vsub.f32 %v3389, %v5121
      %v5421 = vsub.f32 %v3740, %v5121
      %v5422 = vsub.f32 %v3742, %v5121
      %v5423 = vsub.f32 %v4093, %v5121
      %v5424 = vsub.f32 %v4095, %v5121
      %v5425 = vsub.f32 %v4407, %v5121
      %v5426 = vsub.f32 %v3393, %v5122
      %v5427 = vsub.f32 %v3395, %v5122
      %v5428 = vsub.f32 %v3746, %v5122
      %v5429 = vsub.f32 %v3748, %v5122
      %v5430 = vsub.f32 %v4099, %v5122
      %v5431 = vsub.f32 %v4101, %v5122
      %v5432 = vsub.f32 %v4412, %v5122
      %v5433 = vsub.f32 %v3397, %v5123
      %v5434 = vsub.f32 %v3399, %v5123
      %v5435 = vsub.f32 %v3750, %v5123
      %v5436 = vsub.f32 %v3752, %v5123
      %v5437 = vsub.f32 %v4103, %v5123
      %v5438 = vsub.f32 %v4105, %v5123
      %v5439 = vsub.f32 %v4415, %v5123
      %v5440 = vsub.f32 %v3403, %v5124
      %v5441 = vsub.f32 %v3405, %v5124
      %v5442 = vsub.f32 %v3756, %v5124
      %v5443 = vsub.f32 %v3758, %v5124
      %v5444 = vsub.f32 %v4109, %v5124
      %v5445 = vsub.f32 %v4111, %v5124
      %v5446 = vsub.f32 %v4420, %v5124
      %v5447 = vsub.f32 %v3407, %v5125
      %v5448 = vsub.f32 %v3409, %v5125
      %v5449 = vsub.f32 %v3760, %v5125
      %v5450 = vsub.f32 %v3762, %v5125
      %v5451 = vsub.f32 %v4113, %v5125
      %v5452 = vsub.f32 %v4115, %v5125
      %v5453 = vsub.f32 %v4423, %v5125
      %v5454 = vsub.f32 %v3413, %v5126
      %v5455 = vsub.f32 %v3415, %v5126
      %v5456 = vsub.f32 %v3766, %v5126
      %v5457 = vsub.f32 %v3768, %v5126
      %v5458 = vsub.f32 %v4119, %v5126
      %v5459 = vsub.f32 %v4121, %v5126
      %v5460 = vsub.f32 %v4428, %v5126
      %v5461 = vsub.f32 %v3417, %v5127
      %v5462 = vsub.f32 %v3419, %v5127
      %v5463 = vsub.f32 %v3770, %v5127
      %v5464 = vsub.f32 %v3772, %v5127
      %v5465 = vsub.f32 %v4123, %v5127
      %v5466 = vsub.f32 %v4125, %v5127
      %v5467 = vsub.f32 %v4431, %v5127
      %v5468 = vsub.f32 %v3423, %v5128
      %v5469 = vsub.f32 %v3425, %v5128
      %v5470 = vsub.f32 %v3776, %v5128
      %v5471 = vsub.f32 %v3778, %v5128
      %v5472 = vsub.f32 %v4129, %v5128
      %v5473 = vsub.f32 %v4131, %v5128
      %v5474 = vsub.f32 %v4436, %v5128
      %v5475 = vsub.f32 %v3427, %v5129
      %v5476 = vsub.f32 %v3429, %v5129
      %v5477 = vsub.f32 %v3780, %v5129
      %v5478 = vsub.f32 %v3782, %v5129
      %v5479 = vsub.f32 %v4133, %v5129
      %v5480 = vsub.f32 %v4135, %v5129
      %v5481 = vsub.f32 %v4439, %v5129
      %v5482 = vsub.f32 %v3433, %v5130
      %v5483 = vsub.f32 %v3435, %v5130
      %v5484 = vsub.f32 %v3786, %v5130
      %v5485 = vsub.f32 %v3788, %v5130
      %v5486 = vsub.f32 %v4139, %v5130
      %v5487 = vsub.f32 %v4141, %v5130
      %v5488 = vsub.f32 %v4444, %v5130
      %v5489 = vsub.f32 %v3437, %v5131
      %v5490 = vsub.f32 %v3439, %v5131
      %v5491 = vsub.f32 %v3790, %v5131
      %v5492 = vsub.f32 %v3792, %v5131
      %v5493 = vsub.f32 %v4143, %v5131
      %v5494 = vsub.f32 %v4145, %v5131
      %v5495 = vsub.f32 %v4447, %v5131
      %v5496 = vsub.f32 %v3443, %v5132
      %v5497 = vsub.f32 %v3445, %v5132
      %v5498 = vsub.f32 %v3796, %v5132
      %v5499 = vsub.f32 %v3798, %v5132
      %v5500 = vsub.f32 %v4149, %v5132
      %v5501 = vsub.f32 %v4151, %v5132
      %v5502 = vsub.f32 %v4452, %v5132
      %v5503 = vsub.f32 %v3447, %v5133
      %v5504 = vsub.f32 %v3449, %v5133
      %v5505 = vsub.f32 %v3800, %v5133
      %v5506 = vsub.f32 %v3802, %v5133
      %v5507 = vsub.f32 %v4153, %v5133
      %v5508 = vsub.f32 %v4155, %v5133
      %v5509 = vsub.f32 %v4455, %v5133
      %v5510 = vsub.f32 %v3453, %v5134
      %v5511 = vsub.f32 %v3455, %v5134
      %v5512 = vsub.f32 %v3806, %v5134
      %v5513 = vsub.f32 %v3808, %v5134
      %v5514 = vsub.f32 %v4159, %v5134
      %v5515 = vsub.f32 %v4161, %v5134
      %v5516 = vsub.f32 %v4460, %v5134
      %v5517 = vsub.f32 %v3457, %v5135
      %v5518 = vsub.f32 %v3459, %v5135
      %v5519 = vsub.f32 %v3810, %v5135
      %v5520 = vsub.f32 %v3812, %v5135
      %v5521 = vsub.f32 %v4163, %v5135
      %v5522 = vsub.f32 %v4165, %v5135
      %v5523 = vsub.f32 %v4463, %v5135
      %v5524 = vsub.f32 %v3463, %v5136
      %v5525 = vsub.f32 %v3465, %v5136
      %v5526 = vsub.f32 %v3816, %v5136
      %v5527 = vsub.f32 %v3818, %v5136
      %v5528 = vsub.f32 %v4169, %v5136
      %v5529 = vsub.f32 %v4171, %v5136
      %v5530 = vsub.f32 %v4468, %v5136
      %v5531 = vsub.f32 %v3467, %v5137
      %v5532 = vsub.f32 %v3469, %v5137
      %v5533 = vsub.f32 %v3820, %v5137
      %v5534 = vsub.f32 %v3822, %v5137
      %v5535 = vsub.f32 %v4173, %v5137
      %v5536 = vsub.f32 %v4175, %v5137
      %v5537 = vsub.f32 %v4471, %v5137
      %v5538 = vsub.f32 %v3473, %v5138
      %v5539 = vsub.f32 %v3475, %v5138
      %v5540 = vsub.f32 %v3826, %v5138
      %v5541 = vsub.f32 %v3828, %v5138
      %v5542 = vsub.f32 %v4179, %v5138
      %v5543 = vsub.f32 %v4181, %v5138
      %v5544 = vsub.f32 %v4476, %v5138
      %v5545 = vsub.f32 %v3477, %v5139
      %v5546 = vsub.f32 %v3479, %v5139
      %v5547 = vsub.f32 %v3830, %v5139
      %v5548 = vsub.f32 %v3832, %v5139
      %v5549 = vsub.f32 %v4183, %v5139
      %v5550 = vsub.f32 %v4185, %v5139
      %v5551 = vsub.f32 %v4479, %v5139
      %v5552 = vsub.f32 %v3483, %v5140
      %v5553 = vsub.f32 %v3485, %v5140
      %v5554 = vsub.f32 %v3836, %v5140
      %v5555 = vsub.f32 %v3838, %v5140
      %v5556 = vsub.f32 %v4189, %v5140
      %v5557 = vsub.f32 %v4191, %v5140
      %v5558 = vsub.f32 %v4484, %v5140
      %v5559 = vsub.f32 %v3487, %v5141
      %v5560 = vsub.f32 %v3489, %v5141
      %v5561 = vsub.f32 %v3840, %v5141
      %v5562 = vsub.f32 %v3842, %v5141
      %v5563 = vsub.f32 %v4193, %v5141
      %v5564 = vsub.f32 %v4195, %v5141
      %v5565 = vsub.f32 %v4487, %v5141
      %v5566 = vsub.f32 %v3493, %v5142
      %v5567 = vsub.f32 %v3495, %v5142
      %v5568 = vsub.f32 %v3846, %v5142
      %v5569 = vsub.f32 %v3848, %v5142
      %v5570 = vsub.f32 %v4199, %v5142
      %v5571 = vsub.f32 %v4201, %v5142
      %v5572 = vsub.f32 %v4492, %v5142
      %v5573 = vsub.f32 %v3497, %v5143
      %v5574 = vsub.f32 %v3499, %v5143
      %v5575 = vsub.f32 %v3850, %v5143
      %v5576 = vsub.f32 %v3852, %v5143
      %v5577 = vsub.f32 %v4203, %v5143
      %v5578 = vsub.f32 %v4205, %v5143
      %v5579 = vsub.f32 %v4495, %v5143
      %v5580 = vsub.f32 %v3503, %v5144
      %v5581 = vsub.f32 %v3505, %v5144
      %v5582 = vsub.f32 %v3856, %v5144
      %v5583 = vsub.f32 %v3858, %v5144
      %v5584 = vsub.f32 %v4209, %v5144
      %v5585 = vsub.f32 %v4211, %v5144
      %v5586 = vsub.f32 %v4500, %v5144
      %v5587 = vsub.f32 %v3507, %v5145
      %v5588 = vsub.f32 %v3509, %v5145
      %v5589 = vsub.f32 %v3860, %v5145
      %v5590 = vsub.f32 %v3862, %v5145
      %v5591 = vsub.f32 %v4213, %v5145
      %v5592 = vsub.f32 %v4215, %v5145
      %v5593 = vsub.f32 %v4503, %v5145
      %v5594 = vmul.f32 %v5146, %v5146
      %v5595 = vmul.f32 %v5147, %v5147
      %v5596 = vmul.f32 %v5148, %v5148
      %v5597 = vmul.f32 %v5149, %v5149
      %v5598 = vmul.f32 %v5150, %v5150
      %v5599 = vmul.f32 %v5151, %v5151
      %v5600 = vmul.f32 %v5152, %v5152
      %v5601 = vmul.f32 %v5153, %v5153
      %v5602 = vmul.f32 %v5154, %v5154
      %v5603 = vmul.f32 %v5155, %v5155
      %v5604 = vmul.f32 %v5156, %v5156
      %v5605 = vmul.f32 %v5157, %v5157
      %v5606 = vmul.f32 %v5158, %v5158
      %v5607 = vmul.f32 %v5159, %v5159
      %v5608 = vmul.f32 %v5160, %v5160
      %v5609 = vmul.f32 %v5161, %v5161
      %v5610 = vmul.f32 %v5162, %v5162
      %v5611 = vmul.f32 %v5163, %v5163
      %v5612 = vmul.f32 %v5164, %v5164
      %v5613 = vmul.f32 %v5165, %v5165
      %v5614 = vmul.f32 %v5166, %v5166
      %v5615 = vmul.f32 %v5167, %v5167
      %v5616 = vmul.f32 %v5168, %v5168
      %v5617 = vmul.f32 %v5169, %v5169
      %v5618 = vmul.f32 %v5170, %v5170
      %v5619 = vmul.f32 %v5171, %v5171
      %v5620 = vmul.f32 %v5172, %v5172
      %v5621 = vmul.f32 %v5173, %v5173
      %v5622 = vmul.f32 %v5174, %v5174
      %v5623 = vmul.f32 %v5175, %v5175
      %v5624 = vmul.f32 %v5176, %v5176
      %v5625 = vmul.f32 %v5177, %v5177
      %v5626 = vmul.f32 %v5178, %v5178
      %v5627 = vmul.f32 %v5179, %v5179
      %v5628 = vmul.f32 %v5180, %v5180
      %v5629 = vmul.f32 %v5181, %v5181
      %v5630 = vmul.f32 %v5182, %v5182
      %v5631 = vmul.f32 %v5183, %v5183
      %v5632 = vmul.f32 %v5184, %v5184
      %v5633 = vmul.f32 %v5185, %v5185
      %v5634 = vmul.f32 %v5186, %v5186
      %v5635 = vmul.f32 %v5187, %v5187
      %v5636 = vmul.f32 %v5188, %v5188
      %v5637 = vmul.f32 %v5189, %v5189
      %v5638 = vmul.f32 %v5190, %v5190
      %v5639 = vmul.f32 %v5191, %v5191
      %v5640 = vmul.f32 %v5192, %v5192
      %v5641 = vmul.f32 %v5193, %v5193
      %v5642 = vmul.f32 %v5194, %v5194
      %v5643 = vmul.f32 %v5195, %v5195
      %v5644 = vmul.f32 %v5196, %v5196
      %v5645 = vmul.f32 %v5197, %v5197
      %v5646 = vmul.f32 %v5198, %v5198
      %v5647 = vmul.f32 %v5199, %v5199
      %v5648 = vmul.f32 %v5200, %v5200
      %v5649 = vmul.f32 %v5201, %v5201
      %v5650 = vmul.f32 %v5202, %v5202
      %v5651 = vmul.f32 %v5203, %v5203
      %v5652 = vmul.f32 %v5204, %v5204
      %v5653 = vmul.f32 %v5205, %v5205
      %v5654 = vmul.f32 %v5206, %v5206
      %v5655 = vmul.f32 %v5207, %v5207
      %v5656 = vmul.f32 %v5208, %v5208
      %v5657 = vmul.f32 %v5209, %v5209
      %v5658 = vmul.f32 %v5210, %v5210
      %v5659 = vmul.f32 %v5211, %v5211
      %v5660 = vmul.f32 %v5212, %v5212
      %v5661 = vmul.f32 %v5213, %v5213
      %v5662 = vmul.f32 %v5214, %v5214
      %v5663 = vmul.f32 %v5215, %v5215
      %v5664 = vmul.f32 %v5216, %v5216
      %v5665 = vmul.f32 %v5217, %v5217
      %v5666 = vmul.f32 %v5218, %v5218
      %v5667 = vmul.f32 %v5219, %v5219
      %v5668 = vmul.f32 %v5220, %v5220
      %v5669 = vmul.f32 %v5221, %v5221
      %v5670 = vmul.f32 %v5222, %v5222
      %v5671 = vmul.f32 %v5223, %v5223
      %v5672 = vmul.f32 %v5224, %v5224
      %v5673 = vmul.f32 %v5225, %v5225
      %v5674 = vmul.f32 %v5226, %v5226
      %v5675 = vmul.f32 %v5227, %v5227
      %v5676 = vmul.f32 %v5228, %v5228
      %v5677 = vmul.f32 %v5229, %v5229
      %v5678 = vmul.f32 %v5230, %v5230
      %v5679 = vmul.f32 %v5231, %v5231
      %v5680 = vmul.f32 %v5232, %v5232
      %v5681 = vmul.f32 %v5233, %v5233
      %v5682 = vmul.f32 %v5234, %v5234
      %v5683 = vmul.f32 %v5235, %v5235
      %v5684 = vmul.f32 %v5236, %v5236
      %v5685 = vmul.f32 %v5237, %v5237
      %v5686 = vmul.f32 %v5238, %v5238
      %v5687 = vmul.f32 %v5239, %v5239
      %v5688 = vmul.f32 %v5240, %v5240
      %v5689 = vmul.f32 %v5241, %v5241
      %v5690 = vmul.f32 %v5242, %v5242
      %v5691 = vmul.f32 %v5243, %v5243
      %v5692 = vmul.f32 %v5244, %v5244
      %v5693 = vmul.f32 %v5245, %v5245
      %v5694 = vmul.f32 %v5246, %v5246
      %v5695 = vmul.f32 %v5247, %v5247
      %v5696 = vmul.f32 %v5248, %v5248
      %v5697 = vmul.f32 %v5249, %v5249
      %v5698 = vmul.f32 %v5250, %v5250
      %v5699 = vmul.f32 %v5251, %v5251
      %v5700 = vmul.f32 %v5252, %v5252
      %v5701 = vmul.f32 %v5253, %v5253
      %v5702 = vmul.f32 %v5254, %v5254
      %v5703 = vmul.f32 %v5255, %v5255
      %v5704 = vmul.f32 %v5256, %v5256
      %v5705 = vmul.f32 %v5257, %v5257
      %v5706 = vmul.f32 %v5258, %v5258
      %v5707 = vmul.f32 %v5259, %v5259
      %v5708 = vmul.f32 %v5260, %v5260
      %v5709 = vmul.f32 %v5261, %v5261
      %v5710 = vmul.f32 %v5262, %v5262
      %v5711 = vmul.f32 %v5263, %v5263
      %v5712 = vmul.f32 %v5264, %v5264
      %v5713 = vmul.f32 %v5265, %v5265
      %v5714 = vmul.f32 %v5266, %v5266
      %v5715 = vmul.f32 %v5267, %v5267
      %v5716 = vmul.f32 %v5268, %v5268
      %v5717 = vmul.f32 %v5269, %v5269
      %v5718 = vmul.f32 %v5270, %v5270
      %v5719 = vmul.f32 %v5271, %v5271
      %v5720 = vmul.f32 %v5272, %v5272
      %v5721 = vmul.f32 %v5273, %v5273
      %v5722 = vmul.f32 %v5274, %v5274
      %v5723 = vmul.f32 %v5275, %v5275
      %v5724 = vmul.f32 %v5276, %v5276
      %v5725 = vmul.f32 %v5277, %v5277
      %v5726 = vmul.f32 %v5278, %v5278
      %v5727 = vmul.f32 %v5279, %v5279
      %v5728 = vmul.f32 %v5280, %v5280
      %v5729 = vmul.f32 %v5281, %v5281
      %v5730 = vmul.f32 %v5282, %v5282
      %v5731 = vmul.f32 %v5283, %v5283
      %v5732 = vmul.f32 %v5284, %v5284
      %v5733 = vmul.f32 %v5285, %v5285
      %v5734 = vmul.f32 %v5286, %v5286
      %v5735 = vmul.f32 %v5287, %v5287
      %v5736 = vmul.f32 %v5288, %v5288
      %v5737 = vmul.f32 %v5289, %v5289
      %v5738 = vmul.f32 %v5290, %v5290
      %v5739 = vmul.f32 %v5291, %v5291
      %v5740 = vmul.f32 %v5292, %v5292
      %v5741 = vmul.f32 %v5293, %v5293
      %v5742 = vmul.f32 %v5294, %v5294
      %v5743 = vmul.f32 %v5295, %v5295
      %v5744 = vmul.f32 %v5296, %v5296
      %v5745 = vmul.f32 %v5297, %v5297
      %v5746 = vmul.f32 %v5298, %v5298
      %v5747 = vmul.f32 %v5299, %v5299
      %v5748 = vmul.f32 %v5300, %v5300
      %v5749 = vmul.f32 %v5301, %v5301
      %v5750 = vmul.f32 %v5302, %v5302
      %v5751 = vmul.f32 %v5303, %v5303
      %v5752 = vmul.f32 %v5304, %v5304
      %v5753 = vmul.f32 %v5305, %v5305
      %v5754 = vmul.f32 %v5306, %v5306
      %v5755 = vmul.f32 %v5307, %v5307
      %v5756 = vmul.f32 %v5308, %v5308
      %v5757 = vmul.f32 %v5309, %v5309
      %v5758 = vmul.f32 %v5310, %v5310
      %v5759 = vmul.f32 %v5311, %v5311
      %v5760 = vmul.f32 %v5312, %v5312
      %v5761 = vmul.f32 %v5313, %v5313
      %v5762 = vmul.f32 %v5314, %v5314
      %v5763 = vmul.f32 %v5315, %v5315
      %v5764 = vmul.f32 %v5316, %v5316
      %v5765 = vmul.f32 %v5317, %v5317
      %v5766 = vmul.f32 %v5318, %v5318
      %v5767 = vmul.f32 %v5319, %v5319
      %v5768 = vmul.f32 %v5320, %v5320
      %v5769 = vmul.f32 %v5321, %v5321
      %v5770 = vmul.f32 %v5322, %v5322
      %v5771 = vmul.f32 %v5323, %v5323
      %v5772 = vmul.f32 %v5324, %v5324
      %v5773 = vmul.f32 %v5325, %v5325
      %v5774 = vmul.f32 %v5326, %v5326
      %v5775 = vmul.f32 %v5327, %v5327
      %v5776 = vmul.f32 %v5328, %v5328
      %v5777 = vmul.f32 %v5329, %v5329
      %v5778 = vmul.f32 %v5330, %v5330
      %v5779 = vmul.f32 %v5331, %v5331
      %v5780 = vmul.f32 %v5332, %v5332
      %v5781 = vmul.f32 %v5333, %v5333
      %v5782 = vmul.f32 %v5334, %v5334
      %v5783 = vmul.f32 %v5335, %v5335
      %v5784 = vmul.f32 %v5336, %v5336
      %v5785 = vmul.f32 %v5337, %v5337
      %v5786 = vmul.f32 %v5338, %v5338
      %v5787 = vmul.f32 %v5339, %v5339
      %v5788 = vmul.f32 %v5340, %v5340
      %v5789 = vmul.f32 %v5341, %v5341
      %v5790 = vmul.f32 %v5342, %v5342
      %v5791 = vmul.f32 %v5343, %v5343
      %v5792 = vmul.f32 %v5344, %v5344
      %v5793 = vmul.f32 %v5345, %v5345
      %v5794 = vmul.f32 %v5346, %v5346
      %v5795 = vmul.f32 %v5347, %v5347
      %v5796 = vmul.f32 %v5348, %v5348
      %v5797 = vmul.f32 %v5349, %v5349
      %v5798 = vmul.f32 %v5350, %v5350
      %v5799 = vmul.f32 %v5351, %v5351
      %v5800 = vmul.f32 %v5352, %v5352
      %v5801 = vmul.f32 %v5353, %v5353
      %v5802 = vmul.f32 %v5354, %v5354
      %v5803 = vmul.f32 %v5355, %v5355
      %v5804 = vmul.f32 %v5356, %v5356
      %v5805 = vmul.f32 %v5357, %v5357
      %v5806 = vmul.f32 %v5358, %v5358
      %v5807 = vmul.f32 %v5359, %v5359
      %v5808 = vmul.f32 %v5360, %v5360
      %v5809 = vmul.f32 %v5361, %v5361
      %v5810 = vmul.f32 %v5362, %v5362
      %v5811 = vmul.f32 %v5363, %v5363
      %v5812 = vmul.f32 %v5364, %v5364
      %v5813 = vmul.f32 %v5365, %v5365
      %v5814 = vmul.f32 %v5366, %v5366
      %v5815 = vmul.f32 %v5367, %v5367
      %v5816 = vmul.f32 %v5368, %v5368
      %v5817 = vmul.f32 %v5369, %v5369
      %v5818 = vmul.f32 %v5370, %v5370
      %v5819 = vmul.f32 %v5371, %v5371
      %v5820 = vmul.f32 %v5372, %v5372
      %v5821 = vmul.f32 %v5373, %v5373
      %v5822 = vmul.f32 %v5374, %v5374
      %v5823 = vmul.f32 %v5375, %v5375
      %v5824 = vmul.f32 %v5376, %v5376
      %v5825 = vmul.f32 %v5377, %v5377
      %v5826 = vmul.f32 %v5378, %v5378
      %v5827 = vmul.f32 %v5379, %v5379
      %v5828 = vmul.f32 %v5380, %v5380
      %v5829 = vmul.f32 %v5381, %v5381
      %v5830 = vmul.f32 %v5382, %v5382
      %v5831 = vmul.f32 %v5383, %v5383
      %v5832 = vmul.f32 %v5384, %v5384
      %v5833 = vmul.f32 %v5385, %v5385
      %v5834 = vmul.f32 %v5386, %v5386
      %v5835 = vmul.f32 %v5387, %v5387
      %v5836 = vmul.f32 %v5388, %v5388
      %v5837 = vmul.f32 %v5389, %v5389
      %v5838 = vmul.f32 %v5390, %v5390
      %v5839 = vmul.f32 %v5391, %v5391
      %v5840 = vmul.f32 %v5392, %v5392
      %v5841 = vmul.f32 %v5393, %v5393
      %v5842 = vmul.f32 %v5394, %v5394
      %v5843 = vmul.f32 %v5395, %v5395
      %v5844 = vmul.f32 %v5396, %v5396
      %v5845 = vmul.f32 %v5397, %v5397
      %v5846 = vmul.f32 %v5398, %v5398
      %v5847 = vmul.f32 %v5399, %v5399
      %v5848 = vmul.f32 %v5400, %v5400
      %v5849 = vmul.f32 %v5401, %v5401
      %v5850 = vmul.f32 %v5402, %v5402
      %v5851 = vmul.f32 %v5403, %v5403
      %v5852 = vmul.f32 %v5404, %v5404
      %v5853 = vmul.f32 %v5405, %v5405
      %v5854 = vmul.f32 %v5406, %v5406
      %v5855 = vmul.f32 %v5407, %v5407
      %v5856 = vmul.f32 %v5408, %v5408
      %v5857 = vmul.f32 %v5409, %v5409
      %v5858 = vmul.f32 %v5410, %v5410
      %v5859 = vmul.f32 %v5411, %v5411
      %v5860 = vmul.f32 %v5412, %v5412
      %v5861 = vmul.f32 %v5413, %v5413
      %v5862 = vmul.f32 %v5414, %v5414
      %v5863 = vmul.f32 %v5415, %v5415
      %v5864 = vmul.f32 %v5416, %v5416
      %v5865 = vmul.f32 %v5417, %v5417
      %v5866 = vmul.f32 %v5418, %v5418
      %v5867 = vmul.f32 %v5419, %v5419
      %v5868 = vmul.f32 %v5420, %v5420
      %v5869 = vmul.f32 %v5421, %v5421
      %v5870 = vmul.f32 %v5422, %v5422
      %v5871 = vmul.f32 %v5423, %v5423
      %v5872 = vmul.f32 %v5424, %v5424
      %v5873 = vmul.f32 %v5425, %v5425
      %v5874 = vmul.f32 %v5426, %v5426
      %v5875 = vmul.f32 %v5427, %v5427
      %v5876 = vmul.f32 %v5428, %v5428
      %v5877 = vmul.f32 %v5429, %v5429
      %v5878 = vmul.f32 %v5430, %v5430
      %v5879 = vmul.f32 %v5431, %v5431
      %v5880 = vmul.f32 %v5432, %v5432
      %v5881 = vmul.f32 %v5433, %v5433
      %v5882 = vmul.f32 %v5434, %v5434
      %v5883 = vmul.f32 %v5435, %v5435
      %v5884 = vmul.f32 %v5436, %v5436
      %v5885 = vmul.f32 %v5437, %v5437
      %v5886 = vmul.f32 %v5438, %v5438
      %v5887 = vmul.f32 %v5439, %v5439
      %v5888 = vmul.f32 %v5440, %v5440
      %v5889 = vmul.f32 %v5441, %v5441
      %v5890 = vmul.f32 %v5442, %v5442
      %v5891 = vmul.f32 %v5443, %v5443
      %v5892 = vmul.f32 %v5444, %v5444
      %v5893 = vmul.f32 %v5445, %v5445
      %v5894 = vmul.f32 %v5446, %v5446
      %v5895 = vmul.f32 %v5447, %v5447
      %v5896 = vmul.f32 %v5448, %v5448
      %v5897 = vmul.f32 %v5449, %v5449
      %v5898 = vmul.f32 %v5450, %v5450
      %v5899 = vmul.f32 %v5451, %v5451
      %v5900 = vmul.f32 %v5452, %v5452
      %v5901 = vmul.f32 %v5453, %v5453
      %v5902 = vmul.f32 %v5454, %v5454
      %v5903 = vmul.f32 %v5455, %v5455
      %v5904 = vmul.f32 %v5456, %v5456
      %v5905 = vmul.f32 %v5457, %v5457
      %v5906 = vmul.f32 %v5458, %v5458
      %v5907 = vmul.f32 %v5459, %v5459
      %v5908 = vmul.f32 %v5460, %v5460
      %v5909 = vmul.f32 %v5461, %v5461
      %v5910 = vmul.f32 %v5462, %v5462
      %v5911 = vmul.f32 %v5463, %v5463
      %v5912 = vmul.f32 %v5464, %v5464
      %v5913 = vmul.f32 %v5465, %v5465
      %v5914 = vmul.f32 %v5466, %v5466
      %v5915 = vmul.f32 %v5467, %v5467
      %v5916 = vmul.f32 %v5468, %v5468
      %v5917 = vmul.f32 %v5469, %v5469
      %v5918 = vmul.f32 %v5470, %v5470
      %v5919 = vmul.f32 %v5471, %v5471
      %v5920 = vmul.f32 %v5472, %v5472
      %v5921 = vmul.f32 %v5473, %v5473
      %v5922 = vmul.f32 %v5474, %v5474
      %v5923 = vmul.f32 %v5475, %v5475
      %v5924 = vmul.f32 %v5476, %v5476
      %v5925 = vmul.f32 %v5477, %v5477
      %v5926 = vmul.f32 %v5478, %v5478
      %v5927 = vmul.f32 %v5479, %v5479
      %v5928 = vmul.f32 %v5480, %v5480
      %v5929 = vmul.f32 %v5481, %v5481
      %v5930 = vmul.f32 %v5482, %v5482
      %v5931 = vmul.f32 %v5483, %v5483
      %v5932 = vmul.f32 %v5484, %v5484
      %v5933 = vmul.f32 %v5485, %v5485
      %v5934 = vmul.f32 %v5486, %v5486
      %v5935 = vmul.f32 %v5487, %v5487
      %v5936 = vmul.f32 %v5488, %v5488
      %v5937 = vmul.f32 %v5489, %v5489
      %v5938 = vmul.f32 %v5490, %v5490
      %v5939 = vmul.f32 %v5491, %v5491
      %v5940 = vmul.f32 %v5492, %v5492
      %v5941 = vmul.f32 %v5493, %v5493
      %v5942 = vmul.f32 %v5494, %v5494
      %v5943 = vmul.f32 %v5495, %v5495
      %v5944 = vmul.f32 %v5496, %v5496
      %v5945 = vmul.f32 %v5497, %v5497
      %v5946 = vmul.f32 %v5498, %v5498
      %v5947 = vmul.f32 %v5499, %v5499
      %v5948 = vmul.f32 %v5500, %v5500
      %v5949 = vmul.f32 %v5501, %v5501
      %v5950 = vmul.f32 %v5502, %v5502
      %v5951 = vmul.f32 %v5503, %v5503
      %v5952 = vmul.f32 %v5504, %v5504
      %v5953 = vmul.f32 %v5505, %v5505
      %v5954 = vmul.f32 %v5506, %v5506
      %v5955 = vmul.f32 %v5507, %v5507
      %v5956 = vmul.f32 %v5508, %v5508
      %v5957 = vmul.f32 %v5509, %v5509
      %v5958 = vmul.f32 %v5510, %v5510
      %v5959 = vmul.f32 %v5511, %v5511
      %v5960 = vmul.f32 %v5512, %v5512
      %v5961 = vmul.f32 %v5513, %v5513
      %v5962 = vmul.f32 %v5514, %v5514
      %v5963 = vmul.f32 %v5515, %v5515
      %v5964 = vmul.f32 %v5516, %v5516
      %v5965 = vmul.f32 %v5517, %v5517
      %v5966 = vmul.f32 %v5518, %v5518
      %v5967 = vmul.f32 %v5519, %v5519
      %v5968 = vmul.f32 %v5520, %v5520
      %v5969 = vmul.f32 %v5521, %v5521
      %v5970 = vmul.f32 %v5522, %v5522
      %v5971 = vmul.f32 %v5523, %v5523
      %v5972 = vmul.f32 %v5524, %v5524
      %v5973 = vmul.f32 %v5525, %v5525
      %v5974 = vmul.f32 %v5526, %v5526
      %v5975 = vmul.f32 %v5527, %v5527
      %v5976 = vmul.f32 %v5528, %v5528
      %v5977 = vmul.f32 %v5529, %v5529
      %v5978 = vmul.f32 %v5530, %v5530
      %v5979 = vmul.f32 %v5531, %v5531
      %v5980 = vmul.f32 %v5532, %v5532
      %v5981 = vmul.f32 %v5533, %v5533
      %v5982 = vmul.f32 %v5534, %v5534
      %v5983 = vmul.f32 %v5535, %v5535
      %v5984 = vmul.f32 %v5536, %v5536
      %v5985 = vmul.f32 %v5537, %v5537
      %v5986 = vmul.f32 %v5538, %v5538
      %v5987 = vmul.f32 %v5539, %v5539
      %v5988 = vmul.f32 %v5540, %v5540
      %v5989 = vmul.f32 %v5541, %v5541
      %v5990 = vmul.f32 %v5542, %v5542
      %v5991 = vmul.f32 %v5543, %v5543
      %v5992 = vmul.f32 %v5544, %v5544
      %v5993 = vmul.f32 %v5545, %v5545
      %v5994 = vmul.f32 %v5546, %v5546
      %v5995 = vmul.f32 %v5547, %v5547
      %v5996 = vmul.f32 %v5548, %v5548
      %v5997 = vmul.f32 %v5549, %v5549
      %v5998 = vmul.f32 %v5550, %v5550
      %v5999 = vmul.f32 %v5551, %v5551
      %v6000 = vmul.f32 %v5552, %v5552
      %v6001 = vmul.f32 %v5553, %v5553
      %v6002 = vmul.f32 %v5554, %v5554
      %v6003 = vmul.f32 %v5555, %v5555
      %v6004 = vmul.f32 %v5556, %v5556
      %v6005 = vmul.f32 %v5557, %v5557
      %v6006 = vmul.f32 %v5558, %v5558
      %v6007 = vmul.f32 %v5559, %v5559
      %v6008 = vmul.f32 %v5560, %v5560
      %v6009 = vmul.f32 %v5561, %v5561
      %v6010 = vmul.f32 %v5562, %v5562
      %v6011 = vmul.f32 %v5563, %v5563
      %v6012 = vmul.f32 %v5564, %v5564
      %v6013 = vmul.f32 %v5565, %v5565
      %v6014 = vmul.f32 %v5566, %v5566
      %v6015 = vmul.f32 %v5567, %v5567
      %v6016 = vmul.f32 %v5568, %v5568
      %v6017 = vmul.f32 %v5569, %v5569
      %v6018 = vmul.f32 %v5570, %v5570
      %v6019 = vmul.f32 %v5571, %v5571
      %v6020 = vmul.f32 %v5572, %v5572
      %v6021 = vmul.f32 %v5573, %v5573
      %v6022 = vmul.f32 %v5574, %v5574
      %v6023 = vmul.f32 %v5575, %v5575
      %v6024 = vmul.f32 %v5576, %v5576
      %v6025 = vmul.f32 %v5577, %v5577
      %v6026 = vmul.f32 %v5578, %v5578
      %v6027 = vmul.f32 %v5579, %v5579
      %v6028 = vmul.f32 %v5580, %v5580
      %v6029 = vmul.f32 %v5581, %v5581
      %v6030 = vmul.f32 %v5582, %v5582
      %v6031 = vmul.f32 %v5583, %v5583
      %v6032 = vmul.f32 %v5584, %v5584
      %v6033 = vmul.f32 %v5585, %v5585
      %v6034 = vmul.f32 %v5586, %v5586
      %v6035 = vmul.f32 %v5587, %v5587
      %v6036 = vmul.f32 %v5588, %v5588
      %v6037 = vmul.f32 %v5589, %v5589
      %v6038 = vmul.f32 %v5590, %v5590
      %v6039 = vmul.f32 %v5591, %v5591
      %v6040 = vmul.f32 %v5592, %v5592
      %v6041 = vmul.f32 %v5593, %v5593
      %v6042 = vadd.f32 %v5594, %v5595
      %v6043 = vadd.f32 %v6042, %v5596
      %v6044 = vadd.f32 %v6043, %v5597
      %v6045 = vadd.f32 %v6044, %v5598
      %v6046 = vadd.f32 %v6045, %v5599
      %v6047 = vsel %vm458, %v5600, 0.0
      %v6048 = vadd.f32 %v6046, %v6047
      %6049 = vadd.xlane.f32.xlu0 %v6048
      %v6050 = vpop.xlane.xlu0 %6049
      %v6051 = vadd.f32 %v5601, %v5602
      %v6052 = vadd.f32 %v6051, %v5603
      %v6053 = vadd.f32 %v6052, %v5604
      %v6054 = vadd.f32 %v6053, %v5605
      %v6055 = vadd.f32 %v6054, %v5606
      %v6056 = vsel %vm458, %v5607, 0.0
      %v6057 = vadd.f32 %v6055, %v6056
      %6058 = vadd.xlane.f32.xlu0 %v6057
      %v6059 = vpop.xlane.xlu0 %6058
      %v6060 = vadd.f32 %v5608, %v5609
      %v6061 = vadd.f32 %v6060, %v5610
      %v6062 = vadd.f32 %v6061, %v5611
      %v6063 = vadd.f32 %v6062, %v5612
      %v6064 = vadd.f32 %v6063, %v5613
      %v6065 = vsel %vm458, %v5614, 0.0
      %v6066 = vadd.f32 %v6064, %v6065
      %6067 = vadd.xlane.f32.xlu0 %v6066
      %v6068 = vpop.xlane.xlu0 %6067
      %v6069 = vadd.f32 %v5615, %v5616
      %v6070 = vadd.f32 %v6069, %v5617
      %v6071 = vadd.f32 %v6070, %v5618
      %v6072 = vadd.f32 %v6071, %v5619
      %v6073 = vadd.f32 %v6072, %v5620
      %v6074 = vsel %vm458, %v5621, 0.0
      %v6075 = vadd.f32 %v6073, %v6074
      %6076 = vadd.xlane.f32.xlu0 %v6075
      %v6077 = vpop.xlane.xlu0 %6076
      %v6078 = vadd.f32 %v5622, %v5623
      %v6079 = vadd.f32 %v6078, %v5624
      %v6080 = vadd.f32 %v6079, %v5625
      %v6081 = vadd.f32 %v6080, %v5626
      %v6082 = vadd.f32 %v6081, %v5627
      %v6083 = vsel %vm458, %v5628, 0.0
      %v6084 = vadd.f32 %v6082, %v6083
      %6085 = vadd.xlane.f32.xlu0 %v6084
      %v6086 = vpop.xlane.xlu0 %6085
      %v6087 = vadd.f32 %v5629, %v5630
      %v6088 = vadd.f32 %v6087, %v5631
      %v6089 = vadd.f32 %v6088, %v5632
      %v6090 = vadd.f32 %v6089, %v5633
      %v6091 = vadd.f32 %v6090, %v5634
      %v6092 = vsel %vm458, %v5635, 0.0
      %v6093 = vadd.f32 %v6091, %v6092
      %6094 = vadd.xlane.f32.xlu0 %v6093
      %v6095 = vpop.xlane.xlu0 %6094
      %v6096 = vadd.f32 %v5636, %v5637
      %v6097 = vadd.f32 %v6096, %v5638
      %v6098 = vadd.f32 %v6097, %v5639
      %v6099 = vadd.f32 %v6098, %v5640
      %v6100 = vadd.f32 %v6099, %v5641
      %v6101 = vsel %vm458, %v5642, 0.0
      %v6102 = vadd.f32 %v6100, %v6101
      %6103 = vadd.xlane.f32.xlu0 %v6102
      %v6104 = vpop.xlane.xlu0 %6103
      %v6105 = vadd.f32 %v5643, %v5644
      %v6106 = vadd.f32 %v6105, %v5645
      %v6107 = vadd.f32 %v6106, %v5646
      %v6108 = vadd.f32 %v6107, %v5647
      %v6109 = vadd.f32 %v6108, %v5648
      %v6110 = vsel %vm458, %v5649, 0.0
      %v6111 = vadd.f32 %v6109, %v6110
      %6112 = vadd.xlane.f32.xlu0 %v6111
      %v6113 = vpop.xlane.xlu0 %6112
      %v6114 = vadd.f32 %v5650, %v5651
      %v6115 = vadd.f32 %v6114, %v5652
      %v6116 = vadd.f32 %v6115, %v5653
      %v6117 = vadd.f32 %v6116, %v5654
      %v6118 = vadd.f32 %v6117, %v5655
      %v6119 = vsel %vm458, %v5656, 0.0
      %v6120 = vadd.f32 %v6118, %v6119
      %6121 = vadd.xlane.f32.xlu0 %v6120
      %v6122 = vpop.xlane.xlu0 %6121
      %v6123 = vadd.f32 %v5657, %v5658
      %v6124 = vadd.f32 %v6123, %v5659
      %v6125 = vadd.f32 %v6124, %v5660
      %v6126 = vadd.f32 %v6125, %v5661
      %v6127 = vadd.f32 %v6126, %v5662
      %v6128 = vsel %vm458, %v5663, 0.0
      %v6129 = vadd.f32 %v6127, %v6128
      %6130 = vadd.xlane.f32.xlu0 %v6129
      %v6131 = vpop.xlane.xlu0 %6130
      %v6132 = vadd.f32 %v5664, %v5665
      %v6133 = vadd.f32 %v6132, %v5666
      %v6134 = vadd.f32 %v6133, %v5667
      %v6135 = vadd.f32 %v6134, %v5668
      %v6136 = vadd.f32 %v6135, %v5669
      %v6137 = vsel %vm458, %v5670, 0.0
      %v6138 = vadd.f32 %v6136, %v6137
      %6139 = vadd.xlane.f32.xlu0 %v6138
      %v6140 = vpop.xlane.xlu0 %6139
      %v6141 = vadd.f32 %v5671, %v5672
      %v6142 = vadd.f32 %v6141, %v5673
      %v6143 = vadd.f32 %v6142, %v5674
      %v6144 = vadd.f32 %v6143, %v5675
      %v6145 = vadd.f32 %v6144, %v5676
      %v6146 = vsel %vm458, %v5677, 0.0
      %v6147 = vadd.f32 %v6145, %v6146
      %6148 = vadd.xlane.f32.xlu0 %v6147
      %v6149 = vpop.xlane.xlu0 %6148
      %v6150 = vadd.f32 %v5678, %v5679
      %v6151 = vadd.f32 %v6150, %v5680
      %v6152 = vadd.f32 %v6151, %v5681
      %v6153 = vadd.f32 %v6152, %v5682
      %v6154 = vadd.f32 %v6153, %v5683
      %v6155 = vsel %vm458, %v5684, 0.0
      %v6156 = vadd.f32 %v6154, %v6155
      %6157 = vadd.xlane.f32.xlu0 %v6156
      %v6158 = vpop.xlane.xlu0 %6157
      %v6159 = vadd.f32 %v5685, %v5686
      %v6160 = vadd.f32 %v6159, %v5687
      %v6161 = vadd.f32 %v6160, %v5688
      %v6162 = vadd.f32 %v6161, %v5689
      %v6163 = vadd.f32 %v6162, %v5690
      %v6164 = vsel %vm458, %v5691, 0.0
      %v6165 = vadd.f32 %v6163, %v6164
      %6166 = vadd.xlane.f32.xlu0 %v6165
      %v6167 = vpop.xlane.xlu0 %6166
      %v6168 = vadd.f32 %v5692, %v5693
      %v6169 = vadd.f32 %v6168, %v5694
      %v6170 = vadd.f32 %v6169, %v5695
      %v6171 = vadd.f32 %v6170, %v5696
      %v6172 = vadd.f32 %v6171, %v5697
      %v6173 = vsel %vm458, %v5698, 0.0
      %v6174 = vadd.f32 %v6172, %v6173
      %6175 = vadd.xlane.f32.xlu0 %v6174
      %v6176 = vpop.xlane.xlu0 %6175
      %v6177 = vadd.f32 %v5699, %v5700
      %v6178 = vadd.f32 %v6177, %v5701
      %v6179 = vadd.f32 %v6178, %v5702
      %v6180 = vadd.f32 %v6179, %v5703
      %v6181 = vadd.f32 %v6180, %v5704
      %v6182 = vsel %vm458, %v5705, 0.0
      %v6183 = vadd.f32 %v6181, %v6182
      %6184 = vadd.xlane.f32.xlu0 %v6183
      %v6185 = vpop.xlane.xlu0 %6184
      %v6186 = vadd.f32 %v5706, %v5707
      %v6187 = vadd.f32 %v6186, %v5708
      %v6188 = vadd.f32 %v6187, %v5709
      %v6189 = vadd.f32 %v6188, %v5710
      %v6190 = vadd.f32 %v6189, %v5711
      %v6191 = vsel %vm458, %v5712, 0.0
      %v6192 = vadd.f32 %v6190, %v6191
      %6193 = vadd.xlane.f32.xlu0 %v6192
      %v6194 = vpop.xlane.xlu0 %6193
      %v6195 = vadd.f32 %v5713, %v5714
      %v6196 = vadd.f32 %v6195, %v5715
      %v6197 = vadd.f32 %v6196, %v5716
      %v6198 = vadd.f32 %v6197, %v5717
      %v6199 = vadd.f32 %v6198, %v5718
      %v6200 = vsel %vm458, %v5719, 0.0
      %v6201 = vadd.f32 %v6199, %v6200
      %6202 = vadd.xlane.f32.xlu0 %v6201
      %v6203 = vpop.xlane.xlu0 %6202
      %v6204 = vadd.f32 %v5720, %v5721
      %v6205 = vadd.f32 %v6204, %v5722
      %v6206 = vadd.f32 %v6205, %v5723
      %v6207 = vadd.f32 %v6206, %v5724
      %v6208 = vadd.f32 %v6207, %v5725
      %v6209 = vsel %vm458, %v5726, 0.0
      %v6210 = vadd.f32 %v6208, %v6209
      %6211 = vadd.xlane.f32.xlu0 %v6210
      %v6212 = vpop.xlane.xlu0 %6211
      %v6213 = vadd.f32 %v5727, %v5728
      %v6214 = vadd.f32 %v6213, %v5729
      %v6215 = vadd.f32 %v6214, %v5730
      %v6216 = vadd.f32 %v6215, %v5731
      %v6217 = vadd.f32 %v6216, %v5732
      %v6218 = vsel %vm458, %v5733, 0.0
      %v6219 = vadd.f32 %v6217, %v6218
      %6220 = vadd.xlane.f32.xlu0 %v6219
      %v6221 = vpop.xlane.xlu0 %6220
      %v6222 = vadd.f32 %v5734, %v5735
      %v6223 = vadd.f32 %v6222, %v5736
      %v6224 = vadd.f32 %v6223, %v5737
      %v6225 = vadd.f32 %v6224, %v5738
      %v6226 = vadd.f32 %v6225, %v5739
      %v6227 = vsel %vm458, %v5740, 0.0
      %v6228 = vadd.f32 %v6226, %v6227
      %6229 = vadd.xlane.f32.xlu0 %v6228
      %v6230 = vpop.xlane.xlu0 %6229
      %v6231 = vadd.f32 %v5741, %v5742
      %v6232 = vadd.f32 %v6231, %v5743
      %v6233 = vadd.f32 %v6232, %v5744
      %v6234 = vadd.f32 %v6233, %v5745
      %v6235 = vadd.f32 %v6234, %v5746
      %v6236 = vsel %vm458, %v5747, 0.0
      %v6237 = vadd.f32 %v6235, %v6236
      %6238 = vadd.xlane.f32.xlu0 %v6237
      %v6239 = vpop.xlane.xlu0 %6238
      %v6240 = vadd.f32 %v5748, %v5749
      %v6241 = vadd.f32 %v6240, %v5750
      %v6242 = vadd.f32 %v6241, %v5751
      %v6243 = vadd.f32 %v6242, %v5752
      %v6244 = vadd.f32 %v6243, %v5753
      %v6245 = vsel %vm458, %v5754, 0.0
      %v6246 = vadd.f32 %v6244, %v6245
      %6247 = vadd.xlane.f32.xlu0 %v6246
      %v6248 = vpop.xlane.xlu0 %6247
      %v6249 = vadd.f32 %v5755, %v5756
      %v6250 = vadd.f32 %v6249, %v5757
      %v6251 = vadd.f32 %v6250, %v5758
      %v6252 = vadd.f32 %v6251, %v5759
      %v6253 = vadd.f32 %v6252, %v5760
      %v6254 = vsel %vm458, %v5761, 0.0
      %v6255 = vadd.f32 %v6253, %v6254
      %6256 = vadd.xlane.f32.xlu0 %v6255
      %v6257 = vpop.xlane.xlu0 %6256
      %v6258 = vadd.f32 %v5762, %v5763
      %v6259 = vadd.f32 %v6258, %v5764
      %v6260 = vadd.f32 %v6259, %v5765
      %v6261 = vadd.f32 %v6260, %v5766
      %v6262 = vadd.f32 %v6261, %v5767
      %v6263 = vsel %vm458, %v5768, 0.0
      %v6264 = vadd.f32 %v6262, %v6263
      %6265 = vadd.xlane.f32.xlu0 %v6264
      %v6266 = vpop.xlane.xlu0 %6265
      %v6267 = vadd.f32 %v5769, %v5770
      %v6268 = vadd.f32 %v6267, %v5771
      %v6269 = vadd.f32 %v6268, %v5772
      %v6270 = vadd.f32 %v6269, %v5773
      %v6271 = vadd.f32 %v6270, %v5774
      %v6272 = vsel %vm458, %v5775, 0.0
      %v6273 = vadd.f32 %v6271, %v6272
      %6274 = vadd.xlane.f32.xlu0 %v6273
      %v6275 = vpop.xlane.xlu0 %6274
      %v6276 = vadd.f32 %v5776, %v5777
      %v6277 = vadd.f32 %v6276, %v5778
      %v6278 = vadd.f32 %v6277, %v5779
      %v6279 = vadd.f32 %v6278, %v5780
      %v6280 = vadd.f32 %v6279, %v5781
      %v6281 = vsel %vm458, %v5782, 0.0
      %v6282 = vadd.f32 %v6280, %v6281
      %6283 = vadd.xlane.f32.xlu0 %v6282
      %v6284 = vpop.xlane.xlu0 %6283
      %v6285 = vadd.f32 %v5783, %v5784
      %v6286 = vadd.f32 %v6285, %v5785
      %v6287 = vadd.f32 %v6286, %v5786
      %v6288 = vadd.f32 %v6287, %v5787
      %v6289 = vadd.f32 %v6288, %v5788
      %v6290 = vsel %vm458, %v5789, 0.0
      %v6291 = vadd.f32 %v6289, %v6290
      %6292 = vadd.xlane.f32.xlu0 %v6291
      %v6293 = vpop.xlane.xlu0 %6292
      %v6294 = vadd.f32 %v5790, %v5791
      %v6295 = vadd.f32 %v6294, %v5792
      %v6296 = vadd.f32 %v6295, %v5793
      %v6297 = vadd.f32 %v6296, %v5794
      %v6298 = vadd.f32 %v6297, %v5795
      %v6299 = vsel %vm458, %v5796, 0.0
      %v6300 = vadd.f32 %v6298, %v6299
      %6301 = vadd.xlane.f32.xlu0 %v6300
      %v6302 = vpop.xlane.xlu0 %6301
      %v6303 = vadd.f32 %v5797, %v5798
      %v6304 = vadd.f32 %v6303, %v5799
      %v6305 = vadd.f32 %v6304, %v5800
      %v6306 = vadd.f32 %v6305, %v5801
      %v6307 = vadd.f32 %v6306, %v5802
      %v6308 = vsel %vm458, %v5803, 0.0
      %v6309 = vadd.f32 %v6307, %v6308
      %6310 = vadd.xlane.f32.xlu0 %v6309
      %v6311 = vpop.xlane.xlu0 %6310
      %v6312 = vadd.f32 %v5804, %v5805
      %v6313 = vadd.f32 %v6312, %v5806
      %v6314 = vadd.f32 %v6313, %v5807
      %v6315 = vadd.f32 %v6314, %v5808
      %v6316 = vadd.f32 %v6315, %v5809
      %v6317 = vsel %vm458, %v5810, 0.0
      %v6318 = vadd.f32 %v6316, %v6317
      %6319 = vadd.xlane.f32.xlu0 %v6318
      %v6320 = vpop.xlane.xlu0 %6319
      %v6321 = vadd.f32 %v5811, %v5812
      %v6322 = vadd.f32 %v6321, %v5813
      %v6323 = vadd.f32 %v6322, %v5814
      %v6324 = vadd.f32 %v6323, %v5815
      %v6325 = vadd.f32 %v6324, %v5816
      %v6326 = vsel %vm458, %v5817, 0.0
      %v6327 = vadd.f32 %v6325, %v6326
      %6328 = vadd.xlane.f32.xlu0 %v6327
      %v6329 = vpop.xlane.xlu0 %6328
      %v6330 = vadd.f32 %v5818, %v5819
      %v6331 = vadd.f32 %v6330, %v5820
      %v6332 = vadd.f32 %v6331, %v5821
      %v6333 = vadd.f32 %v6332, %v5822
      %v6334 = vadd.f32 %v6333, %v5823
      %v6335 = vsel %vm458, %v5824, 0.0
      %v6336 = vadd.f32 %v6334, %v6335
      %6337 = vadd.xlane.f32.xlu0 %v6336
      %v6338 = vpop.xlane.xlu0 %6337
      %v6339 = vadd.f32 %v5825, %v5826
      %v6340 = vadd.f32 %v6339, %v5827
      %v6341 = vadd.f32 %v6340, %v5828
      %v6342 = vadd.f32 %v6341, %v5829
      %v6343 = vadd.f32 %v6342, %v5830
      %v6344 = vsel %vm458, %v5831, 0.0
      %v6345 = vadd.f32 %v6343, %v6344
      %6346 = vadd.xlane.f32.xlu0 %v6345
      %v6347 = vpop.xlane.xlu0 %6346
      %v6348 = vadd.f32 %v5832, %v5833
      %v6349 = vadd.f32 %v6348, %v5834
      %v6350 = vadd.f32 %v6349, %v5835
      %v6351 = vadd.f32 %v6350, %v5836
      %v6352 = vadd.f32 %v6351, %v5837
      %v6353 = vsel %vm458, %v5838, 0.0
      %v6354 = vadd.f32 %v6352, %v6353
      %6355 = vadd.xlane.f32.xlu0 %v6354
      %v6356 = vpop.xlane.xlu0 %6355
      %v6357 = vadd.f32 %v5839, %v5840
      %v6358 = vadd.f32 %v6357, %v5841
      %v6359 = vadd.f32 %v6358, %v5842
      %v6360 = vadd.f32 %v6359, %v5843
      %v6361 = vadd.f32 %v6360, %v5844
      %v6362 = vsel %vm458, %v5845, 0.0
      %v6363 = vadd.f32 %v6361, %v6362
      %6364 = vadd.xlane.f32.xlu0 %v6363
      %v6365 = vpop.xlane.xlu0 %6364
      %v6366 = vadd.f32 %v5846, %v5847
      %v6367 = vadd.f32 %v6366, %v5848
      %v6368 = vadd.f32 %v6367, %v5849
      %v6369 = vadd.f32 %v6368, %v5850
      %v6370 = vadd.f32 %v6369, %v5851
      %v6371 = vsel %vm458, %v5852, 0.0
      %v6372 = vadd.f32 %v6370, %v6371
      %6373 = vadd.xlane.f32.xlu0 %v6372
      %v6374 = vpop.xlane.xlu0 %6373
      %v6375 = vadd.f32 %v5853, %v5854
      %v6376 = vadd.f32 %v6375, %v5855
      %v6377 = vadd.f32 %v6376, %v5856
      %v6378 = vadd.f32 %v6377, %v5857
      %v6379 = vadd.f32 %v6378, %v5858
      %v6380 = vsel %vm458, %v5859, 0.0
      %v6381 = vadd.f32 %v6379, %v6380
      %6382 = vadd.xlane.f32.xlu0 %v6381
      %v6383 = vpop.xlane.xlu0 %6382
      %v6384 = vadd.f32 %v5860, %v5861
      %v6385 = vadd.f32 %v6384, %v5862
      %v6386 = vadd.f32 %v6385, %v5863
      %v6387 = vadd.f32 %v6386, %v5864
      %v6388 = vadd.f32 %v6387, %v5865
      %v6389 = vsel %vm458, %v5866, 0.0
      %v6390 = vadd.f32 %v6388, %v6389
      %6391 = vadd.xlane.f32.xlu0 %v6390
      %v6392 = vpop.xlane.xlu0 %6391
      %v6393 = vadd.f32 %v5867, %v5868
      %v6394 = vadd.f32 %v6393, %v5869
      %v6395 = vadd.f32 %v6394, %v5870
      %v6396 = vadd.f32 %v6395, %v5871
      %v6397 = vadd.f32 %v6396, %v5872
      %v6398 = vsel %vm458, %v5873, 0.0
      %v6399 = vadd.f32 %v6397, %v6398
      %6400 = vadd.xlane.f32.xlu0 %v6399
      %v6401 = vpop.xlane.xlu0 %6400
      %v6402 = vadd.f32 %v5874, %v5875
      %v6403 = vadd.f32 %v6402, %v5876
      %v6404 = vadd.f32 %v6403, %v5877
      %v6405 = vadd.f32 %v6404, %v5878
      %v6406 = vadd.f32 %v6405, %v5879
      %v6407 = vsel %vm458, %v5880, 0.0
      %v6408 = vadd.f32 %v6406, %v6407
      %6409 = vadd.xlane.f32.xlu0 %v6408
      %v6410 = vpop.xlane.xlu0 %6409
      %v6411 = vadd.f32 %v5881, %v5882
      %v6412 = vadd.f32 %v6411, %v5883
      %v6413 = vadd.f32 %v6412, %v5884
      %v6414 = vadd.f32 %v6413, %v5885
      %v6415 = vadd.f32 %v6414, %v5886
      %v6416 = vsel %vm458, %v5887, 0.0
      %v6417 = vadd.f32 %v6415, %v6416
      %6418 = vadd.xlane.f32.xlu0 %v6417
      %v6419 = vpop.xlane.xlu0 %6418
      %v6420 = vadd.f32 %v5888, %v5889
      %v6421 = vadd.f32 %v6420, %v5890
      %v6422 = vadd.f32 %v6421, %v5891
      %v6423 = vadd.f32 %v6422, %v5892
      %v6424 = vadd.f32 %v6423, %v5893
      %v6425 = vsel %vm458, %v5894, 0.0
      %v6426 = vadd.f32 %v6424, %v6425
      %6427 = vadd.xlane.f32.xlu0 %v6426
      %v6428 = vpop.xlane.xlu0 %6427
      %v6429 = vadd.f32 %v5895, %v5896
      %v6430 = vadd.f32 %v6429, %v5897
      %v6431 = vadd.f32 %v6430, %v5898
      %v6432 = vadd.f32 %v6431, %v5899
      %v6433 = vadd.f32 %v6432, %v5900
      %v6434 = vsel %vm458, %v5901, 0.0
      %v6435 = vadd.f32 %v6433, %v6434
      %6436 = vadd.xlane.f32.xlu0 %v6435
      %v6437 = vpop.xlane.xlu0 %6436
      %v6438 = vadd.f32 %v5902, %v5903
      %v6439 = vadd.f32 %v6438, %v5904
      %v6440 = vadd.f32 %v6439, %v5905
      %v6441 = vadd.f32 %v6440, %v5906
      %v6442 = vadd.f32 %v6441, %v5907
      %v6443 = vsel %vm458, %v5908, 0.0
      %v6444 = vadd.f32 %v6442, %v6443
      %6445 = vadd.xlane.f32.xlu0 %v6444
      %v6446 = vpop.xlane.xlu0 %6445
      %v6447 = vadd.f32 %v5909, %v5910
      %v6448 = vadd.f32 %v6447, %v5911
      %v6449 = vadd.f32 %v6448, %v5912
      %v6450 = vadd.f32 %v6449, %v5913
      %v6451 = vadd.f32 %v6450, %v5914
      %v6452 = vsel %vm458, %v5915, 0.0
      %v6453 = vadd.f32 %v6451, %v6452
      %6454 = vadd.xlane.f32.xlu0 %v6453
      %v6455 = vpop.xlane.xlu0 %6454
      %v6456 = vadd.f32 %v5916, %v5917
      %v6457 = vadd.f32 %v6456, %v5918
      %v6458 = vadd.f32 %v6457, %v5919
      %v6459 = vadd.f32 %v6458, %v5920
      %v6460 = vadd.f32 %v6459, %v5921
      %v6461 = vsel %vm458, %v5922, 0.0
      %v6462 = vadd.f32 %v6460, %v6461
      %6463 = vadd.xlane.f32.xlu0 %v6462
      %v6464 = vpop.xlane.xlu0 %6463
      %v6465 = vadd.f32 %v5923, %v5924
      %v6466 = vadd.f32 %v6465, %v5925
      %v6467 = vadd.f32 %v6466, %v5926
      %v6468 = vadd.f32 %v6467, %v5927
      %v6469 = vadd.f32 %v6468, %v5928
      %v6470 = vsel %vm458, %v5929, 0.0
      %v6471 = vadd.f32 %v6469, %v6470
      %6472 = vadd.xlane.f32.xlu0 %v6471
      %v6473 = vpop.xlane.xlu0 %6472
      %v6474 = vadd.f32 %v5930, %v5931
      %v6475 = vadd.f32 %v6474, %v5932
      %v6476 = vadd.f32 %v6475, %v5933
      %v6477 = vadd.f32 %v6476, %v5934
      %v6478 = vadd.f32 %v6477, %v5935
      %v6479 = vsel %vm458, %v5936, 0.0
      %v6480 = vadd.f32 %v6478, %v6479
      %6481 = vadd.xlane.f32.xlu0 %v6480
      %v6482 = vpop.xlane.xlu0 %6481
      %v6483 = vadd.f32 %v5937, %v5938
      %v6484 = vadd.f32 %v6483, %v5939
      %v6485 = vadd.f32 %v6484, %v5940
      %v6486 = vadd.f32 %v6485, %v5941
      %v6487 = vadd.f32 %v6486, %v5942
      %v6488 = vsel %vm458, %v5943, 0.0
      %v6489 = vadd.f32 %v6487, %v6488
      %6490 = vadd.xlane.f32.xlu0 %v6489
      %v6491 = vpop.xlane.xlu0 %6490
      %v6492 = vadd.f32 %v5944, %v5945
      %v6493 = vadd.f32 %v6492, %v5946
      %v6494 = vadd.f32 %v6493, %v5947
      %v6495 = vadd.f32 %v6494, %v5948
      %v6496 = vadd.f32 %v6495, %v5949
      %v6497 = vsel %vm458, %v5950, 0.0
      %v6498 = vadd.f32 %v6496, %v6497
      %6499 = vadd.xlane.f32.xlu0 %v6498
      %v6500 = vpop.xlane.xlu0 %6499
      %v6501 = vadd.f32 %v5951, %v5952
      %v6502 = vadd.f32 %v6501, %v5953
      %v6503 = vadd.f32 %v6502, %v5954
      %v6504 = vadd.f32 %v6503, %v5955
      %v6505 = vadd.f32 %v6504, %v5956
      %v6506 = vsel %vm458, %v5957, 0.0
      %v6507 = vadd.f32 %v6505, %v6506
      %6508 = vadd.xlane.f32.xlu0 %v6507
      %v6509 = vpop.xlane.xlu0 %6508
      %v6510 = vadd.f32 %v5958, %v5959
      %v6511 = vadd.f32 %v6510, %v5960
      %v6512 = vadd.f32 %v6511, %v5961
      %v6513 = vadd.f32 %v6512, %v5962
      %v6514 = vadd.f32 %v6513, %v5963
      %v6515 = vsel %vm458, %v5964, 0.0
      %v6516 = vadd.f32 %v6514, %v6515
      %6517 = vadd.xlane.f32.xlu0 %v6516
      %v6518 = vpop.xlane.xlu0 %6517
      %v6519 = vadd.f32 %v5965, %v5966
      %v6520 = vadd.f32 %v6519, %v5967
      %v6521 = vadd.f32 %v6520, %v5968
      %v6522 = vadd.f32 %v6521, %v5969
      %v6523 = vadd.f32 %v6522, %v5970
      %v6524 = vsel %vm458, %v5971, 0.0
      %v6525 = vadd.f32 %v6523, %v6524
      %6526 = vadd.xlane.f32.xlu0 %v6525
      %v6527 = vpop.xlane.xlu0 %6526
      %v6528 = vadd.f32 %v5972, %v5973
      %v6529 = vadd.f32 %v6528, %v5974
      %v6530 = vadd.f32 %v6529, %v5975
      %v6531 = vadd.f32 %v6530, %v5976
      %v6532 = vadd.f32 %v6531, %v5977
      %v6533 = vsel %vm458, %v5978, 0.0
      %v6534 = vadd.f32 %v6532, %v6533
      %6535 = vadd.xlane.f32.xlu0 %v6534
      %v6536 = vpop.xlane.xlu0 %6535
      %v6537 = vadd.f32 %v5979, %v5980
      %v6538 = vadd.f32 %v6537, %v5981
      %v6539 = vadd.f32 %v6538, %v5982
      %v6540 = vadd.f32 %v6539, %v5983
      %v6541 = vadd.f32 %v6540, %v5984
      %v6542 = vsel %vm458, %v5985, 0.0
      %v6543 = vadd.f32 %v6541, %v6542
      %6544 = vadd.xlane.f32.xlu0 %v6543
      %v6545 = vpop.xlane.xlu0 %6544
      %v6546 = vadd.f32 %v5986, %v5987
      %v6547 = vadd.f32 %v6546, %v5988
      %v6548 = vadd.f32 %v6547, %v5989
      %v6549 = vadd.f32 %v6548, %v5990
      %v6550 = vadd.f32 %v6549, %v5991
      %v6551 = vsel %vm458, %v5992, 0.0
      %v6552 = vadd.f32 %v6550, %v6551
      %6553 = vadd.xlane.f32.xlu0 %v6552
      %v6554 = vpop.xlane.xlu0 %6553
      %v6555 = vadd.f32 %v5993, %v5994
      %v6556 = vadd.f32 %v6555, %v5995
      %v6557 = vadd.f32 %v6556, %v5996
      %v6558 = vadd.f32 %v6557, %v5997
      %v6559 = vadd.f32 %v6558, %v5998
      %v6560 = vsel %vm458, %v5999, 0.0
      %v6561 = vadd.f32 %v6559, %v6560
      %6562 = vadd.xlane.f32.xlu0 %v6561
      %v6563 = vpop.xlane.xlu0 %6562
      %v6564 = vadd.f32 %v6000, %v6001
      %v6565 = vadd.f32 %v6564, %v6002
      %v6566 = vadd.f32 %v6565, %v6003
      %v6567 = vadd.f32 %v6566, %v6004
      %v6568 = vadd.f32 %v6567, %v6005
      %v6569 = vsel %vm458, %v6006, 0.0
      %v6570 = vadd.f32 %v6568, %v6569
      %6571 = vadd.xlane.f32.xlu0 %v6570
      %v6572 = vpop.xlane.xlu0 %6571
      %v6573 = vadd.f32 %v6007, %v6008
      %v6574 = vadd.f32 %v6573, %v6009
      %v6575 = vadd.f32 %v6574, %v6010
      %v6576 = vadd.f32 %v6575, %v6011
      %v6577 = vadd.f32 %v6576, %v6012
      %v6578 = vsel %vm458, %v6013, 0.0
      %v6579 = vadd.f32 %v6577, %v6578
      %6580 = vadd.xlane.f32.xlu0 %v6579
      %v6581 = vpop.xlane.xlu0 %6580
      %v6582 = vadd.f32 %v6014, %v6015
      %v6583 = vadd.f32 %v6582, %v6016
      %v6584 = vadd.f32 %v6583, %v6017
      %v6585 = vadd.f32 %v6584, %v6018
      %v6586 = vadd.f32 %v6585, %v6019
      %v6587 = vsel %vm458, %v6020, 0.0
      %v6588 = vadd.f32 %v6586, %v6587
      %6589 = vadd.xlane.f32.xlu0 %v6588
      %v6590 = vpop.xlane.xlu0 %6589
      %v6591 = vadd.f32 %v6021, %v6022
      %v6592 = vadd.f32 %v6591, %v6023
      %v6593 = vadd.f32 %v6592, %v6024
      %v6594 = vadd.f32 %v6593, %v6025
      %v6595 = vadd.f32 %v6594, %v6026
      %v6596 = vsel %vm458, %v6027, 0.0
      %v6597 = vadd.f32 %v6595, %v6596
      %6598 = vadd.xlane.f32.xlu0 %v6597
      %v6599 = vpop.xlane.xlu0 %6598
      %v6600 = vadd.f32 %v6028, %v6029
      %v6601 = vadd.f32 %v6600, %v6030
      %v6602 = vadd.f32 %v6601, %v6031
      %v6603 = vadd.f32 %v6602, %v6032
      %v6604 = vadd.f32 %v6603, %v6033
      %v6605 = vsel %vm458, %v6034, 0.0
      %v6606 = vadd.f32 %v6604, %v6605
      %6607 = vadd.xlane.f32.xlu0 %v6606
      %v6608 = vpop.xlane.xlu0 %6607
      %v6609 = vadd.f32 %v6035, %v6036
      %v6610 = vadd.f32 %v6609, %v6037
      %v6611 = vadd.f32 %v6610, %v6038
      %v6612 = vadd.f32 %v6611, %v6039
      %v6613 = vadd.f32 %v6612, %v6040
      %v6614 = vsel %vm458, %v6041, 0.0
      %v6615 = vadd.f32 %v6613, %v6614
      %6616 = vadd.xlane.f32.xlu0 %v6615
      %v6617 = vpop.xlane.xlu0 %6616
      %v6618 = vmul.f32 %v6050, 0.0012755102
      %v6619 = vmul.f32 %v6059, 0.0012755102
      %v6620 = vmul.f32 %v6068, 0.0012755102
      %v6621 = vmul.f32 %v6077, 0.0012755102
      %v6622 = vmul.f32 %v6086, 0.0012755102
      %v6623 = vmul.f32 %v6095, 0.0012755102
      %v6624 = vmul.f32 %v6104, 0.0012755102
      %v6625 = vmul.f32 %v6113, 0.0012755102
      %v6626 = vmul.f32 %v6122, 0.0012755102
      %v6627 = vmul.f32 %v6131, 0.0012755102
      %v6628 = vmul.f32 %v6140, 0.0012755102
      %v6629 = vmul.f32 %v6149, 0.0012755102
      %v6630 = vmul.f32 %v6158, 0.0012755102
      %v6631 = vmul.f32 %v6167, 0.0012755102
      %v6632 = vmul.f32 %v6176, 0.0012755102
      %v6633 = vmul.f32 %v6185, 0.0012755102
      %v6634 = vmul.f32 %v6194, 0.0012755102
      %v6635 = vmul.f32 %v6203, 0.0012755102
      %v6636 = vmul.f32 %v6212, 0.0012755102
      %v6637 = vmul.f32 %v6221, 0.0012755102
      %v6638 = vmul.f32 %v6230, 0.0012755102
      %v6639 = vmul.f32 %v6239, 0.0012755102
      %v6640 = vmul.f32 %v6248, 0.0012755102
      %v6641 = vmul.f32 %v6257, 0.0012755102
      %v6642 = vmul.f32 %v6266, 0.0012755102
      %v6643 = vmul.f32 %v6275, 0.0012755102
      %v6644 = vmul.f32 %v6284, 0.0012755102
      %v6645 = vmul.f32 %v6293, 0.0012755102
      %v6646 = vmul.f32 %v6302, 0.0012755102
      %v6647 = vmul.f32 %v6311, 0.0012755102
      %v6648 = vmul.f32 %v6320, 0.0012755102
      %v6649 = vmul.f32 %v6329, 0.0012755102
      %v6650 = vmul.f32 %v6338, 0.0012755102
      %v6651 = vmul.f32 %v6347, 0.0012755102
      %v6652 = vmul.f32 %v6356, 0.0012755102
      %v6653 = vmul.f32 %v6365, 0.0012755102
      %v6654 = vmul.f32 %v6374, 0.0012755102
      %v6655 = vmul.f32 %v6383, 0.0012755102
      %v6656 = vmul.f32 %v6392, 0.0012755102
      %v6657 = vmul.f32 %v6401, 0.0012755102
      %v6658 = vmul.f32 %v6410, 0.0012755102
      %v6659 = vmul.f32 %v6419, 0.0012755102
      %v6660 = vmul.f32 %v6428, 0.0012755102
      %v6661 = vmul.f32 %v6437, 0.0012755102
      %v6662 = vmul.f32 %v6446, 0.0012755102
      %v6663 = vmul.f32 %v6455, 0.0012755102
      %v6664 = vmul.f32 %v6464, 0.0012755102
      %v6665 = vmul.f32 %v6473, 0.0012755102
      %v6666 = vmul.f32 %v6482, 0.0012755102
      %v6667 = vmul.f32 %v6491, 0.0012755102
      %v6668 = vmul.f32 %v6500, 0.0012755102
      %v6669 = vmul.f32 %v6509, 0.0012755102
      %v6670 = vmul.f32 %v6518, 0.0012755102
      %v6671 = vmul.f32 %v6527, 0.0012755102
      %v6672 = vmul.f32 %v6536, 0.0012755102
      %v6673 = vmul.f32 %v6545, 0.0012755102
      %v6674 = vmul.f32 %v6554, 0.0012755102
      %v6675 = vmul.f32 %v6563, 0.0012755102
      %v6676 = vmul.f32 %v6572, 0.0012755102
      %v6677 = vmul.f32 %v6581, 0.0012755102
      %v6678 = vmul.f32 %v6590, 0.0012755102
      %v6679 = vmul.f32 %v6599, 0.0012755102
      %v6680 = vmul.f32 %v6608, 0.0012755102
      %v6681 = vmul.f32 %v6617, 0.0012755102
      %v6682 = vld [vmem:[%s219] sm:$0xff]
      %v6683 = vld [vmem:[%s219 + $0x8] sm:$0xff]
      %v6684 = vld [vmem:[%s219 + $0x10] sm:$0xff]
      %v6685 = vld [vmem:[%s219 + $0x18] sm:$0xff]
      %v6686 = vld [vmem:[%s219 + $0x20] sm:$0xff]
      %v6687 = vld [vmem:[%s219 + $0x28] sm:$0xff]
      %v6688 = vld [vmem:[%s219 + $0x30] sm:$0xff]
      %v6689 = vld [vmem:[%s219 + $0x38] sm:$0xff]
      %v6690 = vld [vmem:[%s219 + $0x40] sm:$0xff]
      %v6691 = vld [vmem:[%s219 + $0x48] sm:$0xff]
      %v6692 = vld [vmem:[%s219 + $0x50] sm:$0xff]
      %v6693 = vld [vmem:[%s219 + $0x58] sm:$0xff]
      %v6694 = vld [vmem:[%s219 + $0x60] sm:$0xff]
      %v6695 = vld [vmem:[%s219 + $0x68] sm:$0xff]
      %v6696 = vld [vmem:[%s219 + $0x70] sm:$0xff]
      %v6697 = vld [vmem:[%s219 + $0x78] sm:$0xff]
      %v6698 = vld [vmem:[%s219 + $0x80] sm:$0xff]
      %v6699 = vld [vmem:[%s219 + $0x88] sm:$0xff]
      %v6700 = vld [vmem:[%s219 + $0x90] sm:$0xff]
      %v6701 = vld [vmem:[%s219 + $0x98] sm:$0xff]
      %v6702 = vld [vmem:[%s219 + $0xa0] sm:$0xff]
      %v6703 = vld [vmem:[%s219 + $0xa8] sm:$0xff]
      %v6704 = vld [vmem:[%s219 + $0xb0] sm:$0xff]
      %v6705 = vld [vmem:[%s219 + $0xb8] sm:$0xff]
      %v6706 = vld [vmem:[%s219 + $0xc0] sm:$0xff]
      %v6707 = vld [vmem:[%s219 + $0xc8] sm:$0xff]
      %v6708 = vld [vmem:[%s219 + $0xd0] sm:$0xff]
      %v6709 = vld [vmem:[%s219 + $0xd8] sm:$0xff]
      %v6710 = vld [vmem:[%s219 + $0xe0] sm:$0xff]
      %v6711 = vld [vmem:[%s219 + $0xe8] sm:$0xff]
      %v6712 = vld [vmem:[%s219 + $0xf0] sm:$0xff]
      %v6713 = vld [vmem:[%s219 + $0xf8] sm:$0xff]
      %v6714 = vld [vmem:[%s219 + $0x100] sm:$0xff]
      %v6715 = vld [vmem:[%s219 + $0x108] sm:$0xff]
      %v6716 = vld [vmem:[%s219 + $0x110] sm:$0xff]
      %v6717 = vld [vmem:[%s219 + $0x118] sm:$0xff]
      %v6718 = vld [vmem:[%s219 + $0x120] sm:$0xff]
      %v6719 = vld [vmem:[%s219 + $0x128] sm:$0xff]
      %v6720 = vld [vmem:[%s219 + $0x130] sm:$0xff]
      %v6721 = vld [vmem:[%s219 + $0x138] sm:$0xff]
      %v6722 = vld [vmem:[%s219 + $0x140] sm:$0xff]
      %v6723 = vld [vmem:[%s219 + $0x148] sm:$0xff]
      %v6724 = vld [vmem:[%s219 + $0x150] sm:$0xff]
      %v6725 = vld [vmem:[%s219 + $0x158] sm:$0xff]
      %v6726 = vld [vmem:[%s219 + $0x160] sm:$0xff]
      %v6727 = vld [vmem:[%s219 + $0x168] sm:$0xff]
      %v6728 = vld [vmem:[%s219 + $0x170] sm:$0xff]
      %v6729 = vld [vmem:[%s219 + $0x178] sm:$0xff]
      %v6730 = vld [vmem:[%s219 + $0x180] sm:$0xff]
      %v6731 = vld [vmem:[%s219 + $0x188] sm:$0xff]
      %v6732 = vld [vmem:[%s219 + $0x190] sm:$0xff]
      %v6733 = vld [vmem:[%s219 + $0x198] sm:$0xff]
      %v6734 = vld [vmem:[%s219 + $0x1a0] sm:$0xff]
      %v6735 = vld [vmem:[%s219 + $0x1a8] sm:$0xff]
      %v6736 = vld [vmem:[%s219 + $0x1b0] sm:$0xff]
      %v6737 = vld [vmem:[%s219 + $0x1b8] sm:$0xff]
      %v6738 = vld [vmem:[%s219 + $0x1c0] sm:$0xff]
      %v6739 = vld [vmem:[%s219 + $0x1c8] sm:$0xff]
      %v6740 = vld [vmem:[%s219 + $0x1d0] sm:$0xff]
      %v6741 = vld [vmem:[%s219 + $0x1d8] sm:$0xff]
      %v6742 = vld [vmem:[%s219 + $0x1e0] sm:$0xff]
      %v6743 = vld [vmem:[%s219 + $0x1e8] sm:$0xff]
      %v6744 = vld [vmem:[%s219 + $0x1f0] sm:$0xff]
      %v6745 = vld [vmem:[%s219 + $0x1f8] sm:$0xff]
      %v6746 = vadd.f32 %v6618, 1e-05
      %v6747 = vadd.f32 %v6619, 1e-05
      %v6748 = vadd.f32 %v6620, 1e-05
      %v6749 = vadd.f32 %v6621, 1e-05
      %v6750 = vadd.f32 %v6622, 1e-05
      %v6751 = vadd.f32 %v6623, 1e-05
      %v6752 = vadd.f32 %v6624, 1e-05
      %v6753 = vadd.f32 %v6625, 1e-05
      %v6754 = vadd.f32 %v6626, 1e-05
      %v6755 = vadd.f32 %v6627, 1e-05
      %v6756 = vadd.f32 %v6628, 1e-05
      %v6757 = vadd.f32 %v6629, 1e-05
      %v6758 = vadd.f32 %v6630, 1e-05
      %v6759 = vadd.f32 %v6631, 1e-05
      %v6760 = vadd.f32 %v6632, 1e-05
      %v6761 = vadd.f32 %v6633, 1e-05
      %v6762 = vadd.f32 %v6634, 1e-05
      %v6763 = vadd.f32 %v6635, 1e-05
      %v6764 = vadd.f32 %v6636, 1e-05
      %v6765 = vadd.f32 %v6637, 1e-05
      %v6766 = vadd.f32 %v6638, 1e-05
      %v6767 = vadd.f32 %v6639, 1e-05
      %v6768 = vadd.f32 %v6640, 1e-05
      %v6769 = vadd.f32 %v6641, 1e-05
      %v6770 = vadd.f32 %v6642, 1e-05
      %v6771 = vadd.f32 %v6643, 1e-05
      %v6772 = vadd.f32 %v6644, 1e-05
      %v6773 = vadd.f32 %v6645, 1e-05
      %v6774 = vadd.f32 %v6646, 1e-05
      %v6775 = vadd.f32 %v6647, 1e-05
      %v6776 = vadd.f32 %v6648, 1e-05
      %v6777 = vadd.f32 %v6649, 1e-05
      %v6778 = vadd.f32 %v6650, 1e-05
      %v6779 = vadd.f32 %v6651, 1e-05
      %v6780 = vadd.f32 %v6652, 1e-05
      %v6781 = vadd.f32 %v6653, 1e-05
      %v6782 = vadd.f32 %v6654, 1e-05
      %v6783 = vadd.f32 %v6655, 1e-05
      %v6784 = vadd.f32 %v6656, 1e-05
      %v6785 = vadd.f32 %v6657, 1e-05
      %v6786 = vadd.f32 %v6658, 1e-05
      %v6787 = vadd.f32 %v6659, 1e-05
      %v6788 = vadd.f32 %v6660, 1e-05
      %v6789 = vadd.f32 %v6661, 1e-05
      %v6790 = vadd.f32 %v6662, 1e-05
      %v6791 = vadd.f32 %v6663, 1e-05
      %v6792 = vadd.f32 %v6664, 1e-05
      %v6793 = vadd.f32 %v6665, 1e-05
      %v6794 = vadd.f32 %v6666, 1e-05
      %v6795 = vadd.f32 %v6667, 1e-05
      %v6796 = vadd.f32 %v6668, 1e-05
      %v6797 = vadd.f32 %v6669, 1e-05
      %v6798 = vadd.f32 %v6670, 1e-05
      %v6799 = vadd.f32 %v6671, 1e-05
      %v6800 = vadd.f32 %v6672, 1e-05
      %v6801 = vadd.f32 %v6673, 1e-05
      %v6802 = vadd.f32 %v6674, 1e-05
      %v6803 = vadd.f32 %v6675, 1e-05
      %v6804 = vadd.f32 %v6676, 1e-05
      %v6805 = vadd.f32 %v6677, 1e-05
      %v6806 = vadd.f32 %v6678, 1e-05
      %v6807 = vadd.f32 %v6679, 1e-05
      %v6808 = vadd.f32 %v6680, 1e-05
      %v6809 = vadd.f32 %v6681, 1e-05
      %v6810 = vrsqrt.pop %v6746
      %v6811 = vrsqrt.pop %v6747
      %v6812 = vrsqrt.pop %v6748
      %v6813 = vrsqrt.pop %v6749
      %v6814 = vrsqrt.pop %v6750
      %v6815 = vrsqrt.pop %v6751
      %v6816 = vrsqrt.pop %v6752
      %v6817 = vrsqrt.pop %v6753
      %v6818 = vrsqrt.pop %v6754
      %v6819 = vrsqrt.pop %v6755
      %v6820 = vrsqrt.pop %v6756
      %v6821 = vrsqrt.pop %v6757
      %v6822 = vrsqrt.pop %v6758
      %v6823 = vrsqrt.pop %v6759
      %v6824 = vrsqrt.pop %v6760
      %v6825 = vrsqrt.pop %v6761
      %v6826 = vrsqrt.pop %v6762
      %v6827 = vrsqrt.pop %v6763
      %v6828 = vrsqrt.pop %v6764
      %v6829 = vrsqrt.pop %v6765
      %v6830 = vrsqrt.pop %v6766
      %v6831 = vrsqrt.pop %v6767
      %v6832 = vrsqrt.pop %v6768
      %v6833 = vrsqrt.pop %v6769
      %v6834 = vrsqrt.pop %v6770
      %v6835 = vrsqrt.pop %v6771
      %v6836 = vrsqrt.pop %v6772
      %v6837 = vrsqrt.pop %v6773
      %v6838 = vrsqrt.pop %v6774
      %v6839 = vrsqrt.pop %v6775
      %v6840 = vrsqrt.pop %v6776
      %v6841 = vrsqrt.pop %v6777
      %v6842 = vrsqrt.pop %v6778
      %v6843 = vrsqrt.pop %v6779
      %v6844 = vrsqrt.pop %v6780
      %v6845 = vrsqrt.pop %v6781
      %v6846 = vrsqrt.pop %v6782
      %v6847 = vrsqrt.pop %v6783
      %v6848 = vrsqrt.pop %v6784
      %v6849 = vrsqrt.pop %v6785
      %v6850 = vrsqrt.pop %v6786
      %v6851 = vrsqrt.pop %v6787
      %v6852 = vrsqrt.pop %v6788
      %v6853 = vrsqrt.pop %v6789
      %v6854 = vrsqrt.pop %v6790
      %v6855 = vrsqrt.pop %v6791
      %v6856 = vrsqrt.pop %v6792
      %v6857 = vrsqrt.pop %v6793
      %v6858 = vrsqrt.pop %v6794
      %v6859 = vrsqrt.pop %v6795
      %v6860 = vrsqrt.pop %v6796
      %v6861 = vrsqrt.pop %v6797
      %v6862 = vrsqrt.pop %v6798
      %v6863 = vrsqrt.pop %v6799
      %v6864 = vrsqrt.pop %v6800
      %v6865 = vrsqrt.pop %v6801
      %v6866 = vrsqrt.pop %v6802
      %v6867 = vrsqrt.pop %v6803
      %v6868 = vrsqrt.pop %v6804
      %v6869 = vrsqrt.pop %v6805
      %v6870 = vrsqrt.pop %v6806
      %v6871 = vrsqrt.pop %v6807
      %v6872 = vrsqrt.pop %v6808
      %v6873 = vrsqrt.pop %v6809
      %v6874 = vmul.f32 %v6682, %v6810
      %v6875 = vmul.f32 %v6683, %v6811
      %v6876 = vmul.f32 %v6684, %v6812
      %v6877 = vmul.f32 %v6685, %v6813
      %v6878 = vmul.f32 %v6686, %v6814
      %v6879 = vmul.f32 %v6687, %v6815
      %v6880 = vmul.f32 %v6688, %v6816
      %v6881 = vmul.f32 %v6689, %v6817
      %v6882 = vmul.f32 %v6690, %v6818
      %v6883 = vmul.f32 %v6691, %v6819
      %v6884 = vmul.f32 %v6692, %v6820
      %v6885 = vmul.f32 %v6693, %v6821
      %v6886 = vmul.f32 %v6694, %v6822
      %v6887 = vmul.f32 %v6695, %v6823
      %v6888 = vmul.f32 %v6696, %v6824
      %v6889 = vmul.f32 %v6697, %v6825
      %v6890 = vmul.f32 %v6698, %v6826
      %v6891 = vmul.f32 %v6699, %v6827
      %v6892 = vmul.f32 %v6700, %v6828
      %v6893 = vmul.f32 %v6701, %v6829
      %v6894 = vmul.f32 %v6702, %v6830
      %v6895 = vmul.f32 %v6703, %v6831
      %v6896 = vmul.f32 %v6704, %v6832
      %v6897 = vmul.f32 %v6705, %v6833
      %v6898 = vmul.f32 %v6706, %v6834
      %v6899 = vmul.f32 %v6707, %v6835
      %v6900 = vmul.f32 %v6708, %v6836
      %v6901 = vmul.f32 %v6709, %v6837
      %v6902 = vmul.f32 %v6710, %v6838
      %v6903 = vmul.f32 %v6711, %v6839
      %v6904 = vmul.f32 %v6712, %v6840
      %v6905 = vmul.f32 %v6713, %v6841
      %v6906 = vmul.f32 %v6714, %v6842
      %v6907 = vmul.f32 %v6715, %v6843
      %v6908 = vmul.f32 %v6716, %v6844
      %v6909 = vmul.f32 %v6717, %v6845
      %v6910 = vmul.f32 %v6718, %v6846
      %v6911 = vmul.f32 %v6719, %v6847
      %v6912 = vmul.f32 %v6720, %v6848
      %v6913 = vmul.f32 %v6721, %v6849
      %v6914 = vmul.f32 %v6722, %v6850
      %v6915 = vmul.f32 %v6723, %v6851
      %v6916 = vmul.f32 %v6724, %v6852
      %v6917 = vmul.f32 %v6725, %v6853
      %v6918 = vmul.f32 %v6726, %v6854
      %v6919 = vmul.f32 %v6727, %v6855
      %v6920 = vmul.f32 %v6728, %v6856
      %v6921 = vmul.f32 %v6729, %v6857
      %v6922 = vmul.f32 %v6730, %v6858
      %v6923 = vmul.f32 %v6731, %v6859
      %v6924 = vmul.f32 %v6732, %v6860
      %v6925 = vmul.f32 %v6733, %v6861
      %v6926 = vmul.f32 %v6734, %v6862
      %v6927 = vmul.f32 %v6735, %v6863
      %v6928 = vmul.f32 %v6736, %v6864
      %v6929 = vmul.f32 %v6737, %v6865
      %v6930 = vmul.f32 %v6738, %v6866
      %v6931 = vmul.f32 %v6739, %v6867
      %v6932 = vmul.f32 %v6740, %v6868
      %v6933 = vmul.f32 %v6741, %v6869
      %v6934 = vmul.f32 %v6742, %v6870
      %v6935 = vmul.f32 %v6743, %v6871
      %v6936 = vmul.f32 %v6744, %v6872
      %v6937 = vmul.f32 %v6745, %v6873
      %6939 = vset.pattern.permute.xlu0 0
      %6940 = vperm.xlu0 %6939, %v6874
      %v6941 = vpop.permute.xlu0 %6940
      %6944 = vset.pattern.permute.xlu0 0
      %6945 = vperm.xlu0 %6944, %v6875
      %v6946 = vpop.permute.xlu0 %6945
      %6949 = vset.pattern.permute.xlu0 0
      %6950 = vperm.xlu0 %6949, %v6876
      %v6951 = vpop.permute.xlu0 %6950
      %6954 = vset.pattern.permute.xlu0 0
      %6955 = vperm.xlu0 %6954, %v6877
      %v6956 = vpop.permute.xlu0 %6955
      %6959 = vset.pattern.permute.xlu0 0
      %6960 = vperm.xlu0 %6959, %v6878
      %v6961 = vpop.permute.xlu0 %6960
      %6964 = vset.pattern.permute.xlu0 0
      %6965 = vperm.xlu0 %6964, %v6879
      %v6966 = vpop.permute.xlu0 %6965
      %6969 = vset.pattern.permute.xlu0 0
      %6970 = vperm.xlu0 %6969, %v6880
      %v6971 = vpop.permute.xlu0 %6970
      %6974 = vset.pattern.permute.xlu0 0
      %6975 = vperm.xlu0 %6974, %v6881
      %v6976 = vpop.permute.xlu0 %6975
      %6979 = vset.pattern.permute.xlu0 0
      %6980 = vperm.xlu0 %6979, %v6882
      %v6981 = vpop.permute.xlu0 %6980
      %6984 = vset.pattern.permute.xlu0 0
      %6985 = vperm.xlu0 %6984, %v6883
      %v6986 = vpop.permute.xlu0 %6985
      %6989 = vset.pattern.permute.xlu0 0
      %6990 = vperm.xlu0 %6989, %v6884
      %v6991 = vpop.permute.xlu0 %6990
      %6994 = vset.pattern.permute.xlu0 0
      %6995 = vperm.xlu0 %6994, %v6885
      %v6996 = vpop.permute.xlu0 %6995
      %6999 = vset.pattern.permute.xlu0 0
      %7000 = vperm.xlu0 %6999, %v6886
      %v7001 = vpop.permute.xlu0 %7000
      %7004 = vset.pattern.permute.xlu0 0
      %7005 = vperm.xlu0 %7004, %v6887
      %v7006 = vpop.permute.xlu0 %7005
      %7009 = vset.pattern.permute.xlu0 0
      %7010 = vperm.xlu0 %7009, %v6888
      %v7011 = vpop.permute.xlu0 %7010
      %7014 = vset.pattern.permute.xlu0 0
      %7015 = vperm.xlu0 %7014, %v6889
      %v7016 = vpop.permute.xlu0 %7015
      %7019 = vset.pattern.permute.xlu0 0
      %7020 = vperm.xlu0 %7019, %v6890
      %v7021 = vpop.permute.xlu0 %7020
      %7024 = vset.pattern.permute.xlu0 0
      %7025 = vperm.xlu0 %7024, %v6891
      %v7026 = vpop.permute.xlu0 %7025
      %7029 = vset.pattern.permute.xlu0 0
      %7030 = vperm.xlu0 %7029, %v6892
      %v7031 = vpop.permute.xlu0 %7030
      %7034 = vset.pattern.permute.xlu0 0
      %7035 = vperm.xlu0 %7034, %v6893
      %v7036 = vpop.permute.xlu0 %7035
      %7039 = vset.pattern.permute.xlu0 0
      %7040 = vperm.xlu0 %7039, %v6894
      %v7041 = vpop.permute.xlu0 %7040
      %7044 = vset.pattern.permute.xlu0 0
      %7045 = vperm.xlu0 %7044, %v6895
      %v7046 = vpop.permute.xlu0 %7045
      %7049 = vset.pattern.permute.xlu0 0
      %7050 = vperm.xlu0 %7049, %v6896
      %v7051 = vpop.permute.xlu0 %7050
      %7054 = vset.pattern.permute.xlu0 0
      %7055 = vperm.xlu0 %7054, %v6897
      %v7056 = vpop.permute.xlu0 %7055
      %7059 = vset.pattern.permute.xlu0 0
      %7060 = vperm.xlu0 %7059, %v6898
      %v7061 = vpop.permute.xlu0 %7060
      %7064 = vset.pattern.permute.xlu0 0
      %7065 = vperm.xlu0 %7064, %v6899
      %v7066 = vpop.permute.xlu0 %7065
      %7069 = vset.pattern.permute.xlu0 0
      %7070 = vperm.xlu0 %7069, %v6900
      %v7071 = vpop.permute.xlu0 %7070
      %7074 = vset.pattern.permute.xlu0 0
      %7075 = vperm.xlu0 %7074, %v6901
      %v7076 = vpop.permute.xlu0 %7075
      %7079 = vset.pattern.permute.xlu0 0
      %7080 = vperm.xlu0 %7079, %v6902
      %v7081 = vpop.permute.xlu0 %7080
      %7084 = vset.pattern.permute.xlu0 0
      %7085 = vperm.xlu0 %7084, %v6903
      %v7086 = vpop.permute.xlu0 %7085
      %7089 = vset.pattern.permute.xlu0 0
      %7090 = vperm.xlu0 %7089, %v6904
      %v7091 = vpop.permute.xlu0 %7090
      %7094 = vset.pattern.permute.xlu0 0
      %7095 = vperm.xlu0 %7094, %v6905
      %v7096 = vpop.permute.xlu0 %7095
      %7099 = vset.pattern.permute.xlu0 0
      %7100 = vperm.xlu0 %7099, %v6906
      %v7101 = vpop.permute.xlu0 %7100
      %7104 = vset.pattern.permute.xlu0 0
      %7105 = vperm.xlu0 %7104, %v6907
      %v7106 = vpop.permute.xlu0 %7105
      %7109 = vset.pattern.permute.xlu0 0
      %7110 = vperm.xlu0 %7109, %v6908
      %v7111 = vpop.permute.xlu0 %7110
      %7114 = vset.pattern.permute.xlu0 0
      %7115 = vperm.xlu0 %7114, %v6909
      %v7116 = vpop.permute.xlu0 %7115
      %7119 = vset.pattern.permute.xlu0 0
      %7120 = vperm.xlu0 %7119, %v6910
      %v7121 = vpop.permute.xlu0 %7120
      %7124 = vset.pattern.permute.xlu0 0
      %7125 = vperm.xlu0 %7124, %v6911
      %v7126 = vpop.permute.xlu0 %7125
      %7129 = vset.pattern.permute.xlu0 0
      %7130 = vperm.xlu0 %7129, %v6912
      %v7131 = vpop.permute.xlu0 %7130
      %7134 = vset.pattern.permute.xlu0 0
      %7135 = vperm.xlu0 %7134, %v6913
      %v7136 = vpop.permute.xlu0 %7135
      %7139 = vset.pattern.permute.xlu0 0
      %7140 = vperm.xlu0 %7139, %v6914
      %v7141 = vpop.permute.xlu0 %7140
      %7144 = vset.pattern.permute.xlu0 0
      %7145 = vperm.xlu0 %7144, %v6915
      %v7146 = vpop.permute.xlu0 %7145
      %7149 = vset.pattern.permute.xlu0 0
      %7150 = vperm.xlu0 %7149, %v6916
      %v7151 = vpop.permute.xlu0 %7150
      %7154 = vset.pattern.permute.xlu0 0
      %7155 = vperm.xlu0 %7154, %v6917
      %v7156 = vpop.permute.xlu0 %7155
      %7159 = vset.pattern.permute.xlu0 0
      %7160 = vperm.xlu0 %7159, %v6918
      %v7161 = vpop.permute.xlu0 %7160
      %7164 = vset.pattern.permute.xlu0 0
      %7165 = vperm.xlu0 %7164, %v6919
      %v7166 = vpop.permute.xlu0 %7165
      %7169 = vset.pattern.permute.xlu0 0
      %7170 = vperm.xlu0 %7169, %v6920
      %v7171 = vpop.permute.xlu0 %7170
      %7174 = vset.pattern.permute.xlu0 0
      %7175 = vperm.xlu0 %7174, %v6921
      %v7176 = vpop.permute.xlu0 %7175
      %7179 = vset.pattern.permute.xlu0 0
      %7180 = vperm.xlu0 %7179, %v6922
      %v7181 = vpop.permute.xlu0 %7180
      %7184 = vset.pattern.permute.xlu0 0
      %7185 = vperm.xlu0 %7184, %v6923
      %v7186 = vpop.permute.xlu0 %7185
      %7189 = vset.pattern.permute.xlu0 0
      %7190 = vperm.xlu0 %7189, %v6924
      %v7191 = vpop.permute.xlu0 %7190
      %7194 = vset.pattern.permute.xlu0 0
      %7195 = vperm.xlu0 %7194, %v6925
      %v7196 = vpop.permute.xlu0 %7195
      %7199 = vset.pattern.permute.xlu0 0
      %7200 = vperm.xlu0 %7199, %v6926
      %v7201 = vpop.permute.xlu0 %7200
      %7204 = vset.pattern.permute.xlu0 0
      %7205 = vperm.xlu0 %7204, %v6927
      %v7206 = vpop.permute.xlu0 %7205
      %7209 = vset.pattern.permute.xlu0 0
      %7210 = vperm.xlu0 %7209, %v6928
      %v7211 = vpop.permute.xlu0 %7210
      %7214 = vset.pattern.permute.xlu0 0
      %7215 = vperm.xlu0 %7214, %v6929
      %v7216 = vpop.permute.xlu0 %7215
      %7219 = vset.pattern.permute.xlu0 0
      %7220 = vperm.xlu0 %7219, %v6930
      %v7221 = vpop.permute.xlu0 %7220
      %7224 = vset.pattern.permute.xlu0 0
      %7225 = vperm.xlu0 %7224, %v6931
      %v7226 = vpop.permute.xlu0 %7225
      %7229 = vset.pattern.permute.xlu0 0
      %7230 = vperm.xlu0 %7229, %v6932
      %v7231 = vpop.permute.xlu0 %7230
      %7234 = vset.pattern.permute.xlu0 0
      %7235 = vperm.xlu0 %7234, %v6933
      %v7236 = vpop.permute.xlu0 %7235
      %7239 = vset.pattern.permute.xlu0 0
      %7240 = vperm.xlu0 %7239, %v6934
      %v7241 = vpop.permute.xlu0 %7240
      %7244 = vset.pattern.permute.xlu0 0
      %7245 = vperm.xlu0 %7244, %v6935
      %v7246 = vpop.permute.xlu0 %7245
      %7249 = vset.pattern.permute.xlu0 0
      %7250 = vperm.xlu0 %7249, %v6936
      %v7251 = vpop.permute.xlu0 %7250
      %7254 = vset.pattern.permute.xlu0 0
      %7255 = vperm.xlu0 %7254, %v6937
      %v7256 = vpop.permute.xlu0 %7255
      %v7258 = vmul.f32 %v5146, %v6941
      %v7259 = vmul.f32 %v5147, %v6941
      %v7260 = vmul.f32 %v5148, %v6941
      %v7261 = vmul.f32 %v5149, %v6941
      %v7262 = vmul.f32 %v5150, %v6941
      %v7263 = vmul.f32 %v5151, %v6941
      %v7264 = vmul.f32 %v5152, %v6941
      %v7265 = vmul.f32 %v5153, %v6946
      %v7266 = vmul.f32 %v5154, %v6946
      %v7267 = vmul.f32 %v5155, %v6946
      %v7268 = vmul.f32 %v5156, %v6946
      %v7269 = vmul.f32 %v5157, %v6946
      %v7270 = vmul.f32 %v5158, %v6946
      %v7271 = vmul.f32 %v5159, %v6946
      %v7272 = vmul.f32 %v5160, %v6951
      %v7273 = vmul.f32 %v5161, %v6951
      %v7274 = vmul.f32 %v5162, %v6951
      %v7275 = vmul.f32 %v5163, %v6951
      %v7276 = vmul.f32 %v5164, %v6951
      %v7277 = vmul.f32 %v5165, %v6951
      %v7278 = vmul.f32 %v5166, %v6951
      %v7279 = vmul.f32 %v5167, %v6956
      %v7280 = vmul.f32 %v5168, %v6956
      %v7281 = vmul.f32 %v5169, %v6956
      %v7282 = vmul.f32 %v5170, %v6956
      %v7283 = vmul.f32 %v5171, %v6956
      %v7284 = vmul.f32 %v5172, %v6956
      %v7285 = vmul.f32 %v5173, %v6956
      %v7286 = vmul.f32 %v5174, %v6961
      %v7287 = vmul.f32 %v5175, %v6961
      %v7288 = vmul.f32 %v5176, %v6961
      %v7289 = vmul.f32 %v5177, %v6961
      %v7290 = vmul.f32 %v5178, %v6961
      %v7291 = vmul.f32 %v5179, %v6961
      %v7292 = vmul.f32 %v5180, %v6961
      %v7293 = vmul.f32 %v5181, %v6966
      %v7294 = vmul.f32 %v5182, %v6966
      %v7295 = vmul.f32 %v5183, %v6966
      %v7296 = vmul.f32 %v5184, %v6966
      %v7297 = vmul.f32 %v5185, %v6966
      %v7298 = vmul.f32 %v5186, %v6966
      %v7299 = vmul.f32 %v5187, %v6966
      %v7300 = vmul.f32 %v5188, %v6971
      %v7301 = vmul.f32 %v5189, %v6971
      %v7302 = vmul.f32 %v5190, %v6971
      %v7303 = vmul.f32 %v5191, %v6971
      %v7304 = vmul.f32 %v5192, %v6971
      %v7305 = vmul.f32 %v5193, %v6971
      %v7306 = vmul.f32 %v5194, %v6971
      %v7307 = vmul.f32 %v5195, %v6976
      %v7308 = vmul.f32 %v5196, %v6976
      %v7309 = vmul.f32 %v5197, %v6976
      %v7310 = vmul.f32 %v5198, %v6976
      %v7311 = vmul.f32 %v5199, %v6976
      %v7312 = vmul.f32 %v5200, %v6976
      %v7313 = vmul.f32 %v5201, %v6976
      %v7314 = vmul.f32 %v5202, %v6981
      %v7315 = vmul.f32 %v5203, %v6981
      %v7316 = vmul.f32 %v5204, %v6981
      %v7317 = vmul.f32 %v5205, %v6981
      %v7318 = vmul.f32 %v5206, %v6981
      %v7319 = vmul.f32 %v5207, %v6981
      %v7320 = vmul.f32 %v5208, %v6981
      %v7321 = vmul.f32 %v5209, %v6986
      %v7322 = vmul.f32 %v5210, %v6986
      %v7323 = vmul.f32 %v5211, %v6986
      %v7324 = vmul.f32 %v5212, %v6986
      %v7325 = vmul.f32 %v5213, %v6986
      %v7326 = vmul.f32 %v5214, %v6986
      %v7327 = vmul.f32 %v5215, %v6986
      %v7328 = vmul.f32 %v5216, %v6991
      %v7329 = vmul.f32 %v5217, %v6991
      %v7330 = vmul.f32 %v5218, %v6991
      %v7331 = vmul.f32 %v5219, %v6991
      %v7332 = vmul.f32 %v5220, %v6991
      %v7333 = vmul.f32 %v5221, %v6991
      %v7334 = vmul.f32 %v5222, %v6991
      %v7335 = vmul.f32 %v5223, %v6996
      %v7336 = vmul.f32 %v5224, %v6996
      %v7337 = vmul.f32 %v5225, %v6996
      %v7338 = vmul.f32 %v5226, %v6996
      %v7339 = vmul.f32 %v5227, %v6996
      %v7340 = vmul.f32 %v5228, %v6996
      %v7341 = vmul.f32 %v5229, %v6996
      %v7342 = vmul.f32 %v5230, %v7001
      %v7343 = vmul.f32 %v5231, %v7001
      %v7344 = vmul.f32 %v5232, %v7001
      %v7345 = vmul.f32 %v5233, %v7001
      %v7346 = vmul.f32 %v5234, %v7001
      %v7347 = vmul.f32 %v5235, %v7001
      %v7348 = vmul.f32 %v5236, %v7001
      %v7349 = vmul.f32 %v5237, %v7006
      %v7350 = vmul.f32 %v5238, %v7006
      %v7351 = vmul.f32 %v5239, %v7006
      %v7352 = vmul.f32 %v5240, %v7006
      %v7353 = vmul.f32 %v5241, %v7006
      %v7354 = vmul.f32 %v5242, %v7006
      %v7355 = vmul.f32 %v5243, %v7006
      %v7356 = vmul.f32 %v5244, %v7011
      %v7357 = vmul.f32 %v5245, %v7011
      %v7358 = vmul.f32 %v5246, %v7011
      %v7359 = vmul.f32 %v5247, %v7011
      %v7360 = vmul.f32 %v5248, %v7011
      %v7361 = vmul.f32 %v5249, %v7011
      %v7362 = vmul.f32 %v5250, %v7011
      %v7363 = vmul.f32 %v5251, %v7016
      %v7364 = vmul.f32 %v5252, %v7016
      %v7365 = vmul.f32 %v5253, %v7016
      %v7366 = vmul.f32 %v5254, %v7016
      %v7367 = vmul.f32 %v5255, %v7016
      %v7368 = vmul.f32 %v5256, %v7016
      %v7369 = vmul.f32 %v5257, %v7016
      %v7370 = vmul.f32 %v5258, %v7021
      %v7371 = vmul.f32 %v5259, %v7021
      %v7372 = vmul.f32 %v5260, %v7021
      %v7373 = vmul.f32 %v5261, %v7021
      %v7374 = vmul.f32 %v5262, %v7021
      %v7375 = vmul.f32 %v5263, %v7021
      %v7376 = vmul.f32 %v5264, %v7021
      %v7377 = vmul.f32 %v5265, %v7026
      %v7378 = vmul.f32 %v5266, %v7026
      %v7379 = vmul.f32 %v5267, %v7026
      %v7380 = vmul.f32 %v5268, %v7026
      %v7381 = vmul.f32 %v5269, %v7026
      %v7382 = vmul.f32 %v5270, %v7026
      %v7383 = vmul.f32 %v5271, %v7026
      %v7384 = vmul.f32 %v5272, %v7031
      %v7385 = vmul.f32 %v5273, %v7031
      %v7386 = vmul.f32 %v5274, %v7031
      %v7387 = vmul.f32 %v5275, %v7031
      %v7388 = vmul.f32 %v5276, %v7031
      %v7389 = vmul.f32 %v5277, %v7031
      %v7390 = vmul.f32 %v5278, %v7031
      %v7391 = vmul.f32 %v5279, %v7036
      %v7392 = vmul.f32 %v5280, %v7036
      %v7393 = vmul.f32 %v5281, %v7036
      %v7394 = vmul.f32 %v5282, %v7036
      %v7395 = vmul.f32 %v5283, %v7036
      %v7396 = vmul.f32 %v5284, %v7036
      %v7397 = vmul.f32 %v5285, %v7036
      %v7398 = vmul.f32 %v5286, %v7041
      %v7399 = vmul.f32 %v5287, %v7041
      %v7400 = vmul.f32 %v5288, %v7041
      %v7401 = vmul.f32 %v5289, %v7041
      %v7402 = vmul.f32 %v5290, %v7041
      %v7403 = vmul.f32 %v5291, %v7041
      %v7404 = vmul.f32 %v5292, %v7041
      %v7405 = vmul.f32 %v5293, %v7046
      %v7406 = vmul.f32 %v5294, %v7046
      %v7407 = vmul.f32 %v5295, %v7046
      %v7408 = vmul.f32 %v5296, %v7046
      %v7409 = vmul.f32 %v5297, %v7046
      %v7410 = vmul.f32 %v5298, %v7046
      %v7411 = vmul.f32 %v5299, %v7046
      %v7412 = vmul.f32 %v5300, %v7051
      %v7413 = vmul.f32 %v5301, %v7051
      %v7414 = vmul.f32 %v5302, %v7051
      %v7415 = vmul.f32 %v5303, %v7051
      %v7416 = vmul.f32 %v5304, %v7051
      %v7417 = vmul.f32 %v5305, %v7051
      %v7418 = vmul.f32 %v5306, %v7051
      %v7419 = vmul.f32 %v5307, %v7056
      %v7420 = vmul.f32 %v5308, %v7056
      %v7421 = vmul.f32 %v5309, %v7056
      %v7422 = vmul.f32 %v5310, %v7056
      %v7423 = vmul.f32 %v5311, %v7056
      %v7424 = vmul.f32 %v5312, %v7056
      %v7425 = vmul.f32 %v5313, %v7056
      %v7426 = vmul.f32 %v5314, %v7061
      %v7427 = vmul.f32 %v5315, %v7061
      %v7428 = vmul.f32 %v5316, %v7061
      %v7429 = vmul.f32 %v5317, %v7061
      %v7430 = vmul.f32 %v5318, %v7061
      %v7431 = vmul.f32 %v5319, %v7061
      %v7432 = vmul.f32 %v5320, %v7061
      %v7433 = vmul.f32 %v5321, %v7066
      %v7434 = vmul.f32 %v5322, %v7066
      %v7435 = vmul.f32 %v5323, %v7066
      %v7436 = vmul.f32 %v5324, %v7066
      %v7437 = vmul.f32 %v5325, %v7066
      %v7438 = vmul.f32 %v5326, %v7066
      %v7439 = vmul.f32 %v5327, %v7066
      %v7440 = vmul.f32 %v5328, %v7071
      %v7441 = vmul.f32 %v5329, %v7071
      %v7442 = vmul.f32 %v5330, %v7071
      %v7443 = vmul.f32 %v5331, %v7071
      %v7444 = vmul.f32 %v5332, %v7071
      %v7445 = vmul.f32 %v5333, %v7071
      %v7446 = vmul.f32 %v5334, %v7071
      %v7447 = vmul.f32 %v5335, %v7076
      %v7448 = vmul.f32 %v5336, %v7076
      %v7449 = vmul.f32 %v5337, %v7076
      %v7450 = vmul.f32 %v5338, %v7076
      %v7451 = vmul.f32 %v5339, %v7076
      %v7452 = vmul.f32 %v5340, %v7076
      %v7453 = vmul.f32 %v5341, %v7076
      %v7454 = vmul.f32 %v5342, %v7081
      %v7455 = vmul.f32 %v5343, %v7081
      %v7456 = vmul.f32 %v5344, %v7081
      %v7457 = vmul.f32 %v5345, %v7081
      %v7458 = vmul.f32 %v5346, %v7081
      %v7459 = vmul.f32 %v5347, %v7081
      %v7460 = vmul.f32 %v5348, %v7081
      %v7461 = vmul.f32 %v5349, %v7086
      %v7462 = vmul.f32 %v5350, %v7086
      %v7463 = vmul.f32 %v5351, %v7086
      %v7464 = vmul.f32 %v5352, %v7086
      %v7465 = vmul.f32 %v5353, %v7086
      %v7466 = vmul.f32 %v5354, %v7086
      %v7467 = vmul.f32 %v5355, %v7086
      %v7468 = vmul.f32 %v5356, %v7091
      %v7469 = vmul.f32 %v5357, %v7091
      %v7470 = vmul.f32 %v5358, %v7091
      %v7471 = vmul.f32 %v5359, %v7091
      %v7472 = vmul.f32 %v5360, %v7091
      %v7473 = vmul.f32 %v5361, %v7091
      %v7474 = vmul.f32 %v5362, %v7091
      %v7475 = vmul.f32 %v5363, %v7096
      %v7476 = vmul.f32 %v5364, %v7096
      %v7477 = vmul.f32 %v5365, %v7096
      %v7478 = vmul.f32 %v5366, %v7096
      %v7479 = vmul.f32 %v5367, %v7096
      %v7480 = vmul.f32 %v5368, %v7096
      %v7481 = vmul.f32 %v5369, %v7096
      %v7482 = vmul.f32 %v5370, %v7101
      %v7483 = vmul.f32 %v5371, %v7101
      %v7484 = vmul.f32 %v5372, %v7101
      %v7485 = vmul.f32 %v5373, %v7101
      %v7486 = vmul.f32 %v5374, %v7101
      %v7487 = vmul.f32 %v5375, %v7101
      %v7488 = vmul.f32 %v5376, %v7101
      %v7489 = vmul.f32 %v5377, %v7106
      %v7490 = vmul.f32 %v5378, %v7106
      %v7491 = vmul.f32 %v5379, %v7106
      %v7492 = vmul.f32 %v5380, %v7106
      %v7493 = vmul.f32 %v5381, %v7106
      %v7494 = vmul.f32 %v5382, %v7106
      %v7495 = vmul.f32 %v5383, %v7106
      %v7496 = vmul.f32 %v5384, %v7111
      %v7497 = vmul.f32 %v5385, %v7111
      %v7498 = vmul.f32 %v5386, %v7111
      %v7499 = vmul.f32 %v5387, %v7111
      %v7500 = vmul.f32 %v5388, %v7111
      %v7501 = vmul.f32 %v5389, %v7111
      %v7502 = vmul.f32 %v5390, %v7111
      %v7503 = vmul.f32 %v5391, %v7116
      %v7504 = vmul.f32 %v5392, %v7116
      %v7505 = vmul.f32 %v5393, %v7116
      %v7506 = vmul.f32 %v5394, %v7116
      %v7507 = vmul.f32 %v5395, %v7116
      %v7508 = vmul.f32 %v5396, %v7116
      %v7509 = vmul.f32 %v5397, %v7116
      %v7510 = vmul.f32 %v5398, %v7121
      %v7511 = vmul.f32 %v5399, %v7121
      %v7512 = vmul.f32 %v5400, %v7121
      %v7513 = vmul.f32 %v5401, %v7121
      %v7514 = vmul.f32 %v5402, %v7121
      %v7515 = vmul.f32 %v5403, %v7121
      %v7516 = vmul.f32 %v5404, %v7121
      %v7517 = vmul.f32 %v5405, %v7126
      %v7518 = vmul.f32 %v5406, %v7126
      %v7519 = vmul.f32 %v5407, %v7126
      %v7520 = vmul.f32 %v5408, %v7126
      %v7521 = vmul.f32 %v5409, %v7126
      %v7522 = vmul.f32 %v5410, %v7126
      %v7523 = vmul.f32 %v5411, %v7126
      %v7524 = vmul.f32 %v5412, %v7131
      %v7525 = vmul.f32 %v5413, %v7131
      %v7526 = vmul.f32 %v5414, %v7131
      %v7527 = vmul.f32 %v5415, %v7131
      %v7528 = vmul.f32 %v5416, %v7131
      %v7529 = vmul.f32 %v5417, %v7131
      %v7530 = vmul.f32 %v5418, %v7131
      %v7531 = vmul.f32 %v5419, %v7136
      %v7532 = vmul.f32 %v5420, %v7136
      %v7533 = vmul.f32 %v5421, %v7136
      %v7534 = vmul.f32 %v5422, %v7136
      %v7535 = vmul.f32 %v5423, %v7136
      %v7536 = vmul.f32 %v5424, %v7136
      %v7537 = vmul.f32 %v5425, %v7136
      %v7538 = vmul.f32 %v5426, %v7141
      %v7539 = vmul.f32 %v5427, %v7141
      %v7540 = vmul.f32 %v5428, %v7141
      %v7541 = vmul.f32 %v5429, %v7141
      %v7542 = vmul.f32 %v5430, %v7141
      %v7543 = vmul.f32 %v5431, %v7141
      %v7544 = vmul.f32 %v5432, %v7141
      %v7545 = vmul.f32 %v5433, %v7146
      %v7546 = vmul.f32 %v5434, %v7146
      %v7547 = vmul.f32 %v5435, %v7146
      %v7548 = vmul.f32 %v5436, %v7146
      %v7549 = vmul.f32 %v5437, %v7146
      %v7550 = vmul.f32 %v5438, %v7146
      %v7551 = vmul.f32 %v5439, %v7146
      %v7552 = vmul.f32 %v5440, %v7151
      %v7553 = vmul.f32 %v5441, %v7151
      %v7554 = vmul.f32 %v5442, %v7151
      %v7555 = vmul.f32 %v5443, %v7151
      %v7556 = vmul.f32 %v5444, %v7151
      %v7557 = vmul.f32 %v5445, %v7151
      %v7558 = vmul.f32 %v5446, %v7151
      %v7559 = vmul.f32 %v5447, %v7156
      %v7560 = vmul.f32 %v5448, %v7156
      %v7561 = vmul.f32 %v5449, %v7156
      %v7562 = vmul.f32 %v5450, %v7156
      %v7563 = vmul.f32 %v5451, %v7156
      %v7564 = vmul.f32 %v5452, %v7156
      %v7565 = vmul.f32 %v5453, %v7156
      %v7566 = vmul.f32 %v5454, %v7161
      %v7567 = vmul.f32 %v5455, %v7161
      %v7568 = vmul.f32 %v5456, %v7161
      %v7569 = vmul.f32 %v5457, %v7161
      %v7570 = vmul.f32 %v5458, %v7161
      %v7571 = vmul.f32 %v5459, %v7161
      %v7572 = vmul.f32 %v5460, %v7161
      %v7573 = vmul.f32 %v5461, %v7166
      %v7574 = vmul.f32 %v5462, %v7166
      %v7575 = vmul.f32 %v5463, %v7166
      %v7576 = vmul.f32 %v5464, %v7166
      %v7577 = vmul.f32 %v5465, %v7166
      %v7578 = vmul.f32 %v5466, %v7166
      %v7579 = vmul.f32 %v5467, %v7166
      %v7580 = vmul.f32 %v5468, %v7171
      %v7581 = vmul.f32 %v5469, %v7171
      %v7582 = vmul.f32 %v5470, %v7171
      %v7583 = vmul.f32 %v5471, %v7171
      %v7584 = vmul.f32 %v5472, %v7171
      %v7585 = vmul.f32 %v5473, %v7171
      %v7586 = vmul.f32 %v5474, %v7171
      %v7587 = vmul.f32 %v5475, %v7176
      %v7588 = vmul.f32 %v5476, %v7176
      %v7589 = vmul.f32 %v5477, %v7176
      %v7590 = vmul.f32 %v5478, %v7176
      %v7591 = vmul.f32 %v5479, %v7176
      %v7592 = vmul.f32 %v5480, %v7176
      %v7593 = vmul.f32 %v5481, %v7176
      %v7594 = vmul.f32 %v5482, %v7181
      %v7595 = vmul.f32 %v5483, %v7181
      %v7596 = vmul.f32 %v5484, %v7181
      %v7597 = vmul.f32 %v5485, %v7181
      %v7598 = vmul.f32 %v5486, %v7181
      %v7599 = vmul.f32 %v5487, %v7181
      %v7600 = vmul.f32 %v5488, %v7181
      %v7601 = vmul.f32 %v5489, %v7186
      %v7602 = vmul.f32 %v5490, %v7186
      %v7603 = vmul.f32 %v5491, %v7186
      %v7604 = vmul.f32 %v5492, %v7186
      %v7605 = vmul.f32 %v5493, %v7186
      %v7606 = vmul.f32 %v5494, %v7186
      %v7607 = vmul.f32 %v5495, %v7186
      %v7608 = vmul.f32 %v5496, %v7191
      %v7609 = vmul.f32 %v5497, %v7191
      %v7610 = vmul.f32 %v5498, %v7191
      %v7611 = vmul.f32 %v5499, %v7191
      %v7612 = vmul.f32 %v5500, %v7191
      %v7613 = vmul.f32 %v5501, %v7191
      %v7614 = vmul.f32 %v5502, %v7191
      %v7615 = vmul.f32 %v5503, %v7196
      %v7616 = vmul.f32 %v5504, %v7196
      %v7617 = vmul.f32 %v5505, %v7196
      %v7618 = vmul.f32 %v5506, %v7196
      %v7619 = vmul.f32 %v5507, %v7196
      %v7620 = vmul.f32 %v5508, %v7196
      %v7621 = vmul.f32 %v5509, %v7196
      %v7622 = vmul.f32 %v5510, %v7201
      %v7623 = vmul.f32 %v5511, %v7201
      %v7624 = vmul.f32 %v5512, %v7201
      %v7625 = vmul.f32 %v5513, %v7201
      %v7626 = vmul.f32 %v5514, %v7201
      %v7627 = vmul.f32 %v5515, %v7201
      %v7628 = vmul.f32 %v5516, %v7201
      %v7629 = vmul.f32 %v5517, %v7206
      %v7630 = vmul.f32 %v5518, %v7206
      %v7631 = vmul.f32 %v5519, %v7206
      %v7632 = vmul.f32 %v5520, %v7206
      %v7633 = vmul.f32 %v5521, %v7206
      %v7634 = vmul.f32 %v5522, %v7206
      %v7635 = vmul.f32 %v5523, %v7206
      %v7636 = vmul.f32 %v5524, %v7211
      %v7637 = vmul.f32 %v5525, %v7211
      %v7638 = vmul.f32 %v5526, %v7211
      %v7639 = vmul.f32 %v5527, %v7211
      %v7640 = vmul.f32 %v5528, %v7211
      %v7641 = vmul.f32 %v5529, %v7211
      %v7642 = vmul.f32 %v5530, %v7211
      %v7643 = vmul.f32 %v5531, %v7216
      %v7644 = vmul.f32 %v5532, %v7216
      %v7645 = vmul.f32 %v5533, %v7216
      %v7646 = vmul.f32 %v5534, %v7216
      %v7647 = vmul.f32 %v5535, %v7216
      %v7648 = vmul.f32 %v5536, %v7216
      %v7649 = vmul.f32 %v5537, %v7216
      %v7650 = vmul.f32 %v5538, %v7221
      %v7651 = vmul.f32 %v5539, %v7221
      %v7652 = vmul.f32 %v5540, %v7221
      %v7653 = vmul.f32 %v5541, %v7221
      %v7654 = vmul.f32 %v5542, %v7221
      %v7655 = vmul.f32 %v5543, %v7221
      %v7656 = vmul.f32 %v5544, %v7221
      %v7657 = vmul.f32 %v5545, %v7226
      %v7658 = vmul.f32 %v5546, %v7226
      %v7659 = vmul.f32 %v5547, %v7226
      %v7660 = vmul.f32 %v5548, %v7226
      %v7661 = vmul.f32 %v5549, %v7226
      %v7662 = vmul.f32 %v5550, %v7226
      %v7663 = vmul.f32 %v5551, %v7226
      %v7664 = vmul.f32 %v5552, %v7231
      %v7665 = vmul.f32 %v5553, %v7231
      %v7666 = vmul.f32 %v5554, %v7231
      %v7667 = vmul.f32 %v5555, %v7231
      %v7668 = vmul.f32 %v5556, %v7231
      %v7669 = vmul.f32 %v5557, %v7231
      %v7670 = vmul.f32 %v5558, %v7231
      %v7671 = vmul.f32 %v5559, %v7236
      %v7672 = vmul.f32 %v5560, %v7236
      %v7673 = vmul.f32 %v5561, %v7236
      %v7674 = vmul.f32 %v5562, %v7236
      %v7675 = vmul.f32 %v5563, %v7236
      %v7676 = vmul.f32 %v5564, %v7236
      %v7677 = vmul.f32 %v5565, %v7236
      %v7678 = vmul.f32 %v5566, %v7241
      %v7679 = vmul.f32 %v5567, %v7241
      %v7680 = vmul.f32 %v5568, %v7241
      %v7681 = vmul.f32 %v5569, %v7241
      %v7682 = vmul.f32 %v5570, %v7241
      %v7683 = vmul.f32 %v5571, %v7241
      %v7684 = vmul.f32 %v5572, %v7241
      %v7685 = vmul.f32 %v5573, %v7246
      %v7686 = vmul.f32 %v5574, %v7246
      %v7687 = vmul.f32 %v5575, %v7246
      %v7688 = vmul.f32 %v5576, %v7246
      %v7689 = vmul.f32 %v5577, %v7246
      %v7690 = vmul.f32 %v5578, %v7246
      %v7691 = vmul.f32 %v5579, %v7246
      %v7692 = vmul.f32 %v5580, %v7251
      %v7693 = vmul.f32 %v5581, %v7251
      %v7694 = vmul.f32 %v5582, %v7251
      %v7695 = vmul.f32 %v5583, %v7251
      %v7696 = vmul.f32 %v5584, %v7251
      %v7697 = vmul.f32 %v5585, %v7251
      %v7698 = vmul.f32 %v5586, %v7251
      %v7699 = vmul.f32 %v5587, %v7256
      %v7700 = vmul.f32 %v5588, %v7256
      %v7701 = vmul.f32 %v5589, %v7256
      %v7702 = vmul.f32 %v5590, %v7256
      %v7703 = vmul.f32 %v5591, %v7256
      %v7704 = vmul.f32 %v5592, %v7256
      %v7705 = vmul.f32 %v5593, %v7256
      %7707 = vset.pattern.permute.xlu0 1
      %7708 = vperm.xlu0 %7707, %v6682
      %v7709 = vpop.permute.xlu0 %7708
      %7712 = vset.pattern.permute.xlu0 1
      %7713 = vperm.xlu0 %7712, %v6683
      %v7714 = vpop.permute.xlu0 %7713
      %7717 = vset.pattern.permute.xlu0 1
      %7718 = vperm.xlu0 %7717, %v6684
      %v7719 = vpop.permute.xlu0 %7718
      %7722 = vset.pattern.permute.xlu0 1
      %7723 = vperm.xlu0 %7722, %v6685
      %v7724 = vpop.permute.xlu0 %7723
      %7727 = vset.pattern.permute.xlu0 1
      %7728 = vperm.xlu0 %7727, %v6686
      %v7729 = vpop.permute.xlu0 %7728
      %7732 = vset.pattern.permute.xlu0 1
      %7733 = vperm.xlu0 %7732, %v6687
      %v7734 = vpop.permute.xlu0 %7733
      %7737 = vset.pattern.permute.xlu0 1
      %7738 = vperm.xlu0 %7737, %v6688
      %v7739 = vpop.permute.xlu0 %7738
      %7742 = vset.pattern.permute.xlu0 1
      %7743 = vperm.xlu0 %7742, %v6689
      %v7744 = vpop.permute.xlu0 %7743
      %7747 = vset.pattern.permute.xlu0 1
      %7748 = vperm.xlu0 %7747, %v6690
      %v7749 = vpop.permute.xlu0 %7748
      %7752 = vset.pattern.permute.xlu0 1
      %7753 = vperm.xlu0 %7752, %v6691
      %v7754 = vpop.permute.xlu0 %7753
      %7757 = vset.pattern.permute.xlu0 1
      %7758 = vperm.xlu0 %7757, %v6692
      %v7759 = vpop.permute.xlu0 %7758
      %7762 = vset.pattern.permute.xlu0 1
      %7763 = vperm.xlu0 %7762, %v6693
      %v7764 = vpop.permute.xlu0 %7763
      %7767 = vset.pattern.permute.xlu0 1
      %7768 = vperm.xlu0 %7767, %v6694
      %v7769 = vpop.permute.xlu0 %7768
      %7772 = vset.pattern.permute.xlu0 1
      %7773 = vperm.xlu0 %7772, %v6695
      %v7774 = vpop.permute.xlu0 %7773
      %7777 = vset.pattern.permute.xlu0 1
      %7778 = vperm.xlu0 %7777, %v6696
      %v7779 = vpop.permute.xlu0 %7778
      %7782 = vset.pattern.permute.xlu0 1
      %7783 = vperm.xlu0 %7782, %v6697
      %v7784 = vpop.permute.xlu0 %7783
      %7787 = vset.pattern.permute.xlu0 1
      %7788 = vperm.xlu0 %7787, %v6698
      %v7789 = vpop.permute.xlu0 %7788
      %7792 = vset.pattern.permute.xlu0 1
      %7793 = vperm.xlu0 %7792, %v6699
      %v7794 = vpop.permute.xlu0 %7793
      %7797 = vset.pattern.permute.xlu0 1
      %7798 = vperm.xlu0 %7797, %v6700
      %v7799 = vpop.permute.xlu0 %7798
      %7802 = vset.pattern.permute.xlu0 1
      %7803 = vperm.xlu0 %7802, %v6701
      %v7804 = vpop.permute.xlu0 %7803
      %7807 = vset.pattern.permute.xlu0 1
      %7808 = vperm.xlu0 %7807, %v6702
      %v7809 = vpop.permute.xlu0 %7808
      %7812 = vset.pattern.permute.xlu0 1
      %7813 = vperm.xlu0 %7812, %v6703
      %v7814 = vpop.permute.xlu0 %7813
      %7817 = vset.pattern.permute.xlu0 1
      %7818 = vperm.xlu0 %7817, %v6704
      %v7819 = vpop.permute.xlu0 %7818
      %7822 = vset.pattern.permute.xlu0 1
      %7823 = vperm.xlu0 %7822, %v6705
      %v7824 = vpop.permute.xlu0 %7823
      %7827 = vset.pattern.permute.xlu0 1
      %7828 = vperm.xlu0 %7827, %v6706
      %v7829 = vpop.permute.xlu0 %7828
      %7832 = vset.pattern.permute.xlu0 1
      %7833 = vperm.xlu0 %7832, %v6707
      %v7834 = vpop.permute.xlu0 %7833
      %7837 = vset.pattern.permute.xlu0 1
      %7838 = vperm.xlu0 %7837, %v6708
      %v7839 = vpop.permute.xlu0 %7838
      %7842 = vset.pattern.permute.xlu0 1
      %7843 = vperm.xlu0 %7842, %v6709
      %v7844 = vpop.permute.xlu0 %7843
      %7847 = vset.pattern.permute.xlu0 1
      %7848 = vperm.xlu0 %7847, %v6710
      %v7849 = vpop.permute.xlu0 %7848
      %7852 = vset.pattern.permute.xlu0 1
      %7853 = vperm.xlu0 %7852, %v6711
      %v7854 = vpop.permute.xlu0 %7853
      %7857 = vset.pattern.permute.xlu0 1
      %7858 = vperm.xlu0 %7857, %v6712
      %v7859 = vpop.permute.xlu0 %7858
      %7862 = vset.pattern.permute.xlu0 1
      %7863 = vperm.xlu0 %7862, %v6713
      %v7864 = vpop.permute.xlu0 %7863
      %7867 = vset.pattern.permute.xlu0 1
      %7868 = vperm.xlu0 %7867, %v6714
      %v7869 = vpop.permute.xlu0 %7868
      %7872 = vset.pattern.permute.xlu0 1
      %7873 = vperm.xlu0 %7872, %v6715
      %v7874 = vpop.permute.xlu0 %7873
      %7877 = vset.pattern.permute.xlu0 1
      %7878 = vperm.xlu0 %7877, %v6716
      %v7879 = vpop.permute.xlu0 %7878
      %7882 = vset.pattern.permute.xlu0 1
      %7883 = vperm.xlu0 %7882, %v6717
      %v7884 = vpop.permute.xlu0 %7883
      %7887 = vset.pattern.permute.xlu0 1
      %7888 = vperm.xlu0 %7887, %v6718
      %v7889 = vpop.permute.xlu0 %7888
      %7892 = vset.pattern.permute.xlu0 1
      %7893 = vperm.xlu0 %7892, %v6719
      %v7894 = vpop.permute.xlu0 %7893
      %7897 = vset.pattern.permute.xlu0 1
      %7898 = vperm.xlu0 %7897, %v6720
      %v7899 = vpop.permute.xlu0 %7898
      %7902 = vset.pattern.permute.xlu0 1
      %7903 = vperm.xlu0 %7902, %v6721
      %v7904 = vpop.permute.xlu0 %7903
      %7907 = vset.pattern.permute.xlu0 1
      %7908 = vperm.xlu0 %7907, %v6722
      %v7909 = vpop.permute.xlu0 %7908
      %7912 = vset.pattern.permute.xlu0 1
      %7913 = vperm.xlu0 %7912, %v6723
      %v7914 = vpop.permute.xlu0 %7913
      %7917 = vset.pattern.permute.xlu0 1
      %7918 = vperm.xlu0 %7917, %v6724
      %v7919 = vpop.permute.xlu0 %7918
      %7922 = vset.pattern.permute.xlu0 1
      %7923 = vperm.xlu0 %7922, %v6725
      %v7924 = vpop.permute.xlu0 %7923
      %7927 = vset.pattern.permute.xlu0 1
      %7928 = vperm.xlu0 %7927, %v6726
      %v7929 = vpop.permute.xlu0 %7928
      %7932 = vset.pattern.permute.xlu0 1
      %7933 = vperm.xlu0 %7932, %v6727
      %v7934 = vpop.permute.xlu0 %7933
      %7937 = vset.pattern.permute.xlu0 1
      %7938 = vperm.xlu0 %7937, %v6728
      %v7939 = vpop.permute.xlu0 %7938
      %7942 = vset.pattern.permute.xlu0 1
      %7943 = vperm.xlu0 %7942, %v6729
      %v7944 = vpop.permute.xlu0 %7943
      %7947 = vset.pattern.permute.xlu0 1
      %7948 = vperm.xlu0 %7947, %v6730
      %v7949 = vpop.permute.xlu0 %7948
      %7952 = vset.pattern.permute.xlu0 1
      %7953 = vperm.xlu0 %7952, %v6731
      %v7954 = vpop.permute.xlu0 %7953
      %7957 = vset.pattern.permute.xlu0 1
      %7958 = vperm.xlu0 %7957, %v6732
      %v7959 = vpop.permute.xlu0 %7958
      %7962 = vset.pattern.permute.xlu0 1
      %7963 = vperm.xlu0 %7962, %v6733
      %v7964 = vpop.permute.xlu0 %7963
      %7967 = vset.pattern.permute.xlu0 1
      %7968 = vperm.xlu0 %7967, %v6734
      %v7969 = vpop.permute.xlu0 %7968
      %7972 = vset.pattern.permute.xlu0 1
      %7973 = vperm.xlu0 %7972, %v6735
      %v7974 = vpop.permute.xlu0 %7973
      %7977 = vset.pattern.permute.xlu0 1
      %7978 = vperm.xlu0 %7977, %v6736
      %v7979 = vpop.permute.xlu0 %7978
      %7982 = vset.pattern.permute.xlu0 1
      %7983 = vperm.xlu0 %7982, %v6737
      %v7984 = vpop.permute.xlu0 %7983
      %7987 = vset.pattern.permute.xlu0 1
      %7988 = vperm.xlu0 %7987, %v6738
      %v7989 = vpop.permute.xlu0 %7988
      %7992 = vset.pattern.permute.xlu0 1
      %7993 = vperm.xlu0 %7992, %v6739
      %v7994 = vpop.permute.xlu0 %7993
      %7997 = vset.pattern.permute.xlu0 1
      %7998 = vperm.xlu0 %7997, %v6740
      %v7999 = vpop.permute.xlu0 %7998
      %8002 = vset.pattern.permute.xlu0 1
      %8003 = vperm.xlu0 %8002, %v6741
      %v8004 = vpop.permute.xlu0 %8003
      %8007 = vset.pattern.permute.xlu0 1
      %8008 = vperm.xlu0 %8007, %v6742
      %v8009 = vpop.permute.xlu0 %8008
      %8012 = vset.pattern.permute.xlu0 1
      %8013 = vperm.xlu0 %8012, %v6743
      %v8014 = vpop.permute.xlu0 %8013
      %8017 = vset.pattern.permute.xlu0 1
      %8018 = vperm.xlu0 %8017, %v6744
      %v8019 = vpop.permute.xlu0 %8018
      %8022 = vset.pattern.permute.xlu0 1
      %8023 = vperm.xlu0 %8022, %v6745
      %v8024 = vpop.permute.xlu0 %8023
      %v8026 = vadd.f32 %v7258, %v7709
      %v8027 = vadd.f32 %v7259, %v7709
      %v8028 = vadd.f32 %v7260, %v7709
      %v8029 = vadd.f32 %v7261, %v7709
      %v8030 = vadd.f32 %v7262, %v7709
      %v8031 = vadd.f32 %v7263, %v7709
      %v8032 = vadd.f32 %v7264, %v7709
      %v8033 = vadd.f32 %v7265, %v7714
      %v8034 = vadd.f32 %v7266, %v7714
      %v8035 = vadd.f32 %v7267, %v7714
      %v8036 = vadd.f32 %v7268, %v7714
      %v8037 = vadd.f32 %v7269, %v7714
      %v8038 = vadd.f32 %v7270, %v7714
      %v8039 = vadd.f32 %v7271, %v7714
      %v8040 = vadd.f32 %v7272, %v7719
      %v8041 = vadd.f32 %v7273, %v7719
      %v8042 = vadd.f32 %v7274, %v7719
      %v8043 = vadd.f32 %v7275, %v7719
      %v8044 = vadd.f32 %v7276, %v7719
      %v8045 = vadd.f32 %v7277, %v7719
      %v8046 = vadd.f32 %v7278, %v7719
      %v8047 = vadd.f32 %v7279, %v7724
      %v8048 = vadd.f32 %v7280, %v7724
      %v8049 = vadd.f32 %v7281, %v7724
      %v8050 = vadd.f32 %v7282, %v7724
      %v8051 = vadd.f32 %v7283, %v7724
      %v8052 = vadd.f32 %v7284, %v7724
      %v8053 = vadd.f32 %v7285, %v7724
      %v8054 = vadd.f32 %v7286, %v7729
      %v8055 = vadd.f32 %v7287, %v7729
      %v8056 = vadd.f32 %v7288, %v7729
      %v8057 = vadd.f32 %v7289, %v7729
      %v8058 = vadd.f32 %v7290, %v7729
      %v8059 = vadd.f32 %v7291, %v7729
      %v8060 = vadd.f32 %v7292, %v7729
      %v8061 = vadd.f32 %v7293, %v7734
      %v8062 = vadd.f32 %v7294, %v7734
      %v8063 = vadd.f32 %v7295, %v7734
      %v8064 = vadd.f32 %v7296, %v7734
      %v8065 = vadd.f32 %v7297, %v7734
      %v8066 = vadd.f32 %v7298, %v7734
      %v8067 = vadd.f32 %v7299, %v7734
      %v8068 = vadd.f32 %v7300, %v7739
      %v8069 = vadd.f32 %v7301, %v7739
      %v8070 = vadd.f32 %v7302, %v7739
      %v8071 = vadd.f32 %v7303, %v7739
      %v8072 = vadd.f32 %v7304, %v7739
      %v8073 = vadd.f32 %v7305, %v7739
      %v8074 = vadd.f32 %v7306, %v7739
      %v8075 = vadd.f32 %v7307, %v7744
      %v8076 = vadd.f32 %v7308, %v7744
      %v8077 = vadd.f32 %v7309, %v7744
      %v8078 = vadd.f32 %v7310, %v7744
      %v8079 = vadd.f32 %v7311, %v7744
      %v8080 = vadd.f32 %v7312, %v7744
      %v8081 = vadd.f32 %v7313, %v7744
      %v8082 = vadd.f32 %v7314, %v7749
      %v8083 = vadd.f32 %v7315, %v7749
      %v8084 = vadd.f32 %v7316, %v7749
      %v8085 = vadd.f32 %v7317, %v7749
      %v8086 = vadd.f32 %v7318, %v7749
      %v8087 = vadd.f32 %v7319, %v7749
      %v8088 = vadd.f32 %v7320, %v7749
      %v8089 = vadd.f32 %v7321, %v7754
      %v8090 = vadd.f32 %v7322, %v7754
      %v8091 = vadd.f32 %v7323, %v7754
      %v8092 = vadd.f32 %v7324, %v7754
      %v8093 = vadd.f32 %v7325, %v7754
      %v8094 = vadd.f32 %v7326, %v7754
      %v8095 = vadd.f32 %v7327, %v7754
      %v8096 = vadd.f32 %v7328, %v7759
      %v8097 = vadd.f32 %v7329, %v7759
      %v8098 = vadd.f32 %v7330, %v7759
      %v8099 = vadd.f32 %v7331, %v7759
      %v8100 = vadd.f32 %v7332, %v7759
      %v8101 = vadd.f32 %v7333, %v7759
      %v8102 = vadd.f32 %v7334, %v7759
      %v8103 = vadd.f32 %v7335, %v7764
      %v8104 = vadd.f32 %v7336, %v7764
      %v8105 = vadd.f32 %v7337, %v7764
      %v8106 = vadd.f32 %v7338, %v7764
      %v8107 = vadd.f32 %v7339, %v7764
      %v8108 = vadd.f32 %v7340, %v7764
      %v8109 = vadd.f32 %v7341, %v7764
      %v8110 = vadd.f32 %v7342, %v7769
      %v8111 = vadd.f32 %v7343, %v7769
      %v8112 = vadd.f32 %v7344, %v7769
      %v8113 = vadd.f32 %v7345, %v7769
      %v8114 = vadd.f32 %v7346, %v7769
      %v8115 = vadd.f32 %v7347, %v7769
      %v8116 = vadd.f32 %v7348, %v7769
      %v8117 = vadd.f32 %v7349, %v7774
      %v8118 = vadd.f32 %v7350, %v7774
      %v8119 = vadd.f32 %v7351, %v7774
      %v8120 = vadd.f32 %v7352, %v7774
      %v8121 = vadd.f32 %v7353, %v7774
      %v8122 = vadd.f32 %v7354, %v7774
      %v8123 = vadd.f32 %v7355, %v7774
      %v8124 = vadd.f32 %v7356, %v7779
      %v8125 = vadd.f32 %v7357, %v7779
      %v8126 = vadd.f32 %v7358, %v7779
      %v8127 = vadd.f32 %v7359, %v7779
      %v8128 = vadd.f32 %v7360, %v7779
      %v8129 = vadd.f32 %v7361, %v7779
      %v8130 = vadd.f32 %v7362, %v7779
      %v8131 = vadd.f32 %v7363, %v7784
      %v8132 = vadd.f32 %v7364, %v7784
      %v8133 = vadd.f32 %v7365, %v7784
      %v8134 = vadd.f32 %v7366, %v7784
      %v8135 = vadd.f32 %v7367, %v7784
      %v8136 = vadd.f32 %v7368, %v7784
      %v8137 = vadd.f32 %v7369, %v7784
      %v8138 = vadd.f32 %v7370, %v7789
      %v8139 = vadd.f32 %v7371, %v7789
      %v8140 = vadd.f32 %v7372, %v7789
      %v8141 = vadd.f32 %v7373, %v7789
      %v8142 = vadd.f32 %v7374, %v7789
      %v8143 = vadd.f32 %v7375, %v7789
      %v8144 = vadd.f32 %v7376, %v7789
      %v8145 = vadd.f32 %v7377, %v7794
      %v8146 = vadd.f32 %v7378, %v7794
      %v8147 = vadd.f32 %v7379, %v7794
      %v8148 = vadd.f32 %v7380, %v7794
      %v8149 = vadd.f32 %v7381, %v7794
      %v8150 = vadd.f32 %v7382, %v7794
      %v8151 = vadd.f32 %v7383, %v7794
      %v8152 = vadd.f32 %v7384, %v7799
      %v8153 = vadd.f32 %v7385, %v7799
      %v8154 = vadd.f32 %v7386, %v7799
      %v8155 = vadd.f32 %v7387, %v7799
      %v8156 = vadd.f32 %v7388, %v7799
      %v8157 = vadd.f32 %v7389, %v7799
      %v8158 = vadd.f32 %v7390, %v7799
      %v8159 = vadd.f32 %v7391, %v7804
      %v8160 = vadd.f32 %v7392, %v7804
      %v8161 = vadd.f32 %v7393, %v7804
      %v8162 = vadd.f32 %v7394, %v7804
      %v8163 = vadd.f32 %v7395, %v7804
      %v8164 = vadd.f32 %v7396, %v7804
      %v8165 = vadd.f32 %v7397, %v7804
      %v8166 = vadd.f32 %v7398, %v7809
      %v8167 = vadd.f32 %v7399, %v7809
      %v8168 = vadd.f32 %v7400, %v7809
      %v8169 = vadd.f32 %v7401, %v7809
      %v8170 = vadd.f32 %v7402, %v7809
      %v8171 = vadd.f32 %v7403, %v7809
      %v8172 = vadd.f32 %v7404, %v7809
      %v8173 = vadd.f32 %v7405, %v7814
      %v8174 = vadd.f32 %v7406, %v7814
      %v8175 = vadd.f32 %v7407, %v7814
      %v8176 = vadd.f32 %v7408, %v7814
      %v8177 = vadd.f32 %v7409, %v7814
      %v8178 = vadd.f32 %v7410, %v7814
      %v8179 = vadd.f32 %v7411, %v7814
      %v8180 = vadd.f32 %v7412, %v7819
      %v8181 = vadd.f32 %v7413, %v7819
      %v8182 = vadd.f32 %v7414, %v7819
      %v8183 = vadd.f32 %v7415, %v7819
      %v8184 = vadd.f32 %v7416, %v7819
      %v8185 = vadd.f32 %v7417, %v7819
      %v8186 = vadd.f32 %v7418, %v7819
      %v8187 = vadd.f32 %v7419, %v7824
      %v8188 = vadd.f32 %v7420, %v7824
      %v8189 = vadd.f32 %v7421, %v7824
      %v8190 = vadd.f32 %v7422, %v7824
      %v8191 = vadd.f32 %v7423, %v7824
      %v8192 = vadd.f32 %v7424, %v7824
      %v8193 = vadd.f32 %v7425, %v7824
      %v8194 = vadd.f32 %v7426, %v7829
      %v8195 = vadd.f32 %v7427, %v7829
      %v8196 = vadd.f32 %v7428, %v7829
      %v8197 = vadd.f32 %v7429, %v7829
      %v8198 = vadd.f32 %v7430, %v7829
      %v8199 = vadd.f32 %v7431, %v7829
      %v8200 = vadd.f32 %v7432, %v7829
      %v8201 = vadd.f32 %v7433, %v7834
      %v8202 = vadd.f32 %v7434, %v7834
      %v8203 = vadd.f32 %v7435, %v7834
      %v8204 = vadd.f32 %v7436, %v7834
      %v8205 = vadd.f32 %v7437, %v7834
      %v8206 = vadd.f32 %v7438, %v7834
      %v8207 = vadd.f32 %v7439, %v7834
      %v8208 = vadd.f32 %v7440, %v7839
      %v8209 = vadd.f32 %v7441, %v7839
      %v8210 = vadd.f32 %v7442, %v7839
      %v8211 = vadd.f32 %v7443, %v7839
      %v8212 = vadd.f32 %v7444, %v7839
      %v8213 = vadd.f32 %v7445, %v7839
      %v8214 = vadd.f32 %v7446, %v7839
      %v8215 = vadd.f32 %v7447, %v7844
      %v8216 = vadd.f32 %v7448, %v7844
      %v8217 = vadd.f32 %v7449, %v7844
      %v8218 = vadd.f32 %v7450, %v7844
      %v8219 = vadd.f32 %v7451, %v7844
      %v8220 = vadd.f32 %v7452, %v7844
      %v8221 = vadd.f32 %v7453, %v7844
      %v8222 = vadd.f32 %v7454, %v7849
      %v8223 = vadd.f32 %v7455, %v7849
      %v8224 = vadd.f32 %v7456, %v7849
      %v8225 = vadd.f32 %v7457, %v7849
      %v8226 = vadd.f32 %v7458, %v7849
      %v8227 = vadd.f32 %v7459, %v7849
      %v8228 = vadd.f32 %v7460, %v7849
      %v8229 = vadd.f32 %v7461, %v7854
      %v8230 = vadd.f32 %v7462, %v7854
      %v8231 = vadd.f32 %v7463, %v7854
      %v8232 = vadd.f32 %v7464, %v7854
      %v8233 = vadd.f32 %v7465, %v7854
      %v8234 = vadd.f32 %v7466, %v7854
      %v8235 = vadd.f32 %v7467, %v7854
      %v8236 = vadd.f32 %v7468, %v7859
      %v8237 = vadd.f32 %v7469, %v7859
      %v8238 = vadd.f32 %v7470, %v7859
      %v8239 = vadd.f32 %v7471, %v7859
      %v8240 = vadd.f32 %v7472, %v7859
      %v8241 = vadd.f32 %v7473, %v7859
      %v8242 = vadd.f32 %v7474, %v7859
      %v8243 = vadd.f32 %v7475, %v7864
      %v8244 = vadd.f32 %v7476, %v7864
      %v8245 = vadd.f32 %v7477, %v7864
      %v8246 = vadd.f32 %v7478, %v7864
      %v8247 = vadd.f32 %v7479, %v7864
      %v8248 = vadd.f32 %v7480, %v7864
      %v8249 = vadd.f32 %v7481, %v7864
      %v8250 = vadd.f32 %v7482, %v7869
      %v8251 = vadd.f32 %v7483, %v7869
      %v8252 = vadd.f32 %v7484, %v7869
      %v8253 = vadd.f32 %v7485, %v7869
      %v8254 = vadd.f32 %v7486, %v7869
      %v8255 = vadd.f32 %v7487, %v7869
      %v8256 = vadd.f32 %v7488, %v7869
      %v8257 = vadd.f32 %v7489, %v7874
      %v8258 = vadd.f32 %v7490, %v7874
      %v8259 = vadd.f32 %v7491, %v7874
      %v8260 = vadd.f32 %v7492, %v7874
      %v8261 = vadd.f32 %v7493, %v7874
      %v8262 = vadd.f32 %v7494, %v7874
      %v8263 = vadd.f32 %v7495, %v7874
      %v8264 = vadd.f32 %v7496, %v7879
      %v8265 = vadd.f32 %v7497, %v7879
      %v8266 = vadd.f32 %v7498, %v7879
      %v8267 = vadd.f32 %v7499, %v7879
      %v8268 = vadd.f32 %v7500, %v7879
      %v8269 = vadd.f32 %v7501, %v7879
      %v8270 = vadd.f32 %v7502, %v7879
      %v8271 = vadd.f32 %v7503, %v7884
      %v8272 = vadd.f32 %v7504, %v7884
      %v8273 = vadd.f32 %v7505, %v7884
      %v8274 = vadd.f32 %v7506, %v7884
      %v8275 = vadd.f32 %v7507, %v7884
      %v8276 = vadd.f32 %v7508, %v7884
      %v8277 = vadd.f32 %v7509, %v7884
      %v8278 = vadd.f32 %v7510, %v7889
      %v8279 = vadd.f32 %v7511, %v7889
      %v8280 = vadd.f32 %v7512, %v7889
      %v8281 = vadd.f32 %v7513, %v7889
      %v8282 = vadd.f32 %v7514, %v7889
      %v8283 = vadd.f32 %v7515, %v7889
      %v8284 = vadd.f32 %v7516, %v7889
      %v8285 = vadd.f32 %v7517, %v7894
      %v8286 = vadd.f32 %v7518, %v7894
      %v8287 = vadd.f32 %v7519, %v7894
      %v8288 = vadd.f32 %v7520, %v7894
      %v8289 = vadd.f32 %v7521, %v7894
      %v8290 = vadd.f32 %v7522, %v7894
      %v8291 = vadd.f32 %v7523, %v7894
      %v8292 = vadd.f32 %v7524, %v7899
      %v8293 = vadd.f32 %v7525, %v7899
      %v8294 = vadd.f32 %v7526, %v7899
      %v8295 = vadd.f32 %v7527, %v7899
      %v8296 = vadd.f32 %v7528, %v7899
      %v8297 = vadd.f32 %v7529, %v7899
      %v8298 = vadd.f32 %v7530, %v7899
      %v8299 = vadd.f32 %v7531, %v7904
      %v8300 = vadd.f32 %v7532, %v7904
      %v8301 = vadd.f32 %v7533, %v7904
      %v8302 = vadd.f32 %v7534, %v7904
      %v8303 = vadd.f32 %v7535, %v7904
      %v8304 = vadd.f32 %v7536, %v7904
      %v8305 = vadd.f32 %v7537, %v7904
      %v8306 = vadd.f32 %v7538, %v7909
      %v8307 = vadd.f32 %v7539, %v7909
      %v8308 = vadd.f32 %v7540, %v7909
      %v8309 = vadd.f32 %v7541, %v7909
      %v8310 = vadd.f32 %v7542, %v7909
      %v8311 = vadd.f32 %v7543, %v7909
      %v8312 = vadd.f32 %v7544, %v7909
      %v8313 = vadd.f32 %v7545, %v7914
      %v8314 = vadd.f32 %v7546, %v7914
      %v8315 = vadd.f32 %v7547, %v7914
      %v8316 = vadd.f32 %v7548, %v7914
      %v8317 = vadd.f32 %v7549, %v7914
      %v8318 = vadd.f32 %v7550, %v7914
      %v8319 = vadd.f32 %v7551, %v7914
      %v8320 = vadd.f32 %v7552, %v7919
      %v8321 = vadd.f32 %v7553, %v7919
      %v8322 = vadd.f32 %v7554, %v7919
      %v8323 = vadd.f32 %v7555, %v7919
      %v8324 = vadd.f32 %v7556, %v7919
      %v8325 = vadd.f32 %v7557, %v7919
      %v8326 = vadd.f32 %v7558, %v7919
      %v8327 = vadd.f32 %v7559, %v7924
      %v8328 = vadd.f32 %v7560, %v7924
      %v8329 = vadd.f32 %v7561, %v7924
      %v8330 = vadd.f32 %v7562, %v7924
      %v8331 = vadd.f32 %v7563, %v7924
      %v8332 = vadd.f32 %v7564, %v7924
      %v8333 = vadd.f32 %v7565, %v7924
      %v8334 = vadd.f32 %v7566, %v7929
      %v8335 = vadd.f32 %v7567, %v7929
      %v8336 = vadd.f32 %v7568, %v7929
      %v8337 = vadd.f32 %v7569, %v7929
      %v8338 = vadd.f32 %v7570, %v7929
      %v8339 = vadd.f32 %v7571, %v7929
      %v8340 = vadd.f32 %v7572, %v7929
      %v8341 = vadd.f32 %v7573, %v7934
      %v8342 = vadd.f32 %v7574, %v7934
      %v8343 = vadd.f32 %v7575, %v7934
      %v8344 = vadd.f32 %v7576, %v7934
      %v8345 = vadd.f32 %v7577, %v7934
      %v8346 = vadd.f32 %v7578, %v7934
      %v8347 = vadd.f32 %v7579, %v7934
      %v8348 = vadd.f32 %v7580, %v7939
      %v8349 = vadd.f32 %v7581, %v7939
      %v8350 = vadd.f32 %v7582, %v7939
      %v8351 = vadd.f32 %v7583, %v7939
      %v8352 = vadd.f32 %v7584, %v7939
      %v8353 = vadd.f32 %v7585, %v7939
      %v8354 = vadd.f32 %v7586, %v7939
      %v8355 = vadd.f32 %v7587, %v7944
      %v8356 = vadd.f32 %v7588, %v7944
      %v8357 = vadd.f32 %v7589, %v7944
      %v8358 = vadd.f32 %v7590, %v7944
      %v8359 = vadd.f32 %v7591, %v7944
      %v8360 = vadd.f32 %v7592, %v7944
      %v8361 = vadd.f32 %v7593, %v7944
      %v8362 = vadd.f32 %v7594, %v7949
      %v8363 = vadd.f32 %v7595, %v7949
      %v8364 = vadd.f32 %v7596, %v7949
      %v8365 = vadd.f32 %v7597, %v7949
      %v8366 = vadd.f32 %v7598, %v7949
      %v8367 = vadd.f32 %v7599, %v7949
      %v8368 = vadd.f32 %v7600, %v7949
      %v8369 = vadd.f32 %v7601, %v7954
      %v8370 = vadd.f32 %v7602, %v7954
      %v8371 = vadd.f32 %v7603, %v7954
      %v8372 = vadd.f32 %v7604, %v7954
      %v8373 = vadd.f32 %v7605, %v7954
      %v8374 = vadd.f32 %v7606, %v7954
      %v8375 = vadd.f32 %v7607, %v7954
      %v8376 = vadd.f32 %v7608, %v7959
      %v8377 = vadd.f32 %v7609, %v7959
      %v8378 = vadd.f32 %v7610, %v7959
      %v8379 = vadd.f32 %v7611, %v7959
      %v8380 = vadd.f32 %v7612, %v7959
      %v8381 = vadd.f32 %v7613, %v7959
      %v8382 = vadd.f32 %v7614, %v7959
      %v8383 = vadd.f32 %v7615, %v7964
      %v8384 = vadd.f32 %v7616, %v7964
      %v8385 = vadd.f32 %v7617, %v7964
      %v8386 = vadd.f32 %v7618, %v7964
      %v8387 = vadd.f32 %v7619, %v7964
      %v8388 = vadd.f32 %v7620, %v7964
      %v8389 = vadd.f32 %v7621, %v7964
      %v8390 = vadd.f32 %v7622, %v7969
      %v8391 = vadd.f32 %v7623, %v7969
      %v8392 = vadd.f32 %v7624, %v7969
      %v8393 = vadd.f32 %v7625, %v7969
      %v8394 = vadd.f32 %v7626, %v7969
      %v8395 = vadd.f32 %v7627, %v7969
      %v8396 = vadd.f32 %v7628, %v7969
      %v8397 = vadd.f32 %v7629, %v7974
      %v8398 = vadd.f32 %v7630, %v7974
      %v8399 = vadd.f32 %v7631, %v7974
      %v8400 = vadd.f32 %v7632, %v7974
      %v8401 = vadd.f32 %v7633, %v7974
      %v8402 = vadd.f32 %v7634, %v7974
      %v8403 = vadd.f32 %v7635, %v7974
      %v8404 = vadd.f32 %v7636, %v7979
      %v8405 = vadd.f32 %v7637, %v7979
      %v8406 = vadd.f32 %v7638, %v7979
      %v8407 = vadd.f32 %v7639, %v7979
      %v8408 = vadd.f32 %v7640, %v7979
      %v8409 = vadd.f32 %v7641, %v7979
      %v8410 = vadd.f32 %v7642, %v7979
      %v8411 = vadd.f32 %v7643, %v7984
      %v8412 = vadd.f32 %v7644, %v7984
      %v8413 = vadd.f32 %v7645, %v7984
      %v8414 = vadd.f32 %v7646, %v7984
      %v8415 = vadd.f32 %v7647, %v7984
      %v8416 = vadd.f32 %v7648, %v7984
      %v8417 = vadd.f32 %v7649, %v7984
      %v8418 = vadd.f32 %v7650, %v7989
      %v8419 = vadd.f32 %v7651, %v7989
      %v8420 = vadd.f32 %v7652, %v7989
      %v8421 = vadd.f32 %v7653, %v7989
      %v8422 = vadd.f32 %v7654, %v7989
      %v8423 = vadd.f32 %v7655, %v7989
      %v8424 = vadd.f32 %v7656, %v7989
      %v8425 = vadd.f32 %v7657, %v7994
      %v8426 = vadd.f32 %v7658, %v7994
      %v8427 = vadd.f32 %v7659, %v7994
      %v8428 = vadd.f32 %v7660, %v7994
      %v8429 = vadd.f32 %v7661, %v7994
      %v8430 = vadd.f32 %v7662, %v7994
      %v8431 = vadd.f32 %v7663, %v7994
      %v8432 = vadd.f32 %v7664, %v7999
      %v8433 = vadd.f32 %v7665, %v7999
      %v8434 = vadd.f32 %v7666, %v7999
      %v8435 = vadd.f32 %v7667, %v7999
      %v8436 = vadd.f32 %v7668, %v7999
      %v8437 = vadd.f32 %v7669, %v7999
      %v8438 = vadd.f32 %v7670, %v7999
      %v8439 = vadd.f32 %v7671, %v8004
      %v8440 = vadd.f32 %v7672, %v8004
      %v8441 = vadd.f32 %v7673, %v8004
      %v8442 = vadd.f32 %v7674, %v8004
      %v8443 = vadd.f32 %v7675, %v8004
      %v8444 = vadd.f32 %v7676, %v8004
      %v8445 = vadd.f32 %v7677, %v8004
      %v8446 = vadd.f32 %v7678, %v8009
      %v8447 = vadd.f32 %v7679, %v8009
      %v8448 = vadd.f32 %v7680, %v8009
      %v8449 = vadd.f32 %v7681, %v8009
      %v8450 = vadd.f32 %v7682, %v8009
      %v8451 = vadd.f32 %v7683, %v8009
      %v8452 = vadd.f32 %v7684, %v8009
      %v8453 = vadd.f32 %v7685, %v8014
      %v8454 = vadd.f32 %v7686, %v8014
      %v8455 = vadd.f32 %v7687, %v8014
      %v8456 = vadd.f32 %v7688, %v8014
      %v8457 = vadd.f32 %v7689, %v8014
      %v8458 = vadd.f32 %v7690, %v8014
      %v8459 = vadd.f32 %v7691, %v8014
      %v8460 = vadd.f32 %v7692, %v8019
      %v8461 = vadd.f32 %v7693, %v8019
      %v8462 = vadd.f32 %v7694, %v8019
      %v8463 = vadd.f32 %v7695, %v8019
      %v8464 = vadd.f32 %v7696, %v8019
      %v8465 = vadd.f32 %v7697, %v8019
      %v8466 = vadd.f32 %v7698, %v8019
      %v8467 = vadd.f32 %v7699, %v8024
      %v8468 = vadd.f32 %v7700, %v8024
      %v8469 = vadd.f32 %v7701, %v8024
      %v8470 = vadd.f32 %v7702, %v8024
      %v8471 = vadd.f32 %v7703, %v8024
      %v8472 = vadd.f32 %v7704, %v8024
      %v8473 = vadd.f32 %v7705, %v8024
      %8474 = vst [vmem:[%s226] sm:$0xff] %v8026
      %8475 = vst [vmem:[%s226 + $0x8] sm:$0xff] %v8027
      %8476 = vst [vmem:[%s226 + $0x10] sm:$0xff] %v8028
      %8477 = vst [vmem:[%s226 + $0x18] sm:$0xff] %v8029
      %8478 = vst [vmem:[%s226 + $0x20] sm:$0xff] %v8030
      %8479 = vst [vmem:[%s226 + $0x28] sm:$0xff] %v8031
      %8480 = vst.msk [vmem:[%s226 + $0x30] sm:$0xff] %vm458, %v8032
      %8481 = vst [vmem:[%s226 + $0x38] sm:$0xff] %v8033
      %8482 = vst [vmem:[%s226 + $0x40] sm:$0xff] %v8034
      %8483 = vst [vmem:[%s226 + $0x48] sm:$0xff] %v8035
      %8484 = vst [vmem:[%s226 + $0x50] sm:$0xff] %v8036
      %8485 = vst [vmem:[%s226 + $0x58] sm:$0xff] %v8037
      %8486 = vst [vmem:[%s226 + $0x60] sm:$0xff] %v8038
      %8487 = vst.msk [vmem:[%s226 + $0x68] sm:$0xff] %vm458, %v8039
      %8488 = vst [vmem:[%s226 + $0x70] sm:$0xff] %v8040
      %8489 = vst [vmem:[%s226 + $0x78] sm:$0xff] %v8041
      %8490 = vst [vmem:[%s226 + $0x80] sm:$0xff] %v8042
      %8491 = vst [vmem:[%s226 + $0x88] sm:$0xff] %v8043
      %8492 = vst [vmem:[%s226 + $0x90] sm:$0xff] %v8044
      %8493 = vst [vmem:[%s226 + $0x98] sm:$0xff] %v8045
      %8494 = vst.msk [vmem:[%s226 + $0xa0] sm:$0xff] %vm458, %v8046
      %8495 = vst [vmem:[%s226 + $0xa8] sm:$0xff] %v8047
      %8496 = vst [vmem:[%s226 + $0xb0] sm:$0xff] %v8048
      %8497 = vst [vmem:[%s226 + $0xb8] sm:$0xff] %v8049
      %8498 = vst [vmem:[%s226 + $0xc0] sm:$0xff] %v8050
      %8499 = vst [vmem:[%s226 + $0xc8] sm:$0xff] %v8051
      %8500 = vst [vmem:[%s226 + $0xd0] sm:$0xff] %v8052
      %8501 = vst.msk [vmem:[%s226 + $0xd8] sm:$0xff] %vm458, %v8053
      %8502 = vst [vmem:[%s226 + $0xe0] sm:$0xff] %v8054
      %8503 = vst [vmem:[%s226 + $0xe8] sm:$0xff] %v8055
      %8504 = vst [vmem:[%s226 + $0xf0] sm:$0xff] %v8056
      %8505 = vst [vmem:[%s226 + $0xf8] sm:$0xff] %v8057
      %8506 = vst [vmem:[%s226 + $0x100] sm:$0xff] %v8058
      %8507 = vst [vmem:[%s226 + $0x108] sm:$0xff] %v8059
      %8508 = vst.msk [vmem:[%s226 + $0x110] sm:$0xff] %vm458, %v8060
      %8509 = vst [vmem:[%s226 + $0x118] sm:$0xff] %v8061
      %8510 = vst [vmem:[%s226 + $0x120] sm:$0xff] %v8062
      %8511 = vst [vmem:[%s226 + $0x128] sm:$0xff] %v8063
      %8512 = vst [vmem:[%s226 + $0x130] sm:$0xff] %v8064
      %8513 = vst [vmem:[%s226 + $0x138] sm:$0xff] %v8065
      %8514 = vst [vmem:[%s226 + $0x140] sm:$0xff] %v8066
      %8515 = vst.msk [vmem:[%s226 + $0x148] sm:$0xff] %vm458, %v8067
      %8516 = vst [vmem:[%s226 + $0x150] sm:$0xff] %v8068
      %8517 = vst [vmem:[%s226 + $0x158] sm:$0xff] %v8069
      %8518 = vst [vmem:[%s226 + $0x160] sm:$0xff] %v8070
      %8519 = vst [vmem:[%s226 + $0x168] sm:$0xff] %v8071
      %8520 = vst [vmem:[%s226 + $0x170] sm:$0xff] %v8072
      %8521 = vst [vmem:[%s226 + $0x178] sm:$0xff] %v8073
      %8522 = vst.msk [vmem:[%s226 + $0x180] sm:$0xff] %vm458, %v8074
      %8523 = vst [vmem:[%s226 + $0x188] sm:$0xff] %v8075
      %8524 = vst [vmem:[%s226 + $0x190] sm:$0xff] %v8076
      %8525 = vst [vmem:[%s226 + $0x198] sm:$0xff] %v8077
      %8526 = vst [vmem:[%s226 + $0x1a0] sm:$0xff] %v8078
      %8527 = vst [vmem:[%s226 + $0x1a8] sm:$0xff] %v8079
      %8528 = vst [vmem:[%s226 + $0x1b0] sm:$0xff] %v8080
      %8529 = vst.msk [vmem:[%s226 + $0x1b8] sm:$0xff] %vm458, %v8081
      %8530 = vst [vmem:[%s226 + $0x1c0] sm:$0xff] %v8082
      %8531 = vst [vmem:[%s226 + $0x1c8] sm:$0xff] %v8083
      %8532 = vst [vmem:[%s226 + $0x1d0] sm:$0xff] %v8084
      %8533 = vst [vmem:[%s226 + $0x1d8] sm:$0xff] %v8085
      %8534 = vst [vmem:[%s226 + $0x1e0] sm:$0xff] %v8086
      %8535 = vst [vmem:[%s226 + $0x1e8] sm:$0xff] %v8087
      %8536 = vst.msk [vmem:[%s226 + $0x1f0] sm:$0xff] %vm458, %v8088
      %8537 = vst [vmem:[%s226 + $0x1f8] sm:$0xff] %v8089
      %8538 = vst [vmem:[%s226 + $0x200] sm:$0xff] %v8090
      %8539 = vst [vmem:[%s226 + $0x208] sm:$0xff] %v8091
      %8540 = vst [vmem:[%s226 + $0x210] sm:$0xff] %v8092
      %8541 = vst [vmem:[%s226 + $0x218] sm:$0xff] %v8093
      %8542 = vst [vmem:[%s226 + $0x220] sm:$0xff] %v8094
      %8543 = vst.msk [vmem:[%s226 + $0x228] sm:$0xff] %vm458, %v8095
      %8544 = vst [vmem:[%s226 + $0x230] sm:$0xff] %v8096
      %8545 = vst [vmem:[%s226 + $0x238] sm:$0xff] %v8097
      %8546 = vst [vmem:[%s226 + $0x240] sm:$0xff] %v8098
      %8547 = vst [vmem:[%s226 + $0x248] sm:$0xff] %v8099
      %8548 = vst [vmem:[%s226 + $0x250] sm:$0xff] %v8100
      %8549 = vst [vmem:[%s226 + $0x258] sm:$0xff] %v8101
      %8550 = vst.msk [vmem:[%s226 + $0x260] sm:$0xff] %vm458, %v8102
      %8551 = vst [vmem:[%s226 + $0x268] sm:$0xff] %v8103
      %8552 = vst [vmem:[%s226 + $0x270] sm:$0xff] %v8104
      %8553 = vst [vmem:[%s226 + $0x278] sm:$0xff] %v8105
      %8554 = vst [vmem:[%s226 + $0x280] sm:$0xff] %v8106
      %8555 = vst [vmem:[%s226 + $0x288] sm:$0xff] %v8107
      %8556 = vst [vmem:[%s226 + $0x290] sm:$0xff] %v8108
      %8557 = vst.msk [vmem:[%s226 + $0x298] sm:$0xff] %vm458, %v8109
      %8558 = vst [vmem:[%s226 + $0x2a0] sm:$0xff] %v8110
      %8559 = vst [vmem:[%s226 + $0x2a8] sm:$0xff] %v8111
      %8560 = vst [vmem:[%s226 + $0x2b0] sm:$0xff] %v8112
      %8561 = vst [vmem:[%s226 + $0x2b8] sm:$0xff] %v8113
      %8562 = vst [vmem:[%s226 + $0x2c0] sm:$0xff] %v8114
      %8563 = vst [vmem:[%s226 + $0x2c8] sm:$0xff] %v8115
      %8564 = vst.msk [vmem:[%s226 + $0x2d0] sm:$0xff] %vm458, %v8116
      %8565 = vst [vmem:[%s226 + $0x2d8] sm:$0xff] %v8117
      %8566 = vst [vmem:[%s226 + $0x2e0] sm:$0xff] %v8118
      %8567 = vst [vmem:[%s226 + $0x2e8] sm:$0xff] %v8119
      %8568 = vst [vmem:[%s226 + $0x2f0] sm:$0xff] %v8120
      %8569 = vst [vmem:[%s226 + $0x2f8] sm:$0xff] %v8121
      %8570 = vst [vmem:[%s226 + $0x300] sm:$0xff] %v8122
      %8571 = vst.msk [vmem:[%s226 + $0x308] sm:$0xff] %vm458, %v8123
      %8572 = vst [vmem:[%s226 + $0x310] sm:$0xff] %v8124
      %8573 = vst [vmem:[%s226 + $0x318] sm:$0xff] %v8125
      %8574 = vst [vmem:[%s226 + $0x320] sm:$0xff] %v8126
      %8575 = vst [vmem:[%s226 + $0x328] sm:$0xff] %v8127
      %8576 = vst [vmem:[%s226 + $0x330] sm:$0xff] %v8128
      %8577 = vst [vmem:[%s226 + $0x338] sm:$0xff] %v8129
      %8578 = vst.msk [vmem:[%s226 + $0x340] sm:$0xff] %vm458, %v8130
      %8579 = vst [vmem:[%s226 + $0x348] sm:$0xff] %v8131
      %8580 = vst [vmem:[%s226 + $0x350] sm:$0xff] %v8132
      %8581 = vst [vmem:[%s226 + $0x358] sm:$0xff] %v8133
      %8582 = vst [vmem:[%s226 + $0x360] sm:$0xff] %v8134
      %8583 = vst [vmem:[%s226 + $0x368] sm:$0xff] %v8135
      %8584 = vst [vmem:[%s226 + $0x370] sm:$0xff] %v8136
      %8585 = vst.msk [vmem:[%s226 + $0x378] sm:$0xff] %vm458, %v8137
      %8586 = vst [vmem:[%s226 + $0x380] sm:$0xff] %v8138
      %8587 = vst [vmem:[%s226 + $0x388] sm:$0xff] %v8139
      %8588 = vst [vmem:[%s226 + $0x390] sm:$0xff] %v8140
      %8589 = vst [vmem:[%s226 + $0x398] sm:$0xff] %v8141
      %8590 = vst [vmem:[%s226 + $0x3a0] sm:$0xff] %v8142
      %8591 = vst [vmem:[%s226 + $0x3a8] sm:$0xff] %v8143
      %8592 = vst.msk [vmem:[%s226 + $0x3b0] sm:$0xff] %vm458, %v8144
      %8593 = vst [vmem:[%s226 + $0x3b8] sm:$0xff] %v8145
      %8594 = vst [vmem:[%s226 + $0x3c0] sm:$0xff] %v8146
      %8595 = vst [vmem:[%s226 + $0x3c8] sm:$0xff] %v8147
      %8596 = vst [vmem:[%s226 + $0x3d0] sm:$0xff] %v8148
      %8597 = vst [vmem:[%s226 + $0x3d8] sm:$0xff] %v8149
      %8598 = vst [vmem:[%s226 + $0x3e0] sm:$0xff] %v8150
      %8599 = vst.msk [vmem:[%s226 + $0x3e8] sm:$0xff] %vm458, %v8151
      %8600 = vst [vmem:[%s226 + $0x3f0] sm:$0xff] %v8152
      %8601 = vst [vmem:[%s226 + $0x3f8] sm:$0xff] %v8153
      %8602 = vst [vmem:[%s226 + $0x400] sm:$0xff] %v8154
      %8603 = vst [vmem:[%s226 + $0x408] sm:$0xff] %v8155
      %8604 = vst [vmem:[%s226 + $0x410] sm:$0xff] %v8156
      %8605 = vst [vmem:[%s226 + $0x418] sm:$0xff] %v8157
      %8606 = vst.msk [vmem:[%s226 + $0x420] sm:$0xff] %vm458, %v8158
      %8607 = vst [vmem:[%s226 + $0x428] sm:$0xff] %v8159
      %8608 = vst [vmem:[%s226 + $0x430] sm:$0xff] %v8160
      %8609 = vst [vmem:[%s226 + $0x438] sm:$0xff] %v8161
      %8610 = vst [vmem:[%s226 + $0x440] sm:$0xff] %v8162
      %8611 = vst [vmem:[%s226 + $0x448] sm:$0xff] %v8163
      %8612 = vst [vmem:[%s226 + $0x450] sm:$0xff] %v8164
      %8613 = vst.msk [vmem:[%s226 + $0x458] sm:$0xff] %vm458, %v8165
      %8614 = vst [vmem:[%s226 + $0x460] sm:$0xff] %v8166
      %8615 = vst [vmem:[%s226 + $0x468] sm:$0xff] %v8167
      %8616 = vst [vmem:[%s226 + $0x470] sm:$0xff] %v8168
      %8617 = vst [vmem:[%s226 + $0x478] sm:$0xff] %v8169
      %8618 = vst [vmem:[%s226 + $0x480] sm:$0xff] %v8170
      %8619 = vst [vmem:[%s226 + $0x488] sm:$0xff] %v8171
      %8620 = vst.msk [vmem:[%s226 + $0x490] sm:$0xff] %vm458, %v8172
      %8621 = vst [vmem:[%s226 + $0x498] sm:$0xff] %v8173
      %8622 = vst [vmem:[%s226 + $0x4a0] sm:$0xff] %v8174
      %8623 = vst [vmem:[%s226 + $0x4a8] sm:$0xff] %v8175
      %8624 = vst [vmem:[%s226 + $0x4b0] sm:$0xff] %v8176
      %8625 = vst [vmem:[%s226 + $0x4b8] sm:$0xff] %v8177
      %8626 = vst [vmem:[%s226 + $0x4c0] sm:$0xff] %v8178
      %8627 = vst.msk [vmem:[%s226 + $0x4c8] sm:$0xff] %vm458, %v8179
      %8628 = vst [vmem:[%s226 + $0x4d0] sm:$0xff] %v8180
      %8629 = vst [vmem:[%s226 + $0x4d8] sm:$0xff] %v8181
      %8630 = vst [vmem:[%s226 + $0x4e0] sm:$0xff] %v8182
      %8631 = vst [vmem:[%s226 + $0x4e8] sm:$0xff] %v8183
      %8632 = vst [vmem:[%s226 + $0x4f0] sm:$0xff] %v8184
      %8633 = vst [vmem:[%s226 + $0x4f8] sm:$0xff] %v8185
      %8634 = vst.msk [vmem:[%s226 + $0x500] sm:$0xff] %vm458, %v8186
      %8635 = vst [vmem:[%s226 + $0x508] sm:$0xff] %v8187
      %8636 = vst [vmem:[%s226 + $0x510] sm:$0xff] %v8188
      %8637 = vst [vmem:[%s226 + $0x518] sm:$0xff] %v8189
      %8638 = vst [vmem:[%s226 + $0x520] sm:$0xff] %v8190
      %8639 = vst [vmem:[%s226 + $0x528] sm:$0xff] %v8191
      %8640 = vst [vmem:[%s226 + $0x530] sm:$0xff] %v8192
      %8641 = vst.msk [vmem:[%s226 + $0x538] sm:$0xff] %vm458, %v8193
      %8642 = vst [vmem:[%s226 + $0x540] sm:$0xff] %v8194
      %8643 = vst [vmem:[%s226 + $0x548] sm:$0xff] %v8195
      %8644 = vst [vmem:[%s226 + $0x550] sm:$0xff] %v8196
      %8645 = vst [vmem:[%s226 + $0x558] sm:$0xff] %v8197
      %8646 = vst [vmem:[%s226 + $0x560] sm:$0xff] %v8198
      %8647 = vst [vmem:[%s226 + $0x568] sm:$0xff] %v8199
      %8648 = vst.msk [vmem:[%s226 + $0x570] sm:$0xff] %vm458, %v8200
      %8649 = vst [vmem:[%s226 + $0x578] sm:$0xff] %v8201
      %8650 = vst [vmem:[%s226 + $0x580] sm:$0xff] %v8202
      %8651 = vst [vmem:[%s226 + $0x588] sm:$0xff] %v8203
      %8652 = vst [vmem:[%s226 + $0x590] sm:$0xff] %v8204
      %8653 = vst [vmem:[%s226 + $0x598] sm:$0xff] %v8205
      %8654 = vst [vmem:[%s226 + $0x5a0] sm:$0xff] %v8206
      %8655 = vst.msk [vmem:[%s226 + $0x5a8] sm:$0xff] %vm458, %v8207
      %8656 = vst [vmem:[%s226 + $0x5b0] sm:$0xff] %v8208
      %8657 = vst [vmem:[%s226 + $0x5b8] sm:$0xff] %v8209
      %8658 = vst [vmem:[%s226 + $0x5c0] sm:$0xff] %v8210
      %8659 = vst [vmem:[%s226 + $0x5c8] sm:$0xff] %v8211
      %8660 = vst [vmem:[%s226 + $0x5d0] sm:$0xff] %v8212
      %8661 = vst [vmem:[%s226 + $0x5d8] sm:$0xff] %v8213
      %8662 = vst.msk [vmem:[%s226 + $0x5e0] sm:$0xff] %vm458, %v8214
      %8663 = vst [vmem:[%s226 + $0x5e8] sm:$0xff] %v8215
      %8664 = vst [vmem:[%s226 + $0x5f0] sm:$0xff] %v8216
      %8665 = vst [vmem:[%s226 + $0x5f8] sm:$0xff] %v8217
      %8666 = vst [vmem:[%s226 + $0x600] sm:$0xff] %v8218
      %8667 = vst [vmem:[%s226 + $0x608] sm:$0xff] %v8219
      %8668 = vst [vmem:[%s226 + $0x610] sm:$0xff] %v8220
      %8669 = vst.msk [vmem:[%s226 + $0x618] sm:$0xff] %vm458, %v8221
      %8670 = vst [vmem:[%s226 + $0x620] sm:$0xff] %v8222
      %8671 = vst [vmem:[%s226 + $0x628] sm:$0xff] %v8223
      %8672 = vst [vmem:[%s226 + $0x630] sm:$0xff] %v8224
      %8673 = vst [vmem:[%s226 + $0x638] sm:$0xff] %v8225
      %8674 = vst [vmem:[%s226 + $0x640] sm:$0xff] %v8226
      %8675 = vst [vmem:[%s226 + $0x648] sm:$0xff] %v8227
      %8676 = vst.msk [vmem:[%s226 + $0x650] sm:$0xff] %vm458, %v8228
      %8677 = vst [vmem:[%s226 + $0x658] sm:$0xff] %v8229
      %8678 = vst [vmem:[%s226 + $0x660] sm:$0xff] %v8230
      %8679 = vst [vmem:[%s226 + $0x668] sm:$0xff] %v8231
      %8680 = vst [vmem:[%s226 + $0x670] sm:$0xff] %v8232
      %8681 = vst [vmem:[%s226 + $0x678] sm:$0xff] %v8233
      %8682 = vst [vmem:[%s226 + $0x680] sm:$0xff] %v8234
      %8683 = vst.msk [vmem:[%s226 + $0x688] sm:$0xff] %vm458, %v8235
      %8684 = vst [vmem:[%s226 + $0x690] sm:$0xff] %v8236
      %8685 = vst [vmem:[%s226 + $0x698] sm:$0xff] %v8237
      %8686 = vst [vmem:[%s226 + $0x6a0] sm:$0xff] %v8238
      %8687 = vst [vmem:[%s226 + $0x6a8] sm:$0xff] %v8239
      %8688 = vst [vmem:[%s226 + $0x6b0] sm:$0xff] %v8240
      %8689 = vst [vmem:[%s226 + $0x6b8] sm:$0xff] %v8241
      %8690 = vst.msk [vmem:[%s226 + $0x6c0] sm:$0xff] %vm458, %v8242
      %8691 = vst [vmem:[%s226 + $0x6c8] sm:$0xff] %v8243
      %8692 = vst [vmem:[%s226 + $0x6d0] sm:$0xff] %v8244
      %8693 = vst [vmem:[%s226 + $0x6d8] sm:$0xff] %v8245
      %8694 = vst [vmem:[%s226 + $0x6e0] sm:$0xff] %v8246
      %8695 = vst [vmem:[%s226 + $0x6e8] sm:$0xff] %v8247
      %8696 = vst [vmem:[%s226 + $0x6f0] sm:$0xff] %v8248
      %8697 = vst.msk [vmem:[%s226 + $0x6f8] sm:$0xff] %vm458, %v8249
      %8698 = vst [vmem:[%s226 + $0x700] sm:$0xff] %v8250
      %8699 = vst [vmem:[%s226 + $0x708] sm:$0xff] %v8251
      %8700 = vst [vmem:[%s226 + $0x710] sm:$0xff] %v8252
      %8701 = vst [vmem:[%s226 + $0x718] sm:$0xff] %v8253
      %8702 = vst [vmem:[%s226 + $0x720] sm:$0xff] %v8254
      %8703 = vst [vmem:[%s226 + $0x728] sm:$0xff] %v8255
      %8704 = vst.msk [vmem:[%s226 + $0x730] sm:$0xff] %vm458, %v8256
      %8705 = vst [vmem:[%s226 + $0x738] sm:$0xff] %v8257
      %8706 = vst [vmem:[%s226 + $0x740] sm:$0xff] %v8258
      %8707 = vst [vmem:[%s226 + $0x748] sm:$0xff] %v8259
      %8708 = vst [vmem:[%s226 + $0x750] sm:$0xff] %v8260
      %8709 = vst [vmem:[%s226 + $0x758] sm:$0xff] %v8261
      %8710 = vst [vmem:[%s226 + $0x760] sm:$0xff] %v8262
      %8711 = vst.msk [vmem:[%s226 + $0x768] sm:$0xff] %vm458, %v8263
      %8712 = vst [vmem:[%s226 + $0x770] sm:$0xff] %v8264
      %8713 = vst [vmem:[%s226 + $0x778] sm:$0xff] %v8265
      %8714 = vst [vmem:[%s226 + $0x780] sm:$0xff] %v8266
      %8715 = vst [vmem:[%s226 + $0x788] sm:$0xff] %v8267
      %8716 = vst [vmem:[%s226 + $0x790] sm:$0xff] %v8268
      %8717 = vst [vmem:[%s226 + $0x798] sm:$0xff] %v8269
      %8718 = vst.msk [vmem:[%s226 + $0x7a0] sm:$0xff] %vm458, %v8270
      %8719 = vst [vmem:[%s226 + $0x7a8] sm:$0xff] %v8271
      %8720 = vst [vmem:[%s226 + $0x7b0] sm:$0xff] %v8272
      %8721 = vst [vmem:[%s226 + $0x7b8] sm:$0xff] %v8273
      %8722 = vst [vmem:[%s226 + $0x7c0] sm:$0xff] %v8274
      %8723 = vst [vmem:[%s226 + $0x7c8] sm:$0xff] %v8275
      %8724 = vst [vmem:[%s226 + $0x7d0] sm:$0xff] %v8276
      %8725 = vst.msk [vmem:[%s226 + $0x7d8] sm:$0xff] %vm458, %v8277
      %8726 = vst [vmem:[%s226 + $0x7e0] sm:$0xff] %v8278
      %8727 = vst [vmem:[%s226 + $0x7e8] sm:$0xff] %v8279
      %8728 = vst [vmem:[%s226 + $0x7f0] sm:$0xff] %v8280
      %8729 = vst [vmem:[%s226 + $0x7f8] sm:$0xff] %v8281
      %8730 = vst [vmem:[%s226 + $0x800] sm:$0xff] %v8282
      %8731 = vst [vmem:[%s226 + $0x808] sm:$0xff] %v8283
      %8732 = vst.msk [vmem:[%s226 + $0x810] sm:$0xff] %vm458, %v8284
      %8733 = vst [vmem:[%s226 + $0x818] sm:$0xff] %v8285
      %8734 = vst [vmem:[%s226 + $0x820] sm:$0xff] %v8286
      %8735 = vst [vmem:[%s226 + $0x828] sm:$0xff] %v8287
      %8736 = vst [vmem:[%s226 + $0x830] sm:$0xff] %v8288
      %8737 = vst [vmem:[%s226 + $0x838] sm:$0xff] %v8289
      %8738 = vst [vmem:[%s226 + $0x840] sm:$0xff] %v8290
      %8739 = vst.msk [vmem:[%s226 + $0x848] sm:$0xff] %vm458, %v8291
      %8740 = vst [vmem:[%s226 + $0x850] sm:$0xff] %v8292
      %8741 = vst [vmem:[%s226 + $0x858] sm:$0xff] %v8293
      %8742 = vst [vmem:[%s226 + $0x860] sm:$0xff] %v8294
      %8743 = vst [vmem:[%s226 + $0x868] sm:$0xff] %v8295
      %8744 = vst [vmem:[%s226 + $0x870] sm:$0xff] %v8296
      %8745 = vst [vmem:[%s226 + $0x878] sm:$0xff] %v8297
      %8746 = vst.msk [vmem:[%s226 + $0x880] sm:$0xff] %vm458, %v8298
      %8747 = vst [vmem:[%s226 + $0x888] sm:$0xff] %v8299
      %8748 = vst [vmem:[%s226 + $0x890] sm:$0xff] %v8300
      %8749 = vst [vmem:[%s226 + $0x898] sm:$0xff] %v8301
      %8750 = vst [vmem:[%s226 + $0x8a0] sm:$0xff] %v8302
      %8751 = vst [vmem:[%s226 + $0x8a8] sm:$0xff] %v8303
      %8752 = vst [vmem:[%s226 + $0x8b0] sm:$0xff] %v8304
      %8753 = vst.msk [vmem:[%s226 + $0x8b8] sm:$0xff] %vm458, %v8305
      %8754 = vst [vmem:[%s226 + $0x8c0] sm:$0xff] %v8306
      %8755 = vst [vmem:[%s226 + $0x8c8] sm:$0xff] %v8307
      %8756 = vst [vmem:[%s226 + $0x8d0] sm:$0xff] %v8308
      %8757 = vst [vmem:[%s226 + $0x8d8] sm:$0xff] %v8309
      %8758 = vst [vmem:[%s226 + $0x8e0] sm:$0xff] %v8310
      %8759 = vst [vmem:[%s226 + $0x8e8] sm:$0xff] %v8311
      %8760 = vst.msk [vmem:[%s226 + $0x8f0] sm:$0xff] %vm458, %v8312
      %8761 = vst [vmem:[%s226 + $0x8f8] sm:$0xff] %v8313
      %8762 = vst [vmem:[%s226 + $0x900] sm:$0xff] %v8314
      %8763 = vst [vmem:[%s226 + $0x908] sm:$0xff] %v8315
      %8764 = vst [vmem:[%s226 + $0x910] sm:$0xff] %v8316
      %8765 = vst [vmem:[%s226 + $0x918] sm:$0xff] %v8317
      %8766 = vst [vmem:[%s226 + $0x920] sm:$0xff] %v8318
      %8767 = vst.msk [vmem:[%s226 + $0x928] sm:$0xff] %vm458, %v8319
      %8768 = vst [vmem:[%s226 + $0x930] sm:$0xff] %v8320
      %8769 = vst [vmem:[%s226 + $0x938] sm:$0xff] %v8321
      %8770 = vst [vmem:[%s226 + $0x940] sm:$0xff] %v8322
      %8771 = vst [vmem:[%s226 + $0x948] sm:$0xff] %v8323
      %8772 = vst [vmem:[%s226 + $0x950] sm:$0xff] %v8324
      %8773 = vst [vmem:[%s226 + $0x958] sm:$0xff] %v8325
      %8774 = vst.msk [vmem:[%s226 + $0x960] sm:$0xff] %vm458, %v8326
      %8775 = vst [vmem:[%s226 + $0x968] sm:$0xff] %v8327
      %8776 = vst [vmem:[%s226 + $0x970] sm:$0xff] %v8328
      %8777 = vst [vmem:[%s226 + $0x978] sm:$0xff] %v8329
      %8778 = vst [vmem:[%s226 + $0x980] sm:$0xff] %v8330
      %8779 = vst [vmem:[%s226 + $0x988] sm:$0xff] %v8331
      %8780 = vst [vmem:[%s226 + $0x990] sm:$0xff] %v8332
      %8781 = vst.msk [vmem:[%s226 + $0x998] sm:$0xff] %vm458, %v8333
      %8782 = vst [vmem:[%s226 + $0x9a0] sm:$0xff] %v8334
      %8783 = vst [vmem:[%s226 + $0x9a8] sm:$0xff] %v8335
      %8784 = vst [vmem:[%s226 + $0x9b0] sm:$0xff] %v8336
      %8785 = vst [vmem:[%s226 + $0x9b8] sm:$0xff] %v8337
      %8786 = vst [vmem:[%s226 + $0x9c0] sm:$0xff] %v8338
      %8787 = vst [vmem:[%s226 + $0x9c8] sm:$0xff] %v8339
      %8788 = vst.msk [vmem:[%s226 + $0x9d0] sm:$0xff] %vm458, %v8340
      %8789 = vst [vmem:[%s226 + $0x9d8] sm:$0xff] %v8341
      %8790 = vst [vmem:[%s226 + $0x9e0] sm:$0xff] %v8342
      %8791 = vst [vmem:[%s226 + $0x9e8] sm:$0xff] %v8343
      %8792 = vst [vmem:[%s226 + $0x9f0] sm:$0xff] %v8344
      %8793 = vst [vmem:[%s226 + $0x9f8] sm:$0xff] %v8345
      %8794 = vst [vmem:[%s226 + $0xa00] sm:$0xff] %v8346
      %8795 = vst.msk [vmem:[%s226 + $0xa08] sm:$0xff] %vm458, %v8347
      %8796 = vst [vmem:[%s226 + $0xa10] sm:$0xff] %v8348
      %8797 = vst [vmem:[%s226 + $0xa18] sm:$0xff] %v8349
      %8798 = vst [vmem:[%s226 + $0xa20] sm:$0xff] %v8350
      %8799 = vst [vmem:[%s226 + $0xa28] sm:$0xff] %v8351
      %8800 = vst [vmem:[%s226 + $0xa30] sm:$0xff] %v8352
      %8801 = vst [vmem:[%s226 + $0xa38] sm:$0xff] %v8353
      %8802 = vst.msk [vmem:[%s226 + $0xa40] sm:$0xff] %vm458, %v8354
      %8803 = vst [vmem:[%s226 + $0xa48] sm:$0xff] %v8355
      %8804 = vst [vmem:[%s226 + $0xa50] sm:$0xff] %v8356
      %8805 = vst [vmem:[%s226 + $0xa58] sm:$0xff] %v8357
      %8806 = vst [vmem:[%s226 + $0xa60] sm:$0xff] %v8358
      %8807 = vst [vmem:[%s226 + $0xa68] sm:$0xff] %v8359
      %8808 = vst [vmem:[%s226 + $0xa70] sm:$0xff] %v8360
      %8809 = vst.msk [vmem:[%s226 + $0xa78] sm:$0xff] %vm458, %v8361
      %8810 = vst [vmem:[%s226 + $0xa80] sm:$0xff] %v8362
      %8811 = vst [vmem:[%s226 + $0xa88] sm:$0xff] %v8363
      %8812 = vst [vmem:[%s226 + $0xa90] sm:$0xff] %v8364
      %8813 = vst [vmem:[%s226 + $0xa98] sm:$0xff] %v8365
      %8814 = vst [vmem:[%s226 + $0xaa0] sm:$0xff] %v8366
      %8815 = vst [vmem:[%s226 + $0xaa8] sm:$0xff] %v8367
      %8816 = vst.msk [vmem:[%s226 + $0xab0] sm:$0xff] %vm458, %v8368
      %8817 = vst [vmem:[%s226 + $0xab8] sm:$0xff] %v8369
      %8818 = vst [vmem:[%s226 + $0xac0] sm:$0xff] %v8370
      %8819 = vst [vmem:[%s226 + $0xac8] sm:$0xff] %v8371
      %8820 = vst [vmem:[%s226 + $0xad0] sm:$0xff] %v8372
      %8821 = vst [vmem:[%s226 + $0xad8] sm:$0xff] %v8373
      %8822 = vst [vmem:[%s226 + $0xae0] sm:$0xff] %v8374
      %8823 = vst.msk [vmem:[%s226 + $0xae8] sm:$0xff] %vm458, %v8375
      %8824 = vst [vmem:[%s226 + $0xaf0] sm:$0xff] %v8376
      %8825 = vst [vmem:[%s226 + $0xaf8] sm:$0xff] %v8377
      %8826 = vst [vmem:[%s226 + $0xb00] sm:$0xff] %v8378
      %8827 = vst [vmem:[%s226 + $0xb08] sm:$0xff] %v8379
      %8828 = vst [vmem:[%s226 + $0xb10] sm:$0xff] %v8380
      %8829 = vst [vmem:[%s226 + $0xb18] sm:$0xff] %v8381
      %8830 = vst.msk [vmem:[%s226 + $0xb20] sm:$0xff] %vm458, %v8382
      %8831 = vst [vmem:[%s226 + $0xb28] sm:$0xff] %v8383
      %8832 = vst [vmem:[%s226 + $0xb30] sm:$0xff] %v8384
      %8833 = vst [vmem:[%s226 + $0xb38] sm:$0xff] %v8385
      %8834 = vst [vmem:[%s226 + $0xb40] sm:$0xff] %v8386
      %8835 = vst [vmem:[%s226 + $0xb48] sm:$0xff] %v8387
      %8836 = vst [vmem:[%s226 + $0xb50] sm:$0xff] %v8388
      %8837 = vst.msk [vmem:[%s226 + $0xb58] sm:$0xff] %vm458, %v8389
      %8838 = vst [vmem:[%s226 + $0xb60] sm:$0xff] %v8390
      %8839 = vst [vmem:[%s226 + $0xb68] sm:$0xff] %v8391
      %8840 = vst [vmem:[%s226 + $0xb70] sm:$0xff] %v8392
      %8841 = vst [vmem:[%s226 + $0xb78] sm:$0xff] %v8393
      %8842 = vst [vmem:[%s226 + $0xb80] sm:$0xff] %v8394
      %8843 = vst [vmem:[%s226 + $0xb88] sm:$0xff] %v8395
      %8844 = vst.msk [vmem:[%s226 + $0xb90] sm:$0xff] %vm458, %v8396
      %8845 = vst [vmem:[%s226 + $0xb98] sm:$0xff] %v8397
      %8846 = vst [vmem:[%s226 + $0xba0] sm:$0xff] %v8398
      %8847 = vst [vmem:[%s226 + $0xba8] sm:$0xff] %v8399
      %8848 = vst [vmem:[%s226 + $0xbb0] sm:$0xff] %v8400
      %8849 = vst [vmem:[%s226 + $0xbb8] sm:$0xff] %v8401
      %8850 = vst [vmem:[%s226 + $0xbc0] sm:$0xff] %v8402
      %8851 = vst.msk [vmem:[%s226 + $0xbc8] sm:$0xff] %vm458, %v8403
      %8852 = vst [vmem:[%s226 + $0xbd0] sm:$0xff] %v8404
      %8853 = vst [vmem:[%s226 + $0xbd8] sm:$0xff] %v8405
      %8854 = vst [vmem:[%s226 + $0xbe0] sm:$0xff] %v8406
      %8855 = vst [vmem:[%s226 + $0xbe8] sm:$0xff] %v8407
      %8856 = vst [vmem:[%s226 + $0xbf0] sm:$0xff] %v8408
      %8857 = vst [vmem:[%s226 + $0xbf8] sm:$0xff] %v8409
      %8858 = vst.msk [vmem:[%s226 + $0xc00] sm:$0xff] %vm458, %v8410
      %8859 = vst [vmem:[%s226 + $0xc08] sm:$0xff] %v8411
      %8860 = vst [vmem:[%s226 + $0xc10] sm:$0xff] %v8412
      %8861 = vst [vmem:[%s226 + $0xc18] sm:$0xff] %v8413
      %8862 = vst [vmem:[%s226 + $0xc20] sm:$0xff] %v8414
      %8863 = vst [vmem:[%s226 + $0xc28] sm:$0xff] %v8415
      %8864 = vst [vmem:[%s226 + $0xc30] sm:$0xff] %v8416
      %8865 = vst.msk [vmem:[%s226 + $0xc38] sm:$0xff] %vm458, %v8417
      %8866 = vst [vmem:[%s226 + $0xc40] sm:$0xff] %v8418
      %8867 = vst [vmem:[%s226 + $0xc48] sm:$0xff] %v8419
      %8868 = vst [vmem:[%s226 + $0xc50] sm:$0xff] %v8420
      %8869 = vst [vmem:[%s226 + $0xc58] sm:$0xff] %v8421
      %8870 = vst [vmem:[%s226 + $0xc60] sm:$0xff] %v8422
      %8871 = vst [vmem:[%s226 + $0xc68] sm:$0xff] %v8423
      %8872 = vst.msk [vmem:[%s226 + $0xc70] sm:$0xff] %vm458, %v8424
      %8873 = vst [vmem:[%s226 + $0xc78] sm:$0xff] %v8425
      %8874 = vst [vmem:[%s226 + $0xc80] sm:$0xff] %v8426
      %8875 = vst [vmem:[%s226 + $0xc88] sm:$0xff] %v8427
      %8876 = vst [vmem:[%s226 + $0xc90] sm:$0xff] %v8428
      %8877 = vst [vmem:[%s226 + $0xc98] sm:$0xff] %v8429
      %8878 = vst [vmem:[%s226 + $0xca0] sm:$0xff] %v8430
      %8879 = vst.msk [vmem:[%s226 + $0xca8] sm:$0xff] %vm458, %v8431
      %8880 = vst [vmem:[%s226 + $0xcb0] sm:$0xff] %v8432
      %8881 = vst [vmem:[%s226 + $0xcb8] sm:$0xff] %v8433
      %8882 = vst [vmem:[%s226 + $0xcc0] sm:$0xff] %v8434
      %8883 = vst [vmem:[%s226 + $0xcc8] sm:$0xff] %v8435
      %8884 = vst [vmem:[%s226 + $0xcd0] sm:$0xff] %v8436
      %8885 = vst [vmem:[%s226 + $0xcd8] sm:$0xff] %v8437
      %8886 = vst.msk [vmem:[%s226 + $0xce0] sm:$0xff] %vm458, %v8438
      %8887 = vst [vmem:[%s226 + $0xce8] sm:$0xff] %v8439
      %8888 = vst [vmem:[%s226 + $0xcf0] sm:$0xff] %v8440
      %8889 = vst [vmem:[%s226 + $0xcf8] sm:$0xff] %v8441
      %8890 = vst [vmem:[%s226 + $0xd00] sm:$0xff] %v8442
      %8891 = vst [vmem:[%s226 + $0xd08] sm:$0xff] %v8443
      %8892 = vst [vmem:[%s226 + $0xd10] sm:$0xff] %v8444
      %8893 = vst.msk [vmem:[%s226 + $0xd18] sm:$0xff] %vm458, %v8445
      %8894 = vst [vmem:[%s226 + $0xd20] sm:$0xff] %v8446
      %8895 = vst [vmem:[%s226 + $0xd28] sm:$0xff] %v8447
      %8896 = vst [vmem:[%s226 + $0xd30] sm:$0xff] %v8448
      %8897 = vst [vmem:[%s226 + $0xd38] sm:$0xff] %v8449
      %8898 = vst [vmem:[%s226 + $0xd40] sm:$0xff] %v8450
      %8899 = vst [vmem:[%s226 + $0xd48] sm:$0xff] %v8451
      %8900 = vst.msk [vmem:[%s226 + $0xd50] sm:$0xff] %vm458, %v8452
      %8901 = vst [vmem:[%s226 + $0xd58] sm:$0xff] %v8453
      %8902 = vst [vmem:[%s226 + $0xd60] sm:$0xff] %v8454
      %8903 = vst [vmem:[%s226 + $0xd68] sm:$0xff] %v8455
      %8904 = vst [vmem:[%s226 + $0xd70] sm:$0xff] %v8456
      %8905 = vst [vmem:[%s226 + $0xd78] sm:$0xff] %v8457
      %8906 = vst [vmem:[%s226 + $0xd80] sm:$0xff] %v8458
      %8907 = vst.msk [vmem:[%s226 + $0xd88] sm:$0xff] %vm458, %v8459
      %8908 = vst [vmem:[%s226 + $0xd90] sm:$0xff] %v8460
      %8909 = vst [vmem:[%s226 + $0xd98] sm:$0xff] %v8461
      %8910 = vst [vmem:[%s226 + $0xda0] sm:$0xff] %v8462
      %8911 = vst [vmem:[%s226 + $0xda8] sm:$0xff] %v8463
      %8912 = vst [vmem:[%s226 + $0xdb0] sm:$0xff] %v8464
      %8913 = vst [vmem:[%s226 + $0xdb8] sm:$0xff] %v8465
      %8914 = vst.msk [vmem:[%s226 + $0xdc0] sm:$0xff] %vm458, %v8466
      %8915 = vst [vmem:[%s226 + $0xdc8] sm:$0xff] %v8467
      %8916 = vst [vmem:[%s226 + $0xdd0] sm:$0xff] %v8468
      %8917 = vst [vmem:[%s226 + $0xdd8] sm:$0xff] %v8469
      %8918 = vst [vmem:[%s226 + $0xde0] sm:$0xff] %v8470
      %8919 = vst [vmem:[%s226 + $0xde8] sm:$0xff] %v8471
      %8920 = vst [vmem:[%s226 + $0xdf0] sm:$0xff] %v8472
      %8921 = vst.msk [vmem:[%s226 + $0xdf8] sm:$0xff] %vm458, %v8473
      %s8922 = smul.u32 64, %s15
      %p8923 = scmp.lt.s32.totalorder %s8922, 127
      %s8924 = scalar_select %p8923, %s8922, 127
      %s8925 = smul.addr %s8924, 7
      %s8926 = smul.addr %s8925, 8
      %s8927 = scalar_lea.vmem %s4, %s8926
      // Predicated region
      $region37: #{bn_relu_conv1x1_bn.1} parent=35 // pred_check
        %p8928 = pneg %p127
      $region38: #{bn_relu_conv1x1_bn.1} parent=35 // pred_check_branch
        %8930 = sbr.rel (%p8928) target = $region40
      $region39: #{bn_relu_conv1x1_bn.1} parent=35 // pred_region
        %s8931 = smul.u32 64, %s15
      $region40: #{bn_relu_conv1x1_bn.1} parent=35 // pred_fallthru
        _
    $region36: #{bn_relu_conv1x1_bn.1} parent=5 // pred_fallthru
      _
    %p8932 = scmp.le.s32.totalorder 2, %s10
    // Predicated region
    $region41: #{bn_relu_conv1x1_bn.1} parent=5 // pred_check
      %p8933 = pneg %p8932
    $region42: #{bn_relu_conv1x1_bn.1} parent=5 // pred_check_branch
      %8935 = sbr.rel (%p8933) target = $region44
    $region43: #{bn_relu_conv1x1_bn.1} parent=5 // pred_region
      %s8936 = ssub.s32 %s10, 2
      // Predicated region
      $region45: #{bn_relu_conv1x1_bn.1} parent=43 // pred_check
        %p8937 = pneg %p133
      $region46: #{bn_relu_conv1x1_bn.1} parent=43 // pred_check_branch
        %8939 = sbr.rel (%p8937) target = $region48
      $region47: #{bn_relu_conv1x1_bn.1} parent=43 // pred_region
        %s8940 = smul.u32 64, %s16
        %p8941 = scmp.lt.s32.totalorder %s8940, 127
        %s8942 = scalar_select %p8941, %s8940, 127
        %s8943 = smul.addr %s8942, 7
        %s8944 = smul.addr %s8943, 8
        %s8945 = scalar_lea.vmem %s4, %s8944
      $region48: #{bn_relu_conv1x1_bn.1} parent=43 // pred_fallthru
        _
    $region44: #{bn_relu_conv1x1_bn.1} parent=5 // pred_fallthru
      _
  $region6: #{bn_relu_conv1x1_bn.1} parent=0 // loop_footer
    %s14 = sadd.s32 1, %s10
  $region7: #{bn_relu_conv1x1_bn.1} parent=0 // loop_footer_branch
    %9 = sbr.rel target = $region3
  $region8: #{bn_relu_conv1x1_bn.1} parent=0 // loop_exit
    _

</llo_original>
